<compile_context>
chip_gen: v6e
topology: v6e:2x2x1
jax: 0.10.0
libtpu: 0.0.40
codegen_flags: <defaults>
</compile_context>

<pallas_src>
import functools
from typing import NamedTuple

import jax
import jax.numpy as jnp
from jax.experimental import pallas as pl
from jax.experimental.pallas import tpu as pltpu


def _device_kind():
    try:
        return jax.devices()[0].device_kind.lower()
    except Exception:
        return ""


_KIND = _device_kind()
# 256-wide lane tiles on v6e/v7x (2x256^2 MXU); 128 on older parts.
TN = 128 if any(v in _KIND for v in ("v2", "v3", "v4", "v5")) else 256
TM_CAP = 512                 # row-tile cap: most layers become one M step
MULTI_CORE = "v7" in _KIND   # v7x: 2 TCs -> keep >= 2 parallel grid blocks
SINGLE_K_MAX = 2048          # padded-K threshold for the single-K-step kernel
ACT_DTYPE = jnp.bfloat16     # inter-layer activation dtype
NEG_BIG = -3.0e38            # "no ReLU" floor value


def _round_up(x, m):
    return (x + m - 1) // m * m


def _row_tile(m):
    return min(TM_CAP, _round_up(m, 16))


def _padded_rows(m):
    return _round_up(m, _row_tile(m))


# ---------------------------------------------------------------------------
# Activation container: padded 2-D slab + logical NHWC dims.
# Valid data lives in slab[:n*h*w, :c]; padded columns may hold junk but every
# consumer either multiplies them by zero-padded weight rows or slices them.
# ---------------------------------------------------------------------------
class Act(NamedTuple):
    slab: jax.Array      # (Mp, Np) bf16
    n: int
    h: int
    w: int
    c: int


def act_nhwc(a):
    m = a.n * a.h * a.w
    return a.slab[:m, :a.c].reshape(a.n, a.h, a.w, a.c)


def act_from_nhwc(x):
    n, h, w, c = x.shape
    m = n * h * w
    slab = jnp.pad(x.reshape(m, c).astype(ACT_DTYPE),
                   ((0, _padded_rows(m) - m), (0, _round_up(c, TN) - c)))
    return Act(slab, n, h, w, c)


# ---------------------------------------------------------------------------
# Pallas kernels
# ---------------------------------------------------------------------------
def _mm_single_kernel(*refs, apply_relu, has_res, has_floor):
    """y = act((x @ w) * scale + shift [+ residual]); whole K in one step."""
    x_ref, w_ref, s_ref, t_ref = refs[:4]
    i = 4
    f_ref = r_ref = None
    if has_floor:
        f_ref = refs[i]; i += 1
    if has_res:
        r_ref = refs[i]; i += 1
    o_ref = refs[i]
    y = jnp.dot(x_ref[...], w_ref[...], preferred_element_type=jnp.float32)
    y = y * s_ref[...] + t_ref[...]
    if has_res:
        y = y + r_ref[...].astype(jnp.float32)
    if has_floor:
        y = jnp.maximum(y, f_ref[...])
    elif apply_relu:
        y = jnp.maximum(y, 0.0)
    o_ref[...] = y.astype(o_ref.dtype)


def _mm_multi_kernel(*refs, apply_relu, has_res, has_floor):
    """Same as above but accumulating over a K grid axis in an f32 scratch."""
    x_ref, w_ref, s_ref, t_ref = refs[:4]
    i = 4
    f_ref = r_ref = None
    if has_floor:
        f_ref = refs[i]; i += 1
    if has_res:
        r_ref = refs[i]; i += 1
    o_ref, acc_ref = refs[i], refs[i + 1]
    k = pl.program_id(2)

    @pl.when(k == 0)
    def _():
        acc_ref[...] = jnp.zeros_like(acc_ref)

    acc_ref[...] += jnp.dot(x_ref[...], w_ref[...],
                            preferred_element_type=jnp.float32)

    @pl.when(k == pl.num_programs(2) - 1)
    def _():
        y = acc_ref[...] * s_ref[...] + t_ref[...]
        if has_res:
            y = y + r_ref[...].astype(jnp.float32)
        if has_floor:
            y = jnp.maximum(y, f_ref[...])
        elif apply_relu:
            y = jnp.maximum(y, 0.0)
        o_ref[...] = y.astype(o_ref.dtype)


def fused_matmul(x2d, m_rows, cp, *, relu=False, residual=None, floor=None,
                 out_dtype=ACT_DTYPE):
    """Returns the full padded (Mp, Np) slab of act((x @ W)*scale + shift
    [+ residual]).  `x2d` may already be an exactly padded (Mp, Kp) slab
    (consumed in place, no pad/slice) or an unpadded (m_rows, K) matrix."""
    Kp, Np = cp['w'].shape
    tm = _row_tile(m_rows)
    Mp = _round_up(m_rows, tm)
    if MULTI_CORE and Mp // tm == 1 and Np // TN == 1 and Mp >= 32:
        tm = Mp // 2            # >= 2 parallel blocks so both v7x TCs work

    x2d = x2d.astype(ACT_DTYPE)
    if x2d.shape != (Mp, Kp):
        x2d = jnp.pad(x2d, ((0, Mp - x2d.shape[0]), (0, Kp - x2d.shape[1])))

    has_res = residual is not None
    has_floor = floor is not None
    args = [x2d, cp['w'], cp['scale'], cp['shift']]
    if has_floor:
        args.append(floor)
    if has_res:
        assert residual.shape == (Mp, Np), (residual.shape, (Mp, Np))
        args.append(residual)

    if Kp <= SINGLE_K_MAX:
        grid = (Mp // tm, Np // TN)
        in_specs = [
            pl.BlockSpec((tm, Kp), lambda i, j: (i, 0)),
            pl.BlockSpec((Kp, TN), lambda i, j: (0, j)),
            pl.BlockSpec((1, TN), lambda i, j: (0, j)),
            pl.BlockSpec((1, TN), lambda i, j: (0, j)),
        ]
        if has_floor:
            in_specs.append(pl.BlockSpec((1, TN), lambda i, j: (0, j)))
        if has_res:
            in_specs.append(pl.BlockSpec((tm, TN), lambda i, j: (i, j)))
        out = pl.pallas_call(
            functools.partial(_mm_single_kernel, apply_relu=relu,
                              has_res=has_res, has_floor=has_floor),
            out_shape=jax.ShapeDtypeStruct((Mp, Np), out_dtype),
            grid=grid,
            in_specs=in_specs,
            out_specs=pl.BlockSpec((tm, TN), lambda i, j: (i, j)),
            compiler_params=pltpu.CompilerParams(
                dimension_semantics=("parallel", "parallel")),
        )(*args)
    else:
        tk = TN
        grid = (Mp // tm, Np // TN, Kp // tk)
        in_specs = [
            pl.BlockSpec((tm, tk), lambda i, j, k: (i, k)),
            pl.BlockSpec((tk, TN), lambda i, j, k: (k, j)),
            pl.BlockSpec((1, TN), lambda i, j, k: (0, j)),
            pl.BlockSpec((1, TN), lambda i, j, k: (0, j)),
        ]
        if has_floor:
            in_specs.append(pl.BlockSpec((1, TN), lambda i, j, k: (0, j)))
        if has_res:
            in_specs.append(pl.BlockSpec((tm, TN), lambda i, j, k: (i, j)))
        out = pl.pallas_call(
            functools.partial(_mm_multi_kernel, apply_relu=relu,
                              has_res=has_res, has_floor=has_floor),
            out_shape=jax.ShapeDtypeStruct((Mp, Np), out_dtype),
            grid=grid,
            in_specs=in_specs,
            out_specs=pl.BlockSpec((tm, TN), lambda i, j, k: (i, j)),
            scratch_shapes=[pltpu.VMEM((tm, TN), jnp.float32)],
            compiler_params=pltpu.CompilerParams(
                dimension_semantics=("parallel", "parallel", "arbitrary")),
        )(*args)
    return out


def _max9_kernel(*refs):
    o_ref = refs[-1]
    m = refs[0][...]
    for r in refs[1:-1]:
        m = jnp.maximum(m, r[...])
    o_ref[...] = m


def maxpool2d(x, k=3, stride=2, pad=1):
    """MaxPool2d(kernel=3, stride=2, padding=1) on NHWC, lane-dense slabs."""
    # TODO(synk): form the k*k shifted windows inside the kernel from a single
    #             padded NHWC input to cut the wrapper-side 9-slab traffic.
    N, H, W, C = x.shape
    Ho = (H + 2 * pad - k) // stride + 1
    Wo = (W + 2 * pad - k) // stride + 1
    xp = jnp.pad(x, ((0, 0), (pad, pad), (pad, pad), (0, 0)),
                 constant_values=-jnp.inf)
    R, L = N * Ho, Wo * C
    Lp = _round_up(L, 128)
    if R <= 256:
        TR = _round_up(R, 8); Rp = TR
    else:
        TR = 256; Rp = _round_up(R, TR)
    slabs = []
    for i in range(k):
        for j in range(k):
            s = xp[:, i:i + stride * (Ho - 1) + 1:stride,
                   j:j + stride * (Wo - 1) + 1:stride, :].reshape(R, L)
            if (Rp, Lp) != (R, L):
                s = jnp.pad(s, ((0, Rp - R), (0, Lp - L)))
            slabs.append(s)
    out = pl.pallas_call(
        _max9_kernel,
        out_shape=jax.ShapeDtypeStruct((Rp, Lp), x.dtype),
        grid=(Rp // TR,),
        in_specs=[pl.BlockSpec((TR, Lp), lambda r: (r, 0)) for _ in slabs],
        out_specs=pl.BlockSpec((TR, Lp), lambda r: (r, 0)),
        compiler_params=pltpu.CompilerParams(dimension_semantics=("parallel",)),
    )(*slabs)
    return out[:R, :L].reshape(N, Ho, Wo, C)


def _mean_kernel(x_ref, o_ref):
    o_ref[...] = jnp.mean(x_ref[...].astype(jnp.float32), axis=1).astype(o_ref.dtype)


def global_avgpool(act):
    """AdaptiveAvgPool2d((1,1)) + flatten.  Channel-tiled grid; output keeps
    the fc-expected channel padding so the classifier needs no extra pad."""
    m = act.n * act.h * act.w
    Np = act.slab.shape[1]
    x3 = act.slab[:m, :].reshape(act.n, act.h * act.w, Np)
    return pl.pallas_call(
        _mean_kernel,
        out_shape=jax.ShapeDtypeStruct((act.n, Np), jnp.float32),
        grid=(Np // TN,),
        in_specs=[pl.BlockSpec((act.n, act.h * act.w, TN),
                               lambda c: (0, 0, c))],
        out_specs=pl.BlockSpec((act.n, TN), lambda c: (0, c)),
        compiler_params=pltpu.CompilerParams(dimension_semantics=("parallel",)),
    )(x3)


# ---------------------------------------------------------------------------
# Glue: im2col, bottleneck blocks
# ---------------------------------------------------------------------------
def _im2col(x, kh, kw, stride, pad):
    # TODO(synk): accumulate the kh*kw taps inside the matmul kernel (manual
    #             DMA from a pl.ANY HBM ref) instead of materializing this.
    N, H, W, C = x.shape
    Ho = (H + 2 * pad - kh) // stride + 1
    Wo = (W + 2 * pad - kw) // stride + 1
    xp = jnp.pad(x, ((0, 0), (pad, pad), (pad, pad), (0, 0)))
    cols = []
    for i in range(kh):
        for j in range(kw):
            cols.append(xp[:, i:i + stride * (Ho - 1) + 1:stride,
                           j:j + stride * (Wo - 1) + 1:stride, :])
    patches = jnp.concatenate(cols, axis=-1)
    return patches.reshape(N * Ho * Wo, kh * kw * C), Ho, Wo


def bottleneck(x_act, p):
    n, h, w = x_act.n, x_act.h, x_act.w
    m_in = n * h * w
    stride = p['stride']
    c2_cin = p['conv2']['cin']

    if 'fused1' in p:
        # conv1 (1x1, ReLU) + stride-1 downsample fused in one matmul; the
        # per-column floor vector applies ReLU only to the conv1 half.
        fcp = p['fused1']
        fused = fused_matmul(x_act.slab, m_in, fcp, floor=fcp['floor'])
        np_res = _round_up(p['conv3']['cout'], TN)
        res_slab = fused if fused.shape[1] == np_res else fused[:, :np_res]
        c1_nhwc = fused[:m_in, fcp['split']:fcp['split'] + c2_cin].reshape(
            n, h, w, c2_cin)
    else:
        c1 = fused_matmul(x_act.slab, m_in, p['conv1'], relu=True)
        c1_nhwc = c1[:m_in, :c2_cin].reshape(n, h, w, c2_cin)
        if 'down' in p:
            # TODO(synk): stride-2 downsample kept separate (fusing with conv1
            #             would 4x its MXU work and need a strided post-slice).
            xs = act_nhwc(x_act)[:, ::stride, ::stride, :]
            _, hd, wd, _ = xs.shape
            res_slab = fused_matmul(xs.reshape(n * hd * wd, x_act.c),
                                    n * hd * wd, p['down'])
        else:
            res_slab = x_act.slab   # identity — reuse the padded slab directly

    cols2, ho, wo = _im2col(c1_nhwc, 3, 3, stride, 1)
    m2 = n * ho * wo
    c2 = fused_matmul(cols2, m2, p['conv2'], relu=True)
    # conv3 + bn3 + residual add + ReLU all fused in one matmul epilogue;
    # c2 slab is consumed in place (already padded to conv3's Kp).
    c3 = fused_matmul(c2, m2, p['conv3'], relu=True, residual=res_slab)
    return Act(c3, n, ho, wo, p['conv3']['cout'])


# ---------------------------------------------------------------------------
# Deterministic parameter init (fresh-module semantics: BN weight=1, bias=0,
# running_mean=0, running_var=1; kaiming-normal conv weights; uniform fc).
# ---------------------------------------------------------------------------
def _make_bn(c):
    return (jnp.ones((c,), jnp.float32), jnp.zeros((c,), jnp.float32),
            jnp.zeros((c,), jnp.float32), jnp.ones((c,), jnp.float32), 1e-5)


def _conv_w(key, cout, cin, kh, kw):
    std = (2.0 / (cin * kh * kw)) ** 0.5
    return jax.random.normal(key, (cout, cin, kh, kw), jnp.float32) * std


def init_resnet_params(key, base=16, blocks_per_layer=(3, 4, 6, 3),
                       num_classes=7):
    expansion = 4
    keys = iter(jax.random.split(key, 256))
    params = {'conv1_w': _conv_w(next(keys), base, 3, 7, 7),
              'bn1': _make_bn(base), 'layers': []}
    inplanes = base
    for li, nblocks in enumerate(blocks_per_layer):
        planes = base * (2 ** li)
        layer_stride = 1 if li == 0 else 2
        blocks = []
        for bi in range(nblocks):
            s = layer_stride if bi == 0 else 1
            p = {'conv1_w': _conv_w(next(keys), planes, inplanes, 1, 1),
                 'bn1': _make_bn(planes),
                 'conv2_w': _conv_w(next(keys), planes, planes, 3, 3),
                 'bn2': _make_bn(planes),
                 'conv3_w': _conv_w(next(keys), planes * expansion, planes, 1, 1),
                 'bn3': _make_bn(planes * expansion),
                 'stride': s}
            if s != 1 or inplanes != planes * expansion:
                p['down_w'] = _conv_w(next(keys), planes * expansion, inplanes, 1, 1)
                p['down_bn'] = _make_bn(planes * expansion)
            blocks.append(p)
            inplanes = planes * expansion
        params['layers'].append(blocks)
    feat = inplanes
    kfc_w, kfc_b = jax.random.split(next(keys))
    bound = 1.0 / (feat ** 0.5)
    params['fc_w'] = jax.random.uniform(kfc_w, (num_classes, feat),
                                        jnp.float32, -bound, bound)
    params['fc_b'] = jax.random.uniform(kfc_b, (num_classes,),
                                        jnp.float32, -bound, bound)
    return params


# ---------------------------------------------------------------------------
# One-time parameter preparation: fold BN, reshape to (K, Cout), cast to bf16,
# pad to device tile multiples, fuse conv1+downsample weights where applicable.
# NOTE: tile sizes are resolved from the local device at import time; prepare
# params on the same platform you run on.
# ---------------------------------------------------------------------------
def _fold_bn(w_pt, bn):
    cout, cin, kh, kw = w_pt.shape
    wmat = jnp.transpose(w_pt, (2, 3, 1, 0)).reshape(kh * kw * cin, cout)
    gamma, beta, mean, var, eps = bn
    scale = gamma / jnp.sqrt(var + eps)
    shift = beta - mean * scale
    return wmat, scale, shift, kh, kw, cin, cout


def _pack(wmat, scale, shift, kh, kw, cin, cout):
    K = wmat.shape[0]
    Kp, Np = _round_up(K, TN), _round_up(cout, TN)
    return {
        'w': jnp.pad(wmat.astype(jnp.bfloat16), ((0, Kp - K), (0, Np - cout))),
        'scale': jnp.pad(scale.reshape(1, cout).astype(jnp.float32),
                         ((0, 0), (0, Np - cout))),
        'shift': jnp.pad(shift.reshape(1, cout).astype(jnp.float32),
                         ((0, 0), (0, Np - cout))),
        'kh': kh, 'kw': kw, 'cin': cin, 'cout': cout, 'k': K,
    }


def _prep_conv(w_pt, bn):
    return _pack(*_fold_bn(w_pt, bn))


def _prep_fused1(down_w, down_bn, c1_w, c1_bn):
    """Fuse a stride-1 downsample 1x1 conv (columns first) with conv1."""
    wd, sd, td, _, _, cin, cd = _fold_bn(down_w, down_bn)
    w1, s1, t1, _, _, _, c1 = _fold_bn(c1_w, c1_bn)
    cp = _pack(jnp.concatenate([wd, w1], axis=1),
               jnp.concatenate([sd, s1]), jnp.concatenate([td, t1]),
               1, 1, cin, cd + c1)
    Np = cp['w'].shape[1]
    floor = jnp.concatenate([jnp.full((cd,), NEG_BIG, jnp.float32),
                             jnp.zeros((c1,), jnp.float32)])
    cp['floor'] = jnp.pad(floor.reshape(1, cd + c1), ((0, 0), (0, Np - cd - c1)))
    cp['split'] = cd
    return cp


def _prep_linear(w, b):
    nout, K = w.shape
    return _pack(w.T, jnp.ones((nout,), jnp.float32), b.astype(jnp.float32),
                 1, 1, K, nout)


def prepare_params(raw):
    prep = {'conv1': _prep_conv(raw['conv1_w'], raw['bn1']), 'layers': []}
    for blocks in raw['layers']:
        pblocks = []
        for b in blocks:
            pb = {'conv2': _prep_conv(b['conv2_w'], b['bn2']),
                  'conv3': _prep_conv(b['conv3_w'], b['bn3']),
                  'stride': b['stride']}
            if 'down_w' in b and b['stride'] == 1:
                pb['fused1'] = _prep_fused1(b['down_w'], b['down_bn'],
                                            b['conv1_w'], b['bn1'])
            else:
                pb['conv1'] = _prep_conv(b['conv1_w'], b['bn1'])
                if 'down_w' in b:
                    pb['down'] = _prep_conv(b['down_w'], b['down_bn'])
            pblocks.append(pb)
        prep['layers'].append(pblocks)
    prep['fc'] = _prep_linear(raw['fc_w'], raw['fc_b'])
    return prep


# ---------------------------------------------------------------------------
# Forward pass (mirrors ResNet.forward: features -> avgpool -> flatten ->
# embedding_recorder (identity) -> classifier).  norm_par is None -> no
# input normalization.
# ---------------------------------------------------------------------------
def resnet_forward(prepared, x_nchw):
    x = jnp.transpose(x_nchw, (0, 2, 3, 1)).astype(ACT_DTYPE)   # NCHW -> NHWC
    n = x.shape[0]
    # stem: 7x7 s2 conv + bn + relu
    cols, ho, wo = _im2col(x, 7, 7, 2, 3)
    stem = fused_matmul(cols, n * ho * wo, prepared['conv1'], relu=True)
    act = Act(stem, n, ho, wo, prepared['conv1']['cout'])
    # maxpool 3x3 s2 p1
    act = act_from_nhwc(maxpool2d(act_nhwc(act)))
    # layer1..layer4
    for blocks in prepared['layers']:
        for p in blocks:
            act = bottleneck(act, p)
    # avgpool + flatten (+ embedding_recorder identity)
    emb = global_avgpool(act)                      # (N, Np) f32, channel-padded
    # classifier: Linear(feat -> num_classes) with bias
    logits = fused_matmul(emb, n, prepared['fc'], out_dtype=jnp.float32)
    return logits[:n, :prepared['fc']['cout']]


if __name__ == "__main__":
    key = jax.random.PRNGKey(0)
    kp, kx = jax.random.split(key)
    raw_params = init_resnet_params(kp, base=16, blocks_per_layer=(3, 4, 6, 3),
                                    num_classes=7)
    params = prepare_params(raw_params)           # one-time weight/BN prep
    # NCHW input, like the PyTorch module.
    x = jax.random.normal(kx, (2, 3, 32, 32), jnp.float32)

    fwd = jax.jit(lambda inp: resnet_forward(params, inp))
    logits = jax.block_until_ready(fwd(x))

    assert logits.shape == (2, 7), logits.shape
    assert bool(jnp.all(jnp.isfinite(logits)))
    print("KERNEL_OK")
</pallas_src>

<mosaic_0001>
module attributes {stable_mosaic.version = 11 : i64} {
  func.func @_mm_single_kernel(%arg0: i32, %arg1: i32, %arg2: memref<512x256xbf16, #tpu.memory_space<vmem>>, %arg3: memref<256x256xbf16, #tpu.memory_space<vmem>>, %arg4: memref<1x256xf32, #tpu.memory_space<vmem>>, %arg5: memref<1x256xf32, #tpu.memory_space<vmem>>, %arg6: memref<512x256xbf16, #tpu.memory_space<vmem>>) attributes {dimension_semantics = [#tpu.dimension_semantics<parallel>, #tpu.dimension_semantics<parallel>], iteration_bounds = array<i64: 1, 1>, scalar_prefetch = 0 : i64, scratch_operands = 0 : i64, tpu.core_type = #tpu.core_type<tc>, window_params = [{transform_indices = @transform_0, window_bounds = array<i64: 512, 256>}, {transform_indices = @transform_1, window_bounds = array<i64: 256, 256>}, {transform_indices = @transform_2, window_bounds = array<i64: 1, 256>}, {transform_indices = @transform_3, window_bounds = array<i64: 1, 256>}, {transform_indices = @transform_4, window_bounds = array<i64: 512, 256>}]} {
    %c0 = arith.constant 0 : index
    %c0_0 = arith.constant 0 : index
    %0 = vector.load %arg2[%c0, %c0_0] : memref<512x256xbf16, #tpu.memory_space<vmem>>, vector<512x256xbf16>
    %c0_1 = arith.constant 0 : index
    %c0_2 = arith.constant 0 : index
    %1 = vector.load %arg3[%c0_1, %c0_2] : memref<256x256xbf16, #tpu.memory_space<vmem>>, vector<256x256xbf16>
    %cst = arith.constant dense<0.000000e+00> : vector<512x256xf32>
    %2 = tpu.matmul %0, %1, %cst {dimension_numbers = #tpu.dot_dimension_numbers<[1], [0], [0], [1], [0, 0, 1, 1], [], []>} : vector<512x256xbf16>, vector<256x256xbf16>, vector<512x256xf32> -> vector<512x256xf32>
    %c0_3 = arith.constant 0 : index
    %c0_4 = arith.constant 0 : index
    %3 = vector.load %arg4[%c0_3, %c0_4] : memref<1x256xf32, #tpu.memory_space<vmem>>, vector<1x256xf32>
    %4 = vector.broadcast %3 : vector<1x256xf32> to vector<512x256xf32>
    %5 = arith.mulf %2, %4 : vector<512x256xf32>
    %c0_5 = arith.constant 0 : index
    %c0_6 = arith.constant 0 : index
    %6 = vector.load %arg5[%c0_5, %c0_6] : memref<1x256xf32, #tpu.memory_space<vmem>>, vector<1x256xf32>
    %7 = vector.broadcast %6 : vector<1x256xf32> to vector<512x256xf32>
    %8 = arith.addf %5, %7 : vector<512x256xf32>
    %cst_7 = arith.constant 0.000000e+00 : f32
    %9 = vector.broadcast %cst_7 : f32 to vector<512x256xf32>
    %10 = arith.maximumf %8, %9 : vector<512x256xf32>
    %11 = arith.truncf %10 : vector<512x256xf32> to vector<512x256xbf16>
    %c0_8 = arith.constant 0 : index
    %c0_9 = arith.constant 0 : index
    %12 = vector.load %arg6[%c0_8, %c0_9] : memref<512x256xbf16, #tpu.memory_space<vmem>>, vector<512x256xbf16>
    tpu.vector_store %arg6[%c0_8, %c0_9], %11 {strides = array<i32>} : memref<512x256xbf16, #tpu.memory_space<vmem>>, vector<512x256xbf16>,
    return
  }
  func.func @transform_0(%arg0: i32, %arg1: i32) -> (i32, i32) {
    %c0_i32 = arith.constant 0 : i32
    %c0_i32_0 = arith.constant 0 : i32
    return %arg0, %c0_i32 : i32, i32
  }
  func.func @transform_1(%arg0: i32, %arg1: i32) -> (i32, i32) {
    %c0_i32 = arith.constant 0 : i32
    %c0_i32_0 = arith.constant 0 : i32
    return %c0_i32, %arg1 : i32, i32
  }
  func.func @transform_2(%arg0: i32, %arg1: i32) -> (i32, i32) {
    %c0_i32 = arith.constant 0 : i32
    %c0_i32_0 = arith.constant 0 : i32
    return %c0_i32, %arg1 : i32, i32
  }
  func.func @transform_3(%arg0: i32, %arg1: i32) -> (i32, i32) {
    %c0_i32 = arith.constant 0 : i32
    %c0_i32_0 = arith.constant 0 : i32
    return %c0_i32, %arg1 : i32, i32
  }
  func.func @transform_4(%arg0: i32, %arg1: i32) -> (i32, i32) {
    %c0_i32 = arith.constant 0 : i32
    return %arg0, %arg1 : i32, i32
  }
}

module attributes {stable_mosaic.version = 11 : i64} {
  func.func @_max9_kernel(%arg0: i32, %arg1: memref<16x128xbf16, #tpu.memory_space<vmem>>, %arg2: memref<16x128xbf16, #tpu.memory_space<vmem>>, %arg3: memref<16x128xbf16, #tpu.memory_space<vmem>>, %arg4: memref<16x128xbf16, #tpu.memory_space<vmem>>, %arg5: memref<16x128xbf16, #tpu.memory_space<vmem>>, %arg6: memref<16x128xbf16, #tpu.memory_space<vmem>>, %arg7: memref<16x128xbf16, #tpu.memory_space<vmem>>, %arg8: memref<16x128xbf16, #tpu.memory_space<vmem>>, %arg9: memref<16x128xbf16, #tpu.memory_space<vmem>>, %arg10: memref<16x128xbf16, #tpu.memory_space<vmem>>) attributes {dimension_semantics = [#tpu.dimension_semantics<parallel>], iteration_bounds = array<i64: 1>, scalar_prefetch = 0 : i64, scratch_operands = 0 : i64, tpu.core_type = #tpu.core_type<tc>, window_params = [{transform_indices = @transform_0, window_bounds = array<i64: 16, 128>}, {transform_indices = @transform_1, window_bounds = array<i64: 16, 128>}, {transform_indices = @transform_2, window_bounds = array<i64: 16, 128>}, {transform_indices = @transform_3, window_bounds = array<i64: 16, 128>}, {transform_indices = @transform_4, window_bounds = array<i64: 16, 128>}, {transform_indices = @transform_5, window_bounds = array<i64: 16, 128>}, {transform_indices = @transform_6, window_bounds = array<i64: 16, 128>}, {transform_indices = @transform_7, window_bounds = array<i64: 16, 128>}, {transform_indices = @transform_8, window_bounds = array<i64: 16, 128>}, {transform_indices = @transform_9, window_bounds = array<i64: 16, 128>}]} {
    %c0 = arith.constant 0 : index
    %c0_0 = arith.constant 0 : index
    %0 = vector.load %arg1[%c0, %c0_0] : memref<16x128xbf16, #tpu.memory_space<vmem>>, vector<16x128xbf16>
    %c0_1 = arith.constant 0 : index
    %c0_2 = arith.constant 0 : index
    %1 = vector.load %arg2[%c0_1, %c0_2] : memref<16x128xbf16, #tpu.memory_space<vmem>>, vector<16x128xbf16>
    %2 = arith.maximumf %0, %1 : vector<16x128xbf16>
    %c0_3 = arith.constant 0 : index
    %c0_4 = arith.constant 0 : index
    %3 = vector.load %arg3[%c0_3, %c0_4] : memref<16x128xbf16, #tpu.memory_space<vmem>>, vector<16x128xbf16>
    %4 = arith.maximumf %2, %3 : vector<16x128xbf16>
    %c0_5 = arith.constant 0 : index
    %c0_6 = arith.constant 0 : index
    %5 = vector.load %arg4[%c0_5, %c0_6] : memref<16x128xbf16, #tpu.memory_space<vmem>>, vector<16x128xbf16>
    %6 = arith.maximumf %4, %5 : vector<16x128xbf16>
    %c0_7 = arith.constant 0 : index
    %c0_8 = arith.constant 0 : index
    %7 = vector.load %arg5[%c0_7, %c0_8] : memref<16x128xbf16, #tpu.memory_space<vmem>>, vector<16x128xbf16>
    %8 = arith.maximumf %6, %7 : vector<16x128xbf16>
    %c0_9 = arith.constant 0 : index
    %c0_10 = arith.constant 0 : index
    %9 = vector.load %arg6[%c0_9, %c0_10] : memref<16x128xbf16, #tpu.memory_space<vmem>>, vector<16x128xbf16>
    %10 = arith.maximumf %8, %9 : vector<16x128xbf16>
    %c0_11 = arith.constant 0 : index
    %c0_12 = arith.constant 0 : index
    %11 = vector.load %arg7[%c0_11, %c0_12] : memref<16x128xbf16, #tpu.memory_space<vmem>>, vector<16x128xbf16>
    %12 = arith.maximumf %10, %11 : vector<16x128xbf16>
    %c0_13 = arith.constant 0 : index
    %c0_14 = arith.constant 0 : index
    %13 = vector.load %arg8[%c0_13, %c0_14] : memref<16x128xbf16, #tpu.memory_space<vmem>>, vector<16x128xbf16>
    %14 = arith.maximumf %12, %13 : vector<16x128xbf16>
    %c0_15 = arith.constant 0 : index
    %c0_16 = arith.constant 0 : index
    %15 = vector.load %arg9[%c0_15, %c0_16] : memref<16x128xbf16, #tpu.memory_space<vmem>>, vector<16x128xbf16>
    %16 = arith.maximumf %14, %15 : vector<16x128xbf16>
    %c0_17 = arith.constant 0 : index
    %c0_18 = arith.constant 0 : index
    %17 = vector.load %arg10[%c0_17, %c0_18] : memref<16x128xbf16, #tpu.memory_space<vmem>>, vector<16x128xbf16>
    tpu.vector_store %arg10[%c0_17, %c0_18], %16 {strides = array<i32>} : memref<16x128xbf16, #tpu.memory_space<vmem>>, vector<16x128xbf16>,
    return
  }
  func.func @transform_0(%arg0: i32) -> (i32, i32) {
    %c0_i32 = arith.constant 0 : i32
    %c0_i32_0 = arith.constant 0 : i32
    return %arg0, %c0_i32 : i32, i32
  }
  func.func @transform_1(%arg0: i32) -> (i32, i32) {
    %c0_i32 = arith.constant 0 : i32
    %c0_i32_0 = arith.constant 0 : i32
    return %arg0, %c0_i32 : i32, i32
  }
  func.func @transform_2(%arg0: i32) -> (i32, i32) {
    %c0_i32 = arith.constant 0 : i32
    %c0_i32_0 = arith.constant 0 : i32
    return %arg0, %c0_i32 : i32, i32
  }
  func.func @transform_3(%arg0: i32) -> (i32, i32) {
    %c0_i32 = arith.constant 0 : i32
    %c0_i32_0 = arith.constant 0 : i32
    return %arg0, %c0_i32 : i32, i32
  }
  func.func @transform_4(%arg0: i32) -> (i32, i32) {
    %c0_i32 = arith.constant 0 : i32
    %c0_i32_0 = arith.constant 0 : i32
    return %arg0, %c0_i32 : i32, i32
  }
  func.func @transform_5(%arg0: i32) -> (i32, i32) {
    %c0_i32 = arith.constant 0 : i32
    %c0_i32_0 = arith.constant 0 : i32
    return %arg0, %c0_i32 : i32, i32
  }
  func.func @transform_6(%arg0: i32) -> (i32, i32) {
    %c0_i32 = arith.constant 0 : i32
    %c0_i32_0 = arith.constant 0 : i32
    return %arg0, %c0_i32 : i32, i32
  }
  func.func @transform_7(%arg0: i32) -> (i32, i32) {
    %c0_i32 = arith.constant 0 : i32
    %c0_i32_0 = arith.constant 0 : i32
    return %arg0, %c0_i32 : i32, i32
  }
  func.func @transform_8(%arg0: i32) -> (i32, i32) {
    %c0_i32 = arith.constant 0 : i32
    %c0_i32_0 = arith.constant 0 : i32
    return %arg0, %c0_i32 : i32, i32
  }
  func.func @transform_9(%arg0: i32) -> (i32, i32) {
    %c0_i32 = arith.constant 0 : i32
    %c0_i32_0 = arith.constant 0 : i32
    return %arg0, %c0_i32 : i32, i32
  }
}

module attributes {stable_mosaic.version = 11 : i64} {
  func.func @_mm_single_kernel(%arg0: i32, %arg1: i32, %arg2: memref<128x256xbf16, #tpu.memory_space<vmem>>, %arg3: memref<256x256xbf16, #tpu.memory_space<vmem>>, %arg4: memref<1x256xf32, #tpu.memory_space<vmem>>, %arg5: memref<1x256xf32, #tpu.memory_space<vmem>>, %arg6: memref<1x256xf32, #tpu.memory_space<vmem>>, %arg7: memref<128x256xbf16, #tpu.memory_space<vmem>>) attributes {dimension_semantics = [#tpu.dimension_semantics<parallel>, #tpu.dimension_semantics<parallel>], iteration_bounds = array<i64: 1, 1>, scalar_prefetch = 0 : i64, scratch_operands = 0 : i64, tpu.core_type = #tpu.core_type<tc>, window_params = [{transform_indices = @transform_0, window_bounds = array<i64: 128, 256>}, {transform_indices = @transform_1, window_bounds = array<i64: 256, 256>}, {transform_indices = @transform_2, window_bounds = array<i64: 1, 256>}, {transform_indices = @transform_3, window_bounds = array<i64: 1, 256>}, {transform_indices = @transform_4, window_bounds = array<i64: 1, 256>}, {transform_indices = @transform_5, window_bounds = array<i64: 128, 256>}]} {
    %c0 = arith.constant 0 : index
    %c0_0 = arith.constant 0 : index
    %0 = vector.load %arg2[%c0, %c0_0] : memref<128x256xbf16, #tpu.memory_space<vmem>>, vector<128x256xbf16>
    %c0_1 = arith.constant 0 : index
    %c0_2 = arith.constant 0 : index
    %1 = vector.load %arg3[%c0_1, %c0_2] : memref<256x256xbf16, #tpu.memory_space<vmem>>, vector<256x256xbf16>
    %cst = arith.constant dense<0.000000e+00> : vector<128x256xf32>
    %2 = tpu.matmul %0, %1, %cst {dimension_numbers = #tpu.dot_dimension_numbers<[1], [0], [0], [1], [0, 0, 1, 1], [], []>} : vector<128x256xbf16>, vector<256x256xbf16>, vector<128x256xf32> -> vector<128x256xf32>
    %c0_3 = arith.constant 0 : index
    %c0_4 = arith.constant 0 : index
    %3 = vector.load %arg4[%c0_3, %c0_4] : memref<1x256xf32, #tpu.memory_space<vmem>>, vector<1x256xf32>
    %4 = vector.broadcast %3 : vector<1x256xf32> to vector<128x256xf32>
    %5 = arith.mulf %2, %4 : vector<128x256xf32>
    %c0_5 = arith.constant 0 : index
    %c0_6 = arith.constant 0 : index
    %6 = vector.load %arg5[%c0_5, %c0_6] : memref<1x256xf32, #tpu.memory_space<vmem>>, vector<1x256xf32>
    %7 = vector.broadcast %6 : vector<1x256xf32> to vector<128x256xf32>
    %8 = arith.addf %5, %7 : vector<128x256xf32>
    %c0_7 = arith.constant 0 : index
    %c0_8 = arith.constant 0 : index
    %9 = vector.load %arg6[%c0_7, %c0_8] : memref<1x256xf32, #tpu.memory_space<vmem>>, vector<1x256xf32>
    %10 = vector.broadcast %9 : vector<1x256xf32> to vector<128x256xf32>
    %11 = arith.maximumf %8, %10 : vector<128x256xf32>
    %12 = arith.truncf %11 : vector<128x256xf32> to vector<128x256xbf16>
    %c0_9 = arith.constant 0 : index
    %c0_10 = arith.constant 0 : index
    %13 = vector.load %arg7[%c0_9, %c0_10] : memref<128x256xbf16, #tpu.memory_space<vmem>>, vector<128x256xbf16>
    tpu.vector_store %arg7[%c0_9, %c0_10], %12 {strides = array<i32>} : memref<128x256xbf16, #tpu.memory_space<vmem>>, vector<128x256xbf16>,
    return
  }
  func.func @transform_0(%arg0: i32, %arg1: i32) -> (i32, i32) {
    %c0_i32 = arith.constant 0 : i32
    %c0_i32_0 = arith.constant 0 : i32
    return %arg0, %c0_i32 : i32, i32
  }
  func.func @transform_1(%arg0: i32, %arg1: i32) -> (i32, i32) {
    %c0_i32 = arith.constant 0 : i32
    %c0_i32_0 = arith.constant 0 : i32
    return %c0_i32, %arg1 : i32, i32
  }
  func.func @transform_2(%arg0: i32, %arg1: i32) -> (i32, i32) {
    %c0_i32 = arith.constant 0 : i32
    %c0_i32_0 = arith.constant 0 : i32
    return %c0_i32, %arg1 : i32, i32
  }
  func.func @transform_3(%arg0: i32, %arg1: i32) -> (i32, i32) {
    %c0_i32 = arith.constant 0 : i32
    %c0_i32_0 = arith.constant 0 : i32
    return %c0_i32, %arg1 : i32, i32
  }
  func.func @transform_4(%arg0: i32, %arg1: i32) -> (i32, i32) {
    %c0_i32 = arith.constant 0 : i32
    %c0_i32_0 = arith.constant 0 : i32
    return %c0_i32, %arg1 : i32, i32
  }
  func.func @transform_5(%arg0: i32, %arg1: i32) -> (i32, i32) {
    %c0_i32 = arith.constant 0 : i32
    return %arg0, %arg1 : i32, i32
  }
}

module attributes {stable_mosaic.version = 11 : i64} {
  func.func @_mm_single_kernel(%arg0: i32, %arg1: i32, %arg2: memref<128x256xbf16, #tpu.memory_space<vmem>>, %arg3: memref<256x256xbf16, #tpu.memory_space<vmem>>, %arg4: memref<1x256xf32, #tpu.memory_space<vmem>>, %arg5: memref<1x256xf32, #tpu.memory_space<vmem>>, %arg6: memref<128x256xbf16, #tpu.memory_space<vmem>>, %arg7: memref<128x256xbf16, #tpu.memory_space<vmem>>) attributes {dimension_semantics = [#tpu.dimension_semantics<parallel>, #tpu.dimension_semantics<parallel>], iteration_bounds = array<i64: 1, 1>, scalar_prefetch = 0 : i64, scratch_operands = 0 : i64, tpu.core_type = #tpu.core_type<tc>, window_params = [{transform_indices = @transform_0, window_bounds = array<i64: 128, 256>}, {transform_indices = @transform_1, window_bounds = array<i64: 256, 256>}, {transform_indices = @transform_2, window_bounds = array<i64: 1, 256>}, {transform_indices = @transform_3, window_bounds = array<i64: 1, 256>}, {transform_indices = @transform_4, window_bounds = array<i64: 128, 256>}, {transform_indices = @transform_5, window_bounds = array<i64: 128, 256>}]} {
    %c0 = arith.constant 0 : index
    %c0_0 = arith.constant 0 : index
    %0 = vector.load %arg2[%c0, %c0_0] : memref<128x256xbf16, #tpu.memory_space<vmem>>, vector<128x256xbf16>
    %c0_1 = arith.constant 0 : index
    %c0_2 = arith.constant 0 : index
    %1 = vector.load %arg3[%c0_1, %c0_2] : memref<256x256xbf16, #tpu.memory_space<vmem>>, vector<256x256xbf16>
    %cst = arith.constant dense<0.000000e+00> : vector<128x256xf32>
    %2 = tpu.matmul %0, %1, %cst {dimension_numbers = #tpu.dot_dimension_numbers<[1], [0], [0], [1], [0, 0, 1, 1], [], []>} : vector<128x256xbf16>, vector<256x256xbf16>, vector<128x256xf32> -> vector<128x256xf32>
    %c0_3 = arith.constant 0 : index
    %c0_4 = arith.constant 0 : index
    %3 = vector.load %arg4[%c0_3, %c0_4] : memref<1x256xf32, #tpu.memory_space<vmem>>, vector<1x256xf32>
    %4 = vector.broadcast %3 : vector<1x256xf32> to vector<128x256xf32>
    %5 = arith.mulf %2, %4 : vector<128x256xf32>
    %c0_5 = arith.constant 0 : index
    %c0_6 = arith.constant 0 : index
    %6 = vector.load %arg5[%c0_5, %c0_6] : memref<1x256xf32, #tpu.memory_space<vmem>>, vector<1x256xf32>
    %7 = vector.broadcast %6 : vector<1x256xf32> to vector<128x256xf32>
    %8 = arith.addf %5, %7 : vector<128x256xf32>
    %c0_7 = arith.constant 0 : index
    %c0_8 = arith.constant 0 : index
    %9 = vector.load %arg6[%c0_7, %c0_8] : memref<128x256xbf16, #tpu.memory_space<vmem>>, vector<128x256xbf16>
    %10 = arith.extf %9 : vector<128x256xbf16> to vector<128x256xf32>
    %11 = arith.addf %8, %10 : vector<128x256xf32>
    %cst_9 = arith.constant 0.000000e+00 : f32
    %12 = vector.broadcast %cst_9 : f32 to vector<128x256xf32>
    %13 = arith.maximumf %11, %12 : vector<128x256xf32>
    %14 = arith.truncf %13 : vector<128x256xf32> to vector<128x256xbf16>
    %c0_10 = arith.constant 0 : index
    %c0_11 = arith.constant 0 : index
    %15 = vector.load %arg7[%c0_10, %c0_11] : memref<128x256xbf16, #tpu.memory_space<vmem>>, vector<128x256xbf16>
    tpu.vector_store %arg7[%c0_10, %c0_11], %14 {strides = array<i32>} : memref<128x256xbf16, #tpu.memory_space<vmem>>, vector<128x256xbf16>,
    return
  }
  func.func @transform_0(%arg0: i32, %arg1: i32) -> (i32, i32) {
    %c0_i32 = arith.constant 0 : i32
    %c0_i32_0 = arith.constant 0 : i32
    return %arg0, %c0_i32 : i32, i32
  }
  func.func @transform_1(%arg0: i32, %arg1: i32) -> (i32, i32) {
    %c0_i32 = arith.constant 0 : i32
    %c0_i32_0 = arith.constant 0 : i32
    return %c0_i32, %arg1 : i32, i32
  }
  func.func @transform_2(%arg0: i32, %arg1: i32) -> (i32, i32) {
    %c0_i32 = arith.constant 0 : i32
    %c0_i32_0 = arith.constant 0 : i32
    return %c0_i32, %arg1 : i32, i32
  }
  func.func @transform_3(%arg0: i32, %arg1: i32) -> (i32, i32) {
    %c0_i32 = arith.constant 0 : i32
    %c0_i32_0 = arith.constant 0 : i32
    return %c0_i32, %arg1 : i32, i32
  }
  func.func @transform_4(%arg0: i32, %arg1: i32) -> (i32, i32) {
    %c0_i32 = arith.constant 0 : i32
    return %arg0, %arg1 : i32, i32
  }
  func.func @transform_5(%arg0: i32, %arg1: i32) -> (i32, i32) {
    %c0_i32 = arith.constant 0 : i32
    return %arg0, %arg1 : i32, i32
  }
}

module attributes {stable_mosaic.version = 11 : i64} {
  func.func @_mm_single_kernel(%arg0: i32, %arg1: i32, %arg2: memref<128x256xbf16, #tpu.memory_space<vmem>>, %arg3: memref<256x256xbf16, #tpu.memory_space<vmem>>, %arg4: memref<1x256xf32, #tpu.memory_space<vmem>>, %arg5: memref<1x256xf32, #tpu.memory_space<vmem>>, %arg6: memref<128x256xbf16, #tpu.memory_space<vmem>>) attributes {dimension_semantics = [#tpu.dimension_semantics<parallel>, #tpu.dimension_semantics<parallel>], iteration_bounds = array<i64: 1, 1>, scalar_prefetch = 0 : i64, scratch_operands = 0 : i64, tpu.core_type = #tpu.core_type<tc>, window_params = [{transform_indices = @transform_0, window_bounds = array<i64: 128, 256>}, {transform_indices = @transform_1, window_bounds = array<i64: 256, 256>}, {transform_indices = @transform_2, window_bounds = array<i64: 1, 256>}, {transform_indices = @transform_3, window_bounds = array<i64: 1, 256>}, {transform_indices = @transform_4, window_bounds = array<i64: 128, 256>}]} {
    %c0 = arith.constant 0 : index
    %c0_0 = arith.constant 0 : index
    %0 = vector.load %arg2[%c0, %c0_0] : memref<128x256xbf16, #tpu.memory_space<vmem>>, vector<128x256xbf16>
    %c0_1 = arith.constant 0 : index
    %c0_2 = arith.constant 0 : index
    %1 = vector.load %arg3[%c0_1, %c0_2] : memref<256x256xbf16, #tpu.memory_space<vmem>>, vector<256x256xbf16>
    %cst = arith.constant dense<0.000000e+00> : vector<128x256xf32>
    %2 = tpu.matmul %0, %1, %cst {dimension_numbers = #tpu.dot_dimension_numbers<[1], [0], [0], [1], [0, 0, 1, 1], [], []>} : vector<128x256xbf16>, vector<256x256xbf16>, vector<128x256xf32> -> vector<128x256xf32>
    %c0_3 = arith.constant 0 : index
    %c0_4 = arith.constant 0 : index
    %3 = vector.load %arg4[%c0_3, %c0_4] : memref<1x256xf32, #tpu.memory_space<vmem>>, vector<1x256xf32>
    %4 = vector.broadcast %3 : vector<1x256xf32> to vector<128x256xf32>
    %5 = arith.mulf %2, %4 : vector<128x256xf32>
    %c0_5 = arith.constant 0 : index
    %c0_6 = arith.constant 0 : index
    %6 = vector.load %arg5[%c0_5, %c0_6] : memref<1x256xf32, #tpu.memory_space<vmem>>, vector<1x256xf32>
    %7 = vector.broadcast %6 : vector<1x256xf32> to vector<128x256xf32>
    %8 = arith.addf %5, %7 : vector<128x256xf32>
    %cst_7 = arith.constant 0.000000e+00 : f32
    %9 = vector.broadcast %cst_7 : f32 to vector<128x256xf32>
    %10 = arith.maximumf %8, %9 : vector<128x256xf32>
    %11 = arith.truncf %10 : vector<128x256xf32> to vector<128x256xbf16>
    %c0_8 = arith.constant 0 : index
    %c0_9 = arith.constant 0 : index
    %12 = vector.load %arg6[%c0_8, %c0_9] : memref<128x256xbf16, #tpu.memory_space<vmem>>, vector<128x256xbf16>
    tpu.vector_store %arg6[%c0_8, %c0_9], %11 {strides = array<i32>} : memref<128x256xbf16, #tpu.memory_space<vmem>>, vector<128x256xbf16>,
    return
  }
  func.func @transform_0(%arg0: i32, %arg1: i32) -> (i32, i32) {
    %c0_i32 = arith.constant 0 : i32
    %c0_i32_0 = arith.constant 0 : i32
    return %arg0, %c0_i32 : i32, i32
  }
  func.func @transform_1(%arg0: i32, %arg1: i32) -> (i32, i32) {
    %c0_i32 = arith.constant 0 : i32
    %c0_i32_0 = arith.constant 0 : i32
    return %c0_i32, %arg1 : i32, i32
  }
  func.func @transform_2(%arg0: i32, %arg1: i32) -> (i32, i32) {
    %c0_i32 = arith.constant 0 : i32
    %c0_i32_0 = arith.constant 0 : i32
    return %c0_i32, %arg1 : i32, i32
  }
  func.func @transform_3(%arg0: i32, %arg1: i32) -> (i32, i32) {
    %c0_i32 = arith.constant 0 : i32
    %c0_i32_0 = arith.constant 0 : i32
    return %c0_i32, %arg1 : i32, i32
  }
  func.func @transform_4(%arg0: i32, %arg1: i32) -> (i32, i32) {
    %c0_i32 = arith.constant 0 : i32
    return %arg0, %arg1 : i32, i32
  }
}

module attributes {stable_mosaic.version = 11 : i64} {
  func.func @_mm_single_kernel(%arg0: i32, %arg1: i32, %arg2: memref<32x512xbf16, #tpu.memory_space<vmem>>, %arg3: memref<512x256xbf16, #tpu.memory_space<vmem>>, %arg4: memref<1x256xf32, #tpu.memory_space<vmem>>, %arg5: memref<1x256xf32, #tpu.memory_space<vmem>>, %arg6: memref<32x256xbf16, #tpu.memory_space<vmem>>) attributes {dimension_semantics = [#tpu.dimension_semantics<parallel>, #tpu.dimension_semantics<parallel>], iteration_bounds = array<i64: 1, 1>, scalar_prefetch = 0 : i64, scratch_operands = 0 : i64, tpu.core_type = #tpu.core_type<tc>, window_params = [{transform_indices = @transform_0, window_bounds = array<i64: 32, 512>}, {transform_indices = @transform_1, window_bounds = array<i64: 512, 256>}, {transform_indices = @transform_2, window_bounds = array<i64: 1, 256>}, {transform_indices = @transform_3, window_bounds = array<i64: 1, 256>}, {transform_indices = @transform_4, window_bounds = array<i64: 32, 256>}]} {
    %c0 = arith.constant 0 : index
    %c0_0 = arith.constant 0 : index
    %0 = vector.load %arg2[%c0, %c0_0] : memref<32x512xbf16, #tpu.memory_space<vmem>>, vector<32x512xbf16>
    %c0_1 = arith.constant 0 : index
    %c0_2 = arith.constant 0 : index
    %1 = vector.load %arg3[%c0_1, %c0_2] : memref<512x256xbf16, #tpu.memory_space<vmem>>, vector<512x256xbf16>
    %cst = arith.constant dense<0.000000e+00> : vector<32x256xf32>
    %2 = tpu.matmul %0, %1, %cst {dimension_numbers = #tpu.dot_dimension_numbers<[1], [0], [0], [1], [0, 0, 1, 1], [], []>} : vector<32x512xbf16>, vector<512x256xbf16>, vector<32x256xf32> -> vector<32x256xf32>
    %c0_3 = arith.constant 0 : index
    %c0_4 = arith.constant 0 : index
    %3 = vector.load %arg4[%c0_3, %c0_4] : memref<1x256xf32, #tpu.memory_space<vmem>>, vector<1x256xf32>
    %4 = vector.broadcast %3 : vector<1x256xf32> to vector<32x256xf32>
    %5 = arith.mulf %2, %4 : vector<32x256xf32>
    %c0_5 = arith.constant 0 : index
    %c0_6 = arith.constant 0 : index
    %6 = vector.load %arg5[%c0_5, %c0_6] : memref<1x256xf32, #tpu.memory_space<vmem>>, vector<1x256xf32>
    %7 = vector.broadcast %6 : vector<1x256xf32> to vector<32x256xf32>
    %8 = arith.addf %5, %7 : vector<32x256xf32>
    %cst_7 = arith.constant 0.000000e+00 : f32
    %9 = vector.broadcast %cst_7 : f32 to vector<32x256xf32>
    %10 = arith.maximumf %8, %9 : vector<32x256xf32>
    %11 = arith.truncf %10 : vector<32x256xf32> to vector<32x256xbf16>
    %c0_8 = arith.constant 0 : index
    %c0_9 = arith.constant 0 : index
    %12 = vector.load %arg6[%c0_8, %c0_9] : memref<32x256xbf16, #tpu.memory_space<vmem>>, vector<32x256xbf16>
    tpu.vector_store %arg6[%c0_8, %c0_9], %11 {strides = array<i32>} : memref<32x256xbf16, #tpu.memory_space<vmem>>, vector<32x256xbf16>,
    return
  }
  func.func @transform_0(%arg0: i32, %arg1: i32) -> (i32, i32) {
    %c0_i32 = arith.constant 0 : i32
    %c0_i32_0 = arith.constant 0 : i32
    return %arg0, %c0_i32 : i32, i32
  }
  func.func @transform_1(%arg0: i32, %arg1: i32) -> (i32, i32) {
    %c0_i32 = arith.constant 0 : i32
    %c0_i32_0 = arith.constant 0 : i32
    return %c0_i32, %arg1 : i32, i32
  }
  func.func @transform_2(%arg0: i32, %arg1: i32) -> (i32, i32) {
    %c0_i32 = arith.constant 0 : i32
    %c0_i32_0 = arith.constant 0 : i32
    return %c0_i32, %arg1 : i32, i32
  }
  func.func @transform_3(%arg0: i32, %arg1: i32) -> (i32, i32) {
    %c0_i32 = arith.constant 0 : i32
    %c0_i32_0 = arith.constant 0 : i32
    return %c0_i32, %arg1 : i32, i32
  }
  func.func @transform_4(%arg0: i32, %arg1: i32) -> (i32, i32) {
    %c0_i32 = arith.constant 0 : i32
    return %arg0, %arg1 : i32, i32
  }
}

module attributes {stable_mosaic.version = 11 : i64} {
  func.func @_mm_single_kernel(%arg0: i32, %arg1: i32, %arg2: memref<32x256xbf16, #tpu.memory_space<vmem>>, %arg3: memref<256x256xbf16, #tpu.memory_space<vmem>>, %arg4: memref<1x256xf32, #tpu.memory_space<vmem>>, %arg5: memref<1x256xf32, #tpu.memory_space<vmem>>, %arg6: memref<32x256xbf16, #tpu.memory_space<vmem>>) attributes {dimension_semantics = [#tpu.dimension_semantics<parallel>, #tpu.dimension_semantics<parallel>], iteration_bounds = array<i64: 1, 1>, scalar_prefetch = 0 : i64, scratch_operands = 0 : i64, tpu.core_type = #tpu.core_type<tc>, window_params = [{transform_indices = @transform_0, window_bounds = array<i64: 32, 256>}, {transform_indices = @transform_1, window_bounds = array<i64: 256, 256>}, {transform_indices = @transform_2, window_bounds = array<i64: 1, 256>}, {transform_indices = @transform_3, window_bounds = array<i64: 1, 256>}, {transform_indices = @transform_4, window_bounds = array<i64: 32, 256>}]} {
    %c0 = arith.constant 0 : index
    %c0_0 = arith.constant 0 : index
    %0 = vector.load %arg2[%c0, %c0_0] : memref<32x256xbf16, #tpu.memory_space<vmem>>, vector<32x256xbf16>
    %c0_1 = arith.constant 0 : index
    %c0_2 = arith.constant 0 : index
    %1 = vector.load %arg3[%c0_1, %c0_2] : memref<256x256xbf16, #tpu.memory_space<vmem>>, vector<256x256xbf16>
    %cst = arith.constant dense<0.000000e+00> : vector<32x256xf32>
    %2 = tpu.matmul %0, %1, %cst {dimension_numbers = #tpu.dot_dimension_numbers<[1], [0], [0], [1], [0, 0, 1, 1], [], []>} : vector<32x256xbf16>, vector<256x256xbf16>, vector<32x256xf32> -> vector<32x256xf32>
    %c0_3 = arith.constant 0 : index
    %c0_4 = arith.constant 0 : index
    %3 = vector.load %arg4[%c0_3, %c0_4] : memref<1x256xf32, #tpu.memory_space<vmem>>, vector<1x256xf32>
    %4 = vector.broadcast %3 : vector<1x256xf32> to vector<32x256xf32>
    %5 = arith.mulf %2, %4 : vector<32x256xf32>
    %c0_5 = arith.constant 0 : index
    %c0_6 = arith.constant 0 : index
    %6 = vector.load %arg5[%c0_5, %c0_6] : memref<1x256xf32, #tpu.memory_space<vmem>>, vector<1x256xf32>
    %7 = vector.broadcast %6 : vector<1x256xf32> to vector<32x256xf32>
    %8 = arith.addf %5, %7 : vector<32x256xf32>
    %cst_7 = arith.constant 0.000000e+00 : f32
    %9 = vector.broadcast %cst_7 : f32 to vector<32x256xf32>
    %10 = arith.maximumf %8, %9 : vector<32x256xf32>
    %11 = arith.truncf %10 : vector<32x256xf32> to vector<32x256xbf16>
    %c0_8 = arith.constant 0 : index
    %c0_9 = arith.constant 0 : index
    %12 = vector.load %arg6[%c0_8, %c0_9] : memref<32x256xbf16, #tpu.memory_space<vmem>>, vector<32x256xbf16>
    tpu.vector_store %arg6[%c0_8, %c0_9], %11 {strides = array<i32>} : memref<32x256xbf16, #tpu.memory_space<vmem>>, vector<32x256xbf16>,
    return
  }
  func.func @transform_0(%arg0: i32, %arg1: i32) -> (i32, i32) {
    %c0_i32 = arith.constant 0 : i32
    %c0_i32_0 = arith.constant 0 : i32
    return %arg0, %c0_i32 : i32, i32
  }
  func.func @transform_1(%arg0: i32, %arg1: i32) -> (i32, i32) {
    %c0_i32 = arith.constant 0 : i32
    %c0_i32_0 = arith.constant 0 : i32
    return %c0_i32, %arg1 : i32, i32
  }
  func.func @transform_2(%arg0: i32, %arg1: i32) -> (i32, i32) {
    %c0_i32 = arith.constant 0 : i32
    %c0_i32_0 = arith.constant 0 : i32
    return %c0_i32, %arg1 : i32, i32
  }
  func.func @transform_3(%arg0: i32, %arg1: i32) -> (i32, i32) {
    %c0_i32 = arith.constant 0 : i32
    %c0_i32_0 = arith.constant 0 : i32
    return %c0_i32, %arg1 : i32, i32
  }
  func.func @transform_4(%arg0: i32, %arg1: i32) -> (i32, i32) {
    %c0_i32 = arith.constant 0 : i32
    return %arg0, %arg1 : i32, i32
  }
}

module attributes {stable_mosaic.version = 11 : i64} {
  func.func @_mm_single_kernel(%arg0: i32, %arg1: i32, %arg2: memref<32x256xbf16, #tpu.memory_space<vmem>>, %arg3: memref<256x256xbf16, #tpu.memory_space<vmem>>, %arg4: memref<1x256xf32, #tpu.memory_space<vmem>>, %arg5: memref<1x256xf32, #tpu.memory_space<vmem>>, %arg6: memref<32x256xbf16, #tpu.memory_space<vmem>>) attributes {dimension_semantics = [#tpu.dimension_semantics<parallel>, #tpu.dimension_semantics<parallel>], iteration_bounds = array<i64: 1, 1>, scalar_prefetch = 0 : i64, scratch_operands = 0 : i64, tpu.core_type = #tpu.core_type<tc>, window_params = [{transform_indices = @transform_0, window_bounds = array<i64: 32, 256>}, {transform_indices = @transform_1, window_bounds = array<i64: 256, 256>}, {transform_indices = @transform_2, window_bounds = array<i64: 1, 256>}, {transform_indices = @transform_3, window_bounds = array<i64: 1, 256>}, {transform_indices = @transform_4, window_bounds = array<i64: 32, 256>}]} {
    %c0 = arith.constant 0 : index
    %c0_0 = arith.constant 0 : index
    %0 = vector.load %arg2[%c0, %c0_0] : memref<32x256xbf16, #tpu.memory_space<vmem>>, vector<32x256xbf16>
    %c0_1 = arith.constant 0 : index
    %c0_2 = arith.constant 0 : index
    %1 = vector.load %arg3[%c0_1, %c0_2] : memref<256x256xbf16, #tpu.memory_space<vmem>>, vector<256x256xbf16>
    %cst = arith.constant dense<0.000000e+00> : vector<32x256xf32>
    %2 = tpu.matmul %0, %1, %cst {dimension_numbers = #tpu.dot_dimension_numbers<[1], [0], [0], [1], [0, 0, 1, 1], [], []>} : vector<32x256xbf16>, vector<256x256xbf16>, vector<32x256xf32> -> vector<32x256xf32>
    %c0_3 = arith.constant 0 : index
    %c0_4 = arith.constant 0 : index
    %3 = vector.load %arg4[%c0_3, %c0_4] : memref<1x256xf32, #tpu.memory_space<vmem>>, vector<1x256xf32>
    %4 = vector.broadcast %3 : vector<1x256xf32> to vector<32x256xf32>
    %5 = arith.mulf %2, %4 : vector<32x256xf32>
    %c0_5 = arith.constant 0 : index
    %c0_6 = arith.constant 0 : index
    %6 = vector.load %arg5[%c0_5, %c0_6] : memref<1x256xf32, #tpu.memory_space<vmem>>, vector<1x256xf32>
    %7 = vector.broadcast %6 : vector<1x256xf32> to vector<32x256xf32>
    %8 = arith.addf %5, %7 : vector<32x256xf32>
    %9 = arith.truncf %8 : vector<32x256xf32> to vector<32x256xbf16>
    %c0_7 = arith.constant 0 : index
    %c0_8 = arith.constant 0 : index
    %10 = vector.load %arg6[%c0_7, %c0_8] : memref<32x256xbf16, #tpu.memory_space<vmem>>, vector<32x256xbf16>
    tpu.vector_store %arg6[%c0_7, %c0_8], %9 {strides = array<i32>} : memref<32x256xbf16, #tpu.memory_space<vmem>>, vector<32x256xbf16>,
    return
  }
  func.func @transform_0(%arg0: i32, %arg1: i32) -> (i32, i32) {
    %c0_i32 = arith.constant 0 : i32
    %c0_i32_0 = arith.constant 0 : i32
    return %arg0, %c0_i32 : i32, i32
  }
  func.func @transform_1(%arg0: i32, %arg1: i32) -> (i32, i32) {
    %c0_i32 = arith.constant 0 : i32
    %c0_i32_0 = arith.constant 0 : i32
    return %c0_i32, %arg1 : i32, i32
  }
  func.func @transform_2(%arg0: i32, %arg1: i32) -> (i32, i32) {
    %c0_i32 = arith.constant 0 : i32
    %c0_i32_0 = arith.constant 0 : i32
    return %c0_i32, %arg1 : i32, i32
  }
  func.func @transform_3(%arg0: i32, %arg1: i32) -> (i32, i32) {
    %c0_i32 = arith.constant 0 : i32
    %c0_i32_0 = arith.constant 0 : i32
    return %c0_i32, %arg1 : i32, i32
  }
  func.func @transform_4(%arg0: i32, %arg1: i32) -> (i32, i32) {
    %c0_i32 = arith.constant 0 : i32
    return %arg0, %arg1 : i32, i32
  }
}

module attributes {stable_mosaic.version = 11 : i64} {
  func.func @_mm_single_kernel(%arg0: i32, %arg1: i32, %arg2: memref<32x256xbf16, #tpu.memory_space<vmem>>, %arg3: memref<256x256xbf16, #tpu.memory_space<vmem>>, %arg4: memref<1x256xf32, #tpu.memory_space<vmem>>, %arg5: memref<1x256xf32, #tpu.memory_space<vmem>>, %arg6: memref<32x256xbf16, #tpu.memory_space<vmem>>, %arg7: memref<32x256xbf16, #tpu.memory_space<vmem>>) attributes {dimension_semantics = [#tpu.dimension_semantics<parallel>, #tpu.dimension_semantics<parallel>], iteration_bounds = array<i64: 1, 1>, scalar_prefetch = 0 : i64, scratch_operands = 0 : i64, tpu.core_type = #tpu.core_type<tc>, window_params = [{transform_indices = @transform_0, window_bounds = array<i64: 32, 256>}, {transform_indices = @transform_1, window_bounds = array<i64: 256, 256>}, {transform_indices = @transform_2, window_bounds = array<i64: 1, 256>}, {transform_indices = @transform_3, window_bounds = array<i64: 1, 256>}, {transform_indices = @transform_4, window_bounds = array<i64: 32, 256>}, {transform_indices = @transform_5, window_bounds = array<i64: 32, 256>}]} {
    %c0 = arith.constant 0 : index
    %c0_0 = arith.constant 0 : index
    %0 = vector.load %arg2[%c0, %c0_0] : memref<32x256xbf16, #tpu.memory_space<vmem>>, vector<32x256xbf16>
    %c0_1 = arith.constant 0 : index
    %c0_2 = arith.constant 0 : index
    %1 = vector.load %arg3[%c0_1, %c0_2] : memref<256x256xbf16, #tpu.memory_space<vmem>>, vector<256x256xbf16>
    %cst = arith.constant dense<0.000000e+00> : vector<32x256xf32>
    %2 = tpu.matmul %0, %1, %cst {dimension_numbers = #tpu.dot_dimension_numbers<[1], [0], [0], [1], [0, 0, 1, 1], [], []>} : vector<32x256xbf16>, vector<256x256xbf16>, vector<32x256xf32> -> vector<32x256xf32>
    %c0_3 = arith.constant 0 : index
    %c0_4 = arith.constant 0 : index
    %3 = vector.load %arg4[%c0_3, %c0_4] : memref<1x256xf32, #tpu.memory_space<vmem>>, vector<1x256xf32>
    %4 = vector.broadcast %3 : vector<1x256xf32> to vector<32x256xf32>
    %5 = arith.mulf %2, %4 : vector<32x256xf32>
    %c0_5 = arith.constant 0 : index
    %c0_6 = arith.constant 0 : index
    %6 = vector.load %arg5[%c0_5, %c0_6] : memref<1x256xf32, #tpu.memory_space<vmem>>, vector<1x256xf32>
    %7 = vector.broadcast %6 : vector<1x256xf32> to vector<32x256xf32>
    %8 = arith.addf %5, %7 : vector<32x256xf32>
    %c0_7 = arith.constant 0 : index
    %c0_8 = arith.constant 0 : index
    %9 = vector.load %arg6[%c0_7, %c0_8] : memref<32x256xbf16, #tpu.memory_space<vmem>>, vector<32x256xbf16>
    %10 = arith.extf %9 : vector<32x256xbf16> to vector<32x256xf32>
    %11 = arith.addf %8, %10 : vector<32x256xf32>
    %cst_9 = arith.constant 0.000000e+00 : f32
    %12 = vector.broadcast %cst_9 : f32 to vector<32x256xf32>
    %13 = arith.maximumf %11, %12 : vector<32x256xf32>
    %14 = arith.truncf %13 : vector<32x256xf32> to vector<32x256xbf16>
    %c0_10 = arith.constant 0 : index
    %c0_11 = arith.constant 0 : index
    %15 = vector.load %arg7[%c0_10, %c0_11] : memref<32x256xbf16, #tpu.memory_space<vmem>>, vector<32x256xbf16>
    tpu.vector_store %arg7[%c0_10, %c0_11], %14 {strides = array<i32>} : memref<32x256xbf16, #tpu.memory_space<vmem>>, vector<32x256xbf16>,
    return
  }
  func.func @transform_0(%arg0: i32, %arg1: i32) -> (i32, i32) {
    %c0_i32 = arith.constant 0 : i32
    %c0_i32_0 = arith.constant 0 : i32
    return %arg0, %c0_i32 : i32, i32
  }
  func.func @transform_1(%arg0: i32, %arg1: i32) -> (i32, i32) {
    %c0_i32 = arith.constant 0 : i32
    %c0_i32_0 = arith.constant 0 : i32
    return %c0_i32, %arg1 : i32, i32
  }
  func.func @transform_2(%arg0: i32, %arg1: i32) -> (i32, i32) {
    %c0_i32 = arith.constant 0 : i32
    %c0_i32_0 = arith.constant 0 : i32
    return %c0_i32, %arg1 : i32, i32
  }
  func.func @transform_3(%arg0: i32, %arg1: i32) -> (i32, i32) {
    %c0_i32 = arith.constant 0 : i32
    %c0_i32_0 = arith.constant 0 : i32
    return %c0_i32, %arg1 : i32, i32
  }
  func.func @transform_4(%arg0: i32, %arg1: i32) -> (i32, i32) {
    %c0_i32 = arith.constant 0 : i32
    return %arg0, %arg1 : i32, i32
  }
  func.func @transform_5(%arg0: i32, %arg1: i32) -> (i32, i32) {
    %c0_i32 = arith.constant 0 : i32
    return %arg0, %arg1 : i32, i32
  }
}

module attributes {stable_mosaic.version = 11 : i64} {
  func.func @_mm_single_kernel(%arg0: i32, %arg1: i32, %arg2: memref<16x768xbf16, #tpu.memory_space<vmem>>, %arg3: memref<768x256xbf16, #tpu.memory_space<vmem>>, %arg4: memref<1x256xf32, #tpu.memory_space<vmem>>, %arg5: memref<1x256xf32, #tpu.memory_space<vmem>>, %arg6: memref<16x256xbf16, #tpu.memory_space<vmem>>) attributes {dimension_semantics = [#tpu.dimension_semantics<parallel>, #tpu.dimension_semantics<parallel>], iteration_bounds = array<i64: 1, 1>, scalar_prefetch = 0 : i64, scratch_operands = 0 : i64, tpu.core_type = #tpu.core_type<tc>, window_params = [{transform_indices = @transform_0, window_bounds = array<i64: 16, 768>}, {transform_indices = @transform_1, window_bounds = array<i64: 768, 256>}, {transform_indices = @transform_2, window_bounds = array<i64: 1, 256>}, {transform_indices = @transform_3, window_bounds = array<i64: 1, 256>}, {transform_indices = @transform_4, window_bounds = array<i64: 16, 256>}]} {
    %c0 = arith.constant 0 : index
    %c0_0 = arith.constant 0 : index
    %0 = vector.load %arg2[%c0, %c0_0] : memref<16x768xbf16, #tpu.memory_space<vmem>>, vector<16x768xbf16>
    %c0_1 = arith.constant 0 : index
    %c0_2 = arith.constant 0 : index
    %1 = vector.load %arg3[%c0_1, %c0_2] : memref<768x256xbf16, #tpu.memory_space<vmem>>, vector<768x256xbf16>
    %cst = arith.constant dense<0.000000e+00> : vector<16x256xf32>
    %2 = tpu.matmul %0, %1, %cst {dimension_numbers = #tpu.dot_dimension_numbers<[1], [0], [0], [1], [0, 0, 1, 1], [], []>} : vector<16x768xbf16>, vector<768x256xbf16>, vector<16x256xf32> -> vector<16x256xf32>
    %c0_3 = arith.constant 0 : index
    %c0_4 = arith.constant 0 : index
    %3 = vector.load %arg4[%c0_3, %c0_4] : memref<1x256xf32, #tpu.memory_space<vmem>>, vector<1x256xf32>
    %4 = vector.broadcast %3 : vector<1x256xf32> to vector<16x256xf32>
    %5 = arith.mulf %2, %4 : vector<16x256xf32>
    %c0_5 = arith.constant 0 : index
    %c0_6 = arith.constant 0 : index
    %6 = vector.load %arg5[%c0_5, %c0_6] : memref<1x256xf32, #tpu.memory_space<vmem>>, vector<1x256xf32>
    %7 = vector.broadcast %6 : vector<1x256xf32> to vector<16x256xf32>
    %8 = arith.addf %5, %7 : vector<16x256xf32>
    %cst_7 = arith.constant 0.000000e+00 : f32
    %9 = vector.broadcast %cst_7 : f32 to vector<16x256xf32>
    %10 = arith.maximumf %8, %9 : vector<16x256xf32>
    %11 = arith.truncf %10 : vector<16x256xf32> to vector<16x256xbf16>
    %c0_8 = arith.constant 0 : index
    %c0_9 = arith.constant 0 : index
    %12 = vector.load %arg6[%c0_8, %c0_9] : memref<16x256xbf16, #tpu.memory_space<vmem>>, vector<16x256xbf16>
    tpu.vector_store %arg6[%c0_8, %c0_9], %11 {strides = array<i32>} : memref<16x256xbf16, #tpu.memory_space<vmem>>, vector<16x256xbf16>,
    return
  }
  func.func @transform_0(%arg0: i32, %arg1: i32) -> (i32, i32) {
    %c0_i32 = arith.constant 0 : i32
    %c0_i32_0 = arith.constant 0 : i32
    return %arg0, %c0_i32 : i32, i32
  }
  func.func @transform_1(%arg0: i32, %arg1: i32) -> (i32, i32) {
    %c0_i32 = arith.constant 0 : i32
    %c0_i32_0 = arith.constant 0 : i32
    return %c0_i32, %arg1 : i32, i32
  }
  func.func @transform_2(%arg0: i32, %arg1: i32) -> (i32, i32) {
    %c0_i32 = arith.constant 0 : i32
    %c0_i32_0 = arith.constant 0 : i32
    return %c0_i32, %arg1 : i32, i32
  }
  func.func @transform_3(%arg0: i32, %arg1: i32) -> (i32, i32) {
    %c0_i32 = arith.constant 0 : i32
    %c0_i32_0 = arith.constant 0 : i32
    return %c0_i32, %arg1 : i32, i32
  }
  func.func @transform_4(%arg0: i32, %arg1: i32) -> (i32, i32) {
    %c0_i32 = arith.constant 0 : i32
    return %arg0, %arg1 : i32, i32
  }
}

module attributes {stable_mosaic.version = 11 : i64} {
  func.func @_mm_single_kernel(%arg0: i32, %arg1: i32, %arg2: memref<16x256xbf16, #tpu.memory_space<vmem>>, %arg3: memref<256x256xbf16, #tpu.memory_space<vmem>>, %arg4: memref<1x256xf32, #tpu.memory_space<vmem>>, %arg5: memref<1x256xf32, #tpu.memory_space<vmem>>, %arg6: memref<16x256xbf16, #tpu.memory_space<vmem>>) attributes {dimension_semantics = [#tpu.dimension_semantics<parallel>, #tpu.dimension_semantics<parallel>], iteration_bounds = array<i64: 1, 1>, scalar_prefetch = 0 : i64, scratch_operands = 0 : i64, tpu.core_type = #tpu.core_type<tc>, window_params = [{transform_indices = @transform_0, window_bounds = array<i64: 16, 256>}, {transform_indices = @transform_1, window_bounds = array<i64: 256, 256>}, {transform_indices = @transform_2, window_bounds = array<i64: 1, 256>}, {transform_indices = @transform_3, window_bounds = array<i64: 1, 256>}, {transform_indices = @transform_4, window_bounds = array<i64: 16, 256>}]} {
    %c0 = arith.constant 0 : index
    %c0_0 = arith.constant 0 : index
    %0 = vector.load %arg2[%c0, %c0_0] : memref<16x256xbf16, #tpu.memory_space<vmem>>, vector<16x256xbf16>
    %c0_1 = arith.constant 0 : index
    %c0_2 = arith.constant 0 : index
    %1 = vector.load %arg3[%c0_1, %c0_2] : memref<256x256xbf16, #tpu.memory_space<vmem>>, vector<256x256xbf16>
    %cst = arith.constant dense<0.000000e+00> : vector<16x256xf32>
    %2 = tpu.matmul %0, %1, %cst {dimension_numbers = #tpu.dot_dimension_numbers<[1], [0], [0], [1], [0, 0, 1, 1], [], []>} : vector<16x256xbf16>, vector<256x256xbf16>, vector<16x256xf32> -> vector<16x256xf32>
    %c0_3 = arith.constant 0 : index
    %c0_4 = arith.constant 0 : index
    %3 = vector.load %arg4[%c0_3, %c0_4] : memref<1x256xf32, #tpu.memory_space<vmem>>, vector<1x256xf32>
    %4 = vector.broadcast %3 : vector<1x256xf32> to vector<16x256xf32>
    %5 = arith.mulf %2, %4 : vector<16x256xf32>
    %c0_5 = arith.constant 0 : index
    %c0_6 = arith.constant 0 : index
    %6 = vector.load %arg5[%c0_5, %c0_6] : memref<1x256xf32, #tpu.memory_space<vmem>>, vector<1x256xf32>
    %7 = vector.broadcast %6 : vector<1x256xf32> to vector<16x256xf32>
    %8 = arith.addf %5, %7 : vector<16x256xf32>
    %cst_7 = arith.constant 0.000000e+00 : f32
    %9 = vector.broadcast %cst_7 : f32 to vector<16x256xf32>
    %10 = arith.maximumf %8, %9 : vector<16x256xf32>
    %11 = arith.truncf %10 : vector<16x256xf32> to vector<16x256xbf16>
    %c0_8 = arith.constant 0 : index
    %c0_9 = arith.constant 0 : index
    %12 = vector.load %arg6[%c0_8, %c0_9] : memref<16x256xbf16, #tpu.memory_space<vmem>>, vector<16x256xbf16>
    tpu.vector_store %arg6[%c0_8, %c0_9], %11 {strides = array<i32>} : memref<16x256xbf16, #tpu.memory_space<vmem>>, vector<16x256xbf16>,
    return
  }
  func.func @transform_0(%arg0: i32, %arg1: i32) -> (i32, i32) {
    %c0_i32 = arith.constant 0 : i32
    %c0_i32_0 = arith.constant 0 : i32
    return %arg0, %c0_i32 : i32, i32
  }
  func.func @transform_1(%arg0: i32, %arg1: i32) -> (i32, i32) {
    %c0_i32 = arith.constant 0 : i32
    %c0_i32_0 = arith.constant 0 : i32
    return %c0_i32, %arg1 : i32, i32
  }
  func.func @transform_2(%arg0: i32, %arg1: i32) -> (i32, i32) {
    %c0_i32 = arith.constant 0 : i32
    %c0_i32_0 = arith.constant 0 : i32
    return %c0_i32, %arg1 : i32, i32
  }
  func.func @transform_3(%arg0: i32, %arg1: i32) -> (i32, i32) {
    %c0_i32 = arith.constant 0 : i32
    %c0_i32_0 = arith.constant 0 : i32
    return %c0_i32, %arg1 : i32, i32
  }
  func.func @transform_4(%arg0: i32, %arg1: i32) -> (i32, i32) {
    %c0_i32 = arith.constant 0 : i32
    return %arg0, %arg1 : i32, i32
  }
}

module attributes {stable_mosaic.version = 11 : i64} {
  func.func @_mm_single_kernel(%arg0: i32, %arg1: i32, %arg2: memref<16x256xbf16, #tpu.memory_space<vmem>>, %arg3: memref<256x256xbf16, #tpu.memory_space<vmem>>, %arg4: memref<1x256xf32, #tpu.memory_space<vmem>>, %arg5: memref<1x256xf32, #tpu.memory_space<vmem>>, %arg6: memref<16x256xbf16, #tpu.memory_space<vmem>>) attributes {dimension_semantics = [#tpu.dimension_semantics<parallel>, #tpu.dimension_semantics<parallel>], iteration_bounds = array<i64: 1, 1>, scalar_prefetch = 0 : i64, scratch_operands = 0 : i64, tpu.core_type = #tpu.core_type<tc>, window_params = [{transform_indices = @transform_0, window_bounds = array<i64: 16, 256>}, {transform_indices = @transform_1, window_bounds = array<i64: 256, 256>}, {transform_indices = @transform_2, window_bounds = array<i64: 1, 256>}, {transform_indices = @transform_3, window_bounds = array<i64: 1, 256>}, {transform_indices = @transform_4, window_bounds = array<i64: 16, 256>}]} {
    %c0 = arith.constant 0 : index
    %c0_0 = arith.constant 0 : index
    %0 = vector.load %arg2[%c0, %c0_0] : memref<16x256xbf16, #tpu.memory_space<vmem>>, vector<16x256xbf16>
    %c0_1 = arith.constant 0 : index
    %c0_2 = arith.constant 0 : index
    %1 = vector.load %arg3[%c0_1, %c0_2] : memref<256x256xbf16, #tpu.memory_space<vmem>>, vector<256x256xbf16>
    %cst = arith.constant dense<0.000000e+00> : vector<16x256xf32>
    %2 = tpu.matmul %0, %1, %cst {dimension_numbers = #tpu.dot_dimension_numbers<[1], [0], [0], [1], [0, 0, 1, 1], [], []>} : vector<16x256xbf16>, vector<256x256xbf16>, vector<16x256xf32> -> vector<16x256xf32>
    %c0_3 = arith.constant 0 : index
    %c0_4 = arith.constant 0 : index
    %3 = vector.load %arg4[%c0_3, %c0_4] : memref<1x256xf32, #tpu.memory_space<vmem>>, vector<1x256xf32>
    %4 = vector.broadcast %3 : vector<1x256xf32> to vector<16x256xf32>
    %5 = arith.mulf %2, %4 : vector<16x256xf32>
    %c0_5 = arith.constant 0 : index
    %c0_6 = arith.constant 0 : index
    %6 = vector.load %arg5[%c0_5, %c0_6] : memref<1x256xf32, #tpu.memory_space<vmem>>, vector<1x256xf32>
    %7 = vector.broadcast %6 : vector<1x256xf32> to vector<16x256xf32>
    %8 = arith.addf %5, %7 : vector<16x256xf32>
    %9 = arith.truncf %8 : vector<16x256xf32> to vector<16x256xbf16>
    %c0_7 = arith.constant 0 : index
    %c0_8 = arith.constant 0 : index
    %10 = vector.load %arg6[%c0_7, %c0_8] : memref<16x256xbf16, #tpu.memory_space<vmem>>, vector<16x256xbf16>
    tpu.vector_store %arg6[%c0_7, %c0_8], %9 {strides = array<i32>} : memref<16x256xbf16, #tpu.memory_space<vmem>>, vector<16x256xbf16>,
    return
  }
  func.func @transform_0(%arg0: i32, %arg1: i32) -> (i32, i32) {
    %c0_i32 = arith.constant 0 : i32
    %c0_i32_0 = arith.constant 0 : i32
    return %arg0, %c0_i32 : i32, i32
  }
  func.func @transform_1(%arg0: i32, %arg1: i32) -> (i32, i32) {
    %c0_i32 = arith.constant 0 : i32
    %c0_i32_0 = arith.constant 0 : i32
    return %c0_i32, %arg1 : i32, i32
  }
  func.func @transform_2(%arg0: i32, %arg1: i32) -> (i32, i32) {
    %c0_i32 = arith.constant 0 : i32
    %c0_i32_0 = arith.constant 0 : i32
    return %c0_i32, %arg1 : i32, i32
  }
  func.func @transform_3(%arg0: i32, %arg1: i32) -> (i32, i32) {
    %c0_i32 = arith.constant 0 : i32
    %c0_i32_0 = arith.constant 0 : i32
    return %c0_i32, %arg1 : i32, i32
  }
  func.func @transform_4(%arg0: i32, %arg1: i32) -> (i32, i32) {
    %c0_i32 = arith.constant 0 : i32
    return %arg0, %arg1 : i32, i32
  }
}

module attributes {stable_mosaic.version = 11 : i64} {
  func.func @_mm_single_kernel(%arg0: i32, %arg1: i32, %arg2: memref<16x256xbf16, #tpu.memory_space<vmem>>, %arg3: memref<256x256xbf16, #tpu.memory_space<vmem>>, %arg4: memref<1x256xf32, #tpu.memory_space<vmem>>, %arg5: memref<1x256xf32, #tpu.memory_space<vmem>>, %arg6: memref<16x256xbf16, #tpu.memory_space<vmem>>, %arg7: memref<16x256xbf16, #tpu.memory_space<vmem>>) attributes {dimension_semantics = [#tpu.dimension_semantics<parallel>, #tpu.dimension_semantics<parallel>], iteration_bounds = array<i64: 1, 1>, scalar_prefetch = 0 : i64, scratch_operands = 0 : i64, tpu.core_type = #tpu.core_type<tc>, window_params = [{transform_indices = @transform_0, window_bounds = array<i64: 16, 256>}, {transform_indices = @transform_1, window_bounds = array<i64: 256, 256>}, {transform_indices = @transform_2, window_bounds = array<i64: 1, 256>}, {transform_indices = @transform_3, window_bounds = array<i64: 1, 256>}, {transform_indices = @transform_4, window_bounds = array<i64: 16, 256>}, {transform_indices = @transform_5, window_bounds = array<i64: 16, 256>}]} {
    %c0 = arith.constant 0 : index
    %c0_0 = arith.constant 0 : index
    %0 = vector.load %arg2[%c0, %c0_0] : memref<16x256xbf16, #tpu.memory_space<vmem>>, vector<16x256xbf16>
    %c0_1 = arith.constant 0 : index
    %c0_2 = arith.constant 0 : index
    %1 = vector.load %arg3[%c0_1, %c0_2] : memref<256x256xbf16, #tpu.memory_space<vmem>>, vector<256x256xbf16>
    %cst = arith.constant dense<0.000000e+00> : vector<16x256xf32>
    %2 = tpu.matmul %0, %1, %cst {dimension_numbers = #tpu.dot_dimension_numbers<[1], [0], [0], [1], [0, 0, 1, 1], [], []>} : vector<16x256xbf16>, vector<256x256xbf16>, vector<16x256xf32> -> vector<16x256xf32>
    %c0_3 = arith.constant 0 : index
    %c0_4 = arith.constant 0 : index
    %3 = vector.load %arg4[%c0_3, %c0_4] : memref<1x256xf32, #tpu.memory_space<vmem>>, vector<1x256xf32>
    %4 = vector.broadcast %3 : vector<1x256xf32> to vector<16x256xf32>
    %5 = arith.mulf %2, %4 : vector<16x256xf32>
    %c0_5 = arith.constant 0 : index
    %c0_6 = arith.constant 0 : index
    %6 = vector.load %arg5[%c0_5, %c0_6] : memref<1x256xf32, #tpu.memory_space<vmem>>, vector<1x256xf32>
    %7 = vector.broadcast %6 : vector<1x256xf32> to vector<16x256xf32>
    %8 = arith.addf %5, %7 : vector<16x256xf32>
    %c0_7 = arith.constant 0 : index
    %c0_8 = arith.constant 0 : index
    %9 = vector.load %arg6[%c0_7, %c0_8] : memref<16x256xbf16, #tpu.memory_space<vmem>>, vector<16x256xbf16>
    %10 = arith.extf %9 : vector<16x256xbf16> to vector<16x256xf32>
    %11 = arith.addf %8, %10 : vector<16x256xf32>
    %cst_9 = arith.constant 0.000000e+00 : f32
    %12 = vector.broadcast %cst_9 : f32 to vector<16x256xf32>
    %13 = arith.maximumf %11, %12 : vector<16x256xf32>
    %14 = arith.truncf %13 : vector<16x256xf32> to vector<16x256xbf16>
    %c0_10 = arith.constant 0 : index
    %c0_11 = arith.constant 0 : index
    %15 = vector.load %arg7[%c0_10, %c0_11] : memref<16x256xbf16, #tpu.memory_space<vmem>>, vector<16x256xbf16>
    tpu.vector_store %arg7[%c0_10, %c0_11], %14 {strides = array<i32>} : memref<16x256xbf16, #tpu.memory_space<vmem>>, vector<16x256xbf16>,
    return
  }
  func.func @transform_0(%arg0: i32, %arg1: i32) -> (i32, i32) {
    %c0_i32 = arith.constant 0 : i32
    %c0_i32_0 = arith.constant 0 : i32
    return %arg0, %c0_i32 : i32, i32
  }
  func.func @transform_1(%arg0: i32, %arg1: i32) -> (i32, i32) {
    %c0_i32 = arith.constant 0 : i32
    %c0_i32_0 = arith.constant 0 : i32
    return %c0_i32, %arg1 : i32, i32
  }
  func.func @transform_2(%arg0: i32, %arg1: i32) -> (i32, i32) {
    %c0_i32 = arith.constant 0 : i32
    %c0_i32_0 = arith.constant 0 : i32
    return %c0_i32, %arg1 : i32, i32
  }
  func.func @transform_3(%arg0: i32, %arg1: i32) -> (i32, i32) {
    %c0_i32 = arith.constant 0 : i32
    %c0_i32_0 = arith.constant 0 : i32
    return %c0_i32, %arg1 : i32, i32
  }
  func.func @transform_4(%arg0: i32, %arg1: i32) -> (i32, i32) {
    %c0_i32 = arith.constant 0 : i32
    return %arg0, %arg1 : i32, i32
  }
  func.func @transform_5(%arg0: i32, %arg1: i32) -> (i32, i32) {
    %c0_i32 = arith.constant 0 : i32
    return %arg0, %arg1 : i32, i32
  }
}

module attributes {stable_mosaic.version = 11 : i64} {
  func.func @_mm_single_kernel(%arg0: i32, %arg1: i32, %arg2: memref<16x1280xbf16, #tpu.memory_space<vmem>>, %arg3: memref<1280x256xbf16, #tpu.memory_space<vmem>>, %arg4: memref<1x256xf32, #tpu.memory_space<vmem>>, %arg5: memref<1x256xf32, #tpu.memory_space<vmem>>, %arg6: memref<16x256xbf16, #tpu.memory_space<vmem>>) attributes {dimension_semantics = [#tpu.dimension_semantics<parallel>, #tpu.dimension_semantics<parallel>], iteration_bounds = array<i64: 1, 1>, scalar_prefetch = 0 : i64, scratch_operands = 0 : i64, tpu.core_type = #tpu.core_type<tc>, window_params = [{transform_indices = @transform_0, window_bounds = array<i64: 16, 1280>}, {transform_indices = @transform_1, window_bounds = array<i64: 1280, 256>}, {transform_indices = @transform_2, window_bounds = array<i64: 1, 256>}, {transform_indices = @transform_3, window_bounds = array<i64: 1, 256>}, {transform_indices = @transform_4, window_bounds = array<i64: 16, 256>}]} {
    %c0 = arith.constant 0 : index
    %c0_0 = arith.constant 0 : index
    %0 = vector.load %arg2[%c0, %c0_0] : memref<16x1280xbf16, #tpu.memory_space<vmem>>, vector<16x1280xbf16>
    %c0_1 = arith.constant 0 : index
    %c0_2 = arith.constant 0 : index
    %1 = vector.load %arg3[%c0_1, %c0_2] : memref<1280x256xbf16, #tpu.memory_space<vmem>>, vector<1280x256xbf16>
    %cst = arith.constant dense<0.000000e+00> : vector<16x256xf32>
    %2 = tpu.matmul %0, %1, %cst {dimension_numbers = #tpu.dot_dimension_numbers<[1], [0], [0], [1], [0, 0, 1, 1], [], []>} : vector<16x1280xbf16>, vector<1280x256xbf16>, vector<16x256xf32> -> vector<16x256xf32>
    %c0_3 = arith.constant 0 : index
    %c0_4 = arith.constant 0 : index
    %3 = vector.load %arg4[%c0_3, %c0_4] : memref<1x256xf32, #tpu.memory_space<vmem>>, vector<1x256xf32>
    %4 = vector.broadcast %3 : vector<1x256xf32> to vector<16x256xf32>
    %5 = arith.mulf %2, %4 : vector<16x256xf32>
    %c0_5 = arith.constant 0 : index
    %c0_6 = arith.constant 0 : index
    %6 = vector.load %arg5[%c0_5, %c0_6] : memref<1x256xf32, #tpu.memory_space<vmem>>, vector<1x256xf32>
    %7 = vector.broadcast %6 : vector<1x256xf32> to vector<16x256xf32>
    %8 = arith.addf %5, %7 : vector<16x256xf32>
    %cst_7 = arith.constant 0.000000e+00 : f32
    %9 = vector.broadcast %cst_7 : f32 to vector<16x256xf32>
    %10 = arith.maximumf %8, %9 : vector<16x256xf32>
    %11 = arith.truncf %10 : vector<16x256xf32> to vector<16x256xbf16>
    %c0_8 = arith.constant 0 : index
    %c0_9 = arith.constant 0 : index
    %12 = vector.load %arg6[%c0_8, %c0_9] : memref<16x256xbf16, #tpu.memory_space<vmem>>, vector<16x256xbf16>
    tpu.vector_store %arg6[%c0_8, %c0_9], %11 {strides = array<i32>} : memref<16x256xbf16, #tpu.memory_space<vmem>>, vector<16x256xbf16>,
    return
  }
  func.func @transform_0(%arg0: i32, %arg1: i32) -> (i32, i32) {
    %c0_i32 = arith.constant 0 : i32
    %c0_i32_0 = arith.constant 0 : i32
    return %arg0, %c0_i32 : i32, i32
  }
  func.func @transform_1(%arg0: i32, %arg1: i32) -> (i32, i32) {
    %c0_i32 = arith.constant 0 : i32
    %c0_i32_0 = arith.constant 0 : i32
    return %c0_i32, %arg1 : i32, i32
  }
  func.func @transform_2(%arg0: i32, %arg1: i32) -> (i32, i32) {
    %c0_i32 = arith.constant 0 : i32
    %c0_i32_0 = arith.constant 0 : i32
    return %c0_i32, %arg1 : i32, i32
  }
  func.func @transform_3(%arg0: i32, %arg1: i32) -> (i32, i32) {
    %c0_i32 = arith.constant 0 : i32
    %c0_i32_0 = arith.constant 0 : i32
    return %c0_i32, %arg1 : i32, i32
  }
  func.func @transform_4(%arg0: i32, %arg1: i32) -> (i32, i32) {
    %c0_i32 = arith.constant 0 : i32
    return %arg0, %arg1 : i32, i32
  }
}

module attributes {stable_mosaic.version = 11 : i64} {
  func.func @_mm_single_kernel(%arg0: i32, %arg1: i32, %arg2: memref<16x256xbf16, #tpu.memory_space<vmem>>, %arg3: memref<256x256xbf16, #tpu.memory_space<vmem>>, %arg4: memref<1x256xf32, #tpu.memory_space<vmem>>, %arg5: memref<1x256xf32, #tpu.memory_space<vmem>>, %arg6: memref<16x256xbf16, #tpu.memory_space<vmem>>) attributes {dimension_semantics = [#tpu.dimension_semantics<parallel>, #tpu.dimension_semantics<parallel>], iteration_bounds = array<i64: 1, 2>, scalar_prefetch = 0 : i64, scratch_operands = 0 : i64, tpu.core_type = #tpu.core_type<tc>, window_params = [{transform_indices = @transform_0, window_bounds = array<i64: 16, 256>}, {transform_indices = @transform_1, window_bounds = array<i64: 256, 256>}, {transform_indices = @transform_2, window_bounds = array<i64: 1, 256>}, {transform_indices = @transform_3, window_bounds = array<i64: 1, 256>}, {transform_indices = @transform_4, window_bounds = array<i64: 16, 256>}]} {
    %c0 = arith.constant 0 : index
    %c0_0 = arith.constant 0 : index
    %0 = vector.load %arg2[%c0, %c0_0] : memref<16x256xbf16, #tpu.memory_space<vmem>>, vector<16x256xbf16>
    %c0_1 = arith.constant 0 : index
    %c0_2 = arith.constant 0 : index
    %1 = vector.load %arg3[%c0_1, %c0_2] : memref<256x256xbf16, #tpu.memory_space<vmem>>, vector<256x256xbf16>
    %cst = arith.constant dense<0.000000e+00> : vector<16x256xf32>
    %2 = tpu.matmul %0, %1, %cst {dimension_numbers = #tpu.dot_dimension_numbers<[1], [0], [0], [1], [0, 0, 1, 1], [], []>} : vector<16x256xbf16>, vector<256x256xbf16>, vector<16x256xf32> -> vector<16x256xf32>
    %c0_3 = arith.constant 0 : index
    %c0_4 = arith.constant 0 : index
    %3 = vector.load %arg4[%c0_3, %c0_4] : memref<1x256xf32, #tpu.memory_space<vmem>>, vector<1x256xf32>
    %4 = vector.broadcast %3 : vector<1x256xf32> to vector<16x256xf32>
    %5 = arith.mulf %2, %4 : vector<16x256xf32>
    %c0_5 = arith.constant 0 : index
    %c0_6 = arith.constant 0 : index
    %6 = vector.load %arg5[%c0_5, %c0_6] : memref<1x256xf32, #tpu.memory_space<vmem>>, vector<1x256xf32>
    %7 = vector.broadcast %6 : vector<1x256xf32> to vector<16x256xf32>
    %8 = arith.addf %5, %7 : vector<16x256xf32>
    %9 = arith.truncf %8 : vector<16x256xf32> to vector<16x256xbf16>
    %c0_7 = arith.constant 0 : index
    %c0_8 = arith.constant 0 : index
    %10 = vector.load %arg6[%c0_7, %c0_8] : memref<16x256xbf16, #tpu.memory_space<vmem>>, vector<16x256xbf16>
    tpu.vector_store %arg6[%c0_7, %c0_8], %9 {strides = array<i32>} : memref<16x256xbf16, #tpu.memory_space<vmem>>, vector<16x256xbf16>,
    return
  }
  func.func @transform_0(%arg0: i32, %arg1: i32) -> (i32, i32) {
    %c0_i32 = arith.constant 0 : i32
    %c0_i32_0 = arith.constant 0 : i32
    return %arg0, %c0_i32 : i32, i32
  }
  func.func @transform_1(%arg0: i32, %arg1: i32) -> (i32, i32) {
    %c0_i32 = arith.constant 0 : i32
    %c0_i32_0 = arith.constant 0 : i32
    return %c0_i32, %arg1 : i32, i32
  }
  func.func @transform_2(%arg0: i32, %arg1: i32) -> (i32, i32) {
    %c0_i32 = arith.constant 0 : i32
    %c0_i32_0 = arith.constant 0 : i32
    return %c0_i32, %arg1 : i32, i32
  }
  func.func @transform_3(%arg0: i32, %arg1: i32) -> (i32, i32) {
    %c0_i32 = arith.constant 0 : i32
    %c0_i32_0 = arith.constant 0 : i32
    return %c0_i32, %arg1 : i32, i32
  }
  func.func @transform_4(%arg0: i32, %arg1: i32) -> (i32, i32) {
    %c0_i32 = arith.constant 0 : i32
    return %arg0, %arg1 : i32, i32
  }
}

module attributes {stable_mosaic.version = 11 : i64} {
  func.func @_mm_single_kernel(%arg0: i32, %arg1: i32, %arg2: memref<16x512xbf16, #tpu.memory_space<vmem>>, %arg3: memref<512x256xbf16, #tpu.memory_space<vmem>>, %arg4: memref<1x256xf32, #tpu.memory_space<vmem>>, %arg5: memref<1x256xf32, #tpu.memory_space<vmem>>, %arg6: memref<16x256xbf16, #tpu.memory_space<vmem>>) attributes {dimension_semantics = [#tpu.dimension_semantics<parallel>, #tpu.dimension_semantics<parallel>], iteration_bounds = array<i64: 1, 1>, scalar_prefetch = 0 : i64, scratch_operands = 0 : i64, tpu.core_type = #tpu.core_type<tc>, window_params = [{transform_indices = @transform_0, window_bounds = array<i64: 16, 512>}, {transform_indices = @transform_1, window_bounds = array<i64: 512, 256>}, {transform_indices = @transform_2, window_bounds = array<i64: 1, 256>}, {transform_indices = @transform_3, window_bounds = array<i64: 1, 256>}, {transform_indices = @transform_4, window_bounds = array<i64: 16, 256>}]} {
    %c0 = arith.constant 0 : index
    %c0_0 = arith.constant 0 : index
    %0 = vector.load %arg2[%c0, %c0_0] : memref<16x512xbf16, #tpu.memory_space<vmem>>, vector<16x512xbf16>
    %c0_1 = arith.constant 0 : index
    %c0_2 = arith.constant 0 : index
    %1 = vector.load %arg3[%c0_1, %c0_2] : memref<512x256xbf16, #tpu.memory_space<vmem>>, vector<512x256xbf16>
    %cst = arith.constant dense<0.000000e+00> : vector<16x256xf32>
    %2 = tpu.matmul %0, %1, %cst {dimension_numbers = #tpu.dot_dimension_numbers<[1], [0], [0], [1], [0, 0, 1, 1], [], []>} : vector<16x512xbf16>, vector<512x256xbf16>, vector<16x256xf32> -> vector<16x256xf32>
    %c0_3 = arith.constant 0 : index
    %c0_4 = arith.constant 0 : index
    %3 = vector.load %arg4[%c0_3, %c0_4] : memref<1x256xf32, #tpu.memory_space<vmem>>, vector<1x256xf32>
    %4 = vector.broadcast %3 : vector<1x256xf32> to vector<16x256xf32>
    %5 = arith.mulf %2, %4 : vector<16x256xf32>
    %c0_5 = arith.constant 0 : index
    %c0_6 = arith.constant 0 : index
    %6 = vector.load %arg5[%c0_5, %c0_6] : memref<1x256xf32, #tpu.memory_space<vmem>>, vector<1x256xf32>
    %7 = vector.broadcast %6 : vector<1x256xf32> to vector<16x256xf32>
    %8 = arith.addf %5, %7 : vector<16x256xf32>
    %cst_7 = arith.constant 0.000000e+00 : f32
    %9 = vector.broadcast %cst_7 : f32 to vector<16x256xf32>
    %10 = arith.maximumf %8, %9 : vector<16x256xf32>
    %11 = arith.truncf %10 : vector<16x256xf32> to vector<16x256xbf16>
    %c0_8 = arith.constant 0 : index
    %c0_9 = arith.constant 0 : index
    %12 = vector.load %arg6[%c0_8, %c0_9] : memref<16x256xbf16, #tpu.memory_space<vmem>>, vector<16x256xbf16>
    tpu.vector_store %arg6[%c0_8, %c0_9], %11 {strides = array<i32>} : memref<16x256xbf16, #tpu.memory_space<vmem>>, vector<16x256xbf16>,
    return
  }
  func.func @transform_0(%arg0: i32, %arg1: i32) -> (i32, i32) {
    %c0_i32 = arith.constant 0 : i32
    %c0_i32_0 = arith.constant 0 : i32
    return %arg0, %c0_i32 : i32, i32
  }
  func.func @transform_1(%arg0: i32, %arg1: i32) -> (i32, i32) {
    %c0_i32 = arith.constant 0 : i32
    %c0_i32_0 = arith.constant 0 : i32
    return %c0_i32, %arg1 : i32, i32
  }
  func.func @transform_2(%arg0: i32, %arg1: i32) -> (i32, i32) {
    %c0_i32 = arith.constant 0 : i32
    %c0_i32_0 = arith.constant 0 : i32
    return %c0_i32, %arg1 : i32, i32
  }
  func.func @transform_3(%arg0: i32, %arg1: i32) -> (i32, i32) {
    %c0_i32 = arith.constant 0 : i32
    %c0_i32_0 = arith.constant 0 : i32
    return %c0_i32, %arg1 : i32, i32
  }
  func.func @transform_4(%arg0: i32, %arg1: i32) -> (i32, i32) {
    %c0_i32 = arith.constant 0 : i32
    return %arg0, %arg1 : i32, i32
  }
}

module attributes {stable_mosaic.version = 11 : i64} {
  func.func @_mm_single_kernel(%arg0: i32, %arg1: i32, %arg2: memref<16x256xbf16, #tpu.memory_space<vmem>>, %arg3: memref<256x256xbf16, #tpu.memory_space<vmem>>, %arg4: memref<1x256xf32, #tpu.memory_space<vmem>>, %arg5: memref<1x256xf32, #tpu.memory_space<vmem>>, %arg6: memref<16x256xbf16, #tpu.memory_space<vmem>>, %arg7: memref<16x256xbf16, #tpu.memory_space<vmem>>) attributes {dimension_semantics = [#tpu.dimension_semantics<parallel>, #tpu.dimension_semantics<parallel>], iteration_bounds = array<i64: 1, 2>, scalar_prefetch = 0 : i64, scratch_operands = 0 : i64, tpu.core_type = #tpu.core_type<tc>, window_params = [{transform_indices = @transform_0, window_bounds = array<i64: 16, 256>}, {transform_indices = @transform_1, window_bounds = array<i64: 256, 256>}, {transform_indices = @transform_2, window_bounds = array<i64: 1, 256>}, {transform_indices = @transform_3, window_bounds = array<i64: 1, 256>}, {transform_indices = @transform_4, window_bounds = array<i64: 16, 256>}, {transform_indices = @transform_5, window_bounds = array<i64: 16, 256>}]} {
    %c0 = arith.constant 0 : index
    %c0_0 = arith.constant 0 : index
    %0 = vector.load %arg2[%c0, %c0_0] : memref<16x256xbf16, #tpu.memory_space<vmem>>, vector<16x256xbf16>
    %c0_1 = arith.constant 0 : index
    %c0_2 = arith.constant 0 : index
    %1 = vector.load %arg3[%c0_1, %c0_2] : memref<256x256xbf16, #tpu.memory_space<vmem>>, vector<256x256xbf16>
    %cst = arith.constant dense<0.000000e+00> : vector<16x256xf32>
    %2 = tpu.matmul %0, %1, %cst {dimension_numbers = #tpu.dot_dimension_numbers<[1], [0], [0], [1], [0, 0, 1, 1], [], []>} : vector<16x256xbf16>, vector<256x256xbf16>, vector<16x256xf32> -> vector<16x256xf32>
    %c0_3 = arith.constant 0 : index
    %c0_4 = arith.constant 0 : index
    %3 = vector.load %arg4[%c0_3, %c0_4] : memref<1x256xf32, #tpu.memory_space<vmem>>, vector<1x256xf32>
    %4 = vector.broadcast %3 : vector<1x256xf32> to vector<16x256xf32>
    %5 = arith.mulf %2, %4 : vector<16x256xf32>
    %c0_5 = arith.constant 0 : index
    %c0_6 = arith.constant 0 : index
    %6 = vector.load %arg5[%c0_5, %c0_6] : memref<1x256xf32, #tpu.memory_space<vmem>>, vector<1x256xf32>
    %7 = vector.broadcast %6 : vector<1x256xf32> to vector<16x256xf32>
    %8 = arith.addf %5, %7 : vector<16x256xf32>
    %c0_7 = arith.constant 0 : index
    %c0_8 = arith.constant 0 : index
    %9 = vector.load %arg6[%c0_7, %c0_8] : memref<16x256xbf16, #tpu.memory_space<vmem>>, vector<16x256xbf16>
    %10 = arith.extf %9 : vector<16x256xbf16> to vector<16x256xf32>
    %11 = arith.addf %8, %10 : vector<16x256xf32>
    %cst_9 = arith.constant 0.000000e+00 : f32
    %12 = vector.broadcast %cst_9 : f32 to vector<16x256xf32>
    %13 = arith.maximumf %11, %12 : vector<16x256xf32>
    %14 = arith.truncf %13 : vector<16x256xf32> to vector<16x256xbf16>
    %c0_10 = arith.constant 0 : index
    %c0_11 = arith.constant 0 : index
    %15 = vector.load %arg7[%c0_10, %c0_11] : memref<16x256xbf16, #tpu.memory_space<vmem>>, vector<16x256xbf16>
    tpu.vector_store %arg7[%c0_10, %c0_11], %14 {strides = array<i32>} : memref<16x256xbf16, #tpu.memory_space<vmem>>, vector<16x256xbf16>,
    return
  }
  func.func @transform_0(%arg0: i32, %arg1: i32) -> (i32, i32) {
    %c0_i32 = arith.constant 0 : i32
    %c0_i32_0 = arith.constant 0 : i32
    return %arg0, %c0_i32 : i32, i32
  }
  func.func @transform_1(%arg0: i32, %arg1: i32) -> (i32, i32) {
    %c0_i32 = arith.constant 0 : i32
    %c0_i32_0 = arith.constant 0 : i32
    return %c0_i32, %arg1 : i32, i32
  }
  func.func @transform_2(%arg0: i32, %arg1: i32) -> (i32, i32) {
    %c0_i32 = arith.constant 0 : i32
    %c0_i32_0 = arith.constant 0 : i32
    return %c0_i32, %arg1 : i32, i32
  }
  func.func @transform_3(%arg0: i32, %arg1: i32) -> (i32, i32) {
    %c0_i32 = arith.constant 0 : i32
    %c0_i32_0 = arith.constant 0 : i32
    return %c0_i32, %arg1 : i32, i32
  }
  func.func @transform_4(%arg0: i32, %arg1: i32) -> (i32, i32) {
    %c0_i32 = arith.constant 0 : i32
    return %arg0, %arg1 : i32, i32
  }
  func.func @transform_5(%arg0: i32, %arg1: i32) -> (i32, i32) {
    %c0_i32 = arith.constant 0 : i32
    return %arg0, %arg1 : i32, i32
  }
}

module attributes {stable_mosaic.version = 11 : i64} {
  func.func @_mean_kernel(%arg0: i32, %arg1: memref<2x1x256xbf16, #tpu.memory_space<vmem>>, %arg2: memref<2x256xf32, #tpu.memory_space<vmem>>) attributes {dimension_semantics = [#tpu.dimension_semantics<parallel>], iteration_bounds = array<i64: 2>, scalar_prefetch = 0 : i64, scratch_operands = 0 : i64, tpu.core_type = #tpu.core_type<tc>, window_params = [{transform_indices = @transform_0, window_bounds = array<i64: 2, 1, 256>}, {transform_indices = @transform_1, window_bounds = array<i64: 2, 256>}]} {
    %c0 = arith.constant 0 : index
    %c0_0 = arith.constant 0 : index
    %c0_1 = arith.constant 0 : index
    %0 = vector.load %arg1[%c0, %c0_0, %c0_1] : memref<2x1x256xbf16, #tpu.memory_space<vmem>>, vector<2x1x256xbf16>
    %1 = arith.extf %0 : vector<2x1x256xbf16> to vector<2x1x256xf32>
    %cst = arith.constant dense<0.000000e+00> : vector<2x256xf32>
    %2 = vector.multi_reduction <add>, %1, %cst [1] : vector<2x1x256xf32> to vector<2x256xf32>
    %cst_2 = arith.constant 1.000000e+00 : f32
    %3 = vector.broadcast %cst_2 : f32 to vector<2x256xf32>
    %4 = arith.divf %2, %3 : vector<2x256xf32>
    %c0_3 = arith.constant 0 : index
    %c0_4 = arith.constant 0 : index
    %5 = vector.load %arg2[%c0_3, %c0_4] : memref<2x256xf32, #tpu.memory_space<vmem>>, vector<2x256xf32>
    tpu.vector_store %arg2[%c0_3, %c0_4], %4 {strides = array<i32>} : memref<2x256xf32, #tpu.memory_space<vmem>>, vector<2x256xf32>,
    return
  }
  func.func @transform_0(%arg0: i32) -> (i32, i32, i32) {
    %c0_i32 = arith.constant 0 : i32
    %c0_i32_0 = arith.constant 0 : i32
    %c0_i32_1 = arith.constant 0 : i32
    return %c0_i32, %c0_i32_0, %arg0 : i32, i32, i32
  }
  func.func @transform_1(%arg0: i32) -> (i32, i32) {
    %c0_i32 = arith.constant 0 : i32
    %c0_i32_0 = arith.constant 0 : i32
    return %c0_i32, %arg0 : i32, i32
  }
}

module attributes {stable_mosaic.version = 11 : i64} {
  func.func @_mm_single_kernel(%arg0: i32, %arg1: i32, %arg2: memref<16x512xbf16, #tpu.memory_space<vmem>>, %arg3: memref<512x256xbf16, #tpu.memory_space<vmem>>, %arg4: memref<1x256xf32, #tpu.memory_space<vmem>>, %arg5: memref<1x256xf32, #tpu.memory_space<vmem>>, %arg6: memref<16x256xf32, #tpu.memory_space<vmem>>) attributes {dimension_semantics = [#tpu.dimension_semantics<parallel>, #tpu.dimension_semantics<parallel>], iteration_bounds = array<i64: 1, 1>, scalar_prefetch = 0 : i64, scratch_operands = 0 : i64, tpu.core_type = #tpu.core_type<tc>, window_params = [{transform_indices = @transform_0, window_bounds = array<i64: 16, 512>}, {transform_indices = @transform_1, window_bounds = array<i64: 512, 256>}, {transform_indices = @transform_2, window_bounds = array<i64: 1, 256>}, {transform_indices = @transform_3, window_bounds = array<i64: 1, 256>}, {transform_indices = @transform_4, window_bounds = array<i64: 16, 256>}]} {
    %c0 = arith.constant 0 : index
    %c0_0 = arith.constant 0 : index
    %0 = vector.load %arg2[%c0, %c0_0] : memref<16x512xbf16, #tpu.memory_space<vmem>>, vector<16x512xbf16>
    %c0_1 = arith.constant 0 : index
    %c0_2 = arith.constant 0 : index
    %1 = vector.load %arg3[%c0_1, %c0_2] : memref<512x256xbf16, #tpu.memory_space<vmem>>, vector<512x256xbf16>
    %cst = arith.constant dense<0.000000e+00> : vector<16x256xf32>
    %2 = tpu.matmul %0, %1, %cst {dimension_numbers = #tpu.dot_dimension_numbers<[1], [0], [0], [1], [0, 0, 1, 1], [], []>} : vector<16x512xbf16>, vector<512x256xbf16>, vector<16x256xf32> -> vector<16x256xf32>
    %c0_3 = arith.constant 0 : index
    %c0_4 = arith.constant 0 : index
    %3 = vector.load %arg4[%c0_3, %c0_4] : memref<1x256xf32, #tpu.memory_space<vmem>>, vector<1x256xf32>
    %4 = vector.broadcast %3 : vector<1x256xf32> to vector<16x256xf32>
    %5 = arith.mulf %2, %4 : vector<16x256xf32>
    %c0_5 = arith.constant 0 : index
    %c0_6 = arith.constant 0 : index
    %6 = vector.load %arg5[%c0_5, %c0_6] : memref<1x256xf32, #tpu.memory_space<vmem>>, vector<1x256xf32>
    %7 = vector.broadcast %6 : vector<1x256xf32> to vector<16x256xf32>
    %8 = arith.addf %5, %7 : vector<16x256xf32>
    %c0_7 = arith.constant 0 : index
    %c0_8 = arith.constant 0 : index
    %9 = vector.load %arg6[%c0_7, %c0_8] : memref<16x256xf32, #tpu.memory_space<vmem>>, vector<16x256xf32>
    tpu.vector_store %arg6[%c0_7, %c0_8], %8 {strides = array<i32>} : memref<16x256xf32, #tpu.memory_space<vmem>>, vector<16x256xf32>,
    return
  }
  func.func @transform_0(%arg0: i32, %arg1: i32) -> (i32, i32) {
    %c0_i32 = arith.constant 0 : i32
    %c0_i32_0 = arith.constant 0 : i32
    return %arg0, %c0_i32 : i32, i32
  }
  func.func @transform_1(%arg0: i32, %arg1: i32) -> (i32, i32) {
    %c0_i32 = arith.constant 0 : i32
    %c0_i32_0 = arith.constant 0 : i32
    return %c0_i32, %arg1 : i32, i32
  }
  func.func @transform_2(%arg0: i32, %arg1: i32) -> (i32, i32) {
    %c0_i32 = arith.constant 0 : i32
    %c0_i32_0 = arith.constant 0 : i32
    return %c0_i32, %arg1 : i32, i32
  }
  func.func @transform_3(%arg0: i32, %arg1: i32) -> (i32, i32) {
    %c0_i32 = arith.constant 0 : i32
    %c0_i32_0 = arith.constant 0 : i32
    return %c0_i32, %arg1 : i32, i32
  }
  func.func @transform_4(%arg0: i32, %arg1: i32) -> (i32, i32) {
    %c0_i32 = arith.constant 0 : i32
    return %arg0, %arg1 : i32, i32
  }
}

</mosaic_0001>

<llo_original>
// kernel: _lambda_.55
$region0: #{_lambda_.55}
  #allocation0 [shape = 'u32[]', space=smem, size = 0x4, offset = 0x4, fixed_abs, tag = 'smem constant byte address 0x4 - core index']
  #allocation1 [shape = 'u32[144,128]{1,0:T(1,128)}', space=vmem, size = 0x12000, scoped, tag = 'internal scratch']
  %s0 = inlined_call_operand.vmem [shape: bf16[512,256], index: 0, kind: input, shape index: {}]
  %s1 = inlined_call_operand.vmem [shape: bf16[256,256], index: 1, kind: input, shape index: {}]
  %s2 = inlined_call_operand.vmem [shape: f32[1,256], index: 2, kind: input, shape index: {}]
  %s3 = inlined_call_operand.vmem [shape: f32[1,256], index: 3, kind: input, shape index: {}]
  %s4 = inlined_call_operand.vmem [shape: bf16[512,256], index: 4, kind: output, shape index: {}]
  %s5 = sld [smem:[#allocation0]]
  $region26: #{_lambda_.55} parent=0
    _
  %s7 = ssub.s32 1, %s5
  %s8 = scalar_select 0, %s7, %s5
  // Predicated region
  $region2: #{_lambda_.55} parent=0 // pred_check
    _
  $region3: #{_lambda_.55} parent=0 // pred_check_branch
    %10 = sbr.rel (0) target = $region5
  $region4: #{_lambda_.55} parent=0 // pred_region
    _
  $region5: #{_lambda_.55} parent=0 // pred_fallthru
    _
  // Predicated region
  $region6: #{_lambda_.55} parent=0 // pred_check
    _
  $region7: #{_lambda_.55} parent=0 // pred_check_branch
    %12 = sbr.rel (0) target = $region9
  $region8: #{_lambda_.55} parent=0 // pred_region
    _
  $region9: #{_lambda_.55} parent=0 // pred_fallthru
    _
  // Predicated region
  $region10: #{_lambda_.55} parent=0 // pred_check
    _
  $region11: #{_lambda_.55} parent=0 // pred_check_branch
    %14 = sbr.rel (0) target = $region13
  $region12: #{_lambda_.55} parent=0 // pred_region
    _
  $region13: #{_lambda_.55} parent=0 // pred_fallthru
    _
  // Predicated region
  $region14: #{_lambda_.55} parent=0 // pred_check
    _
  $region15: #{_lambda_.55} parent=0 // pred_check_branch
    %16 = sbr.rel (0) target = $region17
  $region16: #{_lambda_.55} parent=0 // pred_region
    _
  $region17: #{_lambda_.55} parent=0 // pred_fallthru
    _
  %v17 = vld [vmem:[%s0] sm:$0xff]
  %v18 = vld [vmem:[%s0 + $0x8] sm:$0xff]
  %v19 = vld [vmem:[%s0 + $0x10] sm:$0xff]
  %v20 = vld [vmem:[%s0 + $0x18] sm:$0xff]
  %v21 = vld [vmem:[%s0 + $0x20] sm:$0xff]
  %v22 = vld [vmem:[%s0 + $0x28] sm:$0xff]
  %v23 = vld [vmem:[%s0 + $0x30] sm:$0xff]
  %v24 = vld [vmem:[%s0 + $0x38] sm:$0xff]
  %v25 = vld [vmem:[%s0 + $0x40] sm:$0xff]
  %v26 = vld [vmem:[%s0 + $0x48] sm:$0xff]
  %v27 = vld [vmem:[%s0 + $0x50] sm:$0xff]
  %v28 = vld [vmem:[%s0 + $0x58] sm:$0xff]
  %v29 = vld [vmem:[%s0 + $0x60] sm:$0xff]
  %v30 = vld [vmem:[%s0 + $0x68] sm:$0xff]
  %v31 = vld [vmem:[%s0 + $0x70] sm:$0xff]
  %v32 = vld [vmem:[%s0 + $0x78] sm:$0xff]
  %v33 = vld [vmem:[%s0 + $0x80] sm:$0xff]
  %v34 = vld [vmem:[%s0 + $0x88] sm:$0xff]
  %v35 = vld [vmem:[%s0 + $0x90] sm:$0xff]
  %v36 = vld [vmem:[%s0 + $0x98] sm:$0xff]
  %v37 = vld [vmem:[%s0 + $0xa0] sm:$0xff]
  %v38 = vld [vmem:[%s0 + $0xa8] sm:$0xff]
  %v39 = vld [vmem:[%s0 + $0xb0] sm:$0xff]
  %v40 = vld [vmem:[%s0 + $0xb8] sm:$0xff]
  %v41 = vld [vmem:[%s0 + $0xc0] sm:$0xff]
  %v42 = vld [vmem:[%s0 + $0xc8] sm:$0xff]
  %v43 = vld [vmem:[%s0 + $0xd0] sm:$0xff]
  %v44 = vld [vmem:[%s0 + $0xd8] sm:$0xff]
  %v45 = vld [vmem:[%s0 + $0xe0] sm:$0xff]
  %v46 = vld [vmem:[%s0 + $0xe8] sm:$0xff]
  %v47 = vld [vmem:[%s0 + $0xf0] sm:$0xff]
  %v48 = vld [vmem:[%s0 + $0xf8] sm:$0xff]
  %v49 = vld [vmem:[%s0 + $0x100] sm:$0xff]
  %v50 = vld [vmem:[%s0 + $0x108] sm:$0xff]
  %v51 = vld [vmem:[%s0 + $0x110] sm:$0xff]
  %v52 = vld [vmem:[%s0 + $0x118] sm:$0xff]
  %v53 = vld [vmem:[%s0 + $0x120] sm:$0xff]
  %v54 = vld [vmem:[%s0 + $0x128] sm:$0xff]
  %v55 = vld [vmem:[%s0 + $0x130] sm:$0xff]
  %v56 = vld [vmem:[%s0 + $0x138] sm:$0xff]
  %v57 = vld [vmem:[%s0 + $0x140] sm:$0xff]
  %v58 = vld [vmem:[%s0 + $0x148] sm:$0xff]
  %v59 = vld [vmem:[%s0 + $0x150] sm:$0xff]
  %v60 = vld [vmem:[%s0 + $0x158] sm:$0xff]
  %v61 = vld [vmem:[%s0 + $0x160] sm:$0xff]
  %v62 = vld [vmem:[%s0 + $0x168] sm:$0xff]
  %v63 = vld [vmem:[%s0 + $0x170] sm:$0xff]
  %v64 = vld [vmem:[%s0 + $0x178] sm:$0xff]
  %v65 = vld [vmem:[%s0 + $0x180] sm:$0xff]
  %v66 = vld [vmem:[%s0 + $0x188] sm:$0xff]
  %v67 = vld [vmem:[%s0 + $0x190] sm:$0xff]
  %v68 = vld [vmem:[%s0 + $0x198] sm:$0xff]
  %v69 = vld [vmem:[%s0 + $0x1a0] sm:$0xff]
  %v70 = vld [vmem:[%s0 + $0x1a8] sm:$0xff]
  %v71 = vld [vmem:[%s0 + $0x1b0] sm:$0xff]
  %v72 = vld [vmem:[%s0 + $0x1b8] sm:$0xff]
  %v73 = vld [vmem:[%s0 + $0x1c0] sm:$0xff]
  %v74 = vld [vmem:[%s0 + $0x1c8] sm:$0xff]
  %v75 = vld [vmem:[%s0 + $0x1d0] sm:$0xff]
  %v76 = vld [vmem:[%s0 + $0x1d8] sm:$0xff]
  %v77 = vld [vmem:[%s0 + $0x1e0] sm:$0xff]
  %v78 = vld [vmem:[%s0 + $0x1e8] sm:$0xff]
  %v79 = vld [vmem:[%s0 + $0x1f0] sm:$0xff]
  %v80 = vld [vmem:[%s0 + $0x1f8] sm:$0xff]
  %v81 = vld [vmem:[%s1] sm:$0xff]
  %v82 = vld [vmem:[%s1 + $0x8] sm:$0xff]
  %v83 = vld [vmem:[%s1 + $0x10] sm:$0xff]
  %v84 = vld [vmem:[%s1 + $0x18] sm:$0xff]
  %v85 = vld [vmem:[%s1 + $0x20] sm:$0xff]
  %v86 = vld [vmem:[%s1 + $0x28] sm:$0xff]
  %v87 = vld [vmem:[%s1 + $0x30] sm:$0xff]
  %v88 = vld [vmem:[%s1 + $0x38] sm:$0xff]
  %v89 = vld [vmem:[%s1 + $0x40] sm:$0xff]
  %v90 = vld [vmem:[%s1 + $0x48] sm:$0xff]
  %v91 = vld [vmem:[%s1 + $0x50] sm:$0xff]
  %v92 = vld [vmem:[%s1 + $0x58] sm:$0xff]
  %v93 = vld [vmem:[%s1 + $0x60] sm:$0xff]
  %v94 = vld [vmem:[%s1 + $0x68] sm:$0xff]
  %v95 = vld [vmem:[%s1 + $0x70] sm:$0xff]
  %v96 = vld [vmem:[%s1 + $0x78] sm:$0xff]
  %v97 = vld [vmem:[%s1 + $0x80] sm:$0xff]
  %v98 = vld [vmem:[%s1 + $0x88] sm:$0xff]
  %v99 = vld [vmem:[%s1 + $0x90] sm:$0xff]
  %v100 = vld [vmem:[%s1 + $0x98] sm:$0xff]
  %v101 = vld [vmem:[%s1 + $0xa0] sm:$0xff]
  %v102 = vld [vmem:[%s1 + $0xa8] sm:$0xff]
  %v103 = vld [vmem:[%s1 + $0xb0] sm:$0xff]
  %v104 = vld [vmem:[%s1 + $0xb8] sm:$0xff]
  %v105 = vld [vmem:[%s1 + $0xc0] sm:$0xff]
  %v106 = vld [vmem:[%s1 + $0xc8] sm:$0xff]
  %v107 = vld [vmem:[%s1 + $0xd0] sm:$0xff]
  %v108 = vld [vmem:[%s1 + $0xd8] sm:$0xff]
  %v109 = vld [vmem:[%s1 + $0xe0] sm:$0xff]
  %v110 = vld [vmem:[%s1 + $0xe8] sm:$0xff]
  %v111 = vld [vmem:[%s1 + $0xf0] sm:$0xff]
  %v112 = vld [vmem:[%s1 + $0xf8] sm:$0xff]
  %v177 = vunpack.c.l.b16 %v17
  %v178 = vunpack.c.h.b16 %v17
  %v179 = vunpack.c.l.b16 %v18
  %v180 = vunpack.c.h.b16 %v18
  %v181 = vunpack.c.l.b16 %v19
  %v182 = vunpack.c.h.b16 %v19
  %v183 = vunpack.c.l.b16 %v20
  %v184 = vunpack.c.h.b16 %v20
  %v185 = vunpack.c.l.b16 %v21
  %v186 = vunpack.c.h.b16 %v21
  %v187 = vunpack.c.l.b16 %v22
  %v188 = vunpack.c.h.b16 %v22
  %v189 = vunpack.c.l.b16 %v23
  %v190 = vunpack.c.h.b16 %v23
  %v191 = vunpack.c.l.b16 %v24
  %v192 = vunpack.c.h.b16 %v24
  %v193 = vunpack.c.l.b16 %v25
  %v194 = vunpack.c.h.b16 %v25
  %v195 = vunpack.c.l.b16 %v26
  %v196 = vunpack.c.h.b16 %v26
  %v197 = vunpack.c.l.b16 %v27
  %v198 = vunpack.c.h.b16 %v27
  %v199 = vunpack.c.l.b16 %v28
  %v200 = vunpack.c.h.b16 %v28
  %v201 = vunpack.c.l.b16 %v29
  %v202 = vunpack.c.h.b16 %v29
  %v203 = vunpack.c.l.b16 %v30
  %v204 = vunpack.c.h.b16 %v30
  %v205 = vunpack.c.l.b16 %v31
  %v206 = vunpack.c.h.b16 %v31
  %v207 = vunpack.c.l.b16 %v32
  %v208 = vunpack.c.h.b16 %v32
  %v209 = vunpack.c.l.b16 %v33
  %v210 = vunpack.c.h.b16 %v33
  %v211 = vunpack.c.l.b16 %v34
  %v212 = vunpack.c.h.b16 %v34
  %v213 = vunpack.c.l.b16 %v35
  %v214 = vunpack.c.h.b16 %v35
  %v215 = vunpack.c.l.b16 %v36
  %v216 = vunpack.c.h.b16 %v36
  %v217 = vunpack.c.l.b16 %v37
  %v218 = vunpack.c.h.b16 %v37
  %v219 = vunpack.c.l.b16 %v38
  %v220 = vunpack.c.h.b16 %v38
  %v221 = vunpack.c.l.b16 %v39
  %v222 = vunpack.c.h.b16 %v39
  %v223 = vunpack.c.l.b16 %v40
  %v224 = vunpack.c.h.b16 %v40
  %v225 = vunpack.c.l.b16 %v41
  %v226 = vunpack.c.h.b16 %v41
  %v227 = vunpack.c.l.b16 %v42
  %v228 = vunpack.c.h.b16 %v42
  %v229 = vunpack.c.l.b16 %v43
  %v230 = vunpack.c.h.b16 %v43
  %v231 = vunpack.c.l.b16 %v44
  %v232 = vunpack.c.h.b16 %v44
  %v233 = vunpack.c.l.b16 %v45
  %v234 = vunpack.c.h.b16 %v45
  %v235 = vunpack.c.l.b16 %v46
  %v236 = vunpack.c.h.b16 %v46
  %v237 = vunpack.c.l.b16 %v47
  %v238 = vunpack.c.h.b16 %v47
  %v239 = vunpack.c.l.b16 %v48
  %v240 = vunpack.c.h.b16 %v48
  %v241 = vunpack.c.l.b16 %v49
  %v242 = vunpack.c.h.b16 %v49
  %v243 = vunpack.c.l.b16 %v50
  %v244 = vunpack.c.h.b16 %v50
  %v245 = vunpack.c.l.b16 %v51
  %v246 = vunpack.c.h.b16 %v51
  %v247 = vunpack.c.l.b16 %v52
  %v248 = vunpack.c.h.b16 %v52
  %v249 = vunpack.c.l.b16 %v53
  %v250 = vunpack.c.h.b16 %v53
  %v251 = vunpack.c.l.b16 %v54
  %v252 = vunpack.c.h.b16 %v54
  %v253 = vunpack.c.l.b16 %v55
  %v254 = vunpack.c.h.b16 %v55
  %v255 = vunpack.c.l.b16 %v56
  %v256 = vunpack.c.h.b16 %v56
  %v257 = vunpack.c.l.b16 %v57
  %v258 = vunpack.c.h.b16 %v57
  %v259 = vunpack.c.l.b16 %v58
  %v260 = vunpack.c.h.b16 %v58
  %v261 = vunpack.c.l.b16 %v59
  %v262 = vunpack.c.h.b16 %v59
  %v263 = vunpack.c.l.b16 %v60
  %v264 = vunpack.c.h.b16 %v60
  %v265 = vunpack.c.l.b16 %v61
  %v266 = vunpack.c.h.b16 %v61
  %v267 = vunpack.c.l.b16 %v62
  %v268 = vunpack.c.h.b16 %v62
  %v269 = vunpack.c.l.b16 %v63
  %v270 = vunpack.c.h.b16 %v63
  %v271 = vunpack.c.l.b16 %v64
  %v272 = vunpack.c.h.b16 %v64
  %v273 = vunpack.c.l.b16 %v65
  %v274 = vunpack.c.h.b16 %v65
  %v275 = vunpack.c.l.b16 %v66
  %v276 = vunpack.c.h.b16 %v66
  %v277 = vunpack.c.l.b16 %v67
  %v278 = vunpack.c.h.b16 %v67
  %v279 = vunpack.c.l.b16 %v68
  %v280 = vunpack.c.h.b16 %v68
  %v281 = vunpack.c.l.b16 %v69
  %v282 = vunpack.c.h.b16 %v69
  %v283 = vunpack.c.l.b16 %v70
  %v284 = vunpack.c.h.b16 %v70
  %v285 = vunpack.c.l.b16 %v71
  %v286 = vunpack.c.h.b16 %v71
  %v287 = vunpack.c.l.b16 %v72
  %v288 = vunpack.c.h.b16 %v72
  %v289 = vunpack.c.l.b16 %v73
  %v290 = vunpack.c.h.b16 %v73
  %v291 = vunpack.c.l.b16 %v74
  %v292 = vunpack.c.h.b16 %v74
  %v293 = vunpack.c.l.b16 %v75
  %v294 = vunpack.c.h.b16 %v75
  %v295 = vunpack.c.l.b16 %v76
  %v296 = vunpack.c.h.b16 %v76
  %v297 = vunpack.c.l.b16 %v77
  %v298 = vunpack.c.h.b16 %v77
  %v299 = vunpack.c.l.b16 %v78
  %v300 = vunpack.c.h.b16 %v78
  %v301 = vunpack.c.l.b16 %v79
  %v302 = vunpack.c.h.b16 %v79
  %v303 = vunpack.c.l.b16 %v80
  %v304 = vunpack.c.h.b16 %v80
  %v305 = vpack.c.b16 %v179, %v177
  %v306 = vpack.c.b16 %v180, %v178
  %v307 = vpack.c.b16 %v183, %v181
  %v308 = vpack.c.b16 %v184, %v182
  %v309 = vpack.c.b16 %v187, %v185
  %v310 = vpack.c.b16 %v188, %v186
  %v311 = vpack.c.b16 %v191, %v189
  %v312 = vpack.c.b16 %v192, %v190
  %v313 = vpack.c.b16 %v195, %v193
  %v314 = vpack.c.b16 %v196, %v194
  %v315 = vpack.c.b16 %v199, %v197
  %v316 = vpack.c.b16 %v200, %v198
  %v317 = vpack.c.b16 %v203, %v201
  %v318 = vpack.c.b16 %v204, %v202
  %v319 = vpack.c.b16 %v207, %v205
  %v320 = vpack.c.b16 %v208, %v206
  %v321 = vpack.c.b16 %v211, %v209
  %v322 = vpack.c.b16 %v212, %v210
  %v323 = vpack.c.b16 %v215, %v213
  %v324 = vpack.c.b16 %v216, %v214
  %v325 = vpack.c.b16 %v219, %v217
  %v326 = vpack.c.b16 %v220, %v218
  %v327 = vpack.c.b16 %v223, %v221
  %v328 = vpack.c.b16 %v224, %v222
  %v329 = vpack.c.b16 %v227, %v225
  %v330 = vpack.c.b16 %v228, %v226
  %v331 = vpack.c.b16 %v231, %v229
  %v332 = vpack.c.b16 %v232, %v230
  %v333 = vpack.c.b16 %v235, %v233
  %v334 = vpack.c.b16 %v236, %v234
  %v335 = vpack.c.b16 %v239, %v237
  %v336 = vpack.c.b16 %v240, %v238
  %v337 = vpack.c.b16 %v243, %v241
  %v338 = vpack.c.b16 %v244, %v242
  %v339 = vpack.c.b16 %v247, %v245
  %v340 = vpack.c.b16 %v248, %v246
  %v341 = vpack.c.b16 %v251, %v249
  %v342 = vpack.c.b16 %v252, %v250
  %v343 = vpack.c.b16 %v255, %v253
  %v344 = vpack.c.b16 %v256, %v254
  %v345 = vpack.c.b16 %v259, %v257
  %v346 = vpack.c.b16 %v260, %v258
  %v347 = vpack.c.b16 %v263, %v261
  %v348 = vpack.c.b16 %v264, %v262
  %v349 = vpack.c.b16 %v267, %v265
  %v350 = vpack.c.b16 %v268, %v266
  %v351 = vpack.c.b16 %v271, %v269
  %v352 = vpack.c.b16 %v272, %v270
  %v353 = vpack.c.b16 %v275, %v273
  %v354 = vpack.c.b16 %v276, %v274
  %v355 = vpack.c.b16 %v279, %v277
  %v356 = vpack.c.b16 %v280, %v278
  %v357 = vpack.c.b16 %v283, %v281
  %v358 = vpack.c.b16 %v284, %v282
  %v359 = vpack.c.b16 %v287, %v285
  %v360 = vpack.c.b16 %v288, %v286
  %v361 = vpack.c.b16 %v291, %v289
  %v362 = vpack.c.b16 %v292, %v290
  %v363 = vpack.c.b16 %v295, %v293
  %v364 = vpack.c.b16 %v296, %v294
  %v365 = vpack.c.b16 %v299, %v297
  %v366 = vpack.c.b16 %v300, %v298
  %v367 = vpack.c.b16 %v303, %v301
  %v368 = vpack.c.b16 %v304, %v302
  %v465 = vunpack.c.l.b16 %v81
  %v466 = vunpack.c.h.b16 %v81
  %v467 = vunpack.c.l.b16 %v82
  %v468 = vunpack.c.h.b16 %v82
  %v469 = vunpack.c.l.b16 %v83
  %v470 = vunpack.c.h.b16 %v83
  %v471 = vunpack.c.l.b16 %v84
  %v472 = vunpack.c.h.b16 %v84
  %v473 = vunpack.c.l.b16 %v85
  %v474 = vunpack.c.h.b16 %v85
  %v475 = vunpack.c.l.b16 %v86
  %v476 = vunpack.c.h.b16 %v86
  %v477 = vunpack.c.l.b16 %v87
  %v478 = vunpack.c.h.b16 %v87
  %v479 = vunpack.c.l.b16 %v88
  %v480 = vunpack.c.h.b16 %v88
  %v481 = vunpack.c.l.b16 %v89
  %v482 = vunpack.c.h.b16 %v89
  %v483 = vunpack.c.l.b16 %v90
  %v484 = vunpack.c.h.b16 %v90
  %v485 = vunpack.c.l.b16 %v91
  %v486 = vunpack.c.h.b16 %v91
  %v487 = vunpack.c.l.b16 %v92
  %v488 = vunpack.c.h.b16 %v92
  %v489 = vunpack.c.l.b16 %v93
  %v490 = vunpack.c.h.b16 %v93
  %v491 = vunpack.c.l.b16 %v94
  %v492 = vunpack.c.h.b16 %v94
  %v493 = vunpack.c.l.b16 %v95
  %v494 = vunpack.c.h.b16 %v95
  %v495 = vunpack.c.l.b16 %v96
  %v496 = vunpack.c.h.b16 %v96
  %v497 = vunpack.c.l.b16 %v97
  %v498 = vunpack.c.h.b16 %v97
  %v499 = vunpack.c.l.b16 %v98
  %v500 = vunpack.c.h.b16 %v98
  %v501 = vunpack.c.l.b16 %v99
  %v502 = vunpack.c.h.b16 %v99
  %v503 = vunpack.c.l.b16 %v100
  %v504 = vunpack.c.h.b16 %v100
  %v505 = vunpack.c.l.b16 %v101
  %v506 = vunpack.c.h.b16 %v101
  %v507 = vunpack.c.l.b16 %v102
  %v508 = vunpack.c.h.b16 %v102
  %v509 = vunpack.c.l.b16 %v103
  %v510 = vunpack.c.h.b16 %v103
  %v511 = vunpack.c.l.b16 %v104
  %v512 = vunpack.c.h.b16 %v104
  %v513 = vunpack.c.l.b16 %v105
  %v514 = vunpack.c.h.b16 %v105
  %v515 = vunpack.c.l.b16 %v106
  %v516 = vunpack.c.h.b16 %v106
  %v517 = vunpack.c.l.b16 %v107
  %v518 = vunpack.c.h.b16 %v107
  %v519 = vunpack.c.l.b16 %v108
  %v520 = vunpack.c.h.b16 %v108
  %v521 = vunpack.c.l.b16 %v109
  %v522 = vunpack.c.h.b16 %v109
  %v523 = vunpack.c.l.b16 %v110
  %v524 = vunpack.c.h.b16 %v110
  %v525 = vunpack.c.l.b16 %v111
  %v526 = vunpack.c.h.b16 %v111
  %v527 = vunpack.c.l.b16 %v112
  %v528 = vunpack.c.h.b16 %v112
  %v529 = vpack.c.b16 %v467, %v465
  %v530 = vpack.c.b16 %v468, %v466
  %v531 = vpack.c.b16 %v471, %v469
  %v532 = vpack.c.b16 %v472, %v470
  %v533 = vpack.c.b16 %v475, %v473
  %v534 = vpack.c.b16 %v476, %v474
  %v535 = vpack.c.b16 %v479, %v477
  %v536 = vpack.c.b16 %v480, %v478
  %v537 = vpack.c.b16 %v483, %v481
  %v538 = vpack.c.b16 %v484, %v482
  %v539 = vpack.c.b16 %v487, %v485
  %v540 = vpack.c.b16 %v488, %v486
  %v541 = vpack.c.b16 %v491, %v489
  %v542 = vpack.c.b16 %v492, %v490
  %v543 = vpack.c.b16 %v495, %v493
  %v544 = vpack.c.b16 %v496, %v494
  %v545 = vpack.c.b16 %v499, %v497
  %v546 = vpack.c.b16 %v500, %v498
  %v547 = vpack.c.b16 %v503, %v501
  %v548 = vpack.c.b16 %v504, %v502
  %v549 = vpack.c.b16 %v507, %v505
  %v550 = vpack.c.b16 %v508, %v506
  %v551 = vpack.c.b16 %v511, %v509
  %v552 = vpack.c.b16 %v512, %v510
  %v553 = vpack.c.b16 %v515, %v513
  %v554 = vpack.c.b16 %v516, %v514
  %v555 = vpack.c.b16 %v519, %v517
  %v556 = vpack.c.b16 %v520, %v518
  %v557 = vpack.c.b16 %v523, %v521
  %v558 = vpack.c.b16 %v524, %v522
  %v559 = vpack.c.b16 %v527, %v525
  %v560 = vpack.c.b16 %v528, %v526
  %593 = vmatprep.subr.bf16.mxu0 %v544
  %594 = vmatpush1.bf16.msra.mxu0 %v543
  %595 = vmatprep.subr.bf16.mxu0 %v542
  %596 = vmatpush1.bf16.msra.mxu0 %v541
  %597 = vmatprep.subr.bf16.mxu0 %v540
  %598 = vmatpush1.bf16.msra.mxu0 %v539
  %599 = vmatprep.subr.bf16.mxu0 %v538
  %600 = vmatpush1.bf16.msra.mxu0 %v537
  %601 = vmatprep.subr.bf16.mxu0 %v536
  %602 = vmatpush1.bf16.msra.mxu0 %v535
  %603 = vmatprep.subr.bf16.mxu0 %v534
  %604 = vmatpush1.bf16.msra.mxu0 %v533
  %605 = vmatprep.subr.bf16.mxu0 %v532
  %606 = vmatpush1.bf16.msra.mxu0 %v531
  %607 = vmatprep.subr.bf16.mxu0 %v530
  %608 = vmatpush1.bf16.msra.mxu0 %v529
  %609 = vmatprep.subr.bf16.mxu0 %v560
  %610 = vmatpush2.bf16.msra.mxu0 %v559
  %611 = vmatprep.subr.bf16.mxu0 %v558
  %612 = vmatpush2.bf16.msra.mxu0 %v557
  %613 = vmatprep.subr.bf16.mxu0 %v556
  %614 = vmatpush2.bf16.msra.mxu0 %v555
  %615 = vmatprep.subr.bf16.mxu0 %v554
  %616 = vmatpush2.bf16.msra.mxu0 %v553
  %617 = vmatprep.subr.bf16.mxu0 %v552
  %618 = vmatpush2.bf16.msra.mxu0 %v551
  %619 = vmatprep.subr.bf16.mxu0 %v550
  %620 = vmatpush2.bf16.msra.mxu0 %v549
  %621 = vmatprep.subr.bf16.mxu0 %v548
  %622 = vmatpush2.bf16.msra.mxu0 %v547
  %623 = vmatprep.subr.bf16.mxu0 %v546
  %624 = vmatpush2.bf16.msra.mxu0 %v545
  %625 = vmatprep.mubr.bf16.mxu0 %v306
  %626 = vmatmul.mubr.bf16.gmra.mxu0 %v305
  %v627 = vpop.f32.mrf.mxu0
  %v628 = vadd.f32 0.0, %v627
  %v629 = vpop.f32.mrf.mxu0
  %v630 = vadd.f32 0.0, %v629
  %v631 = vpop.f32.mrf.mxu0
  %v632 = vadd.f32 0.0, %v631
  %v633 = vpop.f32.mrf.mxu0
  %v634 = vadd.f32 0.0, %v633
  %635 = vmatprep.mubr.bf16.mxu0 %v308
  %636 = vmatmul.mubr.bf16.gmra.mxu0 %v307
  %v637 = vpop.f32.mrf.mxu0
  %v638 = vadd.f32 0.0, %v637
  %v639 = vpop.f32.mrf.mxu0
  %v640 = vadd.f32 0.0, %v639
  %v641 = vpop.f32.mrf.mxu0
  %v642 = vadd.f32 0.0, %v641
  %v643 = vpop.f32.mrf.mxu0
  %v644 = vadd.f32 0.0, %v643
  %645 = vmatprep.mubr.bf16.mxu0 %v310
  %646 = vmatmul.mubr.bf16.gmra.mxu0 %v309
  %v647 = vpop.f32.mrf.mxu0
  %v648 = vadd.f32 0.0, %v647
  %v649 = vpop.f32.mrf.mxu0
  %v650 = vadd.f32 0.0, %v649
  %v651 = vpop.f32.mrf.mxu0
  %v652 = vadd.f32 0.0, %v651
  %v653 = vpop.f32.mrf.mxu0
  %v654 = vadd.f32 0.0, %v653
  %655 = vmatprep.mubr.bf16.mxu0 %v312
  %656 = vmatmul.mubr.bf16.gmra.mxu0 %v311
  %v657 = vpop.f32.mrf.mxu0
  %v658 = vadd.f32 0.0, %v657
  %v659 = vpop.f32.mrf.mxu0
  %v660 = vadd.f32 0.0, %v659
  %v661 = vpop.f32.mrf.mxu0
  %v662 = vadd.f32 0.0, %v661
  %v663 = vpop.f32.mrf.mxu0
  %v664 = vadd.f32 0.0, %v663
  %665 = vmatprep.mubr.bf16.mxu0 %v314
  %666 = vmatmul.mubr.bf16.gmra.mxu0 %v313
  %v667 = vpop.f32.mrf.mxu0
  %v668 = vadd.f32 0.0, %v667
  %v669 = vpop.f32.mrf.mxu0
  %v670 = vadd.f32 0.0, %v669
  %v671 = vpop.f32.mrf.mxu0
  %v672 = vadd.f32 0.0, %v671
  %v673 = vpop.f32.mrf.mxu0
  %v674 = vadd.f32 0.0, %v673
  %675 = vmatprep.mubr.bf16.mxu0 %v316
  %676 = vmatmul.mubr.bf16.gmra.mxu0 %v315
  %v677 = vpop.f32.mrf.mxu0
  %v678 = vadd.f32 0.0, %v677
  %v679 = vpop.f32.mrf.mxu0
  %v680 = vadd.f32 0.0, %v679
  %v681 = vpop.f32.mrf.mxu0
  %v682 = vadd.f32 0.0, %v681
  %v683 = vpop.f32.mrf.mxu0
  %v684 = vadd.f32 0.0, %v683
  %685 = vmatprep.mubr.bf16.mxu0 %v318
  %686 = vmatmul.mubr.bf16.gmra.mxu0 %v317
  %v687 = vpop.f32.mrf.mxu0
  %v688 = vadd.f32 0.0, %v687
  %v689 = vpop.f32.mrf.mxu0
  %v690 = vadd.f32 0.0, %v689
  %v691 = vpop.f32.mrf.mxu0
  %v692 = vadd.f32 0.0, %v691
  %v693 = vpop.f32.mrf.mxu0
  %v694 = vadd.f32 0.0, %v693
  %695 = vmatprep.mubr.bf16.mxu0 %v320
  %696 = vmatmul.mubr.bf16.gmra.mxu0 %v319
  %v697 = vpop.f32.mrf.mxu0
  %v698 = vadd.f32 0.0, %v697
  %v699 = vpop.f32.mrf.mxu0
  %v700 = vadd.f32 0.0, %v699
  %v701 = vpop.f32.mrf.mxu0
  %v702 = vadd.f32 0.0, %v701
  %v703 = vpop.f32.mrf.mxu0
  %v704 = vadd.f32 0.0, %v703
  %705 = vmatprep.mubr.bf16.mxu0 %v322
  %706 = vmatmul.mubr.bf16.gmra.mxu0 %v321
  %v707 = vpop.f32.mrf.mxu0
  %v708 = vadd.f32 0.0, %v707
  %v709 = vpop.f32.mrf.mxu0
  %v710 = vadd.f32 0.0, %v709
  %v711 = vpop.f32.mrf.mxu0
  %v712 = vadd.f32 0.0, %v711
  %v713 = vpop.f32.mrf.mxu0
  %v714 = vadd.f32 0.0, %v713
  %715 = vmatprep.mubr.bf16.mxu0 %v324
  %716 = vmatmul.mubr.bf16.gmra.mxu0 %v323
  %v717 = vpop.f32.mrf.mxu0
  %v718 = vadd.f32 0.0, %v717
  %v719 = vpop.f32.mrf.mxu0
  %v720 = vadd.f32 0.0, %v719
  %v721 = vpop.f32.mrf.mxu0
  %v722 = vadd.f32 0.0, %v721
  %v723 = vpop.f32.mrf.mxu0
  %v724 = vadd.f32 0.0, %v723
  %725 = vmatprep.mubr.bf16.mxu0 %v326
  %726 = vmatmul.mubr.bf16.gmra.mxu0 %v325
  %v727 = vpop.f32.mrf.mxu0
  %v728 = vadd.f32 0.0, %v727
  %v729 = vpop.f32.mrf.mxu0
  %v730 = vadd.f32 0.0, %v729
  %v731 = vpop.f32.mrf.mxu0
  %v732 = vadd.f32 0.0, %v731
  %v733 = vpop.f32.mrf.mxu0
  %v734 = vadd.f32 0.0, %v733
  %735 = vmatprep.mubr.bf16.mxu0 %v328
  %736 = vmatmul.mubr.bf16.gmra.mxu0 %v327
  %v737 = vpop.f32.mrf.mxu0
  %v738 = vadd.f32 0.0, %v737
  %v739 = vpop.f32.mrf.mxu0
  %v740 = vadd.f32 0.0, %v739
  %v741 = vpop.f32.mrf.mxu0
  %v742 = vadd.f32 0.0, %v741
  %v743 = vpop.f32.mrf.mxu0
  %v744 = vadd.f32 0.0, %v743
  %745 = vmatprep.mubr.bf16.mxu0 %v330
  %746 = vmatmul.mubr.bf16.gmra.mxu0 %v329
  %v747 = vpop.f32.mrf.mxu0
  %v748 = vadd.f32 0.0, %v747
  %v749 = vpop.f32.mrf.mxu0
  %v750 = vadd.f32 0.0, %v749
  %v751 = vpop.f32.mrf.mxu0
  %v752 = vadd.f32 0.0, %v751
  %v753 = vpop.f32.mrf.mxu0
  %v754 = vadd.f32 0.0, %v753
  %755 = vmatprep.mubr.bf16.mxu0 %v332
  %756 = vmatmul.mubr.bf16.gmra.mxu0 %v331
  %v757 = vpop.f32.mrf.mxu0
  %v758 = vadd.f32 0.0, %v757
  %v759 = vpop.f32.mrf.mxu0
  %v760 = vadd.f32 0.0, %v759
  %v761 = vpop.f32.mrf.mxu0
  %v762 = vadd.f32 0.0, %v761
  %v763 = vpop.f32.mrf.mxu0
  %v764 = vadd.f32 0.0, %v763
  %765 = vmatprep.mubr.bf16.mxu0 %v334
  %766 = vmatmul.mubr.bf16.gmra.mxu0 %v333
  %v767 = vpop.f32.mrf.mxu0
  %v768 = vadd.f32 0.0, %v767
  %v769 = vpop.f32.mrf.mxu0
  %v770 = vadd.f32 0.0, %v769
  %v771 = vpop.f32.mrf.mxu0
  %v772 = vadd.f32 0.0, %v771
  %v773 = vpop.f32.mrf.mxu0
  %v774 = vadd.f32 0.0, %v773
  %775 = vmatprep.mubr.bf16.mxu0 %v336
  %776 = vmatmul.mubr.bf16.gmra.mxu0 %v335
  %v777 = vpop.f32.mrf.mxu0
  %v778 = vadd.f32 0.0, %v777
  %v779 = vpop.f32.mrf.mxu0
  %v780 = vadd.f32 0.0, %v779
  %v781 = vpop.f32.mrf.mxu0
  %v782 = vadd.f32 0.0, %v781
  %v783 = vpop.f32.mrf.mxu0
  %v784 = vadd.f32 0.0, %v783
  %785 = vmatprep.mubr.bf16.mxu0 %v338
  %786 = vmatmul.mubr.bf16.gmra.mxu0 %v337
  %v787 = vpop.f32.mrf.mxu0
  %v788 = vadd.f32 0.0, %v787
  %v789 = vpop.f32.mrf.mxu0
  %v790 = vadd.f32 0.0, %v789
  %v791 = vpop.f32.mrf.mxu0
  %v792 = vadd.f32 0.0, %v791
  %v793 = vpop.f32.mrf.mxu0
  %v794 = vadd.f32 0.0, %v793
  %795 = vmatprep.mubr.bf16.mxu0 %v340
  %796 = vmatmul.mubr.bf16.gmra.mxu0 %v339
  %v797 = vpop.f32.mrf.mxu0
  %v798 = vadd.f32 0.0, %v797
  %v799 = vpop.f32.mrf.mxu0
  %v800 = vadd.f32 0.0, %v799
  %v801 = vpop.f32.mrf.mxu0
  %v802 = vadd.f32 0.0, %v801
  %v803 = vpop.f32.mrf.mxu0
  %v804 = vadd.f32 0.0, %v803
  %805 = vmatprep.mubr.bf16.mxu0 %v342
  %806 = vmatmul.mubr.bf16.gmra.mxu0 %v341
  %v807 = vpop.f32.mrf.mxu0
  %v808 = vadd.f32 0.0, %v807
  %v809 = vpop.f32.mrf.mxu0
  %v810 = vadd.f32 0.0, %v809
  %v811 = vpop.f32.mrf.mxu0
  %v812 = vadd.f32 0.0, %v811
  %v813 = vpop.f32.mrf.mxu0
  %v814 = vadd.f32 0.0, %v813
  %815 = vmatprep.mubr.bf16.mxu0 %v344
  %816 = vmatmul.mubr.bf16.gmra.mxu0 %v343
  %v817 = vpop.f32.mrf.mxu0
  %v818 = vadd.f32 0.0, %v817
  %v819 = vpop.f32.mrf.mxu0
  %v820 = vadd.f32 0.0, %v819
  %v821 = vpop.f32.mrf.mxu0
  %v822 = vadd.f32 0.0, %v821
  %v823 = vpop.f32.mrf.mxu0
  %v824 = vadd.f32 0.0, %v823
  %825 = vmatprep.mubr.bf16.mxu0 %v346
  %826 = vmatmul.mubr.bf16.gmra.mxu0 %v345
  %v827 = vpop.f32.mrf.mxu0
  %v828 = vadd.f32 0.0, %v827
  %v829 = vpop.f32.mrf.mxu0
  %v830 = vadd.f32 0.0, %v829
  %v831 = vpop.f32.mrf.mxu0
  %v832 = vadd.f32 0.0, %v831
  %v833 = vpop.f32.mrf.mxu0
  %v834 = vadd.f32 0.0, %v833
  %835 = vmatprep.mubr.bf16.mxu0 %v348
  %836 = vmatmul.mubr.bf16.gmra.mxu0 %v347
  %v837 = vpop.f32.mrf.mxu0
  %v838 = vadd.f32 0.0, %v837
  %v839 = vpop.f32.mrf.mxu0
  %v840 = vadd.f32 0.0, %v839
  %v841 = vpop.f32.mrf.mxu0
  %v842 = vadd.f32 0.0, %v841
  %v843 = vpop.f32.mrf.mxu0
  %v844 = vadd.f32 0.0, %v843
  %845 = vmatprep.mubr.bf16.mxu0 %v350
  %846 = vmatmul.mubr.bf16.gmra.mxu0 %v349
  %v847 = vpop.f32.mrf.mxu0
  %v848 = vadd.f32 0.0, %v847
  %v849 = vpop.f32.mrf.mxu0
  %v850 = vadd.f32 0.0, %v849
  %v851 = vpop.f32.mrf.mxu0
  %v852 = vadd.f32 0.0, %v851
  %v853 = vpop.f32.mrf.mxu0
  %v854 = vadd.f32 0.0, %v853
  %855 = vmatprep.mubr.bf16.mxu0 %v352
  %856 = vmatmul.mubr.bf16.gmra.mxu0 %v351
  %v857 = vpop.f32.mrf.mxu0
  %v858 = vadd.f32 0.0, %v857
  %v859 = vpop.f32.mrf.mxu0
  %v860 = vadd.f32 0.0, %v859
  %v861 = vpop.f32.mrf.mxu0
  %v862 = vadd.f32 0.0, %v861
  %v863 = vpop.f32.mrf.mxu0
  %v864 = vadd.f32 0.0, %v863
  %865 = vmatprep.mubr.bf16.mxu0 %v354
  %866 = vmatmul.mubr.bf16.gmra.mxu0 %v353
  %v867 = vpop.f32.mrf.mxu0
  %v868 = vadd.f32 0.0, %v867
  %v869 = vpop.f32.mrf.mxu0
  %v870 = vadd.f32 0.0, %v869
  %v871 = vpop.f32.mrf.mxu0
  %v872 = vadd.f32 0.0, %v871
  %v873 = vpop.f32.mrf.mxu0
  %v874 = vadd.f32 0.0, %v873
  %875 = vmatprep.mubr.bf16.mxu0 %v356
  %876 = vmatmul.mubr.bf16.gmra.mxu0 %v355
  %v877 = vpop.f32.mrf.mxu0
  %v878 = vadd.f32 0.0, %v877
  %v879 = vpop.f32.mrf.mxu0
  %v880 = vadd.f32 0.0, %v879
  %v881 = vpop.f32.mrf.mxu0
  %v882 = vadd.f32 0.0, %v881
  %v883 = vpop.f32.mrf.mxu0
  %v884 = vadd.f32 0.0, %v883
  %885 = vmatprep.mubr.bf16.mxu0 %v358
  %886 = vmatmul.mubr.bf16.gmra.mxu0 %v357
  %v887 = vpop.f32.mrf.mxu0
  %v888 = vadd.f32 0.0, %v887
  %v889 = vpop.f32.mrf.mxu0
  %v890 = vadd.f32 0.0, %v889
  %v891 = vpop.f32.mrf.mxu0
  %v892 = vadd.f32 0.0, %v891
  %v893 = vpop.f32.mrf.mxu0
  %v894 = vadd.f32 0.0, %v893
  %895 = vmatprep.mubr.bf16.mxu0 %v360
  %896 = vmatmul.mubr.bf16.gmra.mxu0 %v359
  %v897 = vpop.f32.mrf.mxu0
  %v898 = vadd.f32 0.0, %v897
  %v899 = vpop.f32.mrf.mxu0
  %v900 = vadd.f32 0.0, %v899
  %v901 = vpop.f32.mrf.mxu0
  %v902 = vadd.f32 0.0, %v901
  %v903 = vpop.f32.mrf.mxu0
  %v904 = vadd.f32 0.0, %v903
  %905 = vmatprep.mubr.bf16.mxu0 %v362
  %906 = vmatmul.mubr.bf16.gmra.mxu0 %v361
  %v907 = vpop.f32.mrf.mxu0
  %v908 = vadd.f32 0.0, %v907
  %v909 = vpop.f32.mrf.mxu0
  %v910 = vadd.f32 0.0, %v909
  %v911 = vpop.f32.mrf.mxu0
  %v912 = vadd.f32 0.0, %v911
  %v913 = vpop.f32.mrf.mxu0
  %v914 = vadd.f32 0.0, %v913
  %915 = vmatprep.mubr.bf16.mxu0 %v364
  %916 = vmatmul.mubr.bf16.gmra.mxu0 %v363
  %v917 = vpop.f32.mrf.mxu0
  %v918 = vadd.f32 0.0, %v917
  %v919 = vpop.f32.mrf.mxu0
  %v920 = vadd.f32 0.0, %v919
  %v921 = vpop.f32.mrf.mxu0
  %v922 = vadd.f32 0.0, %v921
  %v923 = vpop.f32.mrf.mxu0
  %v924 = vadd.f32 0.0, %v923
  %925 = vmatprep.mubr.bf16.mxu0 %v366
  %926 = vmatmul.mubr.bf16.gmra.mxu0 %v365
  %v927 = vpop.f32.mrf.mxu0
  %v928 = vadd.f32 0.0, %v927
  %v929 = vpop.f32.mrf.mxu0
  %v930 = vadd.f32 0.0, %v929
  %v931 = vpop.f32.mrf.mxu0
  %v932 = vadd.f32 0.0, %v931
  %v933 = vpop.f32.mrf.mxu0
  %v934 = vadd.f32 0.0, %v933
  %935 = vmatprep.mubr.bf16.mxu0 %v368
  %936 = vmatmul.mubr.bf16.gmra.mxu0 %v367
  %v937 = vpop.f32.mrf.mxu0
  %v938 = vadd.f32 0.0, %v937
  %v939 = vpop.f32.mrf.mxu0
  %v940 = vadd.f32 0.0, %v939
  %v941 = vpop.f32.mrf.mxu0
  %v942 = vadd.f32 0.0, %v941
  %v943 = vpop.f32.mrf.mxu0
  %v944 = vadd.f32 0.0, %v943
  %945 = vdwg.mxu0
  %v946 = vld [vmem:[%s2] sm:$0x3]
  %v948 = vlaneseq
  %v949 = vshrl.u32 %v948, 7
  %v950 = vsub.s32 0, %v949
  %v951 = vrot.slane %v946, %v950
  %v952 = vlaneseq
  %v953 = vshrl.u32 %v952, 7
  %v954 = vsub.s32 1, %v953
  %v955 = vrot.slane %v946, %v954
  %v958 = vmul.f32 %v628, %v951
  %v959 = vmul.f32 %v630, %v955
  %v960 = vmul.f32 %v632, %v951
  %v961 = vmul.f32 %v634, %v955
  %v962 = vmul.f32 %v638, %v951
  %v963 = vmul.f32 %v640, %v955
  %v964 = vmul.f32 %v642, %v951
  %v965 = vmul.f32 %v644, %v955
  %v966 = vmul.f32 %v648, %v951
  %v967 = vmul.f32 %v650, %v955
  %v968 = vmul.f32 %v652, %v951
  %v969 = vmul.f32 %v654, %v955
  %v970 = vmul.f32 %v658, %v951
  %v971 = vmul.f32 %v660, %v955
  %v972 = vmul.f32 %v662, %v951
  %v973 = vmul.f32 %v664, %v955
  %v974 = vmul.f32 %v668, %v951
  %v975 = vmul.f32 %v670, %v955
  %v976 = vmul.f32 %v672, %v951
  %v977 = vmul.f32 %v674, %v955
  %v978 = vmul.f32 %v678, %v951
  %v979 = vmul.f32 %v680, %v955
  %v980 = vmul.f32 %v682, %v951
  %v981 = vmul.f32 %v684, %v955
  %v982 = vmul.f32 %v688, %v951
  %v983 = vmul.f32 %v690, %v955
  %v984 = vmul.f32 %v692, %v951
  %v985 = vmul.f32 %v694, %v955
  %v986 = vmul.f32 %v698, %v951
  %v987 = vmul.f32 %v700, %v955
  %v988 = vmul.f32 %v702, %v951
  %v989 = vmul.f32 %v704, %v955
  %v990 = vmul.f32 %v708, %v951
  %v991 = vmul.f32 %v710, %v955
  %v992 = vmul.f32 %v712, %v951
  %v993 = vmul.f32 %v714, %v955
  %v994 = vmul.f32 %v718, %v951
  %v995 = vmul.f32 %v720, %v955
  %v996 = vmul.f32 %v722, %v951
  %v997 = vmul.f32 %v724, %v955
  %v998 = vmul.f32 %v728, %v951
  %v999 = vmul.f32 %v730, %v955
  %v1000 = vmul.f32 %v732, %v951
  %v1001 = vmul.f32 %v734, %v955
  %v1002 = vmul.f32 %v738, %v951
  %v1003 = vmul.f32 %v740, %v955
  %v1004 = vmul.f32 %v742, %v951
  %v1005 = vmul.f32 %v744, %v955
  %v1006 = vmul.f32 %v748, %v951
  %v1007 = vmul.f32 %v750, %v955
  %v1008 = vmul.f32 %v752, %v951
  %v1009 = vmul.f32 %v754, %v955
  %v1010 = vmul.f32 %v758, %v951
  %v1011 = vmul.f32 %v760, %v955
  %v1012 = vmul.f32 %v762, %v951
  %v1013 = vmul.f32 %v764, %v955
  %v1014 = vmul.f32 %v768, %v951
  %v1015 = vmul.f32 %v770, %v955
  %v1016 = vmul.f32 %v772, %v951
  %v1017 = vmul.f32 %v774, %v955
  %v1018 = vmul.f32 %v778, %v951
  %v1019 = vmul.f32 %v780, %v955
  %v1020 = vmul.f32 %v782, %v951
  %v1021 = vmul.f32 %v784, %v955
  %v1022 = vmul.f32 %v788, %v951
  %v1023 = vmul.f32 %v790, %v955
  %v1024 = vmul.f32 %v792, %v951
  %v1025 = vmul.f32 %v794, %v955
  %v1026 = vmul.f32 %v798, %v951
  %v1027 = vmul.f32 %v800, %v955
  %v1028 = vmul.f32 %v802, %v951
  %v1029 = vmul.f32 %v804, %v955
  %v1030 = vmul.f32 %v808, %v951
  %v1031 = vmul.f32 %v810, %v955
  %v1032 = vmul.f32 %v812, %v951
  %v1033 = vmul.f32 %v814, %v955
  %v1034 = vmul.f32 %v818, %v951
  %v1035 = vmul.f32 %v820, %v955
  %v1036 = vmul.f32 %v822, %v951
  %v1037 = vmul.f32 %v824, %v955
  %v1038 = vmul.f32 %v828, %v951
  %v1039 = vmul.f32 %v830, %v955
  %v1040 = vmul.f32 %v832, %v951
  %v1041 = vmul.f32 %v834, %v955
  %v1042 = vmul.f32 %v838, %v951
  %v1043 = vmul.f32 %v840, %v955
  %v1044 = vmul.f32 %v842, %v951
  %v1045 = vmul.f32 %v844, %v955
  %v1046 = vmul.f32 %v848, %v951
  %v1047 = vmul.f32 %v850, %v955
  %v1048 = vmul.f32 %v852, %v951
  %v1049 = vmul.f32 %v854, %v955
  %v1050 = vmul.f32 %v858, %v951
  %v1051 = vmul.f32 %v860, %v955
  %v1052 = vmul.f32 %v862, %v951
  %v1053 = vmul.f32 %v864, %v955
  %v1054 = vmul.f32 %v868, %v951
  %v1055 = vmul.f32 %v870, %v955
  %v1056 = vmul.f32 %v872, %v951
  %v1057 = vmul.f32 %v874, %v955
  %v1058 = vmul.f32 %v878, %v951
  %v1059 = vmul.f32 %v880, %v955
  %v1060 = vmul.f32 %v882, %v951
  %v1061 = vmul.f32 %v884, %v955
  %v1062 = vmul.f32 %v888, %v951
  %v1063 = vmul.f32 %v890, %v955
  %v1064 = vmul.f32 %v892, %v951
  %v1065 = vmul.f32 %v894, %v955
  %v1066 = vmul.f32 %v898, %v951
  %v1067 = vmul.f32 %v900, %v955
  %v1068 = vmul.f32 %v902, %v951
  %v1069 = vmul.f32 %v904, %v955
  %v1070 = vmul.f32 %v908, %v951
  %v1071 = vmul.f32 %v910, %v955
  %v1072 = vmul.f32 %v912, %v951
  %v1073 = vmul.f32 %v914, %v955
  %v1074 = vmul.f32 %v918, %v951
  %v1075 = vmul.f32 %v920, %v955
  %v1076 = vmul.f32 %v922, %v951
  %v1077 = vmul.f32 %v924, %v955
  %v1078 = vmul.f32 %v928, %v951
  %v1079 = vmul.f32 %v930, %v955
  %v1080 = vmul.f32 %v932, %v951
  %v1081 = vmul.f32 %v934, %v955
  %v1082 = vmul.f32 %v938, %v951
  %v1083 = vmul.f32 %v940, %v955
  %v1084 = vmul.f32 %v942, %v951
  %v1085 = vmul.f32 %v944, %v955
  %v1086 = vld [vmem:[%s3] sm:$0x3]
  %v1088 = vlaneseq
  %v1089 = vshrl.u32 %v1088, 7
  %v1090 = vsub.s32 0, %v1089
  %v1091 = vrot.slane %v1086, %v1090
  %v1092 = vlaneseq
  %v1093 = vshrl.u32 %v1092, 7
  %v1094 = vsub.s32 1, %v1093
  %v1095 = vrot.slane %v1086, %v1094
  %v1098 = vadd.f32 %v958, %v1091
  %v1099 = vadd.f32 %v959, %v1095
  %v1100 = vadd.f32 %v960, %v1091
  %v1101 = vadd.f32 %v961, %v1095
  %v1102 = vadd.f32 %v962, %v1091
  %v1103 = vadd.f32 %v963, %v1095
  %v1104 = vadd.f32 %v964, %v1091
  %v1105 = vadd.f32 %v965, %v1095
  %v1106 = vadd.f32 %v966, %v1091
  %v1107 = vadd.f32 %v967, %v1095
  %v1108 = vadd.f32 %v968, %v1091
  %v1109 = vadd.f32 %v969, %v1095
  %v1110 = vadd.f32 %v970, %v1091
  %v1111 = vadd.f32 %v971, %v1095
  %v1112 = vadd.f32 %v972, %v1091
  %v1113 = vadd.f32 %v973, %v1095
  %v1114 = vadd.f32 %v974, %v1091
  %v1115 = vadd.f32 %v975, %v1095
  %v1116 = vadd.f32 %v976, %v1091
  %v1117 = vadd.f32 %v977, %v1095
  %v1118 = vadd.f32 %v978, %v1091
  %v1119 = vadd.f32 %v979, %v1095
  %v1120 = vadd.f32 %v980, %v1091
  %v1121 = vadd.f32 %v981, %v1095
  %v1122 = vadd.f32 %v982, %v1091
  %v1123 = vadd.f32 %v983, %v1095
  %v1124 = vadd.f32 %v984, %v1091
  %v1125 = vadd.f32 %v985, %v1095
  %v1126 = vadd.f32 %v986, %v1091
  %v1127 = vadd.f32 %v987, %v1095
  %v1128 = vadd.f32 %v988, %v1091
  %v1129 = vadd.f32 %v989, %v1095
  %v1130 = vadd.f32 %v990, %v1091
  %v1131 = vadd.f32 %v991, %v1095
  %v1132 = vadd.f32 %v992, %v1091
  %v1133 = vadd.f32 %v993, %v1095
  %v1134 = vadd.f32 %v994, %v1091
  %v1135 = vadd.f32 %v995, %v1095
  %v1136 = vadd.f32 %v996, %v1091
  %v1137 = vadd.f32 %v997, %v1095
  %v1138 = vadd.f32 %v998, %v1091
  %v1139 = vadd.f32 %v999, %v1095
  %v1140 = vadd.f32 %v1000, %v1091
  %v1141 = vadd.f32 %v1001, %v1095
  %v1142 = vadd.f32 %v1002, %v1091
  %v1143 = vadd.f32 %v1003, %v1095
  %v1144 = vadd.f32 %v1004, %v1091
  %v1145 = vadd.f32 %v1005, %v1095
  %v1146 = vadd.f32 %v1006, %v1091
  %v1147 = vadd.f32 %v1007, %v1095
  %v1148 = vadd.f32 %v1008, %v1091
  %v1149 = vadd.f32 %v1009, %v1095
  %v1150 = vadd.f32 %v1010, %v1091
  %v1151 = vadd.f32 %v1011, %v1095
  %v1152 = vadd.f32 %v1012, %v1091
  %v1153 = vadd.f32 %v1013, %v1095
  %v1154 = vadd.f32 %v1014, %v1091
  %v1155 = vadd.f32 %v1015, %v1095
  %v1156 = vadd.f32 %v1016, %v1091
  %v1157 = vadd.f32 %v1017, %v1095
  %v1158 = vadd.f32 %v1018, %v1091
  %v1159 = vadd.f32 %v1019, %v1095
  %v1160 = vadd.f32 %v1020, %v1091
  %v1161 = vadd.f32 %v1021, %v1095
  %v1162 = vadd.f32 %v1022, %v1091
  %v1163 = vadd.f32 %v1023, %v1095
  %v1164 = vadd.f32 %v1024, %v1091
  %v1165 = vadd.f32 %v1025, %v1095
  %v1166 = vadd.f32 %v1026, %v1091
  %v1167 = vadd.f32 %v1027, %v1095
  %v1168 = vadd.f32 %v1028, %v1091
  %v1169 = vadd.f32 %v1029, %v1095
  %v1170 = vadd.f32 %v1030, %v1091
  %v1171 = vadd.f32 %v1031, %v1095
  %v1172 = vadd.f32 %v1032, %v1091
  %v1173 = vadd.f32 %v1033, %v1095
  %v1174 = vadd.f32 %v1034, %v1091
  %v1175 = vadd.f32 %v1035, %v1095
  %v1176 = vadd.f32 %v1036, %v1091
  %v1177 = vadd.f32 %v1037, %v1095
  %v1178 = vadd.f32 %v1038, %v1091
  %v1179 = vadd.f32 %v1039, %v1095
  %v1180 = vadd.f32 %v1040, %v1091
  %v1181 = vadd.f32 %v1041, %v1095
  %v1182 = vadd.f32 %v1042, %v1091
  %v1183 = vadd.f32 %v1043, %v1095
  %v1184 = vadd.f32 %v1044, %v1091
  %v1185 = vadd.f32 %v1045, %v1095
  %v1186 = vadd.f32 %v1046, %v1091
  %v1187 = vadd.f32 %v1047, %v1095
  %v1188 = vadd.f32 %v1048, %v1091
  %v1189 = vadd.f32 %v1049, %v1095
  %v1190 = vadd.f32 %v1050, %v1091
  %v1191 = vadd.f32 %v1051, %v1095
  %v1192 = vadd.f32 %v1052, %v1091
  %v1193 = vadd.f32 %v1053, %v1095
  %v1194 = vadd.f32 %v1054, %v1091
  %v1195 = vadd.f32 %v1055, %v1095
  %v1196 = vadd.f32 %v1056, %v1091
  %v1197 = vadd.f32 %v1057, %v1095
  %v1198 = vadd.f32 %v1058, %v1091
  %v1199 = vadd.f32 %v1059, %v1095
  %v1200 = vadd.f32 %v1060, %v1091
  %v1201 = vadd.f32 %v1061, %v1095
  %v1202 = vadd.f32 %v1062, %v1091
  %v1203 = vadd.f32 %v1063, %v1095
  %v1204 = vadd.f32 %v1064, %v1091
  %v1205 = vadd.f32 %v1065, %v1095
  %v1206 = vadd.f32 %v1066, %v1091
  %v1207 = vadd.f32 %v1067, %v1095
  %v1208 = vadd.f32 %v1068, %v1091
  %v1209 = vadd.f32 %v1069, %v1095
  %v1210 = vadd.f32 %v1070, %v1091
  %v1211 = vadd.f32 %v1071, %v1095
  %v1212 = vadd.f32 %v1072, %v1091
  %v1213 = vadd.f32 %v1073, %v1095
  %v1214 = vadd.f32 %v1074, %v1091
  %v1215 = vadd.f32 %v1075, %v1095
  %v1216 = vadd.f32 %v1076, %v1091
  %v1217 = vadd.f32 %v1077, %v1095
  %v1218 = vadd.f32 %v1078, %v1091
  %v1219 = vadd.f32 %v1079, %v1095
  %v1220 = vadd.f32 %v1080, %v1091
  %v1221 = vadd.f32 %v1081, %v1095
  %v1222 = vadd.f32 %v1082, %v1091
  %v1223 = vadd.f32 %v1083, %v1095
  %v1224 = vadd.f32 %v1084, %v1091
  %v1225 = vadd.f32 %v1085, %v1095
  %v1226 = vmax.f32 %v1098, 0.0
  %v1227 = vmax.f32 %v1099, 0.0
  %v1228 = vmax.f32 %v1100, 0.0
  %v1229 = vmax.f32 %v1101, 0.0
  %v1230 = vmax.f32 %v1102, 0.0
  %v1231 = vmax.f32 %v1103, 0.0
  %v1232 = vmax.f32 %v1104, 0.0
  %v1233 = vmax.f32 %v1105, 0.0
  %v1234 = vmax.f32 %v1106, 0.0
  %v1235 = vmax.f32 %v1107, 0.0
  %v1236 = vmax.f32 %v1108, 0.0
  %v1237 = vmax.f32 %v1109, 0.0
  %v1238 = vmax.f32 %v1110, 0.0
  %v1239 = vmax.f32 %v1111, 0.0
  %v1240 = vmax.f32 %v1112, 0.0
  %v1241 = vmax.f32 %v1113, 0.0
  %v1242 = vmax.f32 %v1114, 0.0
  %v1243 = vmax.f32 %v1115, 0.0
  %v1244 = vmax.f32 %v1116, 0.0
  %v1245 = vmax.f32 %v1117, 0.0
  %v1246 = vmax.f32 %v1118, 0.0
  %v1247 = vmax.f32 %v1119, 0.0
  %v1248 = vmax.f32 %v1120, 0.0
  %v1249 = vmax.f32 %v1121, 0.0
  %v1250 = vmax.f32 %v1122, 0.0
  %v1251 = vmax.f32 %v1123, 0.0
  %v1252 = vmax.f32 %v1124, 0.0
  %v1253 = vmax.f32 %v1125, 0.0
  %v1254 = vmax.f32 %v1126, 0.0
  %v1255 = vmax.f32 %v1127, 0.0
  %v1256 = vmax.f32 %v1128, 0.0
  %v1257 = vmax.f32 %v1129, 0.0
  %v1258 = vmax.f32 %v1130, 0.0
  %v1259 = vmax.f32 %v1131, 0.0
  %v1260 = vmax.f32 %v1132, 0.0
  %v1261 = vmax.f32 %v1133, 0.0
  %v1262 = vmax.f32 %v1134, 0.0
  %v1263 = vmax.f32 %v1135, 0.0
  %v1264 = vmax.f32 %v1136, 0.0
  %v1265 = vmax.f32 %v1137, 0.0
  %v1266 = vmax.f32 %v1138, 0.0
  %v1267 = vmax.f32 %v1139, 0.0
  %v1268 = vmax.f32 %v1140, 0.0
  %v1269 = vmax.f32 %v1141, 0.0
  %v1270 = vmax.f32 %v1142, 0.0
  %v1271 = vmax.f32 %v1143, 0.0
  %v1272 = vmax.f32 %v1144, 0.0
  %v1273 = vmax.f32 %v1145, 0.0
  %v1274 = vmax.f32 %v1146, 0.0
  %v1275 = vmax.f32 %v1147, 0.0
  %v1276 = vmax.f32 %v1148, 0.0
  %v1277 = vmax.f32 %v1149, 0.0
  %v1278 = vmax.f32 %v1150, 0.0
  %v1279 = vmax.f32 %v1151, 0.0
  %v1280 = vmax.f32 %v1152, 0.0
  %v1281 = vmax.f32 %v1153, 0.0
  %v1282 = vmax.f32 %v1154, 0.0
  %v1283 = vmax.f32 %v1155, 0.0
  %v1284 = vmax.f32 %v1156, 0.0
  %v1285 = vmax.f32 %v1157, 0.0
  %v1286 = vmax.f32 %v1158, 0.0
  %v1287 = vmax.f32 %v1159, 0.0
  %v1288 = vmax.f32 %v1160, 0.0
  %v1289 = vmax.f32 %v1161, 0.0
  %v1290 = vmax.f32 %v1162, 0.0
  %v1291 = vmax.f32 %v1163, 0.0
  %v1292 = vmax.f32 %v1164, 0.0
  %v1293 = vmax.f32 %v1165, 0.0
  %v1294 = vmax.f32 %v1166, 0.0
  %v1295 = vmax.f32 %v1167, 0.0
  %v1296 = vmax.f32 %v1168, 0.0
  %v1297 = vmax.f32 %v1169, 0.0
  %v1298 = vmax.f32 %v1170, 0.0
  %v1299 = vmax.f32 %v1171, 0.0
  %v1300 = vmax.f32 %v1172, 0.0
  %v1301 = vmax.f32 %v1173, 0.0
  %v1302 = vmax.f32 %v1174, 0.0
  %v1303 = vmax.f32 %v1175, 0.0
  %v1304 = vmax.f32 %v1176, 0.0
  %v1305 = vmax.f32 %v1177, 0.0
  %v1306 = vmax.f32 %v1178, 0.0
  %v1307 = vmax.f32 %v1179, 0.0
  %v1308 = vmax.f32 %v1180, 0.0
  %v1309 = vmax.f32 %v1181, 0.0
  %v1310 = vmax.f32 %v1182, 0.0
  %v1311 = vmax.f32 %v1183, 0.0
  %v1312 = vmax.f32 %v1184, 0.0
  %v1313 = vmax.f32 %v1185, 0.0
  %v1314 = vmax.f32 %v1186, 0.0
  %v1315 = vmax.f32 %v1187, 0.0
  %v1316 = vmax.f32 %v1188, 0.0
  %v1317 = vmax.f32 %v1189, 0.0
  %v1318 = vmax.f32 %v1190, 0.0
  %v1319 = vmax.f32 %v1191, 0.0
  %v1320 = vmax.f32 %v1192, 0.0
  %v1321 = vmax.f32 %v1193, 0.0
  %v1322 = vmax.f32 %v1194, 0.0
  %v1323 = vmax.f32 %v1195, 0.0
  %v1324 = vmax.f32 %v1196, 0.0
  %v1325 = vmax.f32 %v1197, 0.0
  %v1326 = vmax.f32 %v1198, 0.0
  %v1327 = vmax.f32 %v1199, 0.0
  %v1328 = vmax.f32 %v1200, 0.0
  %v1329 = vmax.f32 %v1201, 0.0
  %v1330 = vmax.f32 %v1202, 0.0
  %v1331 = vmax.f32 %v1203, 0.0
  %v1332 = vmax.f32 %v1204, 0.0
  %v1333 = vmax.f32 %v1205, 0.0
  %v1334 = vmax.f32 %v1206, 0.0
  %v1335 = vmax.f32 %v1207, 0.0
  %v1336 = vmax.f32 %v1208, 0.0
  %v1337 = vmax.f32 %v1209, 0.0
  %v1338 = vmax.f32 %v1210, 0.0
  %v1339 = vmax.f32 %v1211, 0.0
  %v1340 = vmax.f32 %v1212, 0.0
  %v1341 = vmax.f32 %v1213, 0.0
  %v1342 = vmax.f32 %v1214, 0.0
  %v1343 = vmax.f32 %v1215, 0.0
  %v1344 = vmax.f32 %v1216, 0.0
  %v1345 = vmax.f32 %v1217, 0.0
  %v1346 = vmax.f32 %v1218, 0.0
  %v1347 = vmax.f32 %v1219, 0.0
  %v1348 = vmax.f32 %v1220, 0.0
  %v1349 = vmax.f32 %v1221, 0.0
  %v1350 = vmax.f32 %v1222, 0.0
  %v1351 = vmax.f32 %v1223, 0.0
  %v1352 = vmax.f32 %v1224, 0.0
  %v1353 = vmax.f32 %v1225, 0.0
  %v1354 = vpack.c.bf16 %v1228, %v1226
  %v1355 = vpack.c.bf16 %v1229, %v1227
  %v1356 = vpack.c.bf16 %v1232, %v1230
  %v1357 = vpack.c.bf16 %v1233, %v1231
  %v1358 = vpack.c.bf16 %v1236, %v1234
  %v1359 = vpack.c.bf16 %v1237, %v1235
  %v1360 = vpack.c.bf16 %v1240, %v1238
  %v1361 = vpack.c.bf16 %v1241, %v1239
  %v1362 = vpack.c.bf16 %v1244, %v1242
  %v1363 = vpack.c.bf16 %v1245, %v1243
  %v1364 = vpack.c.bf16 %v1248, %v1246
  %v1365 = vpack.c.bf16 %v1249, %v1247
  %v1366 = vpack.c.bf16 %v1252, %v1250
  %v1367 = vpack.c.bf16 %v1253, %v1251
  %v1368 = vpack.c.bf16 %v1256, %v1254
  %v1369 = vpack.c.bf16 %v1257, %v1255
  %v1370 = vpack.c.bf16 %v1260, %v1258
  %v1371 = vpack.c.bf16 %v1261, %v1259
  %v1372 = vpack.c.bf16 %v1264, %v1262
  %v1373 = vpack.c.bf16 %v1265, %v1263
  %v1374 = vpack.c.bf16 %v1268, %v1266
  %v1375 = vpack.c.bf16 %v1269, %v1267
  %v1376 = vpack.c.bf16 %v1272, %v1270
  %v1377 = vpack.c.bf16 %v1273, %v1271
  %v1378 = vpack.c.bf16 %v1276, %v1274
  %v1379 = vpack.c.bf16 %v1277, %v1275
  %v1380 = vpack.c.bf16 %v1280, %v1278
  %v1381 = vpack.c.bf16 %v1281, %v1279
  %v1382 = vpack.c.bf16 %v1284, %v1282
  %v1383 = vpack.c.bf16 %v1285, %v1283
  %v1384 = vpack.c.bf16 %v1288, %v1286
  %v1385 = vpack.c.bf16 %v1289, %v1287
  %v1386 = vpack.c.bf16 %v1292, %v1290
  %v1387 = vpack.c.bf16 %v1293, %v1291
  %v1388 = vpack.c.bf16 %v1296, %v1294
  %v1389 = vpack.c.bf16 %v1297, %v1295
  %v1390 = vpack.c.bf16 %v1300, %v1298
  %v1391 = vpack.c.bf16 %v1301, %v1299
  %v1392 = vpack.c.bf16 %v1304, %v1302
  %v1393 = vpack.c.bf16 %v1305, %v1303
  %v1394 = vpack.c.bf16 %v1308, %v1306
  %v1395 = vpack.c.bf16 %v1309, %v1307
  %v1396 = vpack.c.bf16 %v1312, %v1310
  %v1397 = vpack.c.bf16 %v1313, %v1311
  %v1398 = vpack.c.bf16 %v1316, %v1314
  %v1399 = vpack.c.bf16 %v1317, %v1315
  %v1400 = vpack.c.bf16 %v1320, %v1318
  %v1401 = vpack.c.bf16 %v1321, %v1319
  %v1402 = vpack.c.bf16 %v1324, %v1322
  %v1403 = vpack.c.bf16 %v1325, %v1323
  %v1404 = vpack.c.bf16 %v1328, %v1326
  %v1405 = vpack.c.bf16 %v1329, %v1327
  %v1406 = vpack.c.bf16 %v1332, %v1330
  %v1407 = vpack.c.bf16 %v1333, %v1331
  %v1408 = vpack.c.bf16 %v1336, %v1334
  %v1409 = vpack.c.bf16 %v1337, %v1335
  %v1410 = vpack.c.bf16 %v1340, %v1338
  %v1411 = vpack.c.bf16 %v1341, %v1339
  %v1412 = vpack.c.bf16 %v1344, %v1342
  %v1413 = vpack.c.bf16 %v1345, %v1343
  %v1414 = vpack.c.bf16 %v1348, %v1346
  %v1415 = vpack.c.bf16 %v1349, %v1347
  %v1416 = vpack.c.bf16 %v1352, %v1350
  %v1417 = vpack.c.bf16 %v1353, %v1351
  %v1482 = vunpack.c.l.b16 %v1354
  %v1483 = vunpack.c.l.b16 %v1355
  %v1484 = vunpack.c.h.b16 %v1354
  %v1485 = vunpack.c.h.b16 %v1355
  %v1486 = vunpack.c.l.b16 %v1356
  %v1487 = vunpack.c.l.b16 %v1357
  %v1488 = vunpack.c.h.b16 %v1356
  %v1489 = vunpack.c.h.b16 %v1357
  %v1490 = vunpack.c.l.b16 %v1358
  %v1491 = vunpack.c.l.b16 %v1359
  %v1492 = vunpack.c.h.b16 %v1358
  %v1493 = vunpack.c.h.b16 %v1359
  %v1494 = vunpack.c.l.b16 %v1360
  %v1495 = vunpack.c.l.b16 %v1361
  %v1496 = vunpack.c.h.b16 %v1360
  %v1497 = vunpack.c.h.b16 %v1361
  %v1498 = vunpack.c.l.b16 %v1362
  %v1499 = vunpack.c.l.b16 %v1363
  %v1500 = vunpack.c.h.b16 %v1362
  %v1501 = vunpack.c.h.b16 %v1363
  %v1502 = vunpack.c.l.b16 %v1364
  %v1503 = vunpack.c.l.b16 %v1365
  %v1504 = vunpack.c.h.b16 %v1364
  %v1505 = vunpack.c.h.b16 %v1365
  %v1506 = vunpack.c.l.b16 %v1366
  %v1507 = vunpack.c.l.b16 %v1367
  %v1508 = vunpack.c.h.b16 %v1366
  %v1509 = vunpack.c.h.b16 %v1367
  %v1510 = vunpack.c.l.b16 %v1368
  %v1511 = vunpack.c.l.b16 %v1369
  %v1512 = vunpack.c.h.b16 %v1368
  %v1513 = vunpack.c.h.b16 %v1369
  %v1514 = vunpack.c.l.b16 %v1370
  %v1515 = vunpack.c.l.b16 %v1371
  %v1516 = vunpack.c.h.b16 %v1370
  %v1517 = vunpack.c.h.b16 %v1371
  %v1518 = vunpack.c.l.b16 %v1372
  %v1519 = vunpack.c.l.b16 %v1373
  %v1520 = vunpack.c.h.b16 %v1372
  %v1521 = vunpack.c.h.b16 %v1373
  %v1522 = vunpack.c.l.b16 %v1374
  %v1523 = vunpack.c.l.b16 %v1375
  %v1524 = vunpack.c.h.b16 %v1374
  %v1525 = vunpack.c.h.b16 %v1375
  %v1526 = vunpack.c.l.b16 %v1376
  %v1527 = vunpack.c.l.b16 %v1377
  %v1528 = vunpack.c.h.b16 %v1376
  %v1529 = vunpack.c.h.b16 %v1377
  %v1530 = vunpack.c.l.b16 %v1378
  %v1531 = vunpack.c.l.b16 %v1379
  %v1532 = vunpack.c.h.b16 %v1378
  %v1533 = vunpack.c.h.b16 %v1379
  %v1534 = vunpack.c.l.b16 %v1380
  %v1535 = vunpack.c.l.b16 %v1381
  %v1536 = vunpack.c.h.b16 %v1380
  %v1537 = vunpack.c.h.b16 %v1381
  %v1538 = vunpack.c.l.b16 %v1382
  %v1539 = vunpack.c.l.b16 %v1383
  %v1540 = vunpack.c.h.b16 %v1382
  %v1541 = vunpack.c.h.b16 %v1383
  %v1542 = vunpack.c.l.b16 %v1384
  %v1543 = vunpack.c.l.b16 %v1385
  %v1544 = vunpack.c.h.b16 %v1384
  %v1545 = vunpack.c.h.b16 %v1385
  %v1546 = vunpack.c.l.b16 %v1386
  %v1547 = vunpack.c.l.b16 %v1387
  %v1548 = vunpack.c.h.b16 %v1386
  %v1549 = vunpack.c.h.b16 %v1387
  %v1550 = vunpack.c.l.b16 %v1388
  %v1551 = vunpack.c.l.b16 %v1389
  %v1552 = vunpack.c.h.b16 %v1388
  %v1553 = vunpack.c.h.b16 %v1389
  %v1554 = vunpack.c.l.b16 %v1390
  %v1555 = vunpack.c.l.b16 %v1391
  %v1556 = vunpack.c.h.b16 %v1390
  %v1557 = vunpack.c.h.b16 %v1391
  %v1558 = vunpack.c.l.b16 %v1392
  %v1559 = vunpack.c.l.b16 %v1393
  %v1560 = vunpack.c.h.b16 %v1392
  %v1561 = vunpack.c.h.b16 %v1393
  %v1562 = vunpack.c.l.b16 %v1394
  %v1563 = vunpack.c.l.b16 %v1395
  %v1564 = vunpack.c.h.b16 %v1394
  %v1565 = vunpack.c.h.b16 %v1395
  %v1566 = vunpack.c.l.b16 %v1396
  %v1567 = vunpack.c.l.b16 %v1397
  %v1568 = vunpack.c.h.b16 %v1396
  %v1569 = vunpack.c.h.b16 %v1397
  %v1570 = vunpack.c.l.b16 %v1398
  %v1571 = vunpack.c.l.b16 %v1399
  %v1572 = vunpack.c.h.b16 %v1398
  %v1573 = vunpack.c.h.b16 %v1399
  %v1574 = vunpack.c.l.b16 %v1400
  %v1575 = vunpack.c.l.b16 %v1401
  %v1576 = vunpack.c.h.b16 %v1400
  %v1577 = vunpack.c.h.b16 %v1401
  %v1578 = vunpack.c.l.b16 %v1402
  %v1579 = vunpack.c.l.b16 %v1403
  %v1580 = vunpack.c.h.b16 %v1402
  %v1581 = vunpack.c.h.b16 %v1403
  %v1582 = vunpack.c.l.b16 %v1404
  %v1583 = vunpack.c.l.b16 %v1405
  %v1584 = vunpack.c.h.b16 %v1404
  %v1585 = vunpack.c.h.b16 %v1405
  %v1586 = vunpack.c.l.b16 %v1406
  %v1587 = vunpack.c.l.b16 %v1407
  %v1588 = vunpack.c.h.b16 %v1406
  %v1589 = vunpack.c.h.b16 %v1407
  %v1590 = vunpack.c.l.b16 %v1408
  %v1591 = vunpack.c.l.b16 %v1409
  %v1592 = vunpack.c.h.b16 %v1408
  %v1593 = vunpack.c.h.b16 %v1409
  %v1594 = vunpack.c.l.b16 %v1410
  %v1595 = vunpack.c.l.b16 %v1411
  %v1596 = vunpack.c.h.b16 %v1410
  %v1597 = vunpack.c.h.b16 %v1411
  %v1598 = vunpack.c.l.b16 %v1412
  %v1599 = vunpack.c.l.b16 %v1413
  %v1600 = vunpack.c.h.b16 %v1412
  %v1601 = vunpack.c.h.b16 %v1413
  %v1602 = vunpack.c.l.b16 %v1414
  %v1603 = vunpack.c.l.b16 %v1415
  %v1604 = vunpack.c.h.b16 %v1414
  %v1605 = vunpack.c.h.b16 %v1415
  %v1606 = vunpack.c.l.b16 %v1416
  %v1607 = vunpack.c.l.b16 %v1417
  %v1608 = vunpack.c.h.b16 %v1416
  %v1609 = vunpack.c.h.b16 %v1417
  %v1610 = vpack.c.b16 %v1483, %v1482
  %v1611 = vpack.c.b16 %v1485, %v1484
  %v1612 = vpack.c.b16 %v1487, %v1486
  %v1613 = vpack.c.b16 %v1489, %v1488
  %v1614 = vpack.c.b16 %v1491, %v1490
  %v1615 = vpack.c.b16 %v1493, %v1492
  %v1616 = vpack.c.b16 %v1495, %v1494
  %v1617 = vpack.c.b16 %v1497, %v1496
  %v1618 = vpack.c.b16 %v1499, %v1498
  %v1619 = vpack.c.b16 %v1501, %v1500
  %v1620 = vpack.c.b16 %v1503, %v1502
  %v1621 = vpack.c.b16 %v1505, %v1504
  %v1622 = vpack.c.b16 %v1507, %v1506
  %v1623 = vpack.c.b16 %v1509, %v1508
  %v1624 = vpack.c.b16 %v1511, %v1510
  %v1625 = vpack.c.b16 %v1513, %v1512
  %v1626 = vpack.c.b16 %v1515, %v1514
  %v1627 = vpack.c.b16 %v1517, %v1516
  %v1628 = vpack.c.b16 %v1519, %v1518
  %v1629 = vpack.c.b16 %v1521, %v1520
  %v1630 = vpack.c.b16 %v1523, %v1522
  %v1631 = vpack.c.b16 %v1525, %v1524
  %v1632 = vpack.c.b16 %v1527, %v1526
  %v1633 = vpack.c.b16 %v1529, %v1528
  %v1634 = vpack.c.b16 %v1531, %v1530
  %v1635 = vpack.c.b16 %v1533, %v1532
  %v1636 = vpack.c.b16 %v1535, %v1534
  %v1637 = vpack.c.b16 %v1537, %v1536
  %v1638 = vpack.c.b16 %v1539, %v1538
  %v1639 = vpack.c.b16 %v1541, %v1540
  %v1640 = vpack.c.b16 %v1543, %v1542
  %v1641 = vpack.c.b16 %v1545, %v1544
  %v1642 = vpack.c.b16 %v1547, %v1546
  %v1643 = vpack.c.b16 %v1549, %v1548
  %v1644 = vpack.c.b16 %v1551, %v1550
  %v1645 = vpack.c.b16 %v1553, %v1552
  %v1646 = vpack.c.b16 %v1555, %v1554
  %v1647 = vpack.c.b16 %v1557, %v1556
  %v1648 = vpack.c.b16 %v1559, %v1558
  %v1649 = vpack.c.b16 %v1561, %v1560
  %v1650 = vpack.c.b16 %v1563, %v1562
  %v1651 = vpack.c.b16 %v1565, %v1564
  %v1652 = vpack.c.b16 %v1567, %v1566
  %v1653 = vpack.c.b16 %v1569, %v1568
  %v1654 = vpack.c.b16 %v1571, %v1570
  %v1655 = vpack.c.b16 %v1573, %v1572
  %v1656 = vpack.c.b16 %v1575, %v1574
  %v1657 = vpack.c.b16 %v1577, %v1576
  %v1658 = vpack.c.b16 %v1579, %v1578
  %v1659 = vpack.c.b16 %v1581, %v1580
  %v1660 = vpack.c.b16 %v1583, %v1582
  %v1661 = vpack.c.b16 %v1585, %v1584
  %v1662 = vpack.c.b16 %v1587, %v1586
  %v1663 = vpack.c.b16 %v1589, %v1588
  %v1664 = vpack.c.b16 %v1591, %v1590
  %v1665 = vpack.c.b16 %v1593, %v1592
  %v1666 = vpack.c.b16 %v1595, %v1594
  %v1667 = vpack.c.b16 %v1597, %v1596
  %v1668 = vpack.c.b16 %v1599, %v1598
  %v1669 = vpack.c.b16 %v1601, %v1600
  %v1670 = vpack.c.b16 %v1603, %v1602
  %v1671 = vpack.c.b16 %v1605, %v1604
  %v1672 = vpack.c.b16 %v1607, %v1606
  %v1673 = vpack.c.b16 %v1609, %v1608
  %1738 = vst [vmem:[%s4] sm:$0xff] %v1610
  %1739 = vst [vmem:[%s4 + $0x8] sm:$0xff] %v1611
  %1740 = vst [vmem:[%s4 + $0x10] sm:$0xff] %v1612
  %1741 = vst [vmem:[%s4 + $0x18] sm:$0xff] %v1613
  %1742 = vst [vmem:[%s4 + $0x20] sm:$0xff] %v1614
  %1743 = vst [vmem:[%s4 + $0x28] sm:$0xff] %v1615
  %1744 = vst [vmem:[%s4 + $0x30] sm:$0xff] %v1616
  %1745 = vst [vmem:[%s4 + $0x38] sm:$0xff] %v1617
  %1746 = vst [vmem:[%s4 + $0x40] sm:$0xff] %v1618
  %1747 = vst [vmem:[%s4 + $0x48] sm:$0xff] %v1619
  %1748 = vst [vmem:[%s4 + $0x50] sm:$0xff] %v1620
  %1749 = vst [vmem:[%s4 + $0x58] sm:$0xff] %v1621
  %1750 = vst [vmem:[%s4 + $0x60] sm:$0xff] %v1622
  %1751 = vst [vmem:[%s4 + $0x68] sm:$0xff] %v1623
  %1752 = vst [vmem:[%s4 + $0x70] sm:$0xff] %v1624
  %1753 = vst [vmem:[%s4 + $0x78] sm:$0xff] %v1625
  %1754 = vst [vmem:[%s4 + $0x80] sm:$0xff] %v1626
  %1755 = vst [vmem:[%s4 + $0x88] sm:$0xff] %v1627
  %1756 = vst [vmem:[%s4 + $0x90] sm:$0xff] %v1628
  %1757 = vst [vmem:[%s4 + $0x98] sm:$0xff] %v1629
  %1758 = vst [vmem:[%s4 + $0xa0] sm:$0xff] %v1630
  %1759 = vst [vmem:[%s4 + $0xa8] sm:$0xff] %v1631
  %1760 = vst [vmem:[%s4 + $0xb0] sm:$0xff] %v1632
  %1761 = vst [vmem:[%s4 + $0xb8] sm:$0xff] %v1633
  %1762 = vst [vmem:[%s4 + $0xc0] sm:$0xff] %v1634
  %1763 = vst [vmem:[%s4 + $0xc8] sm:$0xff] %v1635
  %1764 = vst [vmem:[%s4 + $0xd0] sm:$0xff] %v1636
  %1765 = vst [vmem:[%s4 + $0xd8] sm:$0xff] %v1637
  %1766 = vst [vmem:[%s4 + $0xe0] sm:$0xff] %v1638
  %1767 = vst [vmem:[%s4 + $0xe8] sm:$0xff] %v1639
  %1768 = vst [vmem:[%s4 + $0xf0] sm:$0xff] %v1640
  %1769 = vst [vmem:[%s4 + $0xf8] sm:$0xff] %v1641
  %1770 = vst [vmem:[%s4 + $0x100] sm:$0xff] %v1642
  %1771 = vst [vmem:[%s4 + $0x108] sm:$0xff] %v1643
  %1772 = vst [vmem:[%s4 + $0x110] sm:$0xff] %v1644
  %1773 = vst [vmem:[%s4 + $0x118] sm:$0xff] %v1645
  %1774 = vst [vmem:[%s4 + $0x120] sm:$0xff] %v1646
  %1775 = vst [vmem:[%s4 + $0x128] sm:$0xff] %v1647
  %1776 = vst [vmem:[%s4 + $0x130] sm:$0xff] %v1648
  %1777 = vst [vmem:[%s4 + $0x138] sm:$0xff] %v1649
  %1778 = vst [vmem:[%s4 + $0x140] sm:$0xff] %v1650
  %1779 = vst [vmem:[%s4 + $0x148] sm:$0xff] %v1651
  %1780 = vst [vmem:[%s4 + $0x150] sm:$0xff] %v1652
  %1781 = vst [vmem:[%s4 + $0x158] sm:$0xff] %v1653
  %1782 = vst [vmem:[%s4 + $0x160] sm:$0xff] %v1654
  %1783 = vst [vmem:[%s4 + $0x168] sm:$0xff] %v1655
  %1784 = vst [vmem:[%s4 + $0x170] sm:$0xff] %v1656
  %1785 = vst [vmem:[%s4 + $0x178] sm:$0xff] %v1657
  %1786 = vst [vmem:[%s4 + $0x180] sm:$0xff] %v1658
  %1787 = vst [vmem:[%s4 + $0x188] sm:$0xff] %v1659
  %1788 = vst [vmem:[%s4 + $0x190] sm:$0xff] %v1660
  %1789 = vst [vmem:[%s4 + $0x198] sm:$0xff] %v1661
  %1790 = vst [vmem:[%s4 + $0x1a0] sm:$0xff] %v1662
  %1791 = vst [vmem:[%s4 + $0x1a8] sm:$0xff] %v1663
  %1792 = vst [vmem:[%s4 + $0x1b0] sm:$0xff] %v1664
  %1793 = vst [vmem:[%s4 + $0x1b8] sm:$0xff] %v1665
  %1794 = vst [vmem:[%s4 + $0x1c0] sm:$0xff] %v1666
  %1795 = vst [vmem:[%s4 + $0x1c8] sm:$0xff] %v1667
  %1796 = vst [vmem:[%s4 + $0x1d0] sm:$0xff] %v1668
  %1797 = vst [vmem:[%s4 + $0x1d8] sm:$0xff] %v1669
  %1798 = vst [vmem:[%s4 + $0x1e0] sm:$0xff] %v1670
  %1799 = vst [vmem:[%s4 + $0x1e8] sm:$0xff] %v1671
  %1800 = vst [vmem:[%s4 + $0x1f0] sm:$0xff] %v1672
  %1801 = vst [vmem:[%s4 + $0x1f8] sm:$0xff] %v1673
  // Predicated region
  $region18: #{_lambda_.55} parent=0 // pred_check
    _
  $region19: #{_lambda_.55} parent=0 // pred_check_branch
    %1803 = sbr.rel (0) target = $region21
  $region20: #{_lambda_.55} parent=0 // pred_region
    _
  $region21: #{_lambda_.55} parent=0 // pred_fallthru
    _
  // Predicated region
  $region22: #{_lambda_.55} parent=0 // pred_check
    _
  $region23: #{_lambda_.55} parent=0 // pred_check_branch
    %1805 = sbr.rel (0) target = $region25
  $region24: #{_lambda_.55} parent=0 // pred_region
    _
  $region25: #{_lambda_.55} parent=0 // pred_fallthru
    _

// kernel: _lambda_.56
$region0: #{_lambda_.56}
  #allocation0 [shape = 'u32[]', space=smem, size = 0x4, offset = 0x4, fixed_abs, tag = 'smem constant byte address 0x4 - core index']
  #allocation1 [shape = 'u32[144,128]{1,0:T(1,128)}', space=vmem, size = 0x12000, scoped, tag = 'internal scratch']
  %s0 = inlined_call_operand.vmem [shape: bf16[16,128], index: 0, kind: input, shape index: {}]
  %s1 = inlined_call_operand.vmem [shape: bf16[16,128], index: 1, kind: input, shape index: {}]
  %s2 = inlined_call_operand.vmem [shape: bf16[16,128], index: 2, kind: input, shape index: {}]
  %s3 = inlined_call_operand.vmem [shape: bf16[16,128], index: 3, kind: input, shape index: {}]
  %s4 = inlined_call_operand.vmem [shape: bf16[16,128], index: 4, kind: input, shape index: {}]
  %s5 = inlined_call_operand.vmem [shape: bf16[16,128], index: 5, kind: input, shape index: {}]
  %s6 = inlined_call_operand.vmem [shape: bf16[16,128], index: 6, kind: input, shape index: {}]
  %s7 = inlined_call_operand.vmem [shape: bf16[16,128], index: 7, kind: input, shape index: {}]
  %s8 = inlined_call_operand.vmem [shape: bf16[16,128], index: 8, kind: input, shape index: {}]
  %s9 = inlined_call_operand.vmem [shape: bf16[16,128], index: 9, kind: output, shape index: {}]
  %s10 = sld [smem:[#allocation0]]
  $region46: #{_lambda_.56} parent=0
    _
  %s12 = ssub.s32 1, %s10
  %s13 = scalar_select 0, %s12, %s10
  // Predicated region
  $region2: #{_lambda_.56} parent=0 // pred_check
    _
  $region3: #{_lambda_.56} parent=0 // pred_check_branch
    %15 = sbr.rel (0) target = $region5
  $region4: #{_lambda_.56} parent=0 // pred_region
    _
  $region5: #{_lambda_.56} parent=0 // pred_fallthru
    _
  // Predicated region
  $region6: #{_lambda_.56} parent=0 // pred_check
    _
  $region7: #{_lambda_.56} parent=0 // pred_check_branch
    %17 = sbr.rel (0) target = $region9
  $region8: #{_lambda_.56} parent=0 // pred_region
    _
  $region9: #{_lambda_.56} parent=0 // pred_fallthru
    _
  // Predicated region
  $region10: #{_lambda_.56} parent=0 // pred_check
    _
  $region11: #{_lambda_.56} parent=0 // pred_check_branch
    %19 = sbr.rel (0) target = $region13
  $region12: #{_lambda_.56} parent=0 // pred_region
    _
  $region13: #{_lambda_.56} parent=0 // pred_fallthru
    _
  // Predicated region
  $region14: #{_lambda_.56} parent=0 // pred_check
    _
  $region15: #{_lambda_.56} parent=0 // pred_check_branch
    %21 = sbr.rel (0) target = $region17
  $region16: #{_lambda_.56} parent=0 // pred_region
    _
  $region17: #{_lambda_.56} parent=0 // pred_fallthru
    _
  // Predicated region
  $region18: #{_lambda_.56} parent=0 // pred_check
    _
  $region19: #{_lambda_.56} parent=0 // pred_check_branch
    %23 = sbr.rel (0) target = $region21
  $region20: #{_lambda_.56} parent=0 // pred_region
    _
  $region21: #{_lambda_.56} parent=0 // pred_fallthru
    _
  // Predicated region
  $region22: #{_lambda_.56} parent=0 // pred_check
    _
  $region23: #{_lambda_.56} parent=0 // pred_check_branch
    %25 = sbr.rel (0) target = $region25
  $region24: #{_lambda_.56} parent=0 // pred_region
    _
  $region25: #{_lambda_.56} parent=0 // pred_fallthru
    _
  // Predicated region
  $region26: #{_lambda_.56} parent=0 // pred_check
    _
  $region27: #{_lambda_.56} parent=0 // pred_check_branch
    %27 = sbr.rel (0) target = $region29
  $region28: #{_lambda_.56} parent=0 // pred_region
    _
  $region29: #{_lambda_.56} parent=0 // pred_fallthru
    _
  // Predicated region
  $region30: #{_lambda_.56} parent=0 // pred_check
    _
  $region31: #{_lambda_.56} parent=0 // pred_check_branch
    %29 = sbr.rel (0) target = $region33
  $region32: #{_lambda_.56} parent=0 // pred_region
    _
  $region33: #{_lambda_.56} parent=0 // pred_fallthru
    _
  // Predicated region
  $region34: #{_lambda_.56} parent=0 // pred_check
    _
  $region35: #{_lambda_.56} parent=0 // pred_check_branch
    %31 = sbr.rel (0) target = $region37
  $region36: #{_lambda_.56} parent=0 // pred_region
    _
  $region37: #{_lambda_.56} parent=0 // pred_fallthru
    _
  %v32 = vld [vmem:[%s0] sm:$0xf]
  %v33 = vld [vmem:[%s0 + $0x4] sm:$0xf]
  %v34 = vld [vmem:[%s1] sm:$0xf]
  %v35 = vld [vmem:[%s1 + $0x4] sm:$0xf]
  %v36 = vmax.bf16 %v32, %v34
  %v37 = vmax.bf16 %v33, %v35
  %v38 = vld [vmem:[%s2] sm:$0xf]
  %v39 = vld [vmem:[%s2 + $0x4] sm:$0xf]
  %v40 = vmax.bf16 %v36, %v38
  %v41 = vmax.bf16 %v37, %v39
  %v42 = vld [vmem:[%s3] sm:$0xf]
  %v43 = vld [vmem:[%s3 + $0x4] sm:$0xf]
  %v44 = vmax.bf16 %v40, %v42
  %v45 = vmax.bf16 %v41, %v43
  %v46 = vld [vmem:[%s4] sm:$0xf]
  %v47 = vld [vmem:[%s4 + $0x4] sm:$0xf]
  %v48 = vmax.bf16 %v44, %v46
  %v49 = vmax.bf16 %v45, %v47
  %v50 = vld [vmem:[%s5] sm:$0xf]
  %v51 = vld [vmem:[%s5 + $0x4] sm:$0xf]
  %v52 = vmax.bf16 %v48, %v50
  %v53 = vmax.bf16 %v49, %v51
  %v54 = vld [vmem:[%s6] sm:$0xf]
  %v55 = vld [vmem:[%s6 + $0x4] sm:$0xf]
  %v56 = vmax.bf16 %v52, %v54
  %v57 = vmax.bf16 %v53, %v55
  %v58 = vld [vmem:[%s7] sm:$0xf]
  %v59 = vld [vmem:[%s7 + $0x4] sm:$0xf]
  %v60 = vmax.bf16 %v56, %v58
  %v61 = vmax.bf16 %v57, %v59
  %v62 = vld [vmem:[%s8] sm:$0xf]
  %v63 = vld [vmem:[%s8 + $0x4] sm:$0xf]
  %v64 = vmax.bf16 %v60, %v62
  %v65 = vmax.bf16 %v61, %v63
  %66 = vst [vmem:[%s9] sm:$0xf] %v64
  %67 = vst [vmem:[%s9 + $0x4] sm:$0xf] %v65
  // Predicated region
  $region38: #{_lambda_.56} parent=0 // pred_check
    _
  $region39: #{_lambda_.56} parent=0 // pred_check_branch
    %69 = sbr.rel (0) target = $region41
  $region40: #{_lambda_.56} parent=0 // pred_region
    _
  $region41: #{_lambda_.56} parent=0 // pred_fallthru
    _
  // Predicated region
  $region42: #{_lambda_.56} parent=0 // pred_check
    _
  $region43: #{_lambda_.56} parent=0 // pred_check_branch
    %71 = sbr.rel (0) target = $region45
  $region44: #{_lambda_.56} parent=0 // pred_region
    _
  $region45: #{_lambda_.56} parent=0 // pred_fallthru
    _

// kernel: _lambda_.57
$region0: #{_lambda_.57}
  #allocation0 [shape = 'u32[]', space=smem, size = 0x4, offset = 0x4, fixed_abs, tag = 'smem constant byte address 0x4 - core index']
  #allocation1 [shape = 'u32[144,128]{1,0:T(1,128)}', space=vmem, size = 0x12000, scoped, tag = 'internal scratch']
  %s0 = inlined_call_operand.vmem [shape: bf16[128,256], index: 0, kind: input, shape index: {}]
  %s1 = inlined_call_operand.vmem [shape: bf16[256,256], index: 1, kind: input, shape index: {}]
  %s2 = inlined_call_operand.vmem [shape: f32[1,256], index: 2, kind: input, shape index: {}]
  %s3 = inlined_call_operand.vmem [shape: f32[1,256], index: 3, kind: input, shape index: {}]
  %s4 = inlined_call_operand.vmem [shape: f32[1,256], index: 4, kind: input, shape index: {}]
  %s5 = inlined_call_operand.vmem [shape: bf16[128,256], index: 5, kind: output, shape index: {}]
  %s6 = sld [smem:[#allocation0]]
  $region30: #{_lambda_.57} parent=0
    _
  %s8 = ssub.s32 1, %s6
  %s9 = scalar_select 0, %s8, %s6
  // Predicated region
  $region2: #{_lambda_.57} parent=0 // pred_check
    _
  $region3: #{_lambda_.57} parent=0 // pred_check_branch
    %11 = sbr.rel (0) target = $region5
  $region4: #{_lambda_.57} parent=0 // pred_region
    _
  $region5: #{_lambda_.57} parent=0 // pred_fallthru
    _
  // Predicated region
  $region6: #{_lambda_.57} parent=0 // pred_check
    _
  $region7: #{_lambda_.57} parent=0 // pred_check_branch
    %13 = sbr.rel (0) target = $region9
  $region8: #{_lambda_.57} parent=0 // pred_region
    _
  $region9: #{_lambda_.57} parent=0 // pred_fallthru
    _
  // Predicated region
  $region10: #{_lambda_.57} parent=0 // pred_check
    _
  $region11: #{_lambda_.57} parent=0 // pred_check_branch
    %15 = sbr.rel (0) target = $region13
  $region12: #{_lambda_.57} parent=0 // pred_region
    _
  $region13: #{_lambda_.57} parent=0 // pred_fallthru
    _
  // Predicated region
  $region14: #{_lambda_.57} parent=0 // pred_check
    _
  $region15: #{_lambda_.57} parent=0 // pred_check_branch
    %17 = sbr.rel (0) target = $region17
  $region16: #{_lambda_.57} parent=0 // pred_region
    _
  $region17: #{_lambda_.57} parent=0 // pred_fallthru
    _
  // Predicated region
  $region18: #{_lambda_.57} parent=0 // pred_check
    _
  $region19: #{_lambda_.57} parent=0 // pred_check_branch
    %19 = sbr.rel (0) target = $region21
  $region20: #{_lambda_.57} parent=0 // pred_region
    _
  $region21: #{_lambda_.57} parent=0 // pred_fallthru
    _
  %v20 = vld [vmem:[%s0] sm:$0xff]
  %v21 = vld [vmem:[%s0 + $0x8] sm:$0xff]
  %v22 = vld [vmem:[%s0 + $0x10] sm:$0xff]
  %v23 = vld [vmem:[%s0 + $0x18] sm:$0xff]
  %v24 = vld [vmem:[%s0 + $0x20] sm:$0xff]
  %v25 = vld [vmem:[%s0 + $0x28] sm:$0xff]
  %v26 = vld [vmem:[%s0 + $0x30] sm:$0xff]
  %v27 = vld [vmem:[%s0 + $0x38] sm:$0xff]
  %v28 = vld [vmem:[%s0 + $0x40] sm:$0xff]
  %v29 = vld [vmem:[%s0 + $0x48] sm:$0xff]
  %v30 = vld [vmem:[%s0 + $0x50] sm:$0xff]
  %v31 = vld [vmem:[%s0 + $0x58] sm:$0xff]
  %v32 = vld [vmem:[%s0 + $0x60] sm:$0xff]
  %v33 = vld [vmem:[%s0 + $0x68] sm:$0xff]
  %v34 = vld [vmem:[%s0 + $0x70] sm:$0xff]
  %v35 = vld [vmem:[%s0 + $0x78] sm:$0xff]
  %v36 = vld [vmem:[%s1] sm:$0xff]
  %v37 = vld [vmem:[%s1 + $0x8] sm:$0xff]
  %v38 = vld [vmem:[%s1 + $0x10] sm:$0xff]
  %v39 = vld [vmem:[%s1 + $0x18] sm:$0xff]
  %v40 = vld [vmem:[%s1 + $0x20] sm:$0xff]
  %v41 = vld [vmem:[%s1 + $0x28] sm:$0xff]
  %v42 = vld [vmem:[%s1 + $0x30] sm:$0xff]
  %v43 = vld [vmem:[%s1 + $0x38] sm:$0xff]
  %v44 = vld [vmem:[%s1 + $0x40] sm:$0xff]
  %v45 = vld [vmem:[%s1 + $0x48] sm:$0xff]
  %v46 = vld [vmem:[%s1 + $0x50] sm:$0xff]
  %v47 = vld [vmem:[%s1 + $0x58] sm:$0xff]
  %v48 = vld [vmem:[%s1 + $0x60] sm:$0xff]
  %v49 = vld [vmem:[%s1 + $0x68] sm:$0xff]
  %v50 = vld [vmem:[%s1 + $0x70] sm:$0xff]
  %v51 = vld [vmem:[%s1 + $0x78] sm:$0xff]
  %v52 = vld [vmem:[%s1 + $0x80] sm:$0xff]
  %v53 = vld [vmem:[%s1 + $0x88] sm:$0xff]
  %v54 = vld [vmem:[%s1 + $0x90] sm:$0xff]
  %v55 = vld [vmem:[%s1 + $0x98] sm:$0xff]
  %v56 = vld [vmem:[%s1 + $0xa0] sm:$0xff]
  %v57 = vld [vmem:[%s1 + $0xa8] sm:$0xff]
  %v58 = vld [vmem:[%s1 + $0xb0] sm:$0xff]
  %v59 = vld [vmem:[%s1 + $0xb8] sm:$0xff]
  %v60 = vld [vmem:[%s1 + $0xc0] sm:$0xff]
  %v61 = vld [vmem:[%s1 + $0xc8] sm:$0xff]
  %v62 = vld [vmem:[%s1 + $0xd0] sm:$0xff]
  %v63 = vld [vmem:[%s1 + $0xd8] sm:$0xff]
  %v64 = vld [vmem:[%s1 + $0xe0] sm:$0xff]
  %v65 = vld [vmem:[%s1 + $0xe8] sm:$0xff]
  %v66 = vld [vmem:[%s1 + $0xf0] sm:$0xff]
  %v67 = vld [vmem:[%s1 + $0xf8] sm:$0xff]
  %v84 = vunpack.c.l.b16 %v20
  %v85 = vunpack.c.h.b16 %v20
  %v86 = vunpack.c.l.b16 %v21
  %v87 = vunpack.c.h.b16 %v21
  %v88 = vunpack.c.l.b16 %v22
  %v89 = vunpack.c.h.b16 %v22
  %v90 = vunpack.c.l.b16 %v23
  %v91 = vunpack.c.h.b16 %v23
  %v92 = vunpack.c.l.b16 %v24
  %v93 = vunpack.c.h.b16 %v24
  %v94 = vunpack.c.l.b16 %v25
  %v95 = vunpack.c.h.b16 %v25
  %v96 = vunpack.c.l.b16 %v26
  %v97 = vunpack.c.h.b16 %v26
  %v98 = vunpack.c.l.b16 %v27
  %v99 = vunpack.c.h.b16 %v27
  %v100 = vunpack.c.l.b16 %v28
  %v101 = vunpack.c.h.b16 %v28
  %v102 = vunpack.c.l.b16 %v29
  %v103 = vunpack.c.h.b16 %v29
  %v104 = vunpack.c.l.b16 %v30
  %v105 = vunpack.c.h.b16 %v30
  %v106 = vunpack.c.l.b16 %v31
  %v107 = vunpack.c.h.b16 %v31
  %v108 = vunpack.c.l.b16 %v32
  %v109 = vunpack.c.h.b16 %v32
  %v110 = vunpack.c.l.b16 %v33
  %v111 = vunpack.c.h.b16 %v33
  %v112 = vunpack.c.l.b16 %v34
  %v113 = vunpack.c.h.b16 %v34
  %v114 = vunpack.c.l.b16 %v35
  %v115 = vunpack.c.h.b16 %v35
  %v116 = vpack.c.b16 %v86, %v84
  %v117 = vpack.c.b16 %v87, %v85
  %v118 = vpack.c.b16 %v90, %v88
  %v119 = vpack.c.b16 %v91, %v89
  %v120 = vpack.c.b16 %v94, %v92
  %v121 = vpack.c.b16 %v95, %v93
  %v122 = vpack.c.b16 %v98, %v96
  %v123 = vpack.c.b16 %v99, %v97
  %v124 = vpack.c.b16 %v102, %v100
  %v125 = vpack.c.b16 %v103, %v101
  %v126 = vpack.c.b16 %v106, %v104
  %v127 = vpack.c.b16 %v107, %v105
  %v128 = vpack.c.b16 %v110, %v108
  %v129 = vpack.c.b16 %v111, %v109
  %v130 = vpack.c.b16 %v114, %v112
  %v131 = vpack.c.b16 %v115, %v113
  %v180 = vunpack.c.l.b16 %v36
  %v181 = vunpack.c.h.b16 %v36
  %v182 = vunpack.c.l.b16 %v37
  %v183 = vunpack.c.h.b16 %v37
  %v184 = vunpack.c.l.b16 %v38
  %v185 = vunpack.c.h.b16 %v38
  %v186 = vunpack.c.l.b16 %v39
  %v187 = vunpack.c.h.b16 %v39
  %v188 = vunpack.c.l.b16 %v40
  %v189 = vunpack.c.h.b16 %v40
  %v190 = vunpack.c.l.b16 %v41
  %v191 = vunpack.c.h.b16 %v41
  %v192 = vunpack.c.l.b16 %v42
  %v193 = vunpack.c.h.b16 %v42
  %v194 = vunpack.c.l.b16 %v43
  %v195 = vunpack.c.h.b16 %v43
  %v196 = vunpack.c.l.b16 %v44
  %v197 = vunpack.c.h.b16 %v44
  %v198 = vunpack.c.l.b16 %v45
  %v199 = vunpack.c.h.b16 %v45
  %v200 = vunpack.c.l.b16 %v46
  %v201 = vunpack.c.h.b16 %v46
  %v202 = vunpack.c.l.b16 %v47
  %v203 = vunpack.c.h.b16 %v47
  %v204 = vunpack.c.l.b16 %v48
  %v205 = vunpack.c.h.b16 %v48
  %v206 = vunpack.c.l.b16 %v49
  %v207 = vunpack.c.h.b16 %v49
  %v208 = vunpack.c.l.b16 %v50
  %v209 = vunpack.c.h.b16 %v50
  %v210 = vunpack.c.l.b16 %v51
  %v211 = vunpack.c.h.b16 %v51
  %v212 = vunpack.c.l.b16 %v52
  %v213 = vunpack.c.h.b16 %v52
  %v214 = vunpack.c.l.b16 %v53
  %v215 = vunpack.c.h.b16 %v53
  %v216 = vunpack.c.l.b16 %v54
  %v217 = vunpack.c.h.b16 %v54
  %v218 = vunpack.c.l.b16 %v55
  %v219 = vunpack.c.h.b16 %v55
  %v220 = vunpack.c.l.b16 %v56
  %v221 = vunpack.c.h.b16 %v56
  %v222 = vunpack.c.l.b16 %v57
  %v223 = vunpack.c.h.b16 %v57
  %v224 = vunpack.c.l.b16 %v58
  %v225 = vunpack.c.h.b16 %v58
  %v226 = vunpack.c.l.b16 %v59
  %v227 = vunpack.c.h.b16 %v59
  %v228 = vunpack.c.l.b16 %v60
  %v229 = vunpack.c.h.b16 %v60
  %v230 = vunpack.c.l.b16 %v61
  %v231 = vunpack.c.h.b16 %v61
  %v232 = vunpack.c.l.b16 %v62
  %v233 = vunpack.c.h.b16 %v62
  %v234 = vunpack.c.l.b16 %v63
  %v235 = vunpack.c.h.b16 %v63
  %v236 = vunpack.c.l.b16 %v64
  %v237 = vunpack.c.h.b16 %v64
  %v238 = vunpack.c.l.b16 %v65
  %v239 = vunpack.c.h.b16 %v65
  %v240 = vunpack.c.l.b16 %v66
  %v241 = vunpack.c.h.b16 %v66
  %v242 = vunpack.c.l.b16 %v67
  %v243 = vunpack.c.h.b16 %v67
  %v244 = vpack.c.b16 %v182, %v180
  %v245 = vpack.c.b16 %v183, %v181
  %v246 = vpack.c.b16 %v186, %v184
  %v247 = vpack.c.b16 %v187, %v185
  %v248 = vpack.c.b16 %v190, %v188
  %v249 = vpack.c.b16 %v191, %v189
  %v250 = vpack.c.b16 %v194, %v192
  %v251 = vpack.c.b16 %v195, %v193
  %v252 = vpack.c.b16 %v198, %v196
  %v253 = vpack.c.b16 %v199, %v197
  %v254 = vpack.c.b16 %v202, %v200
  %v255 = vpack.c.b16 %v203, %v201
  %v256 = vpack.c.b16 %v206, %v204
  %v257 = vpack.c.b16 %v207, %v205
  %v258 = vpack.c.b16 %v210, %v208
  %v259 = vpack.c.b16 %v211, %v209
  %v260 = vpack.c.b16 %v214, %v212
  %v261 = vpack.c.b16 %v215, %v213
  %v262 = vpack.c.b16 %v218, %v216
  %v263 = vpack.c.b16 %v219, %v217
  %v264 = vpack.c.b16 %v222, %v220
  %v265 = vpack.c.b16 %v223, %v221
  %v266 = vpack.c.b16 %v226, %v224
  %v267 = vpack.c.b16 %v227, %v225
  %v268 = vpack.c.b16 %v230, %v228
  %v269 = vpack.c.b16 %v231, %v229
  %v270 = vpack.c.b16 %v234, %v232
  %v271 = vpack.c.b16 %v235, %v233
  %v272 = vpack.c.b16 %v238, %v236
  %v273 = vpack.c.b16 %v239, %v237
  %v274 = vpack.c.b16 %v242, %v240
  %v275 = vpack.c.b16 %v243, %v241
  %308 = vmatprep.subr.bf16.mxu0 %v259
  %309 = vmatpush1.bf16.msra.mxu0 %v258
  %310 = vmatprep.subr.bf16.mxu0 %v257
  %311 = vmatpush1.bf16.msra.mxu0 %v256
  %312 = vmatprep.subr.bf16.mxu0 %v255
  %313 = vmatpush1.bf16.msra.mxu0 %v254
  %314 = vmatprep.subr.bf16.mxu0 %v253
  %315 = vmatpush1.bf16.msra.mxu0 %v252
  %316 = vmatprep.subr.bf16.mxu0 %v251
  %317 = vmatpush1.bf16.msra.mxu0 %v250
  %318 = vmatprep.subr.bf16.mxu0 %v249
  %319 = vmatpush1.bf16.msra.mxu0 %v248
  %320 = vmatprep.subr.bf16.mxu0 %v247
  %321 = vmatpush1.bf16.msra.mxu0 %v246
  %322 = vmatprep.subr.bf16.mxu0 %v245
  %323 = vmatpush1.bf16.msra.mxu0 %v244
  %324 = vmatprep.subr.bf16.mxu0 %v275
  %325 = vmatpush2.bf16.msra.mxu0 %v274
  %326 = vmatprep.subr.bf16.mxu0 %v273
  %327 = vmatpush2.bf16.msra.mxu0 %v272
  %328 = vmatprep.subr.bf16.mxu0 %v271
  %329 = vmatpush2.bf16.msra.mxu0 %v270
  %330 = vmatprep.subr.bf16.mxu0 %v269
  %331 = vmatpush2.bf16.msra.mxu0 %v268
  %332 = vmatprep.subr.bf16.mxu0 %v267
  %333 = vmatpush2.bf16.msra.mxu0 %v266
  %334 = vmatprep.subr.bf16.mxu0 %v265
  %335 = vmatpush2.bf16.msra.mxu0 %v264
  %336 = vmatprep.subr.bf16.mxu0 %v263
  %337 = vmatpush2.bf16.msra.mxu0 %v262
  %338 = vmatprep.subr.bf16.mxu0 %v261
  %339 = vmatpush2.bf16.msra.mxu0 %v260
  %340 = vmatprep.mubr.bf16.mxu0 %v117
  %341 = vmatmul.mubr.bf16.gmra.mxu0 %v116
  %v342 = vpop.f32.mrf.mxu0
  %v343 = vadd.f32 0.0, %v342
  %v344 = vpop.f32.mrf.mxu0
  %v345 = vadd.f32 0.0, %v344
  %v346 = vpop.f32.mrf.mxu0
  %v347 = vadd.f32 0.0, %v346
  %v348 = vpop.f32.mrf.mxu0
  %v349 = vadd.f32 0.0, %v348
  %350 = vmatprep.mubr.bf16.mxu0 %v119
  %351 = vmatmul.mubr.bf16.gmra.mxu0 %v118
  %v352 = vpop.f32.mrf.mxu0
  %v353 = vadd.f32 0.0, %v352
  %v354 = vpop.f32.mrf.mxu0
  %v355 = vadd.f32 0.0, %v354
  %v356 = vpop.f32.mrf.mxu0
  %v357 = vadd.f32 0.0, %v356
  %v358 = vpop.f32.mrf.mxu0
  %v359 = vadd.f32 0.0, %v358
  %360 = vmatprep.mubr.bf16.mxu0 %v121
  %361 = vmatmul.mubr.bf16.gmra.mxu0 %v120
  %v362 = vpop.f32.mrf.mxu0
  %v363 = vadd.f32 0.0, %v362
  %v364 = vpop.f32.mrf.mxu0
  %v365 = vadd.f32 0.0, %v364
  %v366 = vpop.f32.mrf.mxu0
  %v367 = vadd.f32 0.0, %v366
  %v368 = vpop.f32.mrf.mxu0
  %v369 = vadd.f32 0.0, %v368
  %370 = vmatprep.mubr.bf16.mxu0 %v123
  %371 = vmatmul.mubr.bf16.gmra.mxu0 %v122
  %v372 = vpop.f32.mrf.mxu0
  %v373 = vadd.f32 0.0, %v372
  %v374 = vpop.f32.mrf.mxu0
  %v375 = vadd.f32 0.0, %v374
  %v376 = vpop.f32.mrf.mxu0
  %v377 = vadd.f32 0.0, %v376
  %v378 = vpop.f32.mrf.mxu0
  %v379 = vadd.f32 0.0, %v378
  %380 = vmatprep.mubr.bf16.mxu0 %v125
  %381 = vmatmul.mubr.bf16.gmra.mxu0 %v124
  %v382 = vpop.f32.mrf.mxu0
  %v383 = vadd.f32 0.0, %v382
  %v384 = vpop.f32.mrf.mxu0
  %v385 = vadd.f32 0.0, %v384
  %v386 = vpop.f32.mrf.mxu0
  %v387 = vadd.f32 0.0, %v386
  %v388 = vpop.f32.mrf.mxu0
  %v389 = vadd.f32 0.0, %v388
  %390 = vmatprep.mubr.bf16.mxu0 %v127
  %391 = vmatmul.mubr.bf16.gmra.mxu0 %v126
  %v392 = vpop.f32.mrf.mxu0
  %v393 = vadd.f32 0.0, %v392
  %v394 = vpop.f32.mrf.mxu0
  %v395 = vadd.f32 0.0, %v394
  %v396 = vpop.f32.mrf.mxu0
  %v397 = vadd.f32 0.0, %v396
  %v398 = vpop.f32.mrf.mxu0
  %v399 = vadd.f32 0.0, %v398
  %400 = vmatprep.mubr.bf16.mxu0 %v129
  %401 = vmatmul.mubr.bf16.gmra.mxu0 %v128
  %v402 = vpop.f32.mrf.mxu0
  %v403 = vadd.f32 0.0, %v402
  %v404 = vpop.f32.mrf.mxu0
  %v405 = vadd.f32 0.0, %v404
  %v406 = vpop.f32.mrf.mxu0
  %v407 = vadd.f32 0.0, %v406
  %v408 = vpop.f32.mrf.mxu0
  %v409 = vadd.f32 0.0, %v408
  %410 = vmatprep.mubr.bf16.mxu0 %v131
  %411 = vmatmul.mubr.bf16.gmra.mxu0 %v130
  %v412 = vpop.f32.mrf.mxu0
  %v413 = vadd.f32 0.0, %v412
  %v414 = vpop.f32.mrf.mxu0
  %v415 = vadd.f32 0.0, %v414
  %v416 = vpop.f32.mrf.mxu0
  %v417 = vadd.f32 0.0, %v416
  %v418 = vpop.f32.mrf.mxu0
  %v419 = vadd.f32 0.0, %v418
  %420 = vdwg.mxu0
  %v421 = vld [vmem:[%s2] sm:$0x3]
  %v423 = vlaneseq
  %v424 = vshrl.u32 %v423, 7
  %v425 = vsub.s32 0, %v424
  %v426 = vrot.slane %v421, %v425
  %v427 = vlaneseq
  %v428 = vshrl.u32 %v427, 7
  %v429 = vsub.s32 1, %v428
  %v430 = vrot.slane %v421, %v429
  %v433 = vmul.f32 %v343, %v426
  %v434 = vmul.f32 %v345, %v430
  %v435 = vmul.f32 %v347, %v426
  %v436 = vmul.f32 %v349, %v430
  %v437 = vmul.f32 %v353, %v426
  %v438 = vmul.f32 %v355, %v430
  %v439 = vmul.f32 %v357, %v426
  %v440 = vmul.f32 %v359, %v430
  %v441 = vmul.f32 %v363, %v426
  %v442 = vmul.f32 %v365, %v430
  %v443 = vmul.f32 %v367, %v426
  %v444 = vmul.f32 %v369, %v430
  %v445 = vmul.f32 %v373, %v426
  %v446 = vmul.f32 %v375, %v430
  %v447 = vmul.f32 %v377, %v426
  %v448 = vmul.f32 %v379, %v430
  %v449 = vmul.f32 %v383, %v426
  %v450 = vmul.f32 %v385, %v430
  %v451 = vmul.f32 %v387, %v426
  %v452 = vmul.f32 %v389, %v430
  %v453 = vmul.f32 %v393, %v426
  %v454 = vmul.f32 %v395, %v430
  %v455 = vmul.f32 %v397, %v426
  %v456 = vmul.f32 %v399, %v430
  %v457 = vmul.f32 %v403, %v426
  %v458 = vmul.f32 %v405, %v430
  %v459 = vmul.f32 %v407, %v426
  %v460 = vmul.f32 %v409, %v430
  %v461 = vmul.f32 %v413, %v426
  %v462 = vmul.f32 %v415, %v430
  %v463 = vmul.f32 %v417, %v426
  %v464 = vmul.f32 %v419, %v430
  %v465 = vld [vmem:[%s3] sm:$0x3]
  %v467 = vlaneseq
  %v468 = vshrl.u32 %v467, 7
  %v469 = vsub.s32 0, %v468
  %v470 = vrot.slane %v465, %v469
  %v471 = vlaneseq
  %v472 = vshrl.u32 %v471, 7
  %v473 = vsub.s32 1, %v472
  %v474 = vrot.slane %v465, %v473
  %v477 = vadd.f32 %v433, %v470
  %v478 = vadd.f32 %v434, %v474
  %v479 = vadd.f32 %v435, %v470
  %v480 = vadd.f32 %v436, %v474
  %v481 = vadd.f32 %v437, %v470
  %v482 = vadd.f32 %v438, %v474
  %v483 = vadd.f32 %v439, %v470
  %v484 = vadd.f32 %v440, %v474
  %v485 = vadd.f32 %v441, %v470
  %v486 = vadd.f32 %v442, %v474
  %v487 = vadd.f32 %v443, %v470
  %v488 = vadd.f32 %v444, %v474
  %v489 = vadd.f32 %v445, %v470
  %v490 = vadd.f32 %v446, %v474
  %v491 = vadd.f32 %v447, %v470
  %v492 = vadd.f32 %v448, %v474
  %v493 = vadd.f32 %v449, %v470
  %v494 = vadd.f32 %v450, %v474
  %v495 = vadd.f32 %v451, %v470
  %v496 = vadd.f32 %v452, %v474
  %v497 = vadd.f32 %v453, %v470
  %v498 = vadd.f32 %v454, %v474
  %v499 = vadd.f32 %v455, %v470
  %v500 = vadd.f32 %v456, %v474
  %v501 = vadd.f32 %v457, %v470
  %v502 = vadd.f32 %v458, %v474
  %v503 = vadd.f32 %v459, %v470
  %v504 = vadd.f32 %v460, %v474
  %v505 = vadd.f32 %v461, %v470
  %v506 = vadd.f32 %v462, %v474
  %v507 = vadd.f32 %v463, %v470
  %v508 = vadd.f32 %v464, %v474
  %v509 = vld [vmem:[%s4] sm:$0x3]
  %v511 = vlaneseq
  %v512 = vshrl.u32 %v511, 7
  %v513 = vsub.s32 0, %v512
  %v514 = vrot.slane %v509, %v513
  %v515 = vlaneseq
  %v516 = vshrl.u32 %v515, 7
  %v517 = vsub.s32 1, %v516
  %v518 = vrot.slane %v509, %v517
  %v521 = vmax.f32 %v477, %v514
  %v522 = vmax.f32 %v478, %v518
  %v523 = vmax.f32 %v479, %v514
  %v524 = vmax.f32 %v480, %v518
  %v525 = vmax.f32 %v481, %v514
  %v526 = vmax.f32 %v482, %v518
  %v527 = vmax.f32 %v483, %v514
  %v528 = vmax.f32 %v484, %v518
  %v529 = vmax.f32 %v485, %v514
  %v530 = vmax.f32 %v486, %v518
  %v531 = vmax.f32 %v487, %v514
  %v532 = vmax.f32 %v488, %v518
  %v533 = vmax.f32 %v489, %v514
  %v534 = vmax.f32 %v490, %v518
  %v535 = vmax.f32 %v491, %v514
  %v536 = vmax.f32 %v492, %v518
  %v537 = vmax.f32 %v493, %v514
  %v538 = vmax.f32 %v494, %v518
  %v539 = vmax.f32 %v495, %v514
  %v540 = vmax.f32 %v496, %v518
  %v541 = vmax.f32 %v497, %v514
  %v542 = vmax.f32 %v498, %v518
  %v543 = vmax.f32 %v499, %v514
  %v544 = vmax.f32 %v500, %v518
  %v545 = vmax.f32 %v501, %v514
  %v546 = vmax.f32 %v502, %v518
  %v547 = vmax.f32 %v503, %v514
  %v548 = vmax.f32 %v504, %v518
  %v549 = vmax.f32 %v505, %v514
  %v550 = vmax.f32 %v506, %v518
  %v551 = vmax.f32 %v507, %v514
  %v552 = vmax.f32 %v508, %v518
  %v553 = vpack.c.bf16 %v523, %v521
  %v554 = vpack.c.bf16 %v524, %v522
  %v555 = vpack.c.bf16 %v527, %v525
  %v556 = vpack.c.bf16 %v528, %v526
  %v557 = vpack.c.bf16 %v531, %v529
  %v558 = vpack.c.bf16 %v532, %v530
  %v559 = vpack.c.bf16 %v535, %v533
  %v560 = vpack.c.bf16 %v536, %v534
  %v561 = vpack.c.bf16 %v539, %v537
  %v562 = vpack.c.bf16 %v540, %v538
  %v563 = vpack.c.bf16 %v543, %v541
  %v564 = vpack.c.bf16 %v544, %v542
  %v565 = vpack.c.bf16 %v547, %v545
  %v566 = vpack.c.bf16 %v548, %v546
  %v567 = vpack.c.bf16 %v551, %v549
  %v568 = vpack.c.bf16 %v552, %v550
  %v585 = vunpack.c.l.b16 %v553
  %v586 = vunpack.c.l.b16 %v554
  %v587 = vunpack.c.h.b16 %v553
  %v588 = vunpack.c.h.b16 %v554
  %v589 = vunpack.c.l.b16 %v555
  %v590 = vunpack.c.l.b16 %v556
  %v591 = vunpack.c.h.b16 %v555
  %v592 = vunpack.c.h.b16 %v556
  %v593 = vunpack.c.l.b16 %v557
  %v594 = vunpack.c.l.b16 %v558
  %v595 = vunpack.c.h.b16 %v557
  %v596 = vunpack.c.h.b16 %v558
  %v597 = vunpack.c.l.b16 %v559
  %v598 = vunpack.c.l.b16 %v560
  %v599 = vunpack.c.h.b16 %v559
  %v600 = vunpack.c.h.b16 %v560
  %v601 = vunpack.c.l.b16 %v561
  %v602 = vunpack.c.l.b16 %v562
  %v603 = vunpack.c.h.b16 %v561
  %v604 = vunpack.c.h.b16 %v562
  %v605 = vunpack.c.l.b16 %v563
  %v606 = vunpack.c.l.b16 %v564
  %v607 = vunpack.c.h.b16 %v563
  %v608 = vunpack.c.h.b16 %v564
  %v609 = vunpack.c.l.b16 %v565
  %v610 = vunpack.c.l.b16 %v566
  %v611 = vunpack.c.h.b16 %v565
  %v612 = vunpack.c.h.b16 %v566
  %v613 = vunpack.c.l.b16 %v567
  %v614 = vunpack.c.l.b16 %v568
  %v615 = vunpack.c.h.b16 %v567
  %v616 = vunpack.c.h.b16 %v568
  %v617 = vpack.c.b16 %v586, %v585
  %v618 = vpack.c.b16 %v588, %v587
  %v619 = vpack.c.b16 %v590, %v589
  %v620 = vpack.c.b16 %v592, %v591
  %v621 = vpack.c.b16 %v594, %v593
  %v622 = vpack.c.b16 %v596, %v595
  %v623 = vpack.c.b16 %v598, %v597
  %v624 = vpack.c.b16 %v600, %v599
  %v625 = vpack.c.b16 %v602, %v601
  %v626 = vpack.c.b16 %v604, %v603
  %v627 = vpack.c.b16 %v606, %v605
  %v628 = vpack.c.b16 %v608, %v607
  %v629 = vpack.c.b16 %v610, %v609
  %v630 = vpack.c.b16 %v612, %v611
  %v631 = vpack.c.b16 %v614, %v613
  %v632 = vpack.c.b16 %v616, %v615
  %649 = vst [vmem:[%s5] sm:$0xff] %v617
  %650 = vst [vmem:[%s5 + $0x8] sm:$0xff] %v618
  %651 = vst [vmem:[%s5 + $0x10] sm:$0xff] %v619
  %652 = vst [vmem:[%s5 + $0x18] sm:$0xff] %v620
  %653 = vst [vmem:[%s5 + $0x20] sm:$0xff] %v621
  %654 = vst [vmem:[%s5 + $0x28] sm:$0xff] %v622
  %655 = vst [vmem:[%s5 + $0x30] sm:$0xff] %v623
  %656 = vst [vmem:[%s5 + $0x38] sm:$0xff] %v624
  %657 = vst [vmem:[%s5 + $0x40] sm:$0xff] %v625
  %658 = vst [vmem:[%s5 + $0x48] sm:$0xff] %v626
  %659 = vst [vmem:[%s5 + $0x50] sm:$0xff] %v627
  %660 = vst [vmem:[%s5 + $0x58] sm:$0xff] %v628
  %661 = vst [vmem:[%s5 + $0x60] sm:$0xff] %v629
  %662 = vst [vmem:[%s5 + $0x68] sm:$0xff] %v630
  %663 = vst [vmem:[%s5 + $0x70] sm:$0xff] %v631
  %664 = vst [vmem:[%s5 + $0x78] sm:$0xff] %v632
  // Predicated region
  $region22: #{_lambda_.57} parent=0 // pred_check
    _
  $region23: #{_lambda_.57} parent=0 // pred_check_branch
    %666 = sbr.rel (0) target = $region25
  $region24: #{_lambda_.57} parent=0 // pred_region
    _
  $region25: #{_lambda_.57} parent=0 // pred_fallthru
    _
  // Predicated region
  $region26: #{_lambda_.57} parent=0 // pred_check
    _
  $region27: #{_lambda_.57} parent=0 // pred_check_branch
    %668 = sbr.rel (0) target = $region29
  $region28: #{_lambda_.57} parent=0 // pred_region
    _
  $region29: #{_lambda_.57} parent=0 // pred_fallthru
    _

// kernel: _lambda_.59
$region0: #{_lambda_.59}
  #allocation0 [shape = 'u32[]', space=smem, size = 0x4, offset = 0x4, fixed_abs, tag = 'smem constant byte address 0x4 - core index']
  #allocation1 [shape = 'u32[144,128]{1,0:T(1,128)}', space=vmem, size = 0x12000, scoped, tag = 'internal scratch']
  %s0 = inlined_call_operand.vmem [shape: bf16[128,256], index: 0, kind: input, shape index: {}]
  %s1 = inlined_call_operand.vmem [shape: bf16[256,256], index: 1, kind: input, shape index: {}]
  %s2 = inlined_call_operand.vmem [shape: f32[1,256], index: 2, kind: input, shape index: {}]
  %s3 = inlined_call_operand.vmem [shape: f32[1,256], index: 3, kind: input, shape index: {}]
  %s4 = inlined_call_operand.vmem [shape: bf16[128,256], index: 4, kind: input, shape index: {}]
  %s5 = inlined_call_operand.vmem [shape: bf16[128,256], index: 5, kind: output, shape index: {}]
  %s6 = sld [smem:[#allocation0]]
  $region30: #{_lambda_.59} parent=0
    _
  %s8 = ssub.s32 1, %s6
  %s9 = scalar_select 0, %s8, %s6
  // Predicated region
  $region2: #{_lambda_.59} parent=0 // pred_check
    _
  $region3: #{_lambda_.59} parent=0 // pred_check_branch
    %11 = sbr.rel (0) target = $region5
  $region4: #{_lambda_.59} parent=0 // pred_region
    _
  $region5: #{_lambda_.59} parent=0 // pred_fallthru
    _
  // Predicated region
  $region6: #{_lambda_.59} parent=0 // pred_check
    _
  $region7: #{_lambda_.59} parent=0 // pred_check_branch
    %13 = sbr.rel (0) target = $region9
  $region8: #{_lambda_.59} parent=0 // pred_region
    _
  $region9: #{_lambda_.59} parent=0 // pred_fallthru
    _
  // Predicated region
  $region10: #{_lambda_.59} parent=0 // pred_check
    _
  $region11: #{_lambda_.59} parent=0 // pred_check_branch
    %15 = sbr.rel (0) target = $region13
  $region12: #{_lambda_.59} parent=0 // pred_region
    _
  $region13: #{_lambda_.59} parent=0 // pred_fallthru
    _
  // Predicated region
  $region14: #{_lambda_.59} parent=0 // pred_check
    _
  $region15: #{_lambda_.59} parent=0 // pred_check_branch
    %17 = sbr.rel (0) target = $region17
  $region16: #{_lambda_.59} parent=0 // pred_region
    _
  $region17: #{_lambda_.59} parent=0 // pred_fallthru
    _
  // Predicated region
  $region18: #{_lambda_.59} parent=0 // pred_check
    _
  $region19: #{_lambda_.59} parent=0 // pred_check_branch
    %19 = sbr.rel (0) target = $region21
  $region20: #{_lambda_.59} parent=0 // pred_region
    _
  $region21: #{_lambda_.59} parent=0 // pred_fallthru
    _
  %v20 = vld [vmem:[%s0] sm:$0xff]
  %v21 = vld [vmem:[%s0 + $0x8] sm:$0xff]
  %v22 = vld [vmem:[%s0 + $0x10] sm:$0xff]
  %v23 = vld [vmem:[%s0 + $0x18] sm:$0xff]
  %v24 = vld [vmem:[%s0 + $0x20] sm:$0xff]
  %v25 = vld [vmem:[%s0 + $0x28] sm:$0xff]
  %v26 = vld [vmem:[%s0 + $0x30] sm:$0xff]
  %v27 = vld [vmem:[%s0 + $0x38] sm:$0xff]
  %v28 = vld [vmem:[%s0 + $0x40] sm:$0xff]
  %v29 = vld [vmem:[%s0 + $0x48] sm:$0xff]
  %v30 = vld [vmem:[%s0 + $0x50] sm:$0xff]
  %v31 = vld [vmem:[%s0 + $0x58] sm:$0xff]
  %v32 = vld [vmem:[%s0 + $0x60] sm:$0xff]
  %v33 = vld [vmem:[%s0 + $0x68] sm:$0xff]
  %v34 = vld [vmem:[%s0 + $0x70] sm:$0xff]
  %v35 = vld [vmem:[%s0 + $0x78] sm:$0xff]
  %v36 = vld [vmem:[%s1] sm:$0xff]
  %v37 = vld [vmem:[%s1 + $0x8] sm:$0xff]
  %v38 = vld [vmem:[%s1 + $0x10] sm:$0xff]
  %v39 = vld [vmem:[%s1 + $0x18] sm:$0xff]
  %v40 = vld [vmem:[%s1 + $0x20] sm:$0xff]
  %v41 = vld [vmem:[%s1 + $0x28] sm:$0xff]
  %v42 = vld [vmem:[%s1 + $0x30] sm:$0xff]
  %v43 = vld [vmem:[%s1 + $0x38] sm:$0xff]
  %v44 = vld [vmem:[%s1 + $0x40] sm:$0xff]
  %v45 = vld [vmem:[%s1 + $0x48] sm:$0xff]
  %v46 = vld [vmem:[%s1 + $0x50] sm:$0xff]
  %v47 = vld [vmem:[%s1 + $0x58] sm:$0xff]
  %v48 = vld [vmem:[%s1 + $0x60] sm:$0xff]
  %v49 = vld [vmem:[%s1 + $0x68] sm:$0xff]
  %v50 = vld [vmem:[%s1 + $0x70] sm:$0xff]
  %v51 = vld [vmem:[%s1 + $0x78] sm:$0xff]
  %v52 = vld [vmem:[%s1 + $0x80] sm:$0xff]
  %v53 = vld [vmem:[%s1 + $0x88] sm:$0xff]
  %v54 = vld [vmem:[%s1 + $0x90] sm:$0xff]
  %v55 = vld [vmem:[%s1 + $0x98] sm:$0xff]
  %v56 = vld [vmem:[%s1 + $0xa0] sm:$0xff]
  %v57 = vld [vmem:[%s1 + $0xa8] sm:$0xff]
  %v58 = vld [vmem:[%s1 + $0xb0] sm:$0xff]
  %v59 = vld [vmem:[%s1 + $0xb8] sm:$0xff]
  %v60 = vld [vmem:[%s1 + $0xc0] sm:$0xff]
  %v61 = vld [vmem:[%s1 + $0xc8] sm:$0xff]
  %v62 = vld [vmem:[%s1 + $0xd0] sm:$0xff]
  %v63 = vld [vmem:[%s1 + $0xd8] sm:$0xff]
  %v64 = vld [vmem:[%s1 + $0xe0] sm:$0xff]
  %v65 = vld [vmem:[%s1 + $0xe8] sm:$0xff]
  %v66 = vld [vmem:[%s1 + $0xf0] sm:$0xff]
  %v67 = vld [vmem:[%s1 + $0xf8] sm:$0xff]
  %v84 = vunpack.c.l.b16 %v20
  %v85 = vunpack.c.h.b16 %v20
  %v86 = vunpack.c.l.b16 %v21
  %v87 = vunpack.c.h.b16 %v21
  %v88 = vunpack.c.l.b16 %v22
  %v89 = vunpack.c.h.b16 %v22
  %v90 = vunpack.c.l.b16 %v23
  %v91 = vunpack.c.h.b16 %v23
  %v92 = vunpack.c.l.b16 %v24
  %v93 = vunpack.c.h.b16 %v24
  %v94 = vunpack.c.l.b16 %v25
  %v95 = vunpack.c.h.b16 %v25
  %v96 = vunpack.c.l.b16 %v26
  %v97 = vunpack.c.h.b16 %v26
  %v98 = vunpack.c.l.b16 %v27
  %v99 = vunpack.c.h.b16 %v27
  %v100 = vunpack.c.l.b16 %v28
  %v101 = vunpack.c.h.b16 %v28
  %v102 = vunpack.c.l.b16 %v29
  %v103 = vunpack.c.h.b16 %v29
  %v104 = vunpack.c.l.b16 %v30
  %v105 = vunpack.c.h.b16 %v30
  %v106 = vunpack.c.l.b16 %v31
  %v107 = vunpack.c.h.b16 %v31
  %v108 = vunpack.c.l.b16 %v32
  %v109 = vunpack.c.h.b16 %v32
  %v110 = vunpack.c.l.b16 %v33
  %v111 = vunpack.c.h.b16 %v33
  %v112 = vunpack.c.l.b16 %v34
  %v113 = vunpack.c.h.b16 %v34
  %v114 = vunpack.c.l.b16 %v35
  %v115 = vunpack.c.h.b16 %v35
  %v116 = vpack.c.b16 %v86, %v84
  %v117 = vpack.c.b16 %v87, %v85
  %v118 = vpack.c.b16 %v90, %v88
  %v119 = vpack.c.b16 %v91, %v89
  %v120 = vpack.c.b16 %v94, %v92
  %v121 = vpack.c.b16 %v95, %v93
  %v122 = vpack.c.b16 %v98, %v96
  %v123 = vpack.c.b16 %v99, %v97
  %v124 = vpack.c.b16 %v102, %v100
  %v125 = vpack.c.b16 %v103, %v101
  %v126 = vpack.c.b16 %v106, %v104
  %v127 = vpack.c.b16 %v107, %v105
  %v128 = vpack.c.b16 %v110, %v108
  %v129 = vpack.c.b16 %v111, %v109
  %v130 = vpack.c.b16 %v114, %v112
  %v131 = vpack.c.b16 %v115, %v113
  %v180 = vunpack.c.l.b16 %v36
  %v181 = vunpack.c.h.b16 %v36
  %v182 = vunpack.c.l.b16 %v37
  %v183 = vunpack.c.h.b16 %v37
  %v184 = vunpack.c.l.b16 %v38
  %v185 = vunpack.c.h.b16 %v38
  %v186 = vunpack.c.l.b16 %v39
  %v187 = vunpack.c.h.b16 %v39
  %v188 = vunpack.c.l.b16 %v40
  %v189 = vunpack.c.h.b16 %v40
  %v190 = vunpack.c.l.b16 %v41
  %v191 = vunpack.c.h.b16 %v41
  %v192 = vunpack.c.l.b16 %v42
  %v193 = vunpack.c.h.b16 %v42
  %v194 = vunpack.c.l.b16 %v43
  %v195 = vunpack.c.h.b16 %v43
  %v196 = vunpack.c.l.b16 %v44
  %v197 = vunpack.c.h.b16 %v44
  %v198 = vunpack.c.l.b16 %v45
  %v199 = vunpack.c.h.b16 %v45
  %v200 = vunpack.c.l.b16 %v46
  %v201 = vunpack.c.h.b16 %v46
  %v202 = vunpack.c.l.b16 %v47
  %v203 = vunpack.c.h.b16 %v47
  %v204 = vunpack.c.l.b16 %v48
  %v205 = vunpack.c.h.b16 %v48
  %v206 = vunpack.c.l.b16 %v49
  %v207 = vunpack.c.h.b16 %v49
  %v208 = vunpack.c.l.b16 %v50
  %v209 = vunpack.c.h.b16 %v50
  %v210 = vunpack.c.l.b16 %v51
  %v211 = vunpack.c.h.b16 %v51
  %v212 = vunpack.c.l.b16 %v52
  %v213 = vunpack.c.h.b16 %v52
  %v214 = vunpack.c.l.b16 %v53
  %v215 = vunpack.c.h.b16 %v53
  %v216 = vunpack.c.l.b16 %v54
  %v217 = vunpack.c.h.b16 %v54
  %v218 = vunpack.c.l.b16 %v55
  %v219 = vunpack.c.h.b16 %v55
  %v220 = vunpack.c.l.b16 %v56
  %v221 = vunpack.c.h.b16 %v56
  %v222 = vunpack.c.l.b16 %v57
  %v223 = vunpack.c.h.b16 %v57
  %v224 = vunpack.c.l.b16 %v58
  %v225 = vunpack.c.h.b16 %v58
  %v226 = vunpack.c.l.b16 %v59
  %v227 = vunpack.c.h.b16 %v59
  %v228 = vunpack.c.l.b16 %v60
  %v229 = vunpack.c.h.b16 %v60
  %v230 = vunpack.c.l.b16 %v61
  %v231 = vunpack.c.h.b16 %v61
  %v232 = vunpack.c.l.b16 %v62
  %v233 = vunpack.c.h.b16 %v62
  %v234 = vunpack.c.l.b16 %v63
  %v235 = vunpack.c.h.b16 %v63
  %v236 = vunpack.c.l.b16 %v64
  %v237 = vunpack.c.h.b16 %v64
  %v238 = vunpack.c.l.b16 %v65
  %v239 = vunpack.c.h.b16 %v65
  %v240 = vunpack.c.l.b16 %v66
  %v241 = vunpack.c.h.b16 %v66
  %v242 = vunpack.c.l.b16 %v67
  %v243 = vunpack.c.h.b16 %v67
  %v244 = vpack.c.b16 %v182, %v180
  %v245 = vpack.c.b16 %v183, %v181
  %v246 = vpack.c.b16 %v186, %v184
  %v247 = vpack.c.b16 %v187, %v185
  %v248 = vpack.c.b16 %v190, %v188
  %v249 = vpack.c.b16 %v191, %v189
  %v250 = vpack.c.b16 %v194, %v192
  %v251 = vpack.c.b16 %v195, %v193
  %v252 = vpack.c.b16 %v198, %v196
  %v253 = vpack.c.b16 %v199, %v197
  %v254 = vpack.c.b16 %v202, %v200
  %v255 = vpack.c.b16 %v203, %v201
  %v256 = vpack.c.b16 %v206, %v204
  %v257 = vpack.c.b16 %v207, %v205
  %v258 = vpack.c.b16 %v210, %v208
  %v259 = vpack.c.b16 %v211, %v209
  %v260 = vpack.c.b16 %v214, %v212
  %v261 = vpack.c.b16 %v215, %v213
  %v262 = vpack.c.b16 %v218, %v216
  %v263 = vpack.c.b16 %v219, %v217
  %v264 = vpack.c.b16 %v222, %v220
  %v265 = vpack.c.b16 %v223, %v221
  %v266 = vpack.c.b16 %v226, %v224
  %v267 = vpack.c.b16 %v227, %v225
  %v268 = vpack.c.b16 %v230, %v228
  %v269 = vpack.c.b16 %v231, %v229
  %v270 = vpack.c.b16 %v234, %v232
  %v271 = vpack.c.b16 %v235, %v233
  %v272 = vpack.c.b16 %v238, %v236
  %v273 = vpack.c.b16 %v239, %v237
  %v274 = vpack.c.b16 %v242, %v240
  %v275 = vpack.c.b16 %v243, %v241
  %308 = vmatprep.subr.bf16.mxu0 %v259
  %309 = vmatpush1.bf16.msra.mxu0 %v258
  %310 = vmatprep.subr.bf16.mxu0 %v257
  %311 = vmatpush1.bf16.msra.mxu0 %v256
  %312 = vmatprep.subr.bf16.mxu0 %v255
  %313 = vmatpush1.bf16.msra.mxu0 %v254
  %314 = vmatprep.subr.bf16.mxu0 %v253
  %315 = vmatpush1.bf16.msra.mxu0 %v252
  %316 = vmatprep.subr.bf16.mxu0 %v251
  %317 = vmatpush1.bf16.msra.mxu0 %v250
  %318 = vmatprep.subr.bf16.mxu0 %v249
  %319 = vmatpush1.bf16.msra.mxu0 %v248
  %320 = vmatprep.subr.bf16.mxu0 %v247
  %321 = vmatpush1.bf16.msra.mxu0 %v246
  %322 = vmatprep.subr.bf16.mxu0 %v245
  %323 = vmatpush1.bf16.msra.mxu0 %v244
  %324 = vmatprep.subr.bf16.mxu0 %v275
  %325 = vmatpush2.bf16.msra.mxu0 %v274
  %326 = vmatprep.subr.bf16.mxu0 %v273
  %327 = vmatpush2.bf16.msra.mxu0 %v272
  %328 = vmatprep.subr.bf16.mxu0 %v271
  %329 = vmatpush2.bf16.msra.mxu0 %v270
  %330 = vmatprep.subr.bf16.mxu0 %v269
  %331 = vmatpush2.bf16.msra.mxu0 %v268
  %332 = vmatprep.subr.bf16.mxu0 %v267
  %333 = vmatpush2.bf16.msra.mxu0 %v266
  %334 = vmatprep.subr.bf16.mxu0 %v265
  %335 = vmatpush2.bf16.msra.mxu0 %v264
  %336 = vmatprep.subr.bf16.mxu0 %v263
  %337 = vmatpush2.bf16.msra.mxu0 %v262
  %338 = vmatprep.subr.bf16.mxu0 %v261
  %339 = vmatpush2.bf16.msra.mxu0 %v260
  %340 = vmatprep.mubr.bf16.mxu0 %v117
  %341 = vmatmul.mubr.bf16.gmra.mxu0 %v116
  %v342 = vpop.f32.mrf.mxu0
  %v343 = vadd.f32 0.0, %v342
  %v344 = vpop.f32.mrf.mxu0
  %v345 = vadd.f32 0.0, %v344
  %v346 = vpop.f32.mrf.mxu0
  %v347 = vadd.f32 0.0, %v346
  %v348 = vpop.f32.mrf.mxu0
  %v349 = vadd.f32 0.0, %v348
  %350 = vmatprep.mubr.bf16.mxu0 %v119
  %351 = vmatmul.mubr.bf16.gmra.mxu0 %v118
  %v352 = vpop.f32.mrf.mxu0
  %v353 = vadd.f32 0.0, %v352
  %v354 = vpop.f32.mrf.mxu0
  %v355 = vadd.f32 0.0, %v354
  %v356 = vpop.f32.mrf.mxu0
  %v357 = vadd.f32 0.0, %v356
  %v358 = vpop.f32.mrf.mxu0
  %v359 = vadd.f32 0.0, %v358
  %360 = vmatprep.mubr.bf16.mxu0 %v121
  %361 = vmatmul.mubr.bf16.gmra.mxu0 %v120
  %v362 = vpop.f32.mrf.mxu0
  %v363 = vadd.f32 0.0, %v362
  %v364 = vpop.f32.mrf.mxu0
  %v365 = vadd.f32 0.0, %v364
  %v366 = vpop.f32.mrf.mxu0
  %v367 = vadd.f32 0.0, %v366
  %v368 = vpop.f32.mrf.mxu0
  %v369 = vadd.f32 0.0, %v368
  %370 = vmatprep.mubr.bf16.mxu0 %v123
  %371 = vmatmul.mubr.bf16.gmra.mxu0 %v122
  %v372 = vpop.f32.mrf.mxu0
  %v373 = vadd.f32 0.0, %v372
  %v374 = vpop.f32.mrf.mxu0
  %v375 = vadd.f32 0.0, %v374
  %v376 = vpop.f32.mrf.mxu0
  %v377 = vadd.f32 0.0, %v376
  %v378 = vpop.f32.mrf.mxu0
  %v379 = vadd.f32 0.0, %v378
  %380 = vmatprep.mubr.bf16.mxu0 %v125
  %381 = vmatmul.mubr.bf16.gmra.mxu0 %v124
  %v382 = vpop.f32.mrf.mxu0
  %v383 = vadd.f32 0.0, %v382
  %v384 = vpop.f32.mrf.mxu0
  %v385 = vadd.f32 0.0, %v384
  %v386 = vpop.f32.mrf.mxu0
  %v387 = vadd.f32 0.0, %v386
  %v388 = vpop.f32.mrf.mxu0
  %v389 = vadd.f32 0.0, %v388
  %390 = vmatprep.mubr.bf16.mxu0 %v127
  %391 = vmatmul.mubr.bf16.gmra.mxu0 %v126
  %v392 = vpop.f32.mrf.mxu0
  %v393 = vadd.f32 0.0, %v392
  %v394 = vpop.f32.mrf.mxu0
  %v395 = vadd.f32 0.0, %v394
  %v396 = vpop.f32.mrf.mxu0
  %v397 = vadd.f32 0.0, %v396
  %v398 = vpop.f32.mrf.mxu0
  %v399 = vadd.f32 0.0, %v398
  %400 = vmatprep.mubr.bf16.mxu0 %v129
  %401 = vmatmul.mubr.bf16.gmra.mxu0 %v128
  %v402 = vpop.f32.mrf.mxu0
  %v403 = vadd.f32 0.0, %v402
  %v404 = vpop.f32.mrf.mxu0
  %v405 = vadd.f32 0.0, %v404
  %v406 = vpop.f32.mrf.mxu0
  %v407 = vadd.f32 0.0, %v406
  %v408 = vpop.f32.mrf.mxu0
  %v409 = vadd.f32 0.0, %v408
  %410 = vmatprep.mubr.bf16.mxu0 %v131
  %411 = vmatmul.mubr.bf16.gmra.mxu0 %v130
  %v412 = vpop.f32.mrf.mxu0
  %v413 = vadd.f32 0.0, %v412
  %v414 = vpop.f32.mrf.mxu0
  %v415 = vadd.f32 0.0, %v414
  %v416 = vpop.f32.mrf.mxu0
  %v417 = vadd.f32 0.0, %v416
  %v418 = vpop.f32.mrf.mxu0
  %v419 = vadd.f32 0.0, %v418
  %420 = vdwg.mxu0
  %v421 = vld [vmem:[%s2] sm:$0x3]
  %v423 = vlaneseq
  %v424 = vshrl.u32 %v423, 7
  %v425 = vsub.s32 0, %v424
  %v426 = vrot.slane %v421, %v425
  %v427 = vlaneseq
  %v428 = vshrl.u32 %v427, 7
  %v429 = vsub.s32 1, %v428
  %v430 = vrot.slane %v421, %v429
  %v433 = vmul.f32 %v343, %v426
  %v434 = vmul.f32 %v345, %v430
  %v435 = vmul.f32 %v347, %v426
  %v436 = vmul.f32 %v349, %v430
  %v437 = vmul.f32 %v353, %v426
  %v438 = vmul.f32 %v355, %v430
  %v439 = vmul.f32 %v357, %v426
  %v440 = vmul.f32 %v359, %v430
  %v441 = vmul.f32 %v363, %v426
  %v442 = vmul.f32 %v365, %v430
  %v443 = vmul.f32 %v367, %v426
  %v444 = vmul.f32 %v369, %v430
  %v445 = vmul.f32 %v373, %v426
  %v446 = vmul.f32 %v375, %v430
  %v447 = vmul.f32 %v377, %v426
  %v448 = vmul.f32 %v379, %v430
  %v449 = vmul.f32 %v383, %v426
  %v450 = vmul.f32 %v385, %v430
  %v451 = vmul.f32 %v387, %v426
  %v452 = vmul.f32 %v389, %v430
  %v453 = vmul.f32 %v393, %v426
  %v454 = vmul.f32 %v395, %v430
  %v455 = vmul.f32 %v397, %v426
  %v456 = vmul.f32 %v399, %v430
  %v457 = vmul.f32 %v403, %v426
  %v458 = vmul.f32 %v405, %v430
  %v459 = vmul.f32 %v407, %v426
  %v460 = vmul.f32 %v409, %v430
  %v461 = vmul.f32 %v413, %v426
  %v462 = vmul.f32 %v415, %v430
  %v463 = vmul.f32 %v417, %v426
  %v464 = vmul.f32 %v419, %v430
  %v465 = vld [vmem:[%s3] sm:$0x3]
  %v467 = vlaneseq
  %v468 = vshrl.u32 %v467, 7
  %v469 = vsub.s32 0, %v468
  %v470 = vrot.slane %v465, %v469
  %v471 = vlaneseq
  %v472 = vshrl.u32 %v471, 7
  %v473 = vsub.s32 1, %v472
  %v474 = vrot.slane %v465, %v473
  %v477 = vadd.f32 %v433, %v470
  %v478 = vadd.f32 %v434, %v474
  %v479 = vadd.f32 %v435, %v470
  %v480 = vadd.f32 %v436, %v474
  %v481 = vadd.f32 %v437, %v470
  %v482 = vadd.f32 %v438, %v474
  %v483 = vadd.f32 %v439, %v470
  %v484 = vadd.f32 %v440, %v474
  %v485 = vadd.f32 %v441, %v470
  %v486 = vadd.f32 %v442, %v474
  %v487 = vadd.f32 %v443, %v470
  %v488 = vadd.f32 %v444, %v474
  %v489 = vadd.f32 %v445, %v470
  %v490 = vadd.f32 %v446, %v474
  %v491 = vadd.f32 %v447, %v470
  %v492 = vadd.f32 %v448, %v474
  %v493 = vadd.f32 %v449, %v470
  %v494 = vadd.f32 %v450, %v474
  %v495 = vadd.f32 %v451, %v470
  %v496 = vadd.f32 %v452, %v474
  %v497 = vadd.f32 %v453, %v470
  %v498 = vadd.f32 %v454, %v474
  %v499 = vadd.f32 %v455, %v470
  %v500 = vadd.f32 %v456, %v474
  %v501 = vadd.f32 %v457, %v470
  %v502 = vadd.f32 %v458, %v474
  %v503 = vadd.f32 %v459, %v470
  %v504 = vadd.f32 %v460, %v474
  %v505 = vadd.f32 %v461, %v470
  %v506 = vadd.f32 %v462, %v474
  %v507 = vadd.f32 %v463, %v470
  %v508 = vadd.f32 %v464, %v474
  %v509 = vld [vmem:[%s4] sm:$0xff]
  %v510 = vld [vmem:[%s4 + $0x8] sm:$0xff]
  %v511 = vld [vmem:[%s4 + $0x10] sm:$0xff]
  %v512 = vld [vmem:[%s4 + $0x18] sm:$0xff]
  %v513 = vld [vmem:[%s4 + $0x20] sm:$0xff]
  %v514 = vld [vmem:[%s4 + $0x28] sm:$0xff]
  %v515 = vld [vmem:[%s4 + $0x30] sm:$0xff]
  %v516 = vld [vmem:[%s4 + $0x38] sm:$0xff]
  %v517 = vld [vmem:[%s4 + $0x40] sm:$0xff]
  %v518 = vld [vmem:[%s4 + $0x48] sm:$0xff]
  %v519 = vld [vmem:[%s4 + $0x50] sm:$0xff]
  %v520 = vld [vmem:[%s4 + $0x58] sm:$0xff]
  %v521 = vld [vmem:[%s4 + $0x60] sm:$0xff]
  %v522 = vld [vmem:[%s4 + $0x68] sm:$0xff]
  %v523 = vld [vmem:[%s4 + $0x70] sm:$0xff]
  %v524 = vld [vmem:[%s4 + $0x78] sm:$0xff]
  %v525 = vunpack.c.l.bf16 %v509
  %v526 = vunpack.c.h.bf16 %v509
  %v527 = vunpack.c.l.bf16 %v510
  %v528 = vunpack.c.h.bf16 %v510
  %v529 = vunpack.c.l.bf16 %v511
  %v530 = vunpack.c.h.bf16 %v511
  %v531 = vunpack.c.l.bf16 %v512
  %v532 = vunpack.c.h.bf16 %v512
  %v533 = vunpack.c.l.bf16 %v513
  %v534 = vunpack.c.h.bf16 %v513
  %v535 = vunpack.c.l.bf16 %v514
  %v536 = vunpack.c.h.bf16 %v514
  %v537 = vunpack.c.l.bf16 %v515
  %v538 = vunpack.c.h.bf16 %v515
  %v539 = vunpack.c.l.bf16 %v516
  %v540 = vunpack.c.h.bf16 %v516
  %v541 = vunpack.c.l.bf16 %v517
  %v542 = vunpack.c.h.bf16 %v517
  %v543 = vunpack.c.l.bf16 %v518
  %v544 = vunpack.c.h.bf16 %v518
  %v545 = vunpack.c.l.bf16 %v519
  %v546 = vunpack.c.h.bf16 %v519
  %v547 = vunpack.c.l.bf16 %v520
  %v548 = vunpack.c.h.bf16 %v520
  %v549 = vunpack.c.l.bf16 %v521
  %v550 = vunpack.c.h.bf16 %v521
  %v551 = vunpack.c.l.bf16 %v522
  %v552 = vunpack.c.h.bf16 %v522
  %v553 = vunpack.c.l.bf16 %v523
  %v554 = vunpack.c.h.bf16 %v523
  %v555 = vunpack.c.l.bf16 %v524
  %v556 = vunpack.c.h.bf16 %v524
  %v557 = vadd.f32 %v477, %v525
  %v558 = vadd.f32 %v478, %v526
  %v559 = vadd.f32 %v479, %v527
  %v560 = vadd.f32 %v480, %v528
  %v561 = vadd.f32 %v481, %v529
  %v562 = vadd.f32 %v482, %v530
  %v563 = vadd.f32 %v483, %v531
  %v564 = vadd.f32 %v484, %v532
  %v565 = vadd.f32 %v485, %v533
  %v566 = vadd.f32 %v486, %v534
  %v567 = vadd.f32 %v487, %v535
  %v568 = vadd.f32 %v488, %v536
  %v569 = vadd.f32 %v489, %v537
  %v570 = vadd.f32 %v490, %v538
  %v571 = vadd.f32 %v491, %v539
  %v572 = vadd.f32 %v492, %v540
  %v573 = vadd.f32 %v493, %v541
  %v574 = vadd.f32 %v494, %v542
  %v575 = vadd.f32 %v495, %v543
  %v576 = vadd.f32 %v496, %v544
  %v577 = vadd.f32 %v497, %v545
  %v578 = vadd.f32 %v498, %v546
  %v579 = vadd.f32 %v499, %v547
  %v580 = vadd.f32 %v500, %v548
  %v581 = vadd.f32 %v501, %v549
  %v582 = vadd.f32 %v502, %v550
  %v583 = vadd.f32 %v503, %v551
  %v584 = vadd.f32 %v504, %v552
  %v585 = vadd.f32 %v505, %v553
  %v586 = vadd.f32 %v506, %v554
  %v587 = vadd.f32 %v507, %v555
  %v588 = vadd.f32 %v508, %v556
  %v589 = vmax.f32 %v557, 0.0
  %v590 = vmax.f32 %v558, 0.0
  %v591 = vmax.f32 %v559, 0.0
  %v592 = vmax.f32 %v560, 0.0
  %v593 = vmax.f32 %v561, 0.0
  %v594 = vmax.f32 %v562, 0.0
  %v595 = vmax.f32 %v563, 0.0
  %v596 = vmax.f32 %v564, 0.0
  %v597 = vmax.f32 %v565, 0.0
  %v598 = vmax.f32 %v566, 0.0
  %v599 = vmax.f32 %v567, 0.0
  %v600 = vmax.f32 %v568, 0.0
  %v601 = vmax.f32 %v569, 0.0
  %v602 = vmax.f32 %v570, 0.0
  %v603 = vmax.f32 %v571, 0.0
  %v604 = vmax.f32 %v572, 0.0
  %v605 = vmax.f32 %v573, 0.0
  %v606 = vmax.f32 %v574, 0.0
  %v607 = vmax.f32 %v575, 0.0
  %v608 = vmax.f32 %v576, 0.0
  %v609 = vmax.f32 %v577, 0.0
  %v610 = vmax.f32 %v578, 0.0
  %v611 = vmax.f32 %v579, 0.0
  %v612 = vmax.f32 %v580, 0.0
  %v613 = vmax.f32 %v581, 0.0
  %v614 = vmax.f32 %v582, 0.0
  %v615 = vmax.f32 %v583, 0.0
  %v616 = vmax.f32 %v584, 0.0
  %v617 = vmax.f32 %v585, 0.0
  %v618 = vmax.f32 %v586, 0.0
  %v619 = vmax.f32 %v587, 0.0
  %v620 = vmax.f32 %v588, 0.0
  %v621 = vpack.c.bf16 %v591, %v589
  %v622 = vpack.c.bf16 %v592, %v590
  %v623 = vpack.c.bf16 %v595, %v593
  %v624 = vpack.c.bf16 %v596, %v594
  %v625 = vpack.c.bf16 %v599, %v597
  %v626 = vpack.c.bf16 %v600, %v598
  %v627 = vpack.c.bf16 %v603, %v601
  %v628 = vpack.c.bf16 %v604, %v602
  %v629 = vpack.c.bf16 %v607, %v605
  %v630 = vpack.c.bf16 %v608, %v606
  %v631 = vpack.c.bf16 %v611, %v609
  %v632 = vpack.c.bf16 %v612, %v610
  %v633 = vpack.c.bf16 %v615, %v613
  %v634 = vpack.c.bf16 %v616, %v614
  %v635 = vpack.c.bf16 %v619, %v617
  %v636 = vpack.c.bf16 %v620, %v618
  %v653 = vunpack.c.l.b16 %v621
  %v654 = vunpack.c.l.b16 %v622
  %v655 = vunpack.c.h.b16 %v621
  %v656 = vunpack.c.h.b16 %v622
  %v657 = vunpack.c.l.b16 %v623
  %v658 = vunpack.c.l.b16 %v624
  %v659 = vunpack.c.h.b16 %v623
  %v660 = vunpack.c.h.b16 %v624
  %v661 = vunpack.c.l.b16 %v625
  %v662 = vunpack.c.l.b16 %v626
  %v663 = vunpack.c.h.b16 %v625
  %v664 = vunpack.c.h.b16 %v626
  %v665 = vunpack.c.l.b16 %v627
  %v666 = vunpack.c.l.b16 %v628
  %v667 = vunpack.c.h.b16 %v627
  %v668 = vunpack.c.h.b16 %v628
  %v669 = vunpack.c.l.b16 %v629
  %v670 = vunpack.c.l.b16 %v630
  %v671 = vunpack.c.h.b16 %v629
  %v672 = vunpack.c.h.b16 %v630
  %v673 = vunpack.c.l.b16 %v631
  %v674 = vunpack.c.l.b16 %v632
  %v675 = vunpack.c.h.b16 %v631
  %v676 = vunpack.c.h.b16 %v632
  %v677 = vunpack.c.l.b16 %v633
  %v678 = vunpack.c.l.b16 %v634
  %v679 = vunpack.c.h.b16 %v633
  %v680 = vunpack.c.h.b16 %v634
  %v681 = vunpack.c.l.b16 %v635
  %v682 = vunpack.c.l.b16 %v636
  %v683 = vunpack.c.h.b16 %v635
  %v684 = vunpack.c.h.b16 %v636
  %v685 = vpack.c.b16 %v654, %v653
  %v686 = vpack.c.b16 %v656, %v655
  %v687 = vpack.c.b16 %v658, %v657
  %v688 = vpack.c.b16 %v660, %v659
  %v689 = vpack.c.b16 %v662, %v661
  %v690 = vpack.c.b16 %v664, %v663
  %v691 = vpack.c.b16 %v666, %v665
  %v692 = vpack.c.b16 %v668, %v667
  %v693 = vpack.c.b16 %v670, %v669
  %v694 = vpack.c.b16 %v672, %v671
  %v695 = vpack.c.b16 %v674, %v673
  %v696 = vpack.c.b16 %v676, %v675
  %v697 = vpack.c.b16 %v678, %v677
  %v698 = vpack.c.b16 %v680, %v679
  %v699 = vpack.c.b16 %v682, %v681
  %v700 = vpack.c.b16 %v684, %v683
  %717 = vst [vmem:[%s5] sm:$0xff] %v685
  %718 = vst [vmem:[%s5 + $0x8] sm:$0xff] %v686
  %719 = vst [vmem:[%s5 + $0x10] sm:$0xff] %v687
  %720 = vst [vmem:[%s5 + $0x18] sm:$0xff] %v688
  %721 = vst [vmem:[%s5 + $0x20] sm:$0xff] %v689
  %722 = vst [vmem:[%s5 + $0x28] sm:$0xff] %v690
  %723 = vst [vmem:[%s5 + $0x30] sm:$0xff] %v691
  %724 = vst [vmem:[%s5 + $0x38] sm:$0xff] %v692
  %725 = vst [vmem:[%s5 + $0x40] sm:$0xff] %v693
  %726 = vst [vmem:[%s5 + $0x48] sm:$0xff] %v694
  %727 = vst [vmem:[%s5 + $0x50] sm:$0xff] %v695
  %728 = vst [vmem:[%s5 + $0x58] sm:$0xff] %v696
  %729 = vst [vmem:[%s5 + $0x60] sm:$0xff] %v697
  %730 = vst [vmem:[%s5 + $0x68] sm:$0xff] %v698
  %731 = vst [vmem:[%s5 + $0x70] sm:$0xff] %v699
  %732 = vst [vmem:[%s5 + $0x78] sm:$0xff] %v700
  // Predicated region
  $region22: #{_lambda_.59} parent=0 // pred_check
    _
  $region23: #{_lambda_.59} parent=0 // pred_check_branch
    %734 = sbr.rel (0) target = $region25
  $region24: #{_lambda_.59} parent=0 // pred_region
    _
  $region25: #{_lambda_.59} parent=0 // pred_fallthru
    _
  // Predicated region
  $region26: #{_lambda_.59} parent=0 // pred_check
    _
  $region27: #{_lambda_.59} parent=0 // pred_check_branch
    %736 = sbr.rel (0) target = $region29
  $region28: #{_lambda_.59} parent=0 // pred_region
    _
  $region29: #{_lambda_.59} parent=0 // pred_fallthru
    _

// kernel: _lambda_.58
$region0: #{_lambda_.58}
  #allocation0 [shape = 'u32[]', space=smem, size = 0x4, offset = 0x4, fixed_abs, tag = 'smem constant byte address 0x4 - core index']
  #allocation1 [shape = 'u32[144,128]{1,0:T(1,128)}', space=vmem, size = 0x12000, scoped, tag = 'internal scratch']
  %s0 = inlined_call_operand.vmem [shape: bf16[128,256], index: 0, kind: input, shape index: {}]
  %s1 = inlined_call_operand.vmem [shape: bf16[256,256], index: 1, kind: input, shape index: {}]
  %s2 = inlined_call_operand.vmem [shape: f32[1,256], index: 2, kind: input, shape index: {}]
  %s3 = inlined_call_operand.vmem [shape: f32[1,256], index: 3, kind: input, shape index: {}]
  %s4 = inlined_call_operand.vmem [shape: bf16[128,256], index: 4, kind: output, shape index: {}]
  %s5 = sld [smem:[#allocation0]]
  $region26: #{_lambda_.58} parent=0
    _
  %s7 = ssub.s32 1, %s5
  %s8 = scalar_select 0, %s7, %s5
  // Predicated region
  $region2: #{_lambda_.58} parent=0 // pred_check
    _
  $region3: #{_lambda_.58} parent=0 // pred_check_branch
    %10 = sbr.rel (0) target = $region5
  $region4: #{_lambda_.58} parent=0 // pred_region
    _
  $region5: #{_lambda_.58} parent=0 // pred_fallthru
    _
  // Predicated region
  $region6: #{_lambda_.58} parent=0 // pred_check
    _
  $region7: #{_lambda_.58} parent=0 // pred_check_branch
    %12 = sbr.rel (0) target = $region9
  $region8: #{_lambda_.58} parent=0 // pred_region
    _
  $region9: #{_lambda_.58} parent=0 // pred_fallthru
    _
  // Predicated region
  $region10: #{_lambda_.58} parent=0 // pred_check
    _
  $region11: #{_lambda_.58} parent=0 // pred_check_branch
    %14 = sbr.rel (0) target = $region13
  $region12: #{_lambda_.58} parent=0 // pred_region
    _
  $region13: #{_lambda_.58} parent=0 // pred_fallthru
    _
  // Predicated region
  $region14: #{_lambda_.58} parent=0 // pred_check
    _
  $region15: #{_lambda_.58} parent=0 // pred_check_branch
    %16 = sbr.rel (0) target = $region17
  $region16: #{_lambda_.58} parent=0 // pred_region
    _
  $region17: #{_lambda_.58} parent=0 // pred_fallthru
    _
  %v17 = vld [vmem:[%s0] sm:$0xff]
  %v18 = vld [vmem:[%s0 + $0x8] sm:$0xff]
  %v19 = vld [vmem:[%s0 + $0x10] sm:$0xff]
  %v20 = vld [vmem:[%s0 + $0x18] sm:$0xff]
  %v21 = vld [vmem:[%s0 + $0x20] sm:$0xff]
  %v22 = vld [vmem:[%s0 + $0x28] sm:$0xff]
  %v23 = vld [vmem:[%s0 + $0x30] sm:$0xff]
  %v24 = vld [vmem:[%s0 + $0x38] sm:$0xff]
  %v25 = vld [vmem:[%s0 + $0x40] sm:$0xff]
  %v26 = vld [vmem:[%s0 + $0x48] sm:$0xff]
  %v27 = vld [vmem:[%s0 + $0x50] sm:$0xff]
  %v28 = vld [vmem:[%s0 + $0x58] sm:$0xff]
  %v29 = vld [vmem:[%s0 + $0x60] sm:$0xff]
  %v30 = vld [vmem:[%s0 + $0x68] sm:$0xff]
  %v31 = vld [vmem:[%s0 + $0x70] sm:$0xff]
  %v32 = vld [vmem:[%s0 + $0x78] sm:$0xff]
  %v33 = vld [vmem:[%s1] sm:$0xff]
  %v34 = vld [vmem:[%s1 + $0x8] sm:$0xff]
  %v35 = vld [vmem:[%s1 + $0x10] sm:$0xff]
  %v36 = vld [vmem:[%s1 + $0x18] sm:$0xff]
  %v37 = vld [vmem:[%s1 + $0x20] sm:$0xff]
  %v38 = vld [vmem:[%s1 + $0x28] sm:$0xff]
  %v39 = vld [vmem:[%s1 + $0x30] sm:$0xff]
  %v40 = vld [vmem:[%s1 + $0x38] sm:$0xff]
  %v41 = vld [vmem:[%s1 + $0x40] sm:$0xff]
  %v42 = vld [vmem:[%s1 + $0x48] sm:$0xff]
  %v43 = vld [vmem:[%s1 + $0x50] sm:$0xff]
  %v44 = vld [vmem:[%s1 + $0x58] sm:$0xff]
  %v45 = vld [vmem:[%s1 + $0x60] sm:$0xff]
  %v46 = vld [vmem:[%s1 + $0x68] sm:$0xff]
  %v47 = vld [vmem:[%s1 + $0x70] sm:$0xff]
  %v48 = vld [vmem:[%s1 + $0x78] sm:$0xff]
  %v49 = vld [vmem:[%s1 + $0x80] sm:$0xff]
  %v50 = vld [vmem:[%s1 + $0x88] sm:$0xff]
  %v51 = vld [vmem:[%s1 + $0x90] sm:$0xff]
  %v52 = vld [vmem:[%s1 + $0x98] sm:$0xff]
  %v53 = vld [vmem:[%s1 + $0xa0] sm:$0xff]
  %v54 = vld [vmem:[%s1 + $0xa8] sm:$0xff]
  %v55 = vld [vmem:[%s1 + $0xb0] sm:$0xff]
  %v56 = vld [vmem:[%s1 + $0xb8] sm:$0xff]
  %v57 = vld [vmem:[%s1 + $0xc0] sm:$0xff]
  %v58 = vld [vmem:[%s1 + $0xc8] sm:$0xff]
  %v59 = vld [vmem:[%s1 + $0xd0] sm:$0xff]
  %v60 = vld [vmem:[%s1 + $0xd8] sm:$0xff]
  %v61 = vld [vmem:[%s1 + $0xe0] sm:$0xff]
  %v62 = vld [vmem:[%s1 + $0xe8] sm:$0xff]
  %v63 = vld [vmem:[%s1 + $0xf0] sm:$0xff]
  %v64 = vld [vmem:[%s1 + $0xf8] sm:$0xff]
  %v81 = vunpack.c.l.b16 %v17
  %v82 = vunpack.c.h.b16 %v17
  %v83 = vunpack.c.l.b16 %v18
  %v84 = vunpack.c.h.b16 %v18
  %v85 = vunpack.c.l.b16 %v19
  %v86 = vunpack.c.h.b16 %v19
  %v87 = vunpack.c.l.b16 %v20
  %v88 = vunpack.c.h.b16 %v20
  %v89 = vunpack.c.l.b16 %v21
  %v90 = vunpack.c.h.b16 %v21
  %v91 = vunpack.c.l.b16 %v22
  %v92 = vunpack.c.h.b16 %v22
  %v93 = vunpack.c.l.b16 %v23
  %v94 = vunpack.c.h.b16 %v23
  %v95 = vunpack.c.l.b16 %v24
  %v96 = vunpack.c.h.b16 %v24
  %v97 = vunpack.c.l.b16 %v25
  %v98 = vunpack.c.h.b16 %v25
  %v99 = vunpack.c.l.b16 %v26
  %v100 = vunpack.c.h.b16 %v26
  %v101 = vunpack.c.l.b16 %v27
  %v102 = vunpack.c.h.b16 %v27
  %v103 = vunpack.c.l.b16 %v28
  %v104 = vunpack.c.h.b16 %v28
  %v105 = vunpack.c.l.b16 %v29
  %v106 = vunpack.c.h.b16 %v29
  %v107 = vunpack.c.l.b16 %v30
  %v108 = vunpack.c.h.b16 %v30
  %v109 = vunpack.c.l.b16 %v31
  %v110 = vunpack.c.h.b16 %v31
  %v111 = vunpack.c.l.b16 %v32
  %v112 = vunpack.c.h.b16 %v32
  %v113 = vpack.c.b16 %v83, %v81
  %v114 = vpack.c.b16 %v84, %v82
  %v115 = vpack.c.b16 %v87, %v85
  %v116 = vpack.c.b16 %v88, %v86
  %v117 = vpack.c.b16 %v91, %v89
  %v118 = vpack.c.b16 %v92, %v90
  %v119 = vpack.c.b16 %v95, %v93
  %v120 = vpack.c.b16 %v96, %v94
  %v121 = vpack.c.b16 %v99, %v97
  %v122 = vpack.c.b16 %v100, %v98
  %v123 = vpack.c.b16 %v103, %v101
  %v124 = vpack.c.b16 %v104, %v102
  %v125 = vpack.c.b16 %v107, %v105
  %v126 = vpack.c.b16 %v108, %v106
  %v127 = vpack.c.b16 %v111, %v109
  %v128 = vpack.c.b16 %v112, %v110
  %v177 = vunpack.c.l.b16 %v33
  %v178 = vunpack.c.h.b16 %v33
  %v179 = vunpack.c.l.b16 %v34
  %v180 = vunpack.c.h.b16 %v34
  %v181 = vunpack.c.l.b16 %v35
  %v182 = vunpack.c.h.b16 %v35
  %v183 = vunpack.c.l.b16 %v36
  %v184 = vunpack.c.h.b16 %v36
  %v185 = vunpack.c.l.b16 %v37
  %v186 = vunpack.c.h.b16 %v37
  %v187 = vunpack.c.l.b16 %v38
  %v188 = vunpack.c.h.b16 %v38
  %v189 = vunpack.c.l.b16 %v39
  %v190 = vunpack.c.h.b16 %v39
  %v191 = vunpack.c.l.b16 %v40
  %v192 = vunpack.c.h.b16 %v40
  %v193 = vunpack.c.l.b16 %v41
  %v194 = vunpack.c.h.b16 %v41
  %v195 = vunpack.c.l.b16 %v42
  %v196 = vunpack.c.h.b16 %v42
  %v197 = vunpack.c.l.b16 %v43
  %v198 = vunpack.c.h.b16 %v43
  %v199 = vunpack.c.l.b16 %v44
  %v200 = vunpack.c.h.b16 %v44
  %v201 = vunpack.c.l.b16 %v45
  %v202 = vunpack.c.h.b16 %v45
  %v203 = vunpack.c.l.b16 %v46
  %v204 = vunpack.c.h.b16 %v46
  %v205 = vunpack.c.l.b16 %v47
  %v206 = vunpack.c.h.b16 %v47
  %v207 = vunpack.c.l.b16 %v48
  %v208 = vunpack.c.h.b16 %v48
  %v209 = vunpack.c.l.b16 %v49
  %v210 = vunpack.c.h.b16 %v49
  %v211 = vunpack.c.l.b16 %v50
  %v212 = vunpack.c.h.b16 %v50
  %v213 = vunpack.c.l.b16 %v51
  %v214 = vunpack.c.h.b16 %v51
  %v215 = vunpack.c.l.b16 %v52
  %v216 = vunpack.c.h.b16 %v52
  %v217 = vunpack.c.l.b16 %v53
  %v218 = vunpack.c.h.b16 %v53
  %v219 = vunpack.c.l.b16 %v54
  %v220 = vunpack.c.h.b16 %v54
  %v221 = vunpack.c.l.b16 %v55
  %v222 = vunpack.c.h.b16 %v55
  %v223 = vunpack.c.l.b16 %v56
  %v224 = vunpack.c.h.b16 %v56
  %v225 = vunpack.c.l.b16 %v57
  %v226 = vunpack.c.h.b16 %v57
  %v227 = vunpack.c.l.b16 %v58
  %v228 = vunpack.c.h.b16 %v58
  %v229 = vunpack.c.l.b16 %v59
  %v230 = vunpack.c.h.b16 %v59
  %v231 = vunpack.c.l.b16 %v60
  %v232 = vunpack.c.h.b16 %v60
  %v233 = vunpack.c.l.b16 %v61
  %v234 = vunpack.c.h.b16 %v61
  %v235 = vunpack.c.l.b16 %v62
  %v236 = vunpack.c.h.b16 %v62
  %v237 = vunpack.c.l.b16 %v63
  %v238 = vunpack.c.h.b16 %v63
  %v239 = vunpack.c.l.b16 %v64
  %v240 = vunpack.c.h.b16 %v64
  %v241 = vpack.c.b16 %v179, %v177
  %v242 = vpack.c.b16 %v180, %v178
  %v243 = vpack.c.b16 %v183, %v181
  %v244 = vpack.c.b16 %v184, %v182
  %v245 = vpack.c.b16 %v187, %v185
  %v246 = vpack.c.b16 %v188, %v186
  %v247 = vpack.c.b16 %v191, %v189
  %v248 = vpack.c.b16 %v192, %v190
  %v249 = vpack.c.b16 %v195, %v193
  %v250 = vpack.c.b16 %v196, %v194
  %v251 = vpack.c.b16 %v199, %v197
  %v252 = vpack.c.b16 %v200, %v198
  %v253 = vpack.c.b16 %v203, %v201
  %v254 = vpack.c.b16 %v204, %v202
  %v255 = vpack.c.b16 %v207, %v205
  %v256 = vpack.c.b16 %v208, %v206
  %v257 = vpack.c.b16 %v211, %v209
  %v258 = vpack.c.b16 %v212, %v210
  %v259 = vpack.c.b16 %v215, %v213
  %v260 = vpack.c.b16 %v216, %v214
  %v261 = vpack.c.b16 %v219, %v217
  %v262 = vpack.c.b16 %v220, %v218
  %v263 = vpack.c.b16 %v223, %v221
  %v264 = vpack.c.b16 %v224, %v222
  %v265 = vpack.c.b16 %v227, %v225
  %v266 = vpack.c.b16 %v228, %v226
  %v267 = vpack.c.b16 %v231, %v229
  %v268 = vpack.c.b16 %v232, %v230
  %v269 = vpack.c.b16 %v235, %v233
  %v270 = vpack.c.b16 %v236, %v234
  %v271 = vpack.c.b16 %v239, %v237
  %v272 = vpack.c.b16 %v240, %v238
  %305 = vmatprep.subr.bf16.mxu0 %v256
  %306 = vmatpush1.bf16.msra.mxu0 %v255
  %307 = vmatprep.subr.bf16.mxu0 %v254
  %308 = vmatpush1.bf16.msra.mxu0 %v253
  %309 = vmatprep.subr.bf16.mxu0 %v252
  %310 = vmatpush1.bf16.msra.mxu0 %v251
  %311 = vmatprep.subr.bf16.mxu0 %v250
  %312 = vmatpush1.bf16.msra.mxu0 %v249
  %313 = vmatprep.subr.bf16.mxu0 %v248
  %314 = vmatpush1.bf16.msra.mxu0 %v247
  %315 = vmatprep.subr.bf16.mxu0 %v246
  %316 = vmatpush1.bf16.msra.mxu0 %v245
  %317 = vmatprep.subr.bf16.mxu0 %v244
  %318 = vmatpush1.bf16.msra.mxu0 %v243
  %319 = vmatprep.subr.bf16.mxu0 %v242
  %320 = vmatpush1.bf16.msra.mxu0 %v241
  %321 = vmatprep.subr.bf16.mxu0 %v272
  %322 = vmatpush2.bf16.msra.mxu0 %v271
  %323 = vmatprep.subr.bf16.mxu0 %v270
  %324 = vmatpush2.bf16.msra.mxu0 %v269
  %325 = vmatprep.subr.bf16.mxu0 %v268
  %326 = vmatpush2.bf16.msra.mxu0 %v267
  %327 = vmatprep.subr.bf16.mxu0 %v266
  %328 = vmatpush2.bf16.msra.mxu0 %v265
  %329 = vmatprep.subr.bf16.mxu0 %v264
  %330 = vmatpush2.bf16.msra.mxu0 %v263
  %331 = vmatprep.subr.bf16.mxu0 %v262
  %332 = vmatpush2.bf16.msra.mxu0 %v261
  %333 = vmatprep.subr.bf16.mxu0 %v260
  %334 = vmatpush2.bf16.msra.mxu0 %v259
  %335 = vmatprep.subr.bf16.mxu0 %v258
  %336 = vmatpush2.bf16.msra.mxu0 %v257
  %337 = vmatprep.mubr.bf16.mxu0 %v114
  %338 = vmatmul.mubr.bf16.gmra.mxu0 %v113
  %v339 = vpop.f32.mrf.mxu0
  %v340 = vadd.f32 0.0, %v339
  %v341 = vpop.f32.mrf.mxu0
  %v342 = vadd.f32 0.0, %v341
  %v343 = vpop.f32.mrf.mxu0
  %v344 = vadd.f32 0.0, %v343
  %v345 = vpop.f32.mrf.mxu0
  %v346 = vadd.f32 0.0, %v345
  %347 = vmatprep.mubr.bf16.mxu0 %v116
  %348 = vmatmul.mubr.bf16.gmra.mxu0 %v115
  %v349 = vpop.f32.mrf.mxu0
  %v350 = vadd.f32 0.0, %v349
  %v351 = vpop.f32.mrf.mxu0
  %v352 = vadd.f32 0.0, %v351
  %v353 = vpop.f32.mrf.mxu0
  %v354 = vadd.f32 0.0, %v353
  %v355 = vpop.f32.mrf.mxu0
  %v356 = vadd.f32 0.0, %v355
  %357 = vmatprep.mubr.bf16.mxu0 %v118
  %358 = vmatmul.mubr.bf16.gmra.mxu0 %v117
  %v359 = vpop.f32.mrf.mxu0
  %v360 = vadd.f32 0.0, %v359
  %v361 = vpop.f32.mrf.mxu0
  %v362 = vadd.f32 0.0, %v361
  %v363 = vpop.f32.mrf.mxu0
  %v364 = vadd.f32 0.0, %v363
  %v365 = vpop.f32.mrf.mxu0
  %v366 = vadd.f32 0.0, %v365
  %367 = vmatprep.mubr.bf16.mxu0 %v120
  %368 = vmatmul.mubr.bf16.gmra.mxu0 %v119
  %v369 = vpop.f32.mrf.mxu0
  %v370 = vadd.f32 0.0, %v369
  %v371 = vpop.f32.mrf.mxu0
  %v372 = vadd.f32 0.0, %v371
  %v373 = vpop.f32.mrf.mxu0
  %v374 = vadd.f32 0.0, %v373
  %v375 = vpop.f32.mrf.mxu0
  %v376 = vadd.f32 0.0, %v375
  %377 = vmatprep.mubr.bf16.mxu0 %v122
  %378 = vmatmul.mubr.bf16.gmra.mxu0 %v121
  %v379 = vpop.f32.mrf.mxu0
  %v380 = vadd.f32 0.0, %v379
  %v381 = vpop.f32.mrf.mxu0
  %v382 = vadd.f32 0.0, %v381
  %v383 = vpop.f32.mrf.mxu0
  %v384 = vadd.f32 0.0, %v383
  %v385 = vpop.f32.mrf.mxu0
  %v386 = vadd.f32 0.0, %v385
  %387 = vmatprep.mubr.bf16.mxu0 %v124
  %388 = vmatmul.mubr.bf16.gmra.mxu0 %v123
  %v389 = vpop.f32.mrf.mxu0
  %v390 = vadd.f32 0.0, %v389
  %v391 = vpop.f32.mrf.mxu0
  %v392 = vadd.f32 0.0, %v391
  %v393 = vpop.f32.mrf.mxu0
  %v394 = vadd.f32 0.0, %v393
  %v395 = vpop.f32.mrf.mxu0
  %v396 = vadd.f32 0.0, %v395
  %397 = vmatprep.mubr.bf16.mxu0 %v126
  %398 = vmatmul.mubr.bf16.gmra.mxu0 %v125
  %v399 = vpop.f32.mrf.mxu0
  %v400 = vadd.f32 0.0, %v399
  %v401 = vpop.f32.mrf.mxu0
  %v402 = vadd.f32 0.0, %v401
  %v403 = vpop.f32.mrf.mxu0
  %v404 = vadd.f32 0.0, %v403
  %v405 = vpop.f32.mrf.mxu0
  %v406 = vadd.f32 0.0, %v405
  %407 = vmatprep.mubr.bf16.mxu0 %v128
  %408 = vmatmul.mubr.bf16.gmra.mxu0 %v127
  %v409 = vpop.f32.mrf.mxu0
  %v410 = vadd.f32 0.0, %v409
  %v411 = vpop.f32.mrf.mxu0
  %v412 = vadd.f32 0.0, %v411
  %v413 = vpop.f32.mrf.mxu0
  %v414 = vadd.f32 0.0, %v413
  %v415 = vpop.f32.mrf.mxu0
  %v416 = vadd.f32 0.0, %v415
  %417 = vdwg.mxu0
  %v418 = vld [vmem:[%s2] sm:$0x3]
  %v420 = vlaneseq
  %v421 = vshrl.u32 %v420, 7
  %v422 = vsub.s32 0, %v421
  %v423 = vrot.slane %v418, %v422
  %v424 = vlaneseq
  %v425 = vshrl.u32 %v424, 7
  %v426 = vsub.s32 1, %v425
  %v427 = vrot.slane %v418, %v426
  %v430 = vmul.f32 %v340, %v423
  %v431 = vmul.f32 %v342, %v427
  %v432 = vmul.f32 %v344, %v423
  %v433 = vmul.f32 %v346, %v427
  %v434 = vmul.f32 %v350, %v423
  %v435 = vmul.f32 %v352, %v427
  %v436 = vmul.f32 %v354, %v423
  %v437 = vmul.f32 %v356, %v427
  %v438 = vmul.f32 %v360, %v423
  %v439 = vmul.f32 %v362, %v427
  %v440 = vmul.f32 %v364, %v423
  %v441 = vmul.f32 %v366, %v427
  %v442 = vmul.f32 %v370, %v423
  %v443 = vmul.f32 %v372, %v427
  %v444 = vmul.f32 %v374, %v423
  %v445 = vmul.f32 %v376, %v427
  %v446 = vmul.f32 %v380, %v423
  %v447 = vmul.f32 %v382, %v427
  %v448 = vmul.f32 %v384, %v423
  %v449 = vmul.f32 %v386, %v427
  %v450 = vmul.f32 %v390, %v423
  %v451 = vmul.f32 %v392, %v427
  %v452 = vmul.f32 %v394, %v423
  %v453 = vmul.f32 %v396, %v427
  %v454 = vmul.f32 %v400, %v423
  %v455 = vmul.f32 %v402, %v427
  %v456 = vmul.f32 %v404, %v423
  %v457 = vmul.f32 %v406, %v427
  %v458 = vmul.f32 %v410, %v423
  %v459 = vmul.f32 %v412, %v427
  %v460 = vmul.f32 %v414, %v423
  %v461 = vmul.f32 %v416, %v427
  %v462 = vld [vmem:[%s3] sm:$0x3]
  %v464 = vlaneseq
  %v465 = vshrl.u32 %v464, 7
  %v466 = vsub.s32 0, %v465
  %v467 = vrot.slane %v462, %v466
  %v468 = vlaneseq
  %v469 = vshrl.u32 %v468, 7
  %v470 = vsub.s32 1, %v469
  %v471 = vrot.slane %v462, %v470
  %v474 = vadd.f32 %v430, %v467
  %v475 = vadd.f32 %v431, %v471
  %v476 = vadd.f32 %v432, %v467
  %v477 = vadd.f32 %v433, %v471
  %v478 = vadd.f32 %v434, %v467
  %v479 = vadd.f32 %v435, %v471
  %v480 = vadd.f32 %v436, %v467
  %v481 = vadd.f32 %v437, %v471
  %v482 = vadd.f32 %v438, %v467
  %v483 = vadd.f32 %v439, %v471
  %v484 = vadd.f32 %v440, %v467
  %v485 = vadd.f32 %v441, %v471
  %v486 = vadd.f32 %v442, %v467
  %v487 = vadd.f32 %v443, %v471
  %v488 = vadd.f32 %v444, %v467
  %v489 = vadd.f32 %v445, %v471
  %v490 = vadd.f32 %v446, %v467
  %v491 = vadd.f32 %v447, %v471
  %v492 = vadd.f32 %v448, %v467
  %v493 = vadd.f32 %v449, %v471
  %v494 = vadd.f32 %v450, %v467
  %v495 = vadd.f32 %v451, %v471
  %v496 = vadd.f32 %v452, %v467
  %v497 = vadd.f32 %v453, %v471
  %v498 = vadd.f32 %v454, %v467
  %v499 = vadd.f32 %v455, %v471
  %v500 = vadd.f32 %v456, %v467
  %v501 = vadd.f32 %v457, %v471
  %v502 = vadd.f32 %v458, %v467
  %v503 = vadd.f32 %v459, %v471
  %v504 = vadd.f32 %v460, %v467
  %v505 = vadd.f32 %v461, %v471
  %v506 = vmax.f32 %v474, 0.0
  %v507 = vmax.f32 %v475, 0.0
  %v508 = vmax.f32 %v476, 0.0
  %v509 = vmax.f32 %v477, 0.0
  %v510 = vmax.f32 %v478, 0.0
  %v511 = vmax.f32 %v479, 0.0
  %v512 = vmax.f32 %v480, 0.0
  %v513 = vmax.f32 %v481, 0.0
  %v514 = vmax.f32 %v482, 0.0
  %v515 = vmax.f32 %v483, 0.0
  %v516 = vmax.f32 %v484, 0.0
  %v517 = vmax.f32 %v485, 0.0
  %v518 = vmax.f32 %v486, 0.0
  %v519 = vmax.f32 %v487, 0.0
  %v520 = vmax.f32 %v488, 0.0
  %v521 = vmax.f32 %v489, 0.0
  %v522 = vmax.f32 %v490, 0.0
  %v523 = vmax.f32 %v491, 0.0
  %v524 = vmax.f32 %v492, 0.0
  %v525 = vmax.f32 %v493, 0.0
  %v526 = vmax.f32 %v494, 0.0
  %v527 = vmax.f32 %v495, 0.0
  %v528 = vmax.f32 %v496, 0.0
  %v529 = vmax.f32 %v497, 0.0
  %v530 = vmax.f32 %v498, 0.0
  %v531 = vmax.f32 %v499, 0.0
  %v532 = vmax.f32 %v500, 0.0
  %v533 = vmax.f32 %v501, 0.0
  %v534 = vmax.f32 %v502, 0.0
  %v535 = vmax.f32 %v503, 0.0
  %v536 = vmax.f32 %v504, 0.0
  %v537 = vmax.f32 %v505, 0.0
  %v538 = vpack.c.bf16 %v508, %v506
  %v539 = vpack.c.bf16 %v509, %v507
  %v540 = vpack.c.bf16 %v512, %v510
  %v541 = vpack.c.bf16 %v513, %v511
  %v542 = vpack.c.bf16 %v516, %v514
  %v543 = vpack.c.bf16 %v517, %v515
  %v544 = vpack.c.bf16 %v520, %v518
  %v545 = vpack.c.bf16 %v521, %v519
  %v546 = vpack.c.bf16 %v524, %v522
  %v547 = vpack.c.bf16 %v525, %v523
  %v548 = vpack.c.bf16 %v528, %v526
  %v549 = vpack.c.bf16 %v529, %v527
  %v550 = vpack.c.bf16 %v532, %v530
  %v551 = vpack.c.bf16 %v533, %v531
  %v552 = vpack.c.bf16 %v536, %v534
  %v553 = vpack.c.bf16 %v537, %v535
  %v570 = vunpack.c.l.b16 %v538
  %v571 = vunpack.c.l.b16 %v539
  %v572 = vunpack.c.h.b16 %v538
  %v573 = vunpack.c.h.b16 %v539
  %v574 = vunpack.c.l.b16 %v540
  %v575 = vunpack.c.l.b16 %v541
  %v576 = vunpack.c.h.b16 %v540
  %v577 = vunpack.c.h.b16 %v541
  %v578 = vunpack.c.l.b16 %v542
  %v579 = vunpack.c.l.b16 %v543
  %v580 = vunpack.c.h.b16 %v542
  %v581 = vunpack.c.h.b16 %v543
  %v582 = vunpack.c.l.b16 %v544
  %v583 = vunpack.c.l.b16 %v545
  %v584 = vunpack.c.h.b16 %v544
  %v585 = vunpack.c.h.b16 %v545
  %v586 = vunpack.c.l.b16 %v546
  %v587 = vunpack.c.l.b16 %v547
  %v588 = vunpack.c.h.b16 %v546
  %v589 = vunpack.c.h.b16 %v547
  %v590 = vunpack.c.l.b16 %v548
  %v591 = vunpack.c.l.b16 %v549
  %v592 = vunpack.c.h.b16 %v548
  %v593 = vunpack.c.h.b16 %v549
  %v594 = vunpack.c.l.b16 %v550
  %v595 = vunpack.c.l.b16 %v551
  %v596 = vunpack.c.h.b16 %v550
  %v597 = vunpack.c.h.b16 %v551
  %v598 = vunpack.c.l.b16 %v552
  %v599 = vunpack.c.l.b16 %v553
  %v600 = vunpack.c.h.b16 %v552
  %v601 = vunpack.c.h.b16 %v553
  %v602 = vpack.c.b16 %v571, %v570
  %v603 = vpack.c.b16 %v573, %v572
  %v604 = vpack.c.b16 %v575, %v574
  %v605 = vpack.c.b16 %v577, %v576
  %v606 = vpack.c.b16 %v579, %v578
  %v607 = vpack.c.b16 %v581, %v580
  %v608 = vpack.c.b16 %v583, %v582
  %v609 = vpack.c.b16 %v585, %v584
  %v610 = vpack.c.b16 %v587, %v586
  %v611 = vpack.c.b16 %v589, %v588
  %v612 = vpack.c.b16 %v591, %v590
  %v613 = vpack.c.b16 %v593, %v592
  %v614 = vpack.c.b16 %v595, %v594
  %v615 = vpack.c.b16 %v597, %v596
  %v616 = vpack.c.b16 %v599, %v598
  %v617 = vpack.c.b16 %v601, %v600
  %634 = vst [vmem:[%s4] sm:$0xff] %v602
  %635 = vst [vmem:[%s4 + $0x8] sm:$0xff] %v603
  %636 = vst [vmem:[%s4 + $0x10] sm:$0xff] %v604
  %637 = vst [vmem:[%s4 + $0x18] sm:$0xff] %v605
  %638 = vst [vmem:[%s4 + $0x20] sm:$0xff] %v606
  %639 = vst [vmem:[%s4 + $0x28] sm:$0xff] %v607
  %640 = vst [vmem:[%s4 + $0x30] sm:$0xff] %v608
  %641 = vst [vmem:[%s4 + $0x38] sm:$0xff] %v609
  %642 = vst [vmem:[%s4 + $0x40] sm:$0xff] %v610
  %643 = vst [vmem:[%s4 + $0x48] sm:$0xff] %v611
  %644 = vst [vmem:[%s4 + $0x50] sm:$0xff] %v612
  %645 = vst [vmem:[%s4 + $0x58] sm:$0xff] %v613
  %646 = vst [vmem:[%s4 + $0x60] sm:$0xff] %v614
  %647 = vst [vmem:[%s4 + $0x68] sm:$0xff] %v615
  %648 = vst [vmem:[%s4 + $0x70] sm:$0xff] %v616
  %649 = vst [vmem:[%s4 + $0x78] sm:$0xff] %v617
  // Predicated region
  $region18: #{_lambda_.58} parent=0 // pred_check
    _
  $region19: #{_lambda_.58} parent=0 // pred_check_branch
    %651 = sbr.rel (0) target = $region21
  $region20: #{_lambda_.58} parent=0 // pred_region
    _
  $region21: #{_lambda_.58} parent=0 // pred_fallthru
    _
  // Predicated region
  $region22: #{_lambda_.58} parent=0 // pred_check
    _
  $region23: #{_lambda_.58} parent=0 // pred_check_branch
    %653 = sbr.rel (0) target = $region25
  $region24: #{_lambda_.58} parent=0 // pred_region
    _
  $region25: #{_lambda_.58} parent=0 // pred_fallthru
    _

// kernel: _lambda_.70
$region0: #{_lambda_.70}
  #allocation0 [shape = 'u32[]', space=smem, size = 0x4, offset = 0x4, fixed_abs, tag = 'smem constant byte address 0x4 - core index']
  #allocation1 [shape = 'u32[144,128]{1,0:T(1,128)}', space=vmem, size = 0x12000, scoped, tag = 'internal scratch']
  %s0 = inlined_call_operand.vmem [shape: bf16[32,256], index: 0, kind: input, shape index: {}]
  %s1 = inlined_call_operand.vmem [shape: bf16[256,256], index: 1, kind: input, shape index: {}]
  %s2 = inlined_call_operand.vmem [shape: f32[1,256], index: 2, kind: input, shape index: {}]
  %s3 = inlined_call_operand.vmem [shape: f32[1,256], index: 3, kind: input, shape index: {}]
  %s4 = inlined_call_operand.vmem [shape: bf16[32,256], index: 4, kind: output, shape index: {}]
  %s5 = sld [smem:[#allocation0]]
  $region26: #{_lambda_.70} parent=0
    _
  %s7 = ssub.s32 1, %s5
  %s8 = scalar_select 0, %s7, %s5
  // Predicated region
  $region2: #{_lambda_.70} parent=0 // pred_check
    _
  $region3: #{_lambda_.70} parent=0 // pred_check_branch
    %10 = sbr.rel (0) target = $region5
  $region4: #{_lambda_.70} parent=0 // pred_region
    _
  $region5: #{_lambda_.70} parent=0 // pred_fallthru
    _
  // Predicated region
  $region6: #{_lambda_.70} parent=0 // pred_check
    _
  $region7: #{_lambda_.70} parent=0 // pred_check_branch
    %12 = sbr.rel (0) target = $region9
  $region8: #{_lambda_.70} parent=0 // pred_region
    _
  $region9: #{_lambda_.70} parent=0 // pred_fallthru
    _
  // Predicated region
  $region10: #{_lambda_.70} parent=0 // pred_check
    _
  $region11: #{_lambda_.70} parent=0 // pred_check_branch
    %14 = sbr.rel (0) target = $region13
  $region12: #{_lambda_.70} parent=0 // pred_region
    _
  $region13: #{_lambda_.70} parent=0 // pred_fallthru
    _
  // Predicated region
  $region14: #{_lambda_.70} parent=0 // pred_check
    _
  $region15: #{_lambda_.70} parent=0 // pred_check_branch
    %16 = sbr.rel (0) target = $region17
  $region16: #{_lambda_.70} parent=0 // pred_region
    _
  $region17: #{_lambda_.70} parent=0 // pred_fallthru
    _
  %v17 = vld [vmem:[%s0] sm:$0xff]
  %v18 = vld [vmem:[%s0 + $0x8] sm:$0xff]
  %v19 = vld [vmem:[%s0 + $0x10] sm:$0xff]
  %v20 = vld [vmem:[%s0 + $0x18] sm:$0xff]
  %v21 = vld [vmem:[%s1] sm:$0xff]
  %v22 = vld [vmem:[%s1 + $0x8] sm:$0xff]
  %v23 = vld [vmem:[%s1 + $0x10] sm:$0xff]
  %v24 = vld [vmem:[%s1 + $0x18] sm:$0xff]
  %v25 = vld [vmem:[%s1 + $0x20] sm:$0xff]
  %v26 = vld [vmem:[%s1 + $0x28] sm:$0xff]
  %v27 = vld [vmem:[%s1 + $0x30] sm:$0xff]
  %v28 = vld [vmem:[%s1 + $0x38] sm:$0xff]
  %v29 = vld [vmem:[%s1 + $0x40] sm:$0xff]
  %v30 = vld [vmem:[%s1 + $0x48] sm:$0xff]
  %v31 = vld [vmem:[%s1 + $0x50] sm:$0xff]
  %v32 = vld [vmem:[%s1 + $0x58] sm:$0xff]
  %v33 = vld [vmem:[%s1 + $0x60] sm:$0xff]
  %v34 = vld [vmem:[%s1 + $0x68] sm:$0xff]
  %v35 = vld [vmem:[%s1 + $0x70] sm:$0xff]
  %v36 = vld [vmem:[%s1 + $0x78] sm:$0xff]
  %v37 = vld [vmem:[%s1 + $0x80] sm:$0xff]
  %v38 = vld [vmem:[%s1 + $0x88] sm:$0xff]
  %v39 = vld [vmem:[%s1 + $0x90] sm:$0xff]
  %v40 = vld [vmem:[%s1 + $0x98] sm:$0xff]
  %v41 = vld [vmem:[%s1 + $0xa0] sm:$0xff]
  %v42 = vld [vmem:[%s1 + $0xa8] sm:$0xff]
  %v43 = vld [vmem:[%s1 + $0xb0] sm:$0xff]
  %v44 = vld [vmem:[%s1 + $0xb8] sm:$0xff]
  %v45 = vld [vmem:[%s1 + $0xc0] sm:$0xff]
  %v46 = vld [vmem:[%s1 + $0xc8] sm:$0xff]
  %v47 = vld [vmem:[%s1 + $0xd0] sm:$0xff]
  %v48 = vld [vmem:[%s1 + $0xd8] sm:$0xff]
  %v49 = vld [vmem:[%s1 + $0xe0] sm:$0xff]
  %v50 = vld [vmem:[%s1 + $0xe8] sm:$0xff]
  %v51 = vld [vmem:[%s1 + $0xf0] sm:$0xff]
  %v52 = vld [vmem:[%s1 + $0xf8] sm:$0xff]
  %v57 = vunpack.c.l.b16 %v17
  %v58 = vunpack.c.h.b16 %v17
  %v59 = vunpack.c.l.b16 %v18
  %v60 = vunpack.c.h.b16 %v18
  %v61 = vunpack.c.l.b16 %v19
  %v62 = vunpack.c.h.b16 %v19
  %v63 = vunpack.c.l.b16 %v20
  %v64 = vunpack.c.h.b16 %v20
  %v65 = vpack.c.b16 %v59, %v57
  %v66 = vpack.c.b16 %v60, %v58
  %v67 = vpack.c.b16 %v63, %v61
  %v68 = vpack.c.b16 %v64, %v62
  %v105 = vunpack.c.l.b16 %v21
  %v106 = vunpack.c.h.b16 %v21
  %v107 = vunpack.c.l.b16 %v22
  %v108 = vunpack.c.h.b16 %v22
  %v109 = vunpack.c.l.b16 %v23
  %v110 = vunpack.c.h.b16 %v23
  %v111 = vunpack.c.l.b16 %v24
  %v112 = vunpack.c.h.b16 %v24
  %v113 = vunpack.c.l.b16 %v25
  %v114 = vunpack.c.h.b16 %v25
  %v115 = vunpack.c.l.b16 %v26
  %v116 = vunpack.c.h.b16 %v26
  %v117 = vunpack.c.l.b16 %v27
  %v118 = vunpack.c.h.b16 %v27
  %v119 = vunpack.c.l.b16 %v28
  %v120 = vunpack.c.h.b16 %v28
  %v121 = vunpack.c.l.b16 %v29
  %v122 = vunpack.c.h.b16 %v29
  %v123 = vunpack.c.l.b16 %v30
  %v124 = vunpack.c.h.b16 %v30
  %v125 = vunpack.c.l.b16 %v31
  %v126 = vunpack.c.h.b16 %v31
  %v127 = vunpack.c.l.b16 %v32
  %v128 = vunpack.c.h.b16 %v32
  %v129 = vunpack.c.l.b16 %v33
  %v130 = vunpack.c.h.b16 %v33
  %v131 = vunpack.c.l.b16 %v34
  %v132 = vunpack.c.h.b16 %v34
  %v133 = vunpack.c.l.b16 %v35
  %v134 = vunpack.c.h.b16 %v35
  %v135 = vunpack.c.l.b16 %v36
  %v136 = vunpack.c.h.b16 %v36
  %v137 = vunpack.c.l.b16 %v37
  %v138 = vunpack.c.h.b16 %v37
  %v139 = vunpack.c.l.b16 %v38
  %v140 = vunpack.c.h.b16 %v38
  %v141 = vunpack.c.l.b16 %v39
  %v142 = vunpack.c.h.b16 %v39
  %v143 = vunpack.c.l.b16 %v40
  %v144 = vunpack.c.h.b16 %v40
  %v145 = vunpack.c.l.b16 %v41
  %v146 = vunpack.c.h.b16 %v41
  %v147 = vunpack.c.l.b16 %v42
  %v148 = vunpack.c.h.b16 %v42
  %v149 = vunpack.c.l.b16 %v43
  %v150 = vunpack.c.h.b16 %v43
  %v151 = vunpack.c.l.b16 %v44
  %v152 = vunpack.c.h.b16 %v44
  %v153 = vunpack.c.l.b16 %v45
  %v154 = vunpack.c.h.b16 %v45
  %v155 = vunpack.c.l.b16 %v46
  %v156 = vunpack.c.h.b16 %v46
  %v157 = vunpack.c.l.b16 %v47
  %v158 = vunpack.c.h.b16 %v47
  %v159 = vunpack.c.l.b16 %v48
  %v160 = vunpack.c.h.b16 %v48
  %v161 = vunpack.c.l.b16 %v49
  %v162 = vunpack.c.h.b16 %v49
  %v163 = vunpack.c.l.b16 %v50
  %v164 = vunpack.c.h.b16 %v50
  %v165 = vunpack.c.l.b16 %v51
  %v166 = vunpack.c.h.b16 %v51
  %v167 = vunpack.c.l.b16 %v52
  %v168 = vunpack.c.h.b16 %v52
  %v169 = vpack.c.b16 %v107, %v105
  %v170 = vpack.c.b16 %v108, %v106
  %v171 = vpack.c.b16 %v111, %v109
  %v172 = vpack.c.b16 %v112, %v110
  %v173 = vpack.c.b16 %v115, %v113
  %v174 = vpack.c.b16 %v116, %v114
  %v175 = vpack.c.b16 %v119, %v117
  %v176 = vpack.c.b16 %v120, %v118
  %v177 = vpack.c.b16 %v123, %v121
  %v178 = vpack.c.b16 %v124, %v122
  %v179 = vpack.c.b16 %v127, %v125
  %v180 = vpack.c.b16 %v128, %v126
  %v181 = vpack.c.b16 %v131, %v129
  %v182 = vpack.c.b16 %v132, %v130
  %v183 = vpack.c.b16 %v135, %v133
  %v184 = vpack.c.b16 %v136, %v134
  %v185 = vpack.c.b16 %v139, %v137
  %v186 = vpack.c.b16 %v140, %v138
  %v187 = vpack.c.b16 %v143, %v141
  %v188 = vpack.c.b16 %v144, %v142
  %v189 = vpack.c.b16 %v147, %v145
  %v190 = vpack.c.b16 %v148, %v146
  %v191 = vpack.c.b16 %v151, %v149
  %v192 = vpack.c.b16 %v152, %v150
  %v193 = vpack.c.b16 %v155, %v153
  %v194 = vpack.c.b16 %v156, %v154
  %v195 = vpack.c.b16 %v159, %v157
  %v196 = vpack.c.b16 %v160, %v158
  %v197 = vpack.c.b16 %v163, %v161
  %v198 = vpack.c.b16 %v164, %v162
  %v199 = vpack.c.b16 %v167, %v165
  %v200 = vpack.c.b16 %v168, %v166
  %233 = vmatprep.subr.bf16.mxu0 %v184
  %234 = vmatpush1.bf16.msra.mxu0 %v183
  %235 = vmatprep.subr.bf16.mxu0 %v182
  %236 = vmatpush1.bf16.msra.mxu0 %v181
  %237 = vmatprep.subr.bf16.mxu0 %v180
  %238 = vmatpush1.bf16.msra.mxu0 %v179
  %239 = vmatprep.subr.bf16.mxu0 %v178
  %240 = vmatpush1.bf16.msra.mxu0 %v177
  %241 = vmatprep.subr.bf16.mxu0 %v176
  %242 = vmatpush1.bf16.msra.mxu0 %v175
  %243 = vmatprep.subr.bf16.mxu0 %v174
  %244 = vmatpush1.bf16.msra.mxu0 %v173
  %245 = vmatprep.subr.bf16.mxu0 %v172
  %246 = vmatpush1.bf16.msra.mxu0 %v171
  %247 = vmatprep.subr.bf16.mxu0 %v170
  %248 = vmatpush1.bf16.msra.mxu0 %v169
  %249 = vmatprep.subr.bf16.mxu0 %v200
  %250 = vmatpush2.bf16.msra.mxu0 %v199
  %251 = vmatprep.subr.bf16.mxu0 %v198
  %252 = vmatpush2.bf16.msra.mxu0 %v197
  %253 = vmatprep.subr.bf16.mxu0 %v196
  %254 = vmatpush2.bf16.msra.mxu0 %v195
  %255 = vmatprep.subr.bf16.mxu0 %v194
  %256 = vmatpush2.bf16.msra.mxu0 %v193
  %257 = vmatprep.subr.bf16.mxu0 %v192
  %258 = vmatpush2.bf16.msra.mxu0 %v191
  %259 = vmatprep.subr.bf16.mxu0 %v190
  %260 = vmatpush2.bf16.msra.mxu0 %v189
  %261 = vmatprep.subr.bf16.mxu0 %v188
  %262 = vmatpush2.bf16.msra.mxu0 %v187
  %263 = vmatprep.subr.bf16.mxu0 %v186
  %264 = vmatpush2.bf16.msra.mxu0 %v185
  %265 = vmatprep.mubr.bf16.mxu0 %v66
  %266 = vmatmul.mubr.bf16.gmra.mxu0 %v65
  %v267 = vpop.f32.mrf.mxu0
  %v268 = vadd.f32 0.0, %v267
  %v269 = vpop.f32.mrf.mxu0
  %v270 = vadd.f32 0.0, %v269
  %v271 = vpop.f32.mrf.mxu0
  %v272 = vadd.f32 0.0, %v271
  %v273 = vpop.f32.mrf.mxu0
  %v274 = vadd.f32 0.0, %v273
  %275 = vmatprep.mubr.bf16.mxu0 %v68
  %276 = vmatmul.mubr.bf16.gmra.mxu0 %v67
  %v277 = vpop.f32.mrf.mxu0
  %v278 = vadd.f32 0.0, %v277
  %v279 = vpop.f32.mrf.mxu0
  %v280 = vadd.f32 0.0, %v279
  %v281 = vpop.f32.mrf.mxu0
  %v282 = vadd.f32 0.0, %v281
  %v283 = vpop.f32.mrf.mxu0
  %v284 = vadd.f32 0.0, %v283
  %285 = vdwg.mxu0
  %v286 = vld [vmem:[%s2] sm:$0x3]
  %v288 = vlaneseq
  %v289 = vshrl.u32 %v288, 7
  %v290 = vsub.s32 0, %v289
  %v291 = vrot.slane %v286, %v290
  %v292 = vlaneseq
  %v293 = vshrl.u32 %v292, 7
  %v294 = vsub.s32 1, %v293
  %v295 = vrot.slane %v286, %v294
  %v298 = vmul.f32 %v268, %v291
  %v299 = vmul.f32 %v270, %v295
  %v300 = vmul.f32 %v272, %v291
  %v301 = vmul.f32 %v274, %v295
  %v302 = vmul.f32 %v278, %v291
  %v303 = vmul.f32 %v280, %v295
  %v304 = vmul.f32 %v282, %v291
  %v305 = vmul.f32 %v284, %v295
  %v306 = vld [vmem:[%s3] sm:$0x3]
  %v308 = vlaneseq
  %v309 = vshrl.u32 %v308, 7
  %v310 = vsub.s32 0, %v309
  %v311 = vrot.slane %v306, %v310
  %v312 = vlaneseq
  %v313 = vshrl.u32 %v312, 7
  %v314 = vsub.s32 1, %v313
  %v315 = vrot.slane %v306, %v314
  %v318 = vadd.f32 %v298, %v311
  %v319 = vadd.f32 %v299, %v315
  %v320 = vadd.f32 %v300, %v311
  %v321 = vadd.f32 %v301, %v315
  %v322 = vadd.f32 %v302, %v311
  %v323 = vadd.f32 %v303, %v315
  %v324 = vadd.f32 %v304, %v311
  %v325 = vadd.f32 %v305, %v315
  %v326 = vmax.f32 %v318, 0.0
  %v327 = vmax.f32 %v319, 0.0
  %v328 = vmax.f32 %v320, 0.0
  %v329 = vmax.f32 %v321, 0.0
  %v330 = vmax.f32 %v322, 0.0
  %v331 = vmax.f32 %v323, 0.0
  %v332 = vmax.f32 %v324, 0.0
  %v333 = vmax.f32 %v325, 0.0
  %v334 = vpack.c.bf16 %v328, %v326
  %v335 = vpack.c.bf16 %v329, %v327
  %v336 = vpack.c.bf16 %v332, %v330
  %v337 = vpack.c.bf16 %v333, %v331
  %v342 = vunpack.c.l.b16 %v334
  %v343 = vunpack.c.l.b16 %v335
  %v344 = vunpack.c.h.b16 %v334
  %v345 = vunpack.c.h.b16 %v335
  %v346 = vunpack.c.l.b16 %v336
  %v347 = vunpack.c.l.b16 %v337
  %v348 = vunpack.c.h.b16 %v336
  %v349 = vunpack.c.h.b16 %v337
  %v350 = vpack.c.b16 %v343, %v342
  %v351 = vpack.c.b16 %v345, %v344
  %v352 = vpack.c.b16 %v347, %v346
  %v353 = vpack.c.b16 %v349, %v348
  %358 = vst [vmem:[%s4] sm:$0xff] %v350
  %359 = vst [vmem:[%s4 + $0x8] sm:$0xff] %v351
  %360 = vst [vmem:[%s4 + $0x10] sm:$0xff] %v352
  %361 = vst [vmem:[%s4 + $0x18] sm:$0xff] %v353
  // Predicated region
  $region18: #{_lambda_.70} parent=0 // pred_check
    _
  $region19: #{_lambda_.70} parent=0 // pred_check_branch
    %363 = sbr.rel (0) target = $region21
  $region20: #{_lambda_.70} parent=0 // pred_region
    _
  $region21: #{_lambda_.70} parent=0 // pred_fallthru
    _
  // Predicated region
  $region22: #{_lambda_.70} parent=0 // pred_check
    _
  $region23: #{_lambda_.70} parent=0 // pred_check_branch
    %365 = sbr.rel (0) target = $region25
  $region24: #{_lambda_.70} parent=0 // pred_region
    _
  $region25: #{_lambda_.70} parent=0 // pred_fallthru
    _

// kernel: _lambda_.68
$region0: #{_lambda_.68}
  #allocation0 [shape = 'u32[]', space=smem, size = 0x4, offset = 0x4, fixed_abs, tag = 'smem constant byte address 0x4 - core index']
  #allocation1 [shape = 'u32[144,128]{1,0:T(1,128)}', space=vmem, size = 0x12000, scoped, tag = 'internal scratch']
  %s0 = inlined_call_operand.vmem [shape: bf16[32,512], index: 0, kind: input, shape index: {}]
  %s1 = inlined_call_operand.vmem [shape: bf16[512,256], index: 1, kind: input, shape index: {}]
  %s2 = inlined_call_operand.vmem [shape: f32[1,256], index: 2, kind: input, shape index: {}]
  %s3 = inlined_call_operand.vmem [shape: f32[1,256], index: 3, kind: input, shape index: {}]
  %s4 = inlined_call_operand.vmem [shape: bf16[32,256], index: 4, kind: output, shape index: {}]
  %s5 = sld [smem:[#allocation0]]
  $region26: #{_lambda_.68} parent=0
    _
  %s7 = ssub.s32 1, %s5
  %s8 = scalar_select 0, %s7, %s5
  // Predicated region
  $region2: #{_lambda_.68} parent=0 // pred_check
    _
  $region3: #{_lambda_.68} parent=0 // pred_check_branch
    %10 = sbr.rel (0) target = $region5
  $region4: #{_lambda_.68} parent=0 // pred_region
    _
  $region5: #{_lambda_.68} parent=0 // pred_fallthru
    _
  // Predicated region
  $region6: #{_lambda_.68} parent=0 // pred_check
    _
  $region7: #{_lambda_.68} parent=0 // pred_check_branch
    %12 = sbr.rel (0) target = $region9
  $region8: #{_lambda_.68} parent=0 // pred_region
    _
  $region9: #{_lambda_.68} parent=0 // pred_fallthru
    _
  // Predicated region
  $region10: #{_lambda_.68} parent=0 // pred_check
    _
  $region11: #{_lambda_.68} parent=0 // pred_check_branch
    %14 = sbr.rel (0) target = $region13
  $region12: #{_lambda_.68} parent=0 // pred_region
    _
  $region13: #{_lambda_.68} parent=0 // pred_fallthru
    _
  // Predicated region
  $region14: #{_lambda_.68} parent=0 // pred_check
    _
  $region15: #{_lambda_.68} parent=0 // pred_check_branch
    %16 = sbr.rel (0) target = $region17
  $region16: #{_lambda_.68} parent=0 // pred_region
    _
  $region17: #{_lambda_.68} parent=0 // pred_fallthru
    _
  %v17 = vld [vmem:[%s0] sm:$0xff]
  %v18 = vld [vmem:[%s0 + $0x8] sm:$0xff]
  %v19 = vld [vmem:[%s0 + $0x10] sm:$0xff]
  %v20 = vld [vmem:[%s0 + $0x18] sm:$0xff]
  %v21 = vld [vmem:[%s0 + $0x20] sm:$0xff]
  %v22 = vld [vmem:[%s0 + $0x28] sm:$0xff]
  %v23 = vld [vmem:[%s0 + $0x30] sm:$0xff]
  %v24 = vld [vmem:[%s0 + $0x38] sm:$0xff]
  %v25 = vld [vmem:[%s1] sm:$0xff]
  %v26 = vld [vmem:[%s1 + $0x8] sm:$0xff]
  %v27 = vld [vmem:[%s1 + $0x10] sm:$0xff]
  %v28 = vld [vmem:[%s1 + $0x18] sm:$0xff]
  %v29 = vld [vmem:[%s1 + $0x20] sm:$0xff]
  %v30 = vld [vmem:[%s1 + $0x28] sm:$0xff]
  %v31 = vld [vmem:[%s1 + $0x30] sm:$0xff]
  %v32 = vld [vmem:[%s1 + $0x38] sm:$0xff]
  %v33 = vld [vmem:[%s1 + $0x40] sm:$0xff]
  %v34 = vld [vmem:[%s1 + $0x48] sm:$0xff]
  %v35 = vld [vmem:[%s1 + $0x50] sm:$0xff]
  %v36 = vld [vmem:[%s1 + $0x58] sm:$0xff]
  %v37 = vld [vmem:[%s1 + $0x60] sm:$0xff]
  %v38 = vld [vmem:[%s1 + $0x68] sm:$0xff]
  %v39 = vld [vmem:[%s1 + $0x70] sm:$0xff]
  %v40 = vld [vmem:[%s1 + $0x78] sm:$0xff]
  %v41 = vld [vmem:[%s1 + $0x80] sm:$0xff]
  %v42 = vld [vmem:[%s1 + $0x88] sm:$0xff]
  %v43 = vld [vmem:[%s1 + $0x90] sm:$0xff]
  %v44 = vld [vmem:[%s1 + $0x98] sm:$0xff]
  %v45 = vld [vmem:[%s1 + $0xa0] sm:$0xff]
  %v46 = vld [vmem:[%s1 + $0xa8] sm:$0xff]
  %v47 = vld [vmem:[%s1 + $0xb0] sm:$0xff]
  %v48 = vld [vmem:[%s1 + $0xb8] sm:$0xff]
  %v49 = vld [vmem:[%s1 + $0xc0] sm:$0xff]
  %v50 = vld [vmem:[%s1 + $0xc8] sm:$0xff]
  %v51 = vld [vmem:[%s1 + $0xd0] sm:$0xff]
  %v52 = vld [vmem:[%s1 + $0xd8] sm:$0xff]
  %v53 = vld [vmem:[%s1 + $0xe0] sm:$0xff]
  %v54 = vld [vmem:[%s1 + $0xe8] sm:$0xff]
  %v55 = vld [vmem:[%s1 + $0xf0] sm:$0xff]
  %v56 = vld [vmem:[%s1 + $0xf8] sm:$0xff]
  %v57 = vld [vmem:[%s1 + $0x100] sm:$0xff]
  %v58 = vld [vmem:[%s1 + $0x108] sm:$0xff]
  %v59 = vld [vmem:[%s1 + $0x110] sm:$0xff]
  %v60 = vld [vmem:[%s1 + $0x118] sm:$0xff]
  %v61 = vld [vmem:[%s1 + $0x120] sm:$0xff]
  %v62 = vld [vmem:[%s1 + $0x128] sm:$0xff]
  %v63 = vld [vmem:[%s1 + $0x130] sm:$0xff]
  %v64 = vld [vmem:[%s1 + $0x138] sm:$0xff]
  %v65 = vld [vmem:[%s1 + $0x140] sm:$0xff]
  %v66 = vld [vmem:[%s1 + $0x148] sm:$0xff]
  %v67 = vld [vmem:[%s1 + $0x150] sm:$0xff]
  %v68 = vld [vmem:[%s1 + $0x158] sm:$0xff]
  %v69 = vld [vmem:[%s1 + $0x160] sm:$0xff]
  %v70 = vld [vmem:[%s1 + $0x168] sm:$0xff]
  %v71 = vld [vmem:[%s1 + $0x170] sm:$0xff]
  %v72 = vld [vmem:[%s1 + $0x178] sm:$0xff]
  %v73 = vld [vmem:[%s1 + $0x180] sm:$0xff]
  %v74 = vld [vmem:[%s1 + $0x188] sm:$0xff]
  %v75 = vld [vmem:[%s1 + $0x190] sm:$0xff]
  %v76 = vld [vmem:[%s1 + $0x198] sm:$0xff]
  %v77 = vld [vmem:[%s1 + $0x1a0] sm:$0xff]
  %v78 = vld [vmem:[%s1 + $0x1a8] sm:$0xff]
  %v79 = vld [vmem:[%s1 + $0x1b0] sm:$0xff]
  %v80 = vld [vmem:[%s1 + $0x1b8] sm:$0xff]
  %v81 = vld [vmem:[%s1 + $0x1c0] sm:$0xff]
  %v82 = vld [vmem:[%s1 + $0x1c8] sm:$0xff]
  %v83 = vld [vmem:[%s1 + $0x1d0] sm:$0xff]
  %v84 = vld [vmem:[%s1 + $0x1d8] sm:$0xff]
  %v85 = vld [vmem:[%s1 + $0x1e0] sm:$0xff]
  %v86 = vld [vmem:[%s1 + $0x1e8] sm:$0xff]
  %v87 = vld [vmem:[%s1 + $0x1f0] sm:$0xff]
  %v88 = vld [vmem:[%s1 + $0x1f8] sm:$0xff]
  %v97 = vunpack.c.l.b16 %v17
  %v98 = vunpack.c.h.b16 %v17
  %v99 = vunpack.c.l.b16 %v18
  %v100 = vunpack.c.h.b16 %v18
  %v101 = vunpack.c.l.b16 %v19
  %v102 = vunpack.c.h.b16 %v19
  %v103 = vunpack.c.l.b16 %v20
  %v104 = vunpack.c.h.b16 %v20
  %v105 = vunpack.c.l.b16 %v21
  %v106 = vunpack.c.h.b16 %v21
  %v107 = vunpack.c.l.b16 %v22
  %v108 = vunpack.c.h.b16 %v22
  %v109 = vunpack.c.l.b16 %v23
  %v110 = vunpack.c.h.b16 %v23
  %v111 = vunpack.c.l.b16 %v24
  %v112 = vunpack.c.h.b16 %v24
  %v113 = vpack.c.b16 %v101, %v97
  %v114 = vpack.c.b16 %v102, %v98
  %v115 = vpack.c.b16 %v103, %v99
  %v116 = vpack.c.b16 %v104, %v100
  %v117 = vpack.c.b16 %v109, %v105
  %v118 = vpack.c.b16 %v110, %v106
  %v119 = vpack.c.b16 %v111, %v107
  %v120 = vpack.c.b16 %v112, %v108
  %v193 = vunpack.c.l.b16 %v25
  %v194 = vunpack.c.h.b16 %v25
  %v195 = vunpack.c.l.b16 %v26
  %v196 = vunpack.c.h.b16 %v26
  %v197 = vunpack.c.l.b16 %v27
  %v198 = vunpack.c.h.b16 %v27
  %v199 = vunpack.c.l.b16 %v28
  %v200 = vunpack.c.h.b16 %v28
  %v201 = vunpack.c.l.b16 %v29
  %v202 = vunpack.c.h.b16 %v29
  %v203 = vunpack.c.l.b16 %v30
  %v204 = vunpack.c.h.b16 %v30
  %v205 = vunpack.c.l.b16 %v31
  %v206 = vunpack.c.h.b16 %v31
  %v207 = vunpack.c.l.b16 %v32
  %v208 = vunpack.c.h.b16 %v32
  %v209 = vunpack.c.l.b16 %v33
  %v210 = vunpack.c.h.b16 %v33
  %v211 = vunpack.c.l.b16 %v34
  %v212 = vunpack.c.h.b16 %v34
  %v213 = vunpack.c.l.b16 %v35
  %v214 = vunpack.c.h.b16 %v35
  %v215 = vunpack.c.l.b16 %v36
  %v216 = vunpack.c.h.b16 %v36
  %v217 = vunpack.c.l.b16 %v37
  %v218 = vunpack.c.h.b16 %v37
  %v219 = vunpack.c.l.b16 %v38
  %v220 = vunpack.c.h.b16 %v38
  %v221 = vunpack.c.l.b16 %v39
  %v222 = vunpack.c.h.b16 %v39
  %v223 = vunpack.c.l.b16 %v40
  %v224 = vunpack.c.h.b16 %v40
  %v225 = vunpack.c.l.b16 %v41
  %v226 = vunpack.c.h.b16 %v41
  %v227 = vunpack.c.l.b16 %v42
  %v228 = vunpack.c.h.b16 %v42
  %v229 = vunpack.c.l.b16 %v43
  %v230 = vunpack.c.h.b16 %v43
  %v231 = vunpack.c.l.b16 %v44
  %v232 = vunpack.c.h.b16 %v44
  %v233 = vunpack.c.l.b16 %v45
  %v234 = vunpack.c.h.b16 %v45
  %v235 = vunpack.c.l.b16 %v46
  %v236 = vunpack.c.h.b16 %v46
  %v237 = vunpack.c.l.b16 %v47
  %v238 = vunpack.c.h.b16 %v47
  %v239 = vunpack.c.l.b16 %v48
  %v240 = vunpack.c.h.b16 %v48
  %v241 = vunpack.c.l.b16 %v49
  %v242 = vunpack.c.h.b16 %v49
  %v243 = vunpack.c.l.b16 %v50
  %v244 = vunpack.c.h.b16 %v50
  %v245 = vunpack.c.l.b16 %v51
  %v246 = vunpack.c.h.b16 %v51
  %v247 = vunpack.c.l.b16 %v52
  %v248 = vunpack.c.h.b16 %v52
  %v249 = vunpack.c.l.b16 %v53
  %v250 = vunpack.c.h.b16 %v53
  %v251 = vunpack.c.l.b16 %v54
  %v252 = vunpack.c.h.b16 %v54
  %v253 = vunpack.c.l.b16 %v55
  %v254 = vunpack.c.h.b16 %v55
  %v255 = vunpack.c.l.b16 %v56
  %v256 = vunpack.c.h.b16 %v56
  %v257 = vunpack.c.l.b16 %v57
  %v258 = vunpack.c.h.b16 %v57
  %v259 = vunpack.c.l.b16 %v58
  %v260 = vunpack.c.h.b16 %v58
  %v261 = vunpack.c.l.b16 %v59
  %v262 = vunpack.c.h.b16 %v59
  %v263 = vunpack.c.l.b16 %v60
  %v264 = vunpack.c.h.b16 %v60
  %v265 = vunpack.c.l.b16 %v61
  %v266 = vunpack.c.h.b16 %v61
  %v267 = vunpack.c.l.b16 %v62
  %v268 = vunpack.c.h.b16 %v62
  %v269 = vunpack.c.l.b16 %v63
  %v270 = vunpack.c.h.b16 %v63
  %v271 = vunpack.c.l.b16 %v64
  %v272 = vunpack.c.h.b16 %v64
  %v273 = vunpack.c.l.b16 %v65
  %v274 = vunpack.c.h.b16 %v65
  %v275 = vunpack.c.l.b16 %v66
  %v276 = vunpack.c.h.b16 %v66
  %v277 = vunpack.c.l.b16 %v67
  %v278 = vunpack.c.h.b16 %v67
  %v279 = vunpack.c.l.b16 %v68
  %v280 = vunpack.c.h.b16 %v68
  %v281 = vunpack.c.l.b16 %v69
  %v282 = vunpack.c.h.b16 %v69
  %v283 = vunpack.c.l.b16 %v70
  %v284 = vunpack.c.h.b16 %v70
  %v285 = vunpack.c.l.b16 %v71
  %v286 = vunpack.c.h.b16 %v71
  %v287 = vunpack.c.l.b16 %v72
  %v288 = vunpack.c.h.b16 %v72
  %v289 = vunpack.c.l.b16 %v73
  %v290 = vunpack.c.h.b16 %v73
  %v291 = vunpack.c.l.b16 %v74
  %v292 = vunpack.c.h.b16 %v74
  %v293 = vunpack.c.l.b16 %v75
  %v294 = vunpack.c.h.b16 %v75
  %v295 = vunpack.c.l.b16 %v76
  %v296 = vunpack.c.h.b16 %v76
  %v297 = vunpack.c.l.b16 %v77
  %v298 = vunpack.c.h.b16 %v77
  %v299 = vunpack.c.l.b16 %v78
  %v300 = vunpack.c.h.b16 %v78
  %v301 = vunpack.c.l.b16 %v79
  %v302 = vunpack.c.h.b16 %v79
  %v303 = vunpack.c.l.b16 %v80
  %v304 = vunpack.c.h.b16 %v80
  %v305 = vunpack.c.l.b16 %v81
  %v306 = vunpack.c.h.b16 %v81
  %v307 = vunpack.c.l.b16 %v82
  %v308 = vunpack.c.h.b16 %v82
  %v309 = vunpack.c.l.b16 %v83
  %v310 = vunpack.c.h.b16 %v83
  %v311 = vunpack.c.l.b16 %v84
  %v312 = vunpack.c.h.b16 %v84
  %v313 = vunpack.c.l.b16 %v85
  %v314 = vunpack.c.h.b16 %v85
  %v315 = vunpack.c.l.b16 %v86
  %v316 = vunpack.c.h.b16 %v86
  %v317 = vunpack.c.l.b16 %v87
  %v318 = vunpack.c.h.b16 %v87
  %v319 = vunpack.c.l.b16 %v88
  %v320 = vunpack.c.h.b16 %v88
  %v321 = vpack.c.b16 %v195, %v193
  %v322 = vpack.c.b16 %v196, %v194
  %v323 = vpack.c.b16 %v199, %v197
  %v324 = vpack.c.b16 %v200, %v198
  %v325 = vpack.c.b16 %v203, %v201
  %v326 = vpack.c.b16 %v204, %v202
  %v327 = vpack.c.b16 %v207, %v205
  %v328 = vpack.c.b16 %v208, %v206
  %v329 = vpack.c.b16 %v211, %v209
  %v330 = vpack.c.b16 %v212, %v210
  %v331 = vpack.c.b16 %v215, %v213
  %v332 = vpack.c.b16 %v216, %v214
  %v333 = vpack.c.b16 %v219, %v217
  %v334 = vpack.c.b16 %v220, %v218
  %v335 = vpack.c.b16 %v223, %v221
  %v336 = vpack.c.b16 %v224, %v222
  %v337 = vpack.c.b16 %v227, %v225
  %v338 = vpack.c.b16 %v228, %v226
  %v339 = vpack.c.b16 %v231, %v229
  %v340 = vpack.c.b16 %v232, %v230
  %v341 = vpack.c.b16 %v235, %v233
  %v342 = vpack.c.b16 %v236, %v234
  %v343 = vpack.c.b16 %v239, %v237
  %v344 = vpack.c.b16 %v240, %v238
  %v345 = vpack.c.b16 %v243, %v241
  %v346 = vpack.c.b16 %v244, %v242
  %v347 = vpack.c.b16 %v247, %v245
  %v348 = vpack.c.b16 %v248, %v246
  %v349 = vpack.c.b16 %v251, %v249
  %v350 = vpack.c.b16 %v252, %v250
  %v351 = vpack.c.b16 %v255, %v253
  %v352 = vpack.c.b16 %v256, %v254
  %v353 = vpack.c.b16 %v259, %v257
  %v354 = vpack.c.b16 %v260, %v258
  %v355 = vpack.c.b16 %v263, %v261
  %v356 = vpack.c.b16 %v264, %v262
  %v357 = vpack.c.b16 %v267, %v265
  %v358 = vpack.c.b16 %v268, %v266
  %v359 = vpack.c.b16 %v271, %v269
  %v360 = vpack.c.b16 %v272, %v270
  %v361 = vpack.c.b16 %v275, %v273
  %v362 = vpack.c.b16 %v276, %v274
  %v363 = vpack.c.b16 %v279, %v277
  %v364 = vpack.c.b16 %v280, %v278
  %v365 = vpack.c.b16 %v283, %v281
  %v366 = vpack.c.b16 %v284, %v282
  %v367 = vpack.c.b16 %v287, %v285
  %v368 = vpack.c.b16 %v288, %v286
  %v369 = vpack.c.b16 %v291, %v289
  %v370 = vpack.c.b16 %v292, %v290
  %v371 = vpack.c.b16 %v295, %v293
  %v372 = vpack.c.b16 %v296, %v294
  %v373 = vpack.c.b16 %v299, %v297
  %v374 = vpack.c.b16 %v300, %v298
  %v375 = vpack.c.b16 %v303, %v301
  %v376 = vpack.c.b16 %v304, %v302
  %v377 = vpack.c.b16 %v307, %v305
  %v378 = vpack.c.b16 %v308, %v306
  %v379 = vpack.c.b16 %v311, %v309
  %v380 = vpack.c.b16 %v312, %v310
  %v381 = vpack.c.b16 %v315, %v313
  %v382 = vpack.c.b16 %v316, %v314
  %v383 = vpack.c.b16 %v319, %v317
  %v384 = vpack.c.b16 %v320, %v318
  %449 = vmatprep.subr.bf16.mxu0 %v336
  %450 = vmatpush1.bf16.msra.mxu0 %v335
  %451 = vmatprep.subr.bf16.mxu0 %v334
  %452 = vmatpush1.bf16.msra.mxu0 %v333
  %453 = vmatprep.subr.bf16.mxu0 %v332
  %454 = vmatpush1.bf16.msra.mxu0 %v331
  %455 = vmatprep.subr.bf16.mxu0 %v330
  %456 = vmatpush1.bf16.msra.mxu0 %v329
  %457 = vmatprep.subr.bf16.mxu0 %v328
  %458 = vmatpush1.bf16.msra.mxu0 %v327
  %459 = vmatprep.subr.bf16.mxu0 %v326
  %460 = vmatpush1.bf16.msra.mxu0 %v325
  %461 = vmatprep.subr.bf16.mxu0 %v324
  %462 = vmatpush1.bf16.msra.mxu0 %v323
  %463 = vmatprep.subr.bf16.mxu0 %v322
  %464 = vmatpush1.bf16.msra.mxu0 %v321
  %465 = vmatprep.subr.bf16.mxu0 %v352
  %466 = vmatpush2.bf16.msra.mxu0 %v351
  %467 = vmatprep.subr.bf16.mxu0 %v350
  %468 = vmatpush2.bf16.msra.mxu0 %v349
  %469 = vmatprep.subr.bf16.mxu0 %v348
  %470 = vmatpush2.bf16.msra.mxu0 %v347
  %471 = vmatprep.subr.bf16.mxu0 %v346
  %472 = vmatpush2.bf16.msra.mxu0 %v345
  %473 = vmatprep.subr.bf16.mxu0 %v344
  %474 = vmatpush2.bf16.msra.mxu0 %v343
  %475 = vmatprep.subr.bf16.mxu0 %v342
  %476 = vmatpush2.bf16.msra.mxu0 %v341
  %477 = vmatprep.subr.bf16.mxu0 %v340
  %478 = vmatpush2.bf16.msra.mxu0 %v339
  %479 = vmatprep.subr.bf16.mxu0 %v338
  %480 = vmatpush2.bf16.msra.mxu0 %v337
  %481 = vmatprep.mubr.bf16.mxu0 %v114
  %482 = vmatmul.mubr.bf16.gmra.mxu0 %v113
  %v483 = vpop.f32.mrf.mxu0
  %v484 = vadd.f32 0.0, %v483
  %v485 = vpop.f32.mrf.mxu0
  %v486 = vadd.f32 0.0, %v485
  %v487 = vpop.f32.mrf.mxu0
  %v488 = vadd.f32 0.0, %v487
  %v489 = vpop.f32.mrf.mxu0
  %v490 = vadd.f32 0.0, %v489
  %491 = vmatprep.mubr.bf16.mxu0 %v118
  %492 = vmatmul.mubr.bf16.gmra.mxu0 %v117
  %v493 = vpop.f32.mrf.mxu0
  %v494 = vadd.f32 0.0, %v493
  %v495 = vpop.f32.mrf.mxu0
  %v496 = vadd.f32 0.0, %v495
  %v497 = vpop.f32.mrf.mxu0
  %v498 = vadd.f32 0.0, %v497
  %v499 = vpop.f32.mrf.mxu0
  %v500 = vadd.f32 0.0, %v499
  %501 = vdwg.mxu0
  %502 = vmatprep.subr.bf16.mxu0 %v368
  %503 = vmatpush1.bf16.msra.mxu0 %v367
  %504 = vmatprep.subr.bf16.mxu0 %v366
  %505 = vmatpush1.bf16.msra.mxu0 %v365
  %506 = vmatprep.subr.bf16.mxu0 %v364
  %507 = vmatpush1.bf16.msra.mxu0 %v363
  %508 = vmatprep.subr.bf16.mxu0 %v362
  %509 = vmatpush1.bf16.msra.mxu0 %v361
  %510 = vmatprep.subr.bf16.mxu0 %v360
  %511 = vmatpush1.bf16.msra.mxu0 %v359
  %512 = vmatprep.subr.bf16.mxu0 %v358
  %513 = vmatpush1.bf16.msra.mxu0 %v357
  %514 = vmatprep.subr.bf16.mxu0 %v356
  %515 = vmatpush1.bf16.msra.mxu0 %v355
  %516 = vmatprep.subr.bf16.mxu0 %v354
  %517 = vmatpush1.bf16.msra.mxu0 %v353
  %518 = vmatprep.subr.bf16.mxu0 %v384
  %519 = vmatpush2.bf16.msra.mxu0 %v383
  %520 = vmatprep.subr.bf16.mxu0 %v382
  %521 = vmatpush2.bf16.msra.mxu0 %v381
  %522 = vmatprep.subr.bf16.mxu0 %v380
  %523 = vmatpush2.bf16.msra.mxu0 %v379
  %524 = vmatprep.subr.bf16.mxu0 %v378
  %525 = vmatpush2.bf16.msra.mxu0 %v377
  %526 = vmatprep.subr.bf16.mxu0 %v376
  %527 = vmatpush2.bf16.msra.mxu0 %v375
  %528 = vmatprep.subr.bf16.mxu0 %v374
  %529 = vmatpush2.bf16.msra.mxu0 %v373
  %530 = vmatprep.subr.bf16.mxu0 %v372
  %531 = vmatpush2.bf16.msra.mxu0 %v371
  %532 = vmatprep.subr.bf16.mxu0 %v370
  %533 = vmatpush2.bf16.msra.mxu0 %v369
  %534 = vmatprep.mubr.bf16.mxu0 %v116
  %535 = vmatmul.mubr.bf16.gmra.mxu0 %v115
  %v536 = vpop.f32.mrf.mxu0
  %v537 = vadd.f32 %v484, %v536
  %v538 = vpop.f32.mrf.mxu0
  %v539 = vadd.f32 %v486, %v538
  %v540 = vpop.f32.mrf.mxu0
  %v541 = vadd.f32 %v488, %v540
  %v542 = vpop.f32.mrf.mxu0
  %v543 = vadd.f32 %v490, %v542
  %544 = vmatprep.mubr.bf16.mxu0 %v120
  %545 = vmatmul.mubr.bf16.gmra.mxu0 %v119
  %v546 = vpop.f32.mrf.mxu0
  %v547 = vadd.f32 %v494, %v546
  %v548 = vpop.f32.mrf.mxu0
  %v549 = vadd.f32 %v496, %v548
  %v550 = vpop.f32.mrf.mxu0
  %v551 = vadd.f32 %v498, %v550
  %v552 = vpop.f32.mrf.mxu0
  %v553 = vadd.f32 %v500, %v552
  %554 = vdwg.mxu0
  %v555 = vld [vmem:[%s2] sm:$0x3]
  %v557 = vlaneseq
  %v558 = vshrl.u32 %v557, 7
  %v559 = vsub.s32 0, %v558
  %v560 = vrot.slane %v555, %v559
  %v561 = vlaneseq
  %v562 = vshrl.u32 %v561, 7
  %v563 = vsub.s32 1, %v562
  %v564 = vrot.slane %v555, %v563
  %v567 = vmul.f32 %v537, %v560
  %v568 = vmul.f32 %v539, %v564
  %v569 = vmul.f32 %v541, %v560
  %v570 = vmul.f32 %v543, %v564
  %v571 = vmul.f32 %v547, %v560
  %v572 = vmul.f32 %v549, %v564
  %v573 = vmul.f32 %v551, %v560
  %v574 = vmul.f32 %v553, %v564
  %v575 = vld [vmem:[%s3] sm:$0x3]
  %v577 = vlaneseq
  %v578 = vshrl.u32 %v577, 7
  %v579 = vsub.s32 0, %v578
  %v580 = vrot.slane %v575, %v579
  %v581 = vlaneseq
  %v582 = vshrl.u32 %v581, 7
  %v583 = vsub.s32 1, %v582
  %v584 = vrot.slane %v575, %v583
  %v587 = vadd.f32 %v567, %v580
  %v588 = vadd.f32 %v568, %v584
  %v589 = vadd.f32 %v569, %v580
  %v590 = vadd.f32 %v570, %v584
  %v591 = vadd.f32 %v571, %v580
  %v592 = vadd.f32 %v572, %v584
  %v593 = vadd.f32 %v573, %v580
  %v594 = vadd.f32 %v574, %v584
  %v595 = vmax.f32 %v587, 0.0
  %v596 = vmax.f32 %v588, 0.0
  %v597 = vmax.f32 %v589, 0.0
  %v598 = vmax.f32 %v590, 0.0
  %v599 = vmax.f32 %v591, 0.0
  %v600 = vmax.f32 %v592, 0.0
  %v601 = vmax.f32 %v593, 0.0
  %v602 = vmax.f32 %v594, 0.0
  %v603 = vpack.c.bf16 %v597, %v595
  %v604 = vpack.c.bf16 %v598, %v596
  %v605 = vpack.c.bf16 %v601, %v599
  %v606 = vpack.c.bf16 %v602, %v600
  %v611 = vunpack.c.l.b16 %v603
  %v612 = vunpack.c.l.b16 %v604
  %v613 = vunpack.c.h.b16 %v603
  %v614 = vunpack.c.h.b16 %v604
  %v615 = vunpack.c.l.b16 %v605
  %v616 = vunpack.c.l.b16 %v606
  %v617 = vunpack.c.h.b16 %v605
  %v618 = vunpack.c.h.b16 %v606
  %v619 = vpack.c.b16 %v612, %v611
  %v620 = vpack.c.b16 %v614, %v613
  %v621 = vpack.c.b16 %v616, %v615
  %v622 = vpack.c.b16 %v618, %v617
  %627 = vst [vmem:[%s4] sm:$0xff] %v619
  %628 = vst [vmem:[%s4 + $0x8] sm:$0xff] %v620
  %629 = vst [vmem:[%s4 + $0x10] sm:$0xff] %v621
  %630 = vst [vmem:[%s4 + $0x18] sm:$0xff] %v622
  // Predicated region
  $region18: #{_lambda_.68} parent=0 // pred_check
    _
  $region19: #{_lambda_.68} parent=0 // pred_check_branch
    %632 = sbr.rel (0) target = $region21
  $region20: #{_lambda_.68} parent=0 // pred_region
    _
  $region21: #{_lambda_.68} parent=0 // pred_fallthru
    _
  // Predicated region
  $region22: #{_lambda_.68} parent=0 // pred_check
    _
  $region23: #{_lambda_.68} parent=0 // pred_check_branch
    %634 = sbr.rel (0) target = $region25
  $region24: #{_lambda_.68} parent=0 // pred_region
    _
  $region25: #{_lambda_.68} parent=0 // pred_fallthru
    _

// kernel: _lambda_.67
$region0: #{_lambda_.67}
  #allocation0 [shape = 'u32[]', space=smem, size = 0x4, offset = 0x4, fixed_abs, tag = 'smem constant byte address 0x4 - core index']
  #allocation1 [shape = 'u32[144,128]{1,0:T(1,128)}', space=vmem, size = 0x12000, scoped, tag = 'internal scratch']
  %s0 = inlined_call_operand.vmem [shape: bf16[32,256], index: 0, kind: input, shape index: {}]
  %s1 = inlined_call_operand.vmem [shape: bf16[256,256], index: 1, kind: input, shape index: {}]
  %s2 = inlined_call_operand.vmem [shape: f32[1,256], index: 2, kind: input, shape index: {}]
  %s3 = inlined_call_operand.vmem [shape: f32[1,256], index: 3, kind: input, shape index: {}]
  %s4 = inlined_call_operand.vmem [shape: bf16[32,256], index: 4, kind: output, shape index: {}]
  %s5 = sld [smem:[#allocation0]]
  $region26: #{_lambda_.67} parent=0
    _
  %s7 = ssub.s32 1, %s5
  %s8 = scalar_select 0, %s7, %s5
  // Predicated region
  $region2: #{_lambda_.67} parent=0 // pred_check
    _
  $region3: #{_lambda_.67} parent=0 // pred_check_branch
    %10 = sbr.rel (0) target = $region5
  $region4: #{_lambda_.67} parent=0 // pred_region
    _
  $region5: #{_lambda_.67} parent=0 // pred_fallthru
    _
  // Predicated region
  $region6: #{_lambda_.67} parent=0 // pred_check
    _
  $region7: #{_lambda_.67} parent=0 // pred_check_branch
    %12 = sbr.rel (0) target = $region9
  $region8: #{_lambda_.67} parent=0 // pred_region
    _
  $region9: #{_lambda_.67} parent=0 // pred_fallthru
    _
  // Predicated region
  $region10: #{_lambda_.67} parent=0 // pred_check
    _
  $region11: #{_lambda_.67} parent=0 // pred_check_branch
    %14 = sbr.rel (0) target = $region13
  $region12: #{_lambda_.67} parent=0 // pred_region
    _
  $region13: #{_lambda_.67} parent=0 // pred_fallthru
    _
  // Predicated region
  $region14: #{_lambda_.67} parent=0 // pred_check
    _
  $region15: #{_lambda_.67} parent=0 // pred_check_branch
    %16 = sbr.rel (0) target = $region17
  $region16: #{_lambda_.67} parent=0 // pred_region
    _
  $region17: #{_lambda_.67} parent=0 // pred_fallthru
    _
  %v17 = vld [vmem:[%s0] sm:$0xff]
  %v18 = vld [vmem:[%s0 + $0x8] sm:$0xff]
  %v19 = vld [vmem:[%s0 + $0x10] sm:$0xff]
  %v20 = vld [vmem:[%s0 + $0x18] sm:$0xff]
  %v21 = vld [vmem:[%s1] sm:$0xff]
  %v22 = vld [vmem:[%s1 + $0x8] sm:$0xff]
  %v23 = vld [vmem:[%s1 + $0x10] sm:$0xff]
  %v24 = vld [vmem:[%s1 + $0x18] sm:$0xff]
  %v25 = vld [vmem:[%s1 + $0x20] sm:$0xff]
  %v26 = vld [vmem:[%s1 + $0x28] sm:$0xff]
  %v27 = vld [vmem:[%s1 + $0x30] sm:$0xff]
  %v28 = vld [vmem:[%s1 + $0x38] sm:$0xff]
  %v29 = vld [vmem:[%s1 + $0x40] sm:$0xff]
  %v30 = vld [vmem:[%s1 + $0x48] sm:$0xff]
  %v31 = vld [vmem:[%s1 + $0x50] sm:$0xff]
  %v32 = vld [vmem:[%s1 + $0x58] sm:$0xff]
  %v33 = vld [vmem:[%s1 + $0x60] sm:$0xff]
  %v34 = vld [vmem:[%s1 + $0x68] sm:$0xff]
  %v35 = vld [vmem:[%s1 + $0x70] sm:$0xff]
  %v36 = vld [vmem:[%s1 + $0x78] sm:$0xff]
  %v37 = vld [vmem:[%s1 + $0x80] sm:$0xff]
  %v38 = vld [vmem:[%s1 + $0x88] sm:$0xff]
  %v39 = vld [vmem:[%s1 + $0x90] sm:$0xff]
  %v40 = vld [vmem:[%s1 + $0x98] sm:$0xff]
  %v41 = vld [vmem:[%s1 + $0xa0] sm:$0xff]
  %v42 = vld [vmem:[%s1 + $0xa8] sm:$0xff]
  %v43 = vld [vmem:[%s1 + $0xb0] sm:$0xff]
  %v44 = vld [vmem:[%s1 + $0xb8] sm:$0xff]
  %v45 = vld [vmem:[%s1 + $0xc0] sm:$0xff]
  %v46 = vld [vmem:[%s1 + $0xc8] sm:$0xff]
  %v47 = vld [vmem:[%s1 + $0xd0] sm:$0xff]
  %v48 = vld [vmem:[%s1 + $0xd8] sm:$0xff]
  %v49 = vld [vmem:[%s1 + $0xe0] sm:$0xff]
  %v50 = vld [vmem:[%s1 + $0xe8] sm:$0xff]
  %v51 = vld [vmem:[%s1 + $0xf0] sm:$0xff]
  %v52 = vld [vmem:[%s1 + $0xf8] sm:$0xff]
  %v57 = vunpack.c.l.b16 %v17
  %v58 = vunpack.c.h.b16 %v17
  %v59 = vunpack.c.l.b16 %v18
  %v60 = vunpack.c.h.b16 %v18
  %v61 = vunpack.c.l.b16 %v19
  %v62 = vunpack.c.h.b16 %v19
  %v63 = vunpack.c.l.b16 %v20
  %v64 = vunpack.c.h.b16 %v20
  %v65 = vpack.c.b16 %v59, %v57
  %v66 = vpack.c.b16 %v60, %v58
  %v67 = vpack.c.b16 %v63, %v61
  %v68 = vpack.c.b16 %v64, %v62
  %v105 = vunpack.c.l.b16 %v21
  %v106 = vunpack.c.h.b16 %v21
  %v107 = vunpack.c.l.b16 %v22
  %v108 = vunpack.c.h.b16 %v22
  %v109 = vunpack.c.l.b16 %v23
  %v110 = vunpack.c.h.b16 %v23
  %v111 = vunpack.c.l.b16 %v24
  %v112 = vunpack.c.h.b16 %v24
  %v113 = vunpack.c.l.b16 %v25
  %v114 = vunpack.c.h.b16 %v25
  %v115 = vunpack.c.l.b16 %v26
  %v116 = vunpack.c.h.b16 %v26
  %v117 = vunpack.c.l.b16 %v27
  %v118 = vunpack.c.h.b16 %v27
  %v119 = vunpack.c.l.b16 %v28
  %v120 = vunpack.c.h.b16 %v28
  %v121 = vunpack.c.l.b16 %v29
  %v122 = vunpack.c.h.b16 %v29
  %v123 = vunpack.c.l.b16 %v30
  %v124 = vunpack.c.h.b16 %v30
  %v125 = vunpack.c.l.b16 %v31
  %v126 = vunpack.c.h.b16 %v31
  %v127 = vunpack.c.l.b16 %v32
  %v128 = vunpack.c.h.b16 %v32
  %v129 = vunpack.c.l.b16 %v33
  %v130 = vunpack.c.h.b16 %v33
  %v131 = vunpack.c.l.b16 %v34
  %v132 = vunpack.c.h.b16 %v34
  %v133 = vunpack.c.l.b16 %v35
  %v134 = vunpack.c.h.b16 %v35
  %v135 = vunpack.c.l.b16 %v36
  %v136 = vunpack.c.h.b16 %v36
  %v137 = vunpack.c.l.b16 %v37
  %v138 = vunpack.c.h.b16 %v37
  %v139 = vunpack.c.l.b16 %v38
  %v140 = vunpack.c.h.b16 %v38
  %v141 = vunpack.c.l.b16 %v39
  %v142 = vunpack.c.h.b16 %v39
  %v143 = vunpack.c.l.b16 %v40
  %v144 = vunpack.c.h.b16 %v40
  %v145 = vunpack.c.l.b16 %v41
  %v146 = vunpack.c.h.b16 %v41
  %v147 = vunpack.c.l.b16 %v42
  %v148 = vunpack.c.h.b16 %v42
  %v149 = vunpack.c.l.b16 %v43
  %v150 = vunpack.c.h.b16 %v43
  %v151 = vunpack.c.l.b16 %v44
  %v152 = vunpack.c.h.b16 %v44
  %v153 = vunpack.c.l.b16 %v45
  %v154 = vunpack.c.h.b16 %v45
  %v155 = vunpack.c.l.b16 %v46
  %v156 = vunpack.c.h.b16 %v46
  %v157 = vunpack.c.l.b16 %v47
  %v158 = vunpack.c.h.b16 %v47
  %v159 = vunpack.c.l.b16 %v48
  %v160 = vunpack.c.h.b16 %v48
  %v161 = vunpack.c.l.b16 %v49
  %v162 = vunpack.c.h.b16 %v49
  %v163 = vunpack.c.l.b16 %v50
  %v164 = vunpack.c.h.b16 %v50
  %v165 = vunpack.c.l.b16 %v51
  %v166 = vunpack.c.h.b16 %v51
  %v167 = vunpack.c.l.b16 %v52
  %v168 = vunpack.c.h.b16 %v52
  %v169 = vpack.c.b16 %v107, %v105
  %v170 = vpack.c.b16 %v108, %v106
  %v171 = vpack.c.b16 %v111, %v109
  %v172 = vpack.c.b16 %v112, %v110
  %v173 = vpack.c.b16 %v115, %v113
  %v174 = vpack.c.b16 %v116, %v114
  %v175 = vpack.c.b16 %v119, %v117
  %v176 = vpack.c.b16 %v120, %v118
  %v177 = vpack.c.b16 %v123, %v121
  %v178 = vpack.c.b16 %v124, %v122
  %v179 = vpack.c.b16 %v127, %v125
  %v180 = vpack.c.b16 %v128, %v126
  %v181 = vpack.c.b16 %v131, %v129
  %v182 = vpack.c.b16 %v132, %v130
  %v183 = vpack.c.b16 %v135, %v133
  %v184 = vpack.c.b16 %v136, %v134
  %v185 = vpack.c.b16 %v139, %v137
  %v186 = vpack.c.b16 %v140, %v138
  %v187 = vpack.c.b16 %v143, %v141
  %v188 = vpack.c.b16 %v144, %v142
  %v189 = vpack.c.b16 %v147, %v145
  %v190 = vpack.c.b16 %v148, %v146
  %v191 = vpack.c.b16 %v151, %v149
  %v192 = vpack.c.b16 %v152, %v150
  %v193 = vpack.c.b16 %v155, %v153
  %v194 = vpack.c.b16 %v156, %v154
  %v195 = vpack.c.b16 %v159, %v157
  %v196 = vpack.c.b16 %v160, %v158
  %v197 = vpack.c.b16 %v163, %v161
  %v198 = vpack.c.b16 %v164, %v162
  %v199 = vpack.c.b16 %v167, %v165
  %v200 = vpack.c.b16 %v168, %v166
  %233 = vmatprep.subr.bf16.mxu0 %v184
  %234 = vmatpush1.bf16.msra.mxu0 %v183
  %235 = vmatprep.subr.bf16.mxu0 %v182
  %236 = vmatpush1.bf16.msra.mxu0 %v181
  %237 = vmatprep.subr.bf16.mxu0 %v180
  %238 = vmatpush1.bf16.msra.mxu0 %v179
  %239 = vmatprep.subr.bf16.mxu0 %v178
  %240 = vmatpush1.bf16.msra.mxu0 %v177
  %241 = vmatprep.subr.bf16.mxu0 %v176
  %242 = vmatpush1.bf16.msra.mxu0 %v175
  %243 = vmatprep.subr.bf16.mxu0 %v174
  %244 = vmatpush1.bf16.msra.mxu0 %v173
  %245 = vmatprep.subr.bf16.mxu0 %v172
  %246 = vmatpush1.bf16.msra.mxu0 %v171
  %247 = vmatprep.subr.bf16.mxu0 %v170
  %248 = vmatpush1.bf16.msra.mxu0 %v169
  %249 = vmatprep.subr.bf16.mxu0 %v200
  %250 = vmatpush2.bf16.msra.mxu0 %v199
  %251 = vmatprep.subr.bf16.mxu0 %v198
  %252 = vmatpush2.bf16.msra.mxu0 %v197
  %253 = vmatprep.subr.bf16.mxu0 %v196
  %254 = vmatpush2.bf16.msra.mxu0 %v195
  %255 = vmatprep.subr.bf16.mxu0 %v194
  %256 = vmatpush2.bf16.msra.mxu0 %v193
  %257 = vmatprep.subr.bf16.mxu0 %v192
  %258 = vmatpush2.bf16.msra.mxu0 %v191
  %259 = vmatprep.subr.bf16.mxu0 %v190
  %260 = vmatpush2.bf16.msra.mxu0 %v189
  %261 = vmatprep.subr.bf16.mxu0 %v188
  %262 = vmatpush2.bf16.msra.mxu0 %v187
  %263 = vmatprep.subr.bf16.mxu0 %v186
  %264 = vmatpush2.bf16.msra.mxu0 %v185
  %265 = vmatprep.mubr.bf16.mxu0 %v66
  %266 = vmatmul.mubr.bf16.gmra.mxu0 %v65
  %v267 = vpop.f32.mrf.mxu0
  %v268 = vadd.f32 0.0, %v267
  %v269 = vpop.f32.mrf.mxu0
  %v270 = vadd.f32 0.0, %v269
  %v271 = vpop.f32.mrf.mxu0
  %v272 = vadd.f32 0.0, %v271
  %v273 = vpop.f32.mrf.mxu0
  %v274 = vadd.f32 0.0, %v273
  %275 = vmatprep.mubr.bf16.mxu0 %v68
  %276 = vmatmul.mubr.bf16.gmra.mxu0 %v67
  %v277 = vpop.f32.mrf.mxu0
  %v278 = vadd.f32 0.0, %v277
  %v279 = vpop.f32.mrf.mxu0
  %v280 = vadd.f32 0.0, %v279
  %v281 = vpop.f32.mrf.mxu0
  %v282 = vadd.f32 0.0, %v281
  %v283 = vpop.f32.mrf.mxu0
  %v284 = vadd.f32 0.0, %v283
  %285 = vdwg.mxu0
  %v286 = vld [vmem:[%s2] sm:$0x3]
  %v288 = vlaneseq
  %v289 = vshrl.u32 %v288, 7
  %v290 = vsub.s32 0, %v289
  %v291 = vrot.slane %v286, %v290
  %v292 = vlaneseq
  %v293 = vshrl.u32 %v292, 7
  %v294 = vsub.s32 1, %v293
  %v295 = vrot.slane %v286, %v294
  %v298 = vmul.f32 %v268, %v291
  %v299 = vmul.f32 %v270, %v295
  %v300 = vmul.f32 %v272, %v291
  %v301 = vmul.f32 %v274, %v295
  %v302 = vmul.f32 %v278, %v291
  %v303 = vmul.f32 %v280, %v295
  %v304 = vmul.f32 %v282, %v291
  %v305 = vmul.f32 %v284, %v295
  %v306 = vld [vmem:[%s3] sm:$0x3]
  %v308 = vlaneseq
  %v309 = vshrl.u32 %v308, 7
  %v310 = vsub.s32 0, %v309
  %v311 = vrot.slane %v306, %v310
  %v312 = vlaneseq
  %v313 = vshrl.u32 %v312, 7
  %v314 = vsub.s32 1, %v313
  %v315 = vrot.slane %v306, %v314
  %v318 = vadd.f32 %v298, %v311
  %v319 = vadd.f32 %v299, %v315
  %v320 = vadd.f32 %v300, %v311
  %v321 = vadd.f32 %v301, %v315
  %v322 = vadd.f32 %v302, %v311
  %v323 = vadd.f32 %v303, %v315
  %v324 = vadd.f32 %v304, %v311
  %v325 = vadd.f32 %v305, %v315
  %v326 = vpack.c.bf16 %v320, %v318
  %v327 = vpack.c.bf16 %v321, %v319
  %v328 = vpack.c.bf16 %v324, %v322
  %v329 = vpack.c.bf16 %v325, %v323
  %v334 = vunpack.c.l.b16 %v326
  %v335 = vunpack.c.l.b16 %v327
  %v336 = vunpack.c.h.b16 %v326
  %v337 = vunpack.c.h.b16 %v327
  %v338 = vunpack.c.l.b16 %v328
  %v339 = vunpack.c.l.b16 %v329
  %v340 = vunpack.c.h.b16 %v328
  %v341 = vunpack.c.h.b16 %v329
  %v342 = vpack.c.b16 %v335, %v334
  %v343 = vpack.c.b16 %v337, %v336
  %v344 = vpack.c.b16 %v339, %v338
  %v345 = vpack.c.b16 %v341, %v340
  %350 = vst [vmem:[%s4] sm:$0xff] %v342
  %351 = vst [vmem:[%s4 + $0x8] sm:$0xff] %v343
  %352 = vst [vmem:[%s4 + $0x10] sm:$0xff] %v344
  %353 = vst [vmem:[%s4 + $0x18] sm:$0xff] %v345
  // Predicated region
  $region18: #{_lambda_.67} parent=0 // pred_check
    _
  $region19: #{_lambda_.67} parent=0 // pred_check_branch
    %355 = sbr.rel (0) target = $region21
  $region20: #{_lambda_.67} parent=0 // pred_region
    _
  $region21: #{_lambda_.67} parent=0 // pred_fallthru
    _
  // Predicated region
  $region22: #{_lambda_.67} parent=0 // pred_check
    _
  $region23: #{_lambda_.67} parent=0 // pred_check_branch
    %357 = sbr.rel (0) target = $region25
  $region24: #{_lambda_.67} parent=0 // pred_region
    _
  $region25: #{_lambda_.67} parent=0 // pred_fallthru
    _

// kernel: _lambda_.69
$region0: #{_lambda_.69}
  #allocation0 [shape = 'u32[]', space=smem, size = 0x4, offset = 0x4, fixed_abs, tag = 'smem constant byte address 0x4 - core index']
  #allocation1 [shape = 'u32[144,128]{1,0:T(1,128)}', space=vmem, size = 0x12000, scoped, tag = 'internal scratch']
  %s0 = inlined_call_operand.vmem [shape: bf16[32,256], index: 0, kind: input, shape index: {}]
  %s1 = inlined_call_operand.vmem [shape: bf16[256,256], index: 1, kind: input, shape index: {}]
  %s2 = inlined_call_operand.vmem [shape: f32[1,256], index: 2, kind: input, shape index: {}]
  %s3 = inlined_call_operand.vmem [shape: f32[1,256], index: 3, kind: input, shape index: {}]
  %s4 = inlined_call_operand.vmem [shape: bf16[32,256], index: 4, kind: input, shape index: {}]
  %s5 = inlined_call_operand.vmem [shape: bf16[32,256], index: 5, kind: output, shape index: {}]
  %s6 = sld [smem:[#allocation0]]
  $region30: #{_lambda_.69} parent=0
    _
  %s8 = ssub.s32 1, %s6
  %s9 = scalar_select 0, %s8, %s6
  // Predicated region
  $region2: #{_lambda_.69} parent=0 // pred_check
    _
  $region3: #{_lambda_.69} parent=0 // pred_check_branch
    %11 = sbr.rel (0) target = $region5
  $region4: #{_lambda_.69} parent=0 // pred_region
    _
  $region5: #{_lambda_.69} parent=0 // pred_fallthru
    _
  // Predicated region
  $region6: #{_lambda_.69} parent=0 // pred_check
    _
  $region7: #{_lambda_.69} parent=0 // pred_check_branch
    %13 = sbr.rel (0) target = $region9
  $region8: #{_lambda_.69} parent=0 // pred_region
    _
  $region9: #{_lambda_.69} parent=0 // pred_fallthru
    _
  // Predicated region
  $region10: #{_lambda_.69} parent=0 // pred_check
    _
  $region11: #{_lambda_.69} parent=0 // pred_check_branch
    %15 = sbr.rel (0) target = $region13
  $region12: #{_lambda_.69} parent=0 // pred_region
    _
  $region13: #{_lambda_.69} parent=0 // pred_fallthru
    _
  // Predicated region
  $region14: #{_lambda_.69} parent=0 // pred_check
    _
  $region15: #{_lambda_.69} parent=0 // pred_check_branch
    %17 = sbr.rel (0) target = $region17
  $region16: #{_lambda_.69} parent=0 // pred_region
    _
  $region17: #{_lambda_.69} parent=0 // pred_fallthru
    _
  // Predicated region
  $region18: #{_lambda_.69} parent=0 // pred_check
    _
  $region19: #{_lambda_.69} parent=0 // pred_check_branch
    %19 = sbr.rel (0) target = $region21
  $region20: #{_lambda_.69} parent=0 // pred_region
    _
  $region21: #{_lambda_.69} parent=0 // pred_fallthru
    _
  %v20 = vld [vmem:[%s0] sm:$0xff]
  %v21 = vld [vmem:[%s0 + $0x8] sm:$0xff]
  %v22 = vld [vmem:[%s0 + $0x10] sm:$0xff]
  %v23 = vld [vmem:[%s0 + $0x18] sm:$0xff]
  %v24 = vld [vmem:[%s1] sm:$0xff]
  %v25 = vld [vmem:[%s1 + $0x8] sm:$0xff]
  %v26 = vld [vmem:[%s1 + $0x10] sm:$0xff]
  %v27 = vld [vmem:[%s1 + $0x18] sm:$0xff]
  %v28 = vld [vmem:[%s1 + $0x20] sm:$0xff]
  %v29 = vld [vmem:[%s1 + $0x28] sm:$0xff]
  %v30 = vld [vmem:[%s1 + $0x30] sm:$0xff]
  %v31 = vld [vmem:[%s1 + $0x38] sm:$0xff]
  %v32 = vld [vmem:[%s1 + $0x40] sm:$0xff]
  %v33 = vld [vmem:[%s1 + $0x48] sm:$0xff]
  %v34 = vld [vmem:[%s1 + $0x50] sm:$0xff]
  %v35 = vld [vmem:[%s1 + $0x58] sm:$0xff]
  %v36 = vld [vmem:[%s1 + $0x60] sm:$0xff]
  %v37 = vld [vmem:[%s1 + $0x68] sm:$0xff]
  %v38 = vld [vmem:[%s1 + $0x70] sm:$0xff]
  %v39 = vld [vmem:[%s1 + $0x78] sm:$0xff]
  %v40 = vld [vmem:[%s1 + $0x80] sm:$0xff]
  %v41 = vld [vmem:[%s1 + $0x88] sm:$0xff]
  %v42 = vld [vmem:[%s1 + $0x90] sm:$0xff]
  %v43 = vld [vmem:[%s1 + $0x98] sm:$0xff]
  %v44 = vld [vmem:[%s1 + $0xa0] sm:$0xff]
  %v45 = vld [vmem:[%s1 + $0xa8] sm:$0xff]
  %v46 = vld [vmem:[%s1 + $0xb0] sm:$0xff]
  %v47 = vld [vmem:[%s1 + $0xb8] sm:$0xff]
  %v48 = vld [vmem:[%s1 + $0xc0] sm:$0xff]
  %v49 = vld [vmem:[%s1 + $0xc8] sm:$0xff]
  %v50 = vld [vmem:[%s1 + $0xd0] sm:$0xff]
  %v51 = vld [vmem:[%s1 + $0xd8] sm:$0xff]
  %v52 = vld [vmem:[%s1 + $0xe0] sm:$0xff]
  %v53 = vld [vmem:[%s1 + $0xe8] sm:$0xff]
  %v54 = vld [vmem:[%s1 + $0xf0] sm:$0xff]
  %v55 = vld [vmem:[%s1 + $0xf8] sm:$0xff]
  %v60 = vunpack.c.l.b16 %v20
  %v61 = vunpack.c.h.b16 %v20
  %v62 = vunpack.c.l.b16 %v21
  %v63 = vunpack.c.h.b16 %v21
  %v64 = vunpack.c.l.b16 %v22
  %v65 = vunpack.c.h.b16 %v22
  %v66 = vunpack.c.l.b16 %v23
  %v67 = vunpack.c.h.b16 %v23
  %v68 = vpack.c.b16 %v62, %v60
  %v69 = vpack.c.b16 %v63, %v61
  %v70 = vpack.c.b16 %v66, %v64
  %v71 = vpack.c.b16 %v67, %v65
  %v108 = vunpack.c.l.b16 %v24
  %v109 = vunpack.c.h.b16 %v24
  %v110 = vunpack.c.l.b16 %v25
  %v111 = vunpack.c.h.b16 %v25
  %v112 = vunpack.c.l.b16 %v26
  %v113 = vunpack.c.h.b16 %v26
  %v114 = vunpack.c.l.b16 %v27
  %v115 = vunpack.c.h.b16 %v27
  %v116 = vunpack.c.l.b16 %v28
  %v117 = vunpack.c.h.b16 %v28
  %v118 = vunpack.c.l.b16 %v29
  %v119 = vunpack.c.h.b16 %v29
  %v120 = vunpack.c.l.b16 %v30
  %v121 = vunpack.c.h.b16 %v30
  %v122 = vunpack.c.l.b16 %v31
  %v123 = vunpack.c.h.b16 %v31
  %v124 = vunpack.c.l.b16 %v32
  %v125 = vunpack.c.h.b16 %v32
  %v126 = vunpack.c.l.b16 %v33
  %v127 = vunpack.c.h.b16 %v33
  %v128 = vunpack.c.l.b16 %v34
  %v129 = vunpack.c.h.b16 %v34
  %v130 = vunpack.c.l.b16 %v35
  %v131 = vunpack.c.h.b16 %v35
  %v132 = vunpack.c.l.b16 %v36
  %v133 = vunpack.c.h.b16 %v36
  %v134 = vunpack.c.l.b16 %v37
  %v135 = vunpack.c.h.b16 %v37
  %v136 = vunpack.c.l.b16 %v38
  %v137 = vunpack.c.h.b16 %v38
  %v138 = vunpack.c.l.b16 %v39
  %v139 = vunpack.c.h.b16 %v39
  %v140 = vunpack.c.l.b16 %v40
  %v141 = vunpack.c.h.b16 %v40
  %v142 = vunpack.c.l.b16 %v41
  %v143 = vunpack.c.h.b16 %v41
  %v144 = vunpack.c.l.b16 %v42
  %v145 = vunpack.c.h.b16 %v42
  %v146 = vunpack.c.l.b16 %v43
  %v147 = vunpack.c.h.b16 %v43
  %v148 = vunpack.c.l.b16 %v44
  %v149 = vunpack.c.h.b16 %v44
  %v150 = vunpack.c.l.b16 %v45
  %v151 = vunpack.c.h.b16 %v45
  %v152 = vunpack.c.l.b16 %v46
  %v153 = vunpack.c.h.b16 %v46
  %v154 = vunpack.c.l.b16 %v47
  %v155 = vunpack.c.h.b16 %v47
  %v156 = vunpack.c.l.b16 %v48
  %v157 = vunpack.c.h.b16 %v48
  %v158 = vunpack.c.l.b16 %v49
  %v159 = vunpack.c.h.b16 %v49
  %v160 = vunpack.c.l.b16 %v50
  %v161 = vunpack.c.h.b16 %v50
  %v162 = vunpack.c.l.b16 %v51
  %v163 = vunpack.c.h.b16 %v51
  %v164 = vunpack.c.l.b16 %v52
  %v165 = vunpack.c.h.b16 %v52
  %v166 = vunpack.c.l.b16 %v53
  %v167 = vunpack.c.h.b16 %v53
  %v168 = vunpack.c.l.b16 %v54
  %v169 = vunpack.c.h.b16 %v54
  %v170 = vunpack.c.l.b16 %v55
  %v171 = vunpack.c.h.b16 %v55
  %v172 = vpack.c.b16 %v110, %v108
  %v173 = vpack.c.b16 %v111, %v109
  %v174 = vpack.c.b16 %v114, %v112
  %v175 = vpack.c.b16 %v115, %v113
  %v176 = vpack.c.b16 %v118, %v116
  %v177 = vpack.c.b16 %v119, %v117
  %v178 = vpack.c.b16 %v122, %v120
  %v179 = vpack.c.b16 %v123, %v121
  %v180 = vpack.c.b16 %v126, %v124
  %v181 = vpack.c.b16 %v127, %v125
  %v182 = vpack.c.b16 %v130, %v128
  %v183 = vpack.c.b16 %v131, %v129
  %v184 = vpack.c.b16 %v134, %v132
  %v185 = vpack.c.b16 %v135, %v133
  %v186 = vpack.c.b16 %v138, %v136
  %v187 = vpack.c.b16 %v139, %v137
  %v188 = vpack.c.b16 %v142, %v140
  %v189 = vpack.c.b16 %v143, %v141
  %v190 = vpack.c.b16 %v146, %v144
  %v191 = vpack.c.b16 %v147, %v145
  %v192 = vpack.c.b16 %v150, %v148
  %v193 = vpack.c.b16 %v151, %v149
  %v194 = vpack.c.b16 %v154, %v152
  %v195 = vpack.c.b16 %v155, %v153
  %v196 = vpack.c.b16 %v158, %v156
  %v197 = vpack.c.b16 %v159, %v157
  %v198 = vpack.c.b16 %v162, %v160
  %v199 = vpack.c.b16 %v163, %v161
  %v200 = vpack.c.b16 %v166, %v164
  %v201 = vpack.c.b16 %v167, %v165
  %v202 = vpack.c.b16 %v170, %v168
  %v203 = vpack.c.b16 %v171, %v169
  %236 = vmatprep.subr.bf16.mxu0 %v187
  %237 = vmatpush1.bf16.msra.mxu0 %v186
  %238 = vmatprep.subr.bf16.mxu0 %v185
  %239 = vmatpush1.bf16.msra.mxu0 %v184
  %240 = vmatprep.subr.bf16.mxu0 %v183
  %241 = vmatpush1.bf16.msra.mxu0 %v182
  %242 = vmatprep.subr.bf16.mxu0 %v181
  %243 = vmatpush1.bf16.msra.mxu0 %v180
  %244 = vmatprep.subr.bf16.mxu0 %v179
  %245 = vmatpush1.bf16.msra.mxu0 %v178
  %246 = vmatprep.subr.bf16.mxu0 %v177
  %247 = vmatpush1.bf16.msra.mxu0 %v176
  %248 = vmatprep.subr.bf16.mxu0 %v175
  %249 = vmatpush1.bf16.msra.mxu0 %v174
  %250 = vmatprep.subr.bf16.mxu0 %v173
  %251 = vmatpush1.bf16.msra.mxu0 %v172
  %252 = vmatprep.subr.bf16.mxu0 %v203
  %253 = vmatpush2.bf16.msra.mxu0 %v202
  %254 = vmatprep.subr.bf16.mxu0 %v201
  %255 = vmatpush2.bf16.msra.mxu0 %v200
  %256 = vmatprep.subr.bf16.mxu0 %v199
  %257 = vmatpush2.bf16.msra.mxu0 %v198
  %258 = vmatprep.subr.bf16.mxu0 %v197
  %259 = vmatpush2.bf16.msra.mxu0 %v196
  %260 = vmatprep.subr.bf16.mxu0 %v195
  %261 = vmatpush2.bf16.msra.mxu0 %v194
  %262 = vmatprep.subr.bf16.mxu0 %v193
  %263 = vmatpush2.bf16.msra.mxu0 %v192
  %264 = vmatprep.subr.bf16.mxu0 %v191
  %265 = vmatpush2.bf16.msra.mxu0 %v190
  %266 = vmatprep.subr.bf16.mxu0 %v189
  %267 = vmatpush2.bf16.msra.mxu0 %v188
  %268 = vmatprep.mubr.bf16.mxu0 %v69
  %269 = vmatmul.mubr.bf16.gmra.mxu0 %v68
  %v270 = vpop.f32.mrf.mxu0
  %v271 = vadd.f32 0.0, %v270
  %v272 = vpop.f32.mrf.mxu0
  %v273 = vadd.f32 0.0, %v272
  %v274 = vpop.f32.mrf.mxu0
  %v275 = vadd.f32 0.0, %v274
  %v276 = vpop.f32.mrf.mxu0
  %v277 = vadd.f32 0.0, %v276
  %278 = vmatprep.mubr.bf16.mxu0 %v71
  %279 = vmatmul.mubr.bf16.gmra.mxu0 %v70
  %v280 = vpop.f32.mrf.mxu0
  %v281 = vadd.f32 0.0, %v280
  %v282 = vpop.f32.mrf.mxu0
  %v283 = vadd.f32 0.0, %v282
  %v284 = vpop.f32.mrf.mxu0
  %v285 = vadd.f32 0.0, %v284
  %v286 = vpop.f32.mrf.mxu0
  %v287 = vadd.f32 0.0, %v286
  %288 = vdwg.mxu0
  %v289 = vld [vmem:[%s2] sm:$0x3]
  %v291 = vlaneseq
  %v292 = vshrl.u32 %v291, 7
  %v293 = vsub.s32 0, %v292
  %v294 = vrot.slane %v289, %v293
  %v295 = vlaneseq
  %v296 = vshrl.u32 %v295, 7
  %v297 = vsub.s32 1, %v296
  %v298 = vrot.slane %v289, %v297
  %v301 = vmul.f32 %v271, %v294
  %v302 = vmul.f32 %v273, %v298
  %v303 = vmul.f32 %v275, %v294
  %v304 = vmul.f32 %v277, %v298
  %v305 = vmul.f32 %v281, %v294
  %v306 = vmul.f32 %v283, %v298
  %v307 = vmul.f32 %v285, %v294
  %v308 = vmul.f32 %v287, %v298
  %v309 = vld [vmem:[%s3] sm:$0x3]
  %v311 = vlaneseq
  %v312 = vshrl.u32 %v311, 7
  %v313 = vsub.s32 0, %v312
  %v314 = vrot.slane %v309, %v313
  %v315 = vlaneseq
  %v316 = vshrl.u32 %v315, 7
  %v317 = vsub.s32 1, %v316
  %v318 = vrot.slane %v309, %v317
  %v321 = vadd.f32 %v301, %v314
  %v322 = vadd.f32 %v302, %v318
  %v323 = vadd.f32 %v303, %v314
  %v324 = vadd.f32 %v304, %v318
  %v325 = vadd.f32 %v305, %v314
  %v326 = vadd.f32 %v306, %v318
  %v327 = vadd.f32 %v307, %v314
  %v328 = vadd.f32 %v308, %v318
  %v329 = vld [vmem:[%s4] sm:$0xff]
  %v330 = vld [vmem:[%s4 + $0x8] sm:$0xff]
  %v331 = vld [vmem:[%s4 + $0x10] sm:$0xff]
  %v332 = vld [vmem:[%s4 + $0x18] sm:$0xff]
  %v333 = vunpack.c.l.bf16 %v329
  %v334 = vunpack.c.h.bf16 %v329
  %v335 = vunpack.c.l.bf16 %v330
  %v336 = vunpack.c.h.bf16 %v330
  %v337 = vunpack.c.l.bf16 %v331
  %v338 = vunpack.c.h.bf16 %v331
  %v339 = vunpack.c.l.bf16 %v332
  %v340 = vunpack.c.h.bf16 %v332
  %v341 = vadd.f32 %v321, %v333
  %v342 = vadd.f32 %v322, %v334
  %v343 = vadd.f32 %v323, %v335
  %v344 = vadd.f32 %v324, %v336
  %v345 = vadd.f32 %v325, %v337
  %v346 = vadd.f32 %v326, %v338
  %v347 = vadd.f32 %v327, %v339
  %v348 = vadd.f32 %v328, %v340
  %v349 = vmax.f32 %v341, 0.0
  %v350 = vmax.f32 %v342, 0.0
  %v351 = vmax.f32 %v343, 0.0
  %v352 = vmax.f32 %v344, 0.0
  %v353 = vmax.f32 %v345, 0.0
  %v354 = vmax.f32 %v346, 0.0
  %v355 = vmax.f32 %v347, 0.0
  %v356 = vmax.f32 %v348, 0.0
  %v357 = vpack.c.bf16 %v351, %v349
  %v358 = vpack.c.bf16 %v352, %v350
  %v359 = vpack.c.bf16 %v355, %v353
  %v360 = vpack.c.bf16 %v356, %v354
  %v365 = vunpack.c.l.b16 %v357
  %v366 = vunpack.c.l.b16 %v358
  %v367 = vunpack.c.h.b16 %v357
  %v368 = vunpack.c.h.b16 %v358
  %v369 = vunpack.c.l.b16 %v359
  %v370 = vunpack.c.l.b16 %v360
  %v371 = vunpack.c.h.b16 %v359
  %v372 = vunpack.c.h.b16 %v360
  %v373 = vpack.c.b16 %v366, %v365
  %v374 = vpack.c.b16 %v368, %v367
  %v375 = vpack.c.b16 %v370, %v369
  %v376 = vpack.c.b16 %v372, %v371
  %381 = vst [vmem:[%s5] sm:$0xff] %v373
  %382 = vst [vmem:[%s5 + $0x8] sm:$0xff] %v374
  %383 = vst [vmem:[%s5 + $0x10] sm:$0xff] %v375
  %384 = vst [vmem:[%s5 + $0x18] sm:$0xff] %v376
  // Predicated region
  $region22: #{_lambda_.69} parent=0 // pred_check
    _
  $region23: #{_lambda_.69} parent=0 // pred_check_branch
    %386 = sbr.rel (0) target = $region25
  $region24: #{_lambda_.69} parent=0 // pred_region
    _
  $region25: #{_lambda_.69} parent=0 // pred_fallthru
    _
  // Predicated region
  $region26: #{_lambda_.69} parent=0 // pred_check
    _
  $region27: #{_lambda_.69} parent=0 // pred_check_branch
    %388 = sbr.rel (0) target = $region29
  $region28: #{_lambda_.69} parent=0 // pred_region
    _
  $region29: #{_lambda_.69} parent=0 // pred_fallthru
    _

// kernel: _lambda_.83
$region0: #{_lambda_.83}
  #allocation0 [shape = 'u32[]', space=smem, size = 0x4, offset = 0x4, fixed_abs, tag = 'smem constant byte address 0x4 - core index']
  #allocation1 [shape = 'u32[144,128]{1,0:T(1,128)}', space=vmem, size = 0x12000, scoped, tag = 'internal scratch']
  %s0 = inlined_call_operand.vmem [shape: bf16[16,256], index: 0, kind: input, shape index: {}]
  %s1 = inlined_call_operand.vmem [shape: bf16[256,256], index: 1, kind: input, shape index: {}]
  %s2 = inlined_call_operand.vmem [shape: f32[1,256], index: 2, kind: input, shape index: {}]
  %s3 = inlined_call_operand.vmem [shape: f32[1,256], index: 3, kind: input, shape index: {}]
  %s4 = inlined_call_operand.vmem [shape: bf16[16,256], index: 4, kind: output, shape index: {}]
  %s5 = sld [smem:[#allocation0]]
  $region26: #{_lambda_.83} parent=0
    _
  %s7 = ssub.s32 1, %s5
  %s8 = scalar_select 0, %s7, %s5
  // Predicated region
  $region2: #{_lambda_.83} parent=0 // pred_check
    _
  $region3: #{_lambda_.83} parent=0 // pred_check_branch
    %10 = sbr.rel (0) target = $region5
  $region4: #{_lambda_.83} parent=0 // pred_region
    _
  $region5: #{_lambda_.83} parent=0 // pred_fallthru
    _
  // Predicated region
  $region6: #{_lambda_.83} parent=0 // pred_check
    _
  $region7: #{_lambda_.83} parent=0 // pred_check_branch
    %12 = sbr.rel (0) target = $region9
  $region8: #{_lambda_.83} parent=0 // pred_region
    _
  $region9: #{_lambda_.83} parent=0 // pred_fallthru
    _
  // Predicated region
  $region10: #{_lambda_.83} parent=0 // pred_check
    _
  $region11: #{_lambda_.83} parent=0 // pred_check_branch
    %14 = sbr.rel (0) target = $region13
  $region12: #{_lambda_.83} parent=0 // pred_region
    _
  $region13: #{_lambda_.83} parent=0 // pred_fallthru
    _
  // Predicated region
  $region14: #{_lambda_.83} parent=0 // pred_check
    _
  $region15: #{_lambda_.83} parent=0 // pred_check_branch
    %16 = sbr.rel (0) target = $region17
  $region16: #{_lambda_.83} parent=0 // pred_region
    _
  $region17: #{_lambda_.83} parent=0 // pred_fallthru
    _
  %v17 = vld [vmem:[%s0] sm:$0xff]
  %v18 = vld [vmem:[%s0 + $0x8] sm:$0xff]
  %v19 = vld [vmem:[%s1] sm:$0xff]
  %v20 = vld [vmem:[%s1 + $0x8] sm:$0xff]
  %v21 = vld [vmem:[%s1 + $0x10] sm:$0xff]
  %v22 = vld [vmem:[%s1 + $0x18] sm:$0xff]
  %v23 = vld [vmem:[%s1 + $0x20] sm:$0xff]
  %v24 = vld [vmem:[%s1 + $0x28] sm:$0xff]
  %v25 = vld [vmem:[%s1 + $0x30] sm:$0xff]
  %v26 = vld [vmem:[%s1 + $0x38] sm:$0xff]
  %v27 = vld [vmem:[%s1 + $0x40] sm:$0xff]
  %v28 = vld [vmem:[%s1 + $0x48] sm:$0xff]
  %v29 = vld [vmem:[%s1 + $0x50] sm:$0xff]
  %v30 = vld [vmem:[%s1 + $0x58] sm:$0xff]
  %v31 = vld [vmem:[%s1 + $0x60] sm:$0xff]
  %v32 = vld [vmem:[%s1 + $0x68] sm:$0xff]
  %v33 = vld [vmem:[%s1 + $0x70] sm:$0xff]
  %v34 = vld [vmem:[%s1 + $0x78] sm:$0xff]
  %v35 = vld [vmem:[%s1 + $0x80] sm:$0xff]
  %v36 = vld [vmem:[%s1 + $0x88] sm:$0xff]
  %v37 = vld [vmem:[%s1 + $0x90] sm:$0xff]
  %v38 = vld [vmem:[%s1 + $0x98] sm:$0xff]
  %v39 = vld [vmem:[%s1 + $0xa0] sm:$0xff]
  %v40 = vld [vmem:[%s1 + $0xa8] sm:$0xff]
  %v41 = vld [vmem:[%s1 + $0xb0] sm:$0xff]
  %v42 = vld [vmem:[%s1 + $0xb8] sm:$0xff]
  %v43 = vld [vmem:[%s1 + $0xc0] sm:$0xff]
  %v44 = vld [vmem:[%s1 + $0xc8] sm:$0xff]
  %v45 = vld [vmem:[%s1 + $0xd0] sm:$0xff]
  %v46 = vld [vmem:[%s1 + $0xd8] sm:$0xff]
  %v47 = vld [vmem:[%s1 + $0xe0] sm:$0xff]
  %v48 = vld [vmem:[%s1 + $0xe8] sm:$0xff]
  %v49 = vld [vmem:[%s1 + $0xf0] sm:$0xff]
  %v50 = vld [vmem:[%s1 + $0xf8] sm:$0xff]
  %v53 = vunpack.c.l.b16 %v17
  %v54 = vunpack.c.h.b16 %v17
  %v55 = vunpack.c.l.b16 %v18
  %v56 = vunpack.c.h.b16 %v18
  %v57 = vpack.c.b16 %v55, %v53
  %v58 = vpack.c.b16 %v56, %v54
  %v93 = vunpack.c.l.b16 %v19
  %v94 = vunpack.c.h.b16 %v19
  %v95 = vunpack.c.l.b16 %v20
  %v96 = vunpack.c.h.b16 %v20
  %v97 = vunpack.c.l.b16 %v21
  %v98 = vunpack.c.h.b16 %v21
  %v99 = vunpack.c.l.b16 %v22
  %v100 = vunpack.c.h.b16 %v22
  %v101 = vunpack.c.l.b16 %v23
  %v102 = vunpack.c.h.b16 %v23
  %v103 = vunpack.c.l.b16 %v24
  %v104 = vunpack.c.h.b16 %v24
  %v105 = vunpack.c.l.b16 %v25
  %v106 = vunpack.c.h.b16 %v25
  %v107 = vunpack.c.l.b16 %v26
  %v108 = vunpack.c.h.b16 %v26
  %v109 = vunpack.c.l.b16 %v27
  %v110 = vunpack.c.h.b16 %v27
  %v111 = vunpack.c.l.b16 %v28
  %v112 = vunpack.c.h.b16 %v28
  %v113 = vunpack.c.l.b16 %v29
  %v114 = vunpack.c.h.b16 %v29
  %v115 = vunpack.c.l.b16 %v30
  %v116 = vunpack.c.h.b16 %v30
  %v117 = vunpack.c.l.b16 %v31
  %v118 = vunpack.c.h.b16 %v31
  %v119 = vunpack.c.l.b16 %v32
  %v120 = vunpack.c.h.b16 %v32
  %v121 = vunpack.c.l.b16 %v33
  %v122 = vunpack.c.h.b16 %v33
  %v123 = vunpack.c.l.b16 %v34
  %v124 = vunpack.c.h.b16 %v34
  %v125 = vunpack.c.l.b16 %v35
  %v126 = vunpack.c.h.b16 %v35
  %v127 = vunpack.c.l.b16 %v36
  %v128 = vunpack.c.h.b16 %v36
  %v129 = vunpack.c.l.b16 %v37
  %v130 = vunpack.c.h.b16 %v37
  %v131 = vunpack.c.l.b16 %v38
  %v132 = vunpack.c.h.b16 %v38
  %v133 = vunpack.c.l.b16 %v39
  %v134 = vunpack.c.h.b16 %v39
  %v135 = vunpack.c.l.b16 %v40
  %v136 = vunpack.c.h.b16 %v40
  %v137 = vunpack.c.l.b16 %v41
  %v138 = vunpack.c.h.b16 %v41
  %v139 = vunpack.c.l.b16 %v42
  %v140 = vunpack.c.h.b16 %v42
  %v141 = vunpack.c.l.b16 %v43
  %v142 = vunpack.c.h.b16 %v43
  %v143 = vunpack.c.l.b16 %v44
  %v144 = vunpack.c.h.b16 %v44
  %v145 = vunpack.c.l.b16 %v45
  %v146 = vunpack.c.h.b16 %v45
  %v147 = vunpack.c.l.b16 %v46
  %v148 = vunpack.c.h.b16 %v46
  %v149 = vunpack.c.l.b16 %v47
  %v150 = vunpack.c.h.b16 %v47
  %v151 = vunpack.c.l.b16 %v48
  %v152 = vunpack.c.h.b16 %v48
  %v153 = vunpack.c.l.b16 %v49
  %v154 = vunpack.c.h.b16 %v49
  %v155 = vunpack.c.l.b16 %v50
  %v156 = vunpack.c.h.b16 %v50
  %v157 = vpack.c.b16 %v95, %v93
  %v158 = vpack.c.b16 %v96, %v94
  %v159 = vpack.c.b16 %v99, %v97
  %v160 = vpack.c.b16 %v100, %v98
  %v161 = vpack.c.b16 %v103, %v101
  %v162 = vpack.c.b16 %v104, %v102
  %v163 = vpack.c.b16 %v107, %v105
  %v164 = vpack.c.b16 %v108, %v106
  %v165 = vpack.c.b16 %v111, %v109
  %v166 = vpack.c.b16 %v112, %v110
  %v167 = vpack.c.b16 %v115, %v113
  %v168 = vpack.c.b16 %v116, %v114
  %v169 = vpack.c.b16 %v119, %v117
  %v170 = vpack.c.b16 %v120, %v118
  %v171 = vpack.c.b16 %v123, %v121
  %v172 = vpack.c.b16 %v124, %v122
  %v173 = vpack.c.b16 %v127, %v125
  %v174 = vpack.c.b16 %v128, %v126
  %v175 = vpack.c.b16 %v131, %v129
  %v176 = vpack.c.b16 %v132, %v130
  %v177 = vpack.c.b16 %v135, %v133
  %v178 = vpack.c.b16 %v136, %v134
  %v179 = vpack.c.b16 %v139, %v137
  %v180 = vpack.c.b16 %v140, %v138
  %v181 = vpack.c.b16 %v143, %v141
  %v182 = vpack.c.b16 %v144, %v142
  %v183 = vpack.c.b16 %v147, %v145
  %v184 = vpack.c.b16 %v148, %v146
  %v185 = vpack.c.b16 %v151, %v149
  %v186 = vpack.c.b16 %v152, %v150
  %v187 = vpack.c.b16 %v155, %v153
  %v188 = vpack.c.b16 %v156, %v154
  %221 = vmatprep.subr.bf16.mxu0 %v172
  %222 = vmatpush1.bf16.msra.mxu0 %v171
  %223 = vmatprep.subr.bf16.mxu0 %v170
  %224 = vmatpush1.bf16.msra.mxu0 %v169
  %225 = vmatprep.subr.bf16.mxu0 %v168
  %226 = vmatpush1.bf16.msra.mxu0 %v167
  %227 = vmatprep.subr.bf16.mxu0 %v166
  %228 = vmatpush1.bf16.msra.mxu0 %v165
  %229 = vmatprep.subr.bf16.mxu0 %v164
  %230 = vmatpush1.bf16.msra.mxu0 %v163
  %231 = vmatprep.subr.bf16.mxu0 %v162
  %232 = vmatpush1.bf16.msra.mxu0 %v161
  %233 = vmatprep.subr.bf16.mxu0 %v160
  %234 = vmatpush1.bf16.msra.mxu0 %v159
  %235 = vmatprep.subr.bf16.mxu0 %v158
  %236 = vmatpush1.bf16.msra.mxu0 %v157
  %237 = vmatprep.subr.bf16.mxu0 %v188
  %238 = vmatpush2.bf16.msra.mxu0 %v187
  %239 = vmatprep.subr.bf16.mxu0 %v186
  %240 = vmatpush2.bf16.msra.mxu0 %v185
  %241 = vmatprep.subr.bf16.mxu0 %v184
  %242 = vmatpush2.bf16.msra.mxu0 %v183
  %243 = vmatprep.subr.bf16.mxu0 %v182
  %244 = vmatpush2.bf16.msra.mxu0 %v181
  %245 = vmatprep.subr.bf16.mxu0 %v180
  %246 = vmatpush2.bf16.msra.mxu0 %v179
  %247 = vmatprep.subr.bf16.mxu0 %v178
  %248 = vmatpush2.bf16.msra.mxu0 %v177
  %249 = vmatprep.subr.bf16.mxu0 %v176
  %250 = vmatpush2.bf16.msra.mxu0 %v175
  %251 = vmatprep.subr.bf16.mxu0 %v174
  %252 = vmatpush2.bf16.msra.mxu0 %v173
  %253 = vmatprep.mubr.bf16.mxu0 %v58
  %254 = vmatmul.mubr.bf16.gmra.mxu0 %v57
  %v255 = vpop.f32.mrf.mxu0
  %v256 = vadd.f32 0.0, %v255
  %v257 = vpop.f32.mrf.mxu0
  %v258 = vadd.f32 0.0, %v257
  %v259 = vpop.f32.mrf.mxu0
  %v260 = vadd.f32 0.0, %v259
  %v261 = vpop.f32.mrf.mxu0
  %v262 = vadd.f32 0.0, %v261
  %263 = vdwg.mxu0
  %v264 = vld [vmem:[%s2] sm:$0x3]
  %v266 = vlaneseq
  %v267 = vshrl.u32 %v266, 7
  %v268 = vsub.s32 0, %v267
  %v269 = vrot.slane %v264, %v268
  %v270 = vlaneseq
  %v271 = vshrl.u32 %v270, 7
  %v272 = vsub.s32 1, %v271
  %v273 = vrot.slane %v264, %v272
  %v276 = vmul.f32 %v256, %v269
  %v277 = vmul.f32 %v258, %v273
  %v278 = vmul.f32 %v260, %v269
  %v279 = vmul.f32 %v262, %v273
  %v280 = vld [vmem:[%s3] sm:$0x3]
  %v282 = vlaneseq
  %v283 = vshrl.u32 %v282, 7
  %v284 = vsub.s32 0, %v283
  %v285 = vrot.slane %v280, %v284
  %v286 = vlaneseq
  %v287 = vshrl.u32 %v286, 7
  %v288 = vsub.s32 1, %v287
  %v289 = vrot.slane %v280, %v288
  %v292 = vadd.f32 %v276, %v285
  %v293 = vadd.f32 %v277, %v289
  %v294 = vadd.f32 %v278, %v285
  %v295 = vadd.f32 %v279, %v289
  %v296 = vmax.f32 %v292, 0.0
  %v297 = vmax.f32 %v293, 0.0
  %v298 = vmax.f32 %v294, 0.0
  %v299 = vmax.f32 %v295, 0.0
  %v300 = vpack.c.bf16 %v298, %v296
  %v301 = vpack.c.bf16 %v299, %v297
  %v304 = vunpack.c.l.b16 %v300
  %v305 = vunpack.c.l.b16 %v301
  %v306 = vunpack.c.h.b16 %v300
  %v307 = vunpack.c.h.b16 %v301
  %v308 = vpack.c.b16 %v305, %v304
  %v309 = vpack.c.b16 %v307, %v306
  %312 = vst [vmem:[%s4] sm:$0xff] %v308
  %313 = vst [vmem:[%s4 + $0x8] sm:$0xff] %v309
  // Predicated region
  $region18: #{_lambda_.83} parent=0 // pred_check
    _
  $region19: #{_lambda_.83} parent=0 // pred_check_branch
    %315 = sbr.rel (0) target = $region21
  $region20: #{_lambda_.83} parent=0 // pred_region
    _
  $region21: #{_lambda_.83} parent=0 // pred_fallthru
    _
  // Predicated region
  $region22: #{_lambda_.83} parent=0 // pred_check
    _
  $region23: #{_lambda_.83} parent=0 // pred_check_branch
    %317 = sbr.rel (0) target = $region25
  $region24: #{_lambda_.83} parent=0 // pred_region
    _
  $region25: #{_lambda_.83} parent=0 // pred_fallthru
    _

// kernel: _lambda_.80
$region0: #{_lambda_.80}
  #allocation0 [shape = 'u32[]', space=smem, size = 0x4, offset = 0x4, fixed_abs, tag = 'smem constant byte address 0x4 - core index']
  #allocation1 [shape = 'u32[144,128]{1,0:T(1,128)}', space=vmem, size = 0x12000, scoped, tag = 'internal scratch']
  %s0 = inlined_call_operand.vmem [shape: bf16[16,256], index: 0, kind: input, shape index: {}]
  %s1 = inlined_call_operand.vmem [shape: bf16[256,256], index: 1, kind: input, shape index: {}]
  %s2 = inlined_call_operand.vmem [shape: f32[1,256], index: 2, kind: input, shape index: {}]
  %s3 = inlined_call_operand.vmem [shape: f32[1,256], index: 3, kind: input, shape index: {}]
  %s4 = inlined_call_operand.vmem [shape: bf16[16,256], index: 4, kind: output, shape index: {}]
  %s5 = sld [smem:[#allocation0]]
  $region26: #{_lambda_.80} parent=0
    _
  %s7 = ssub.s32 1, %s5
  %s8 = scalar_select 0, %s7, %s5
  // Predicated region
  $region2: #{_lambda_.80} parent=0 // pred_check
    _
  $region3: #{_lambda_.80} parent=0 // pred_check_branch
    %10 = sbr.rel (0) target = $region5
  $region4: #{_lambda_.80} parent=0 // pred_region
    _
  $region5: #{_lambda_.80} parent=0 // pred_fallthru
    _
  // Predicated region
  $region6: #{_lambda_.80} parent=0 // pred_check
    _
  $region7: #{_lambda_.80} parent=0 // pred_check_branch
    %12 = sbr.rel (0) target = $region9
  $region8: #{_lambda_.80} parent=0 // pred_region
    _
  $region9: #{_lambda_.80} parent=0 // pred_fallthru
    _
  // Predicated region
  $region10: #{_lambda_.80} parent=0 // pred_check
    _
  $region11: #{_lambda_.80} parent=0 // pred_check_branch
    %14 = sbr.rel (0) target = $region13
  $region12: #{_lambda_.80} parent=0 // pred_region
    _
  $region13: #{_lambda_.80} parent=0 // pred_fallthru
    _
  // Predicated region
  $region14: #{_lambda_.80} parent=0 // pred_check
    _
  $region15: #{_lambda_.80} parent=0 // pred_check_branch
    %16 = sbr.rel (0) target = $region17
  $region16: #{_lambda_.80} parent=0 // pred_region
    _
  $region17: #{_lambda_.80} parent=0 // pred_fallthru
    _
  %v17 = vld [vmem:[%s0] sm:$0xff]
  %v18 = vld [vmem:[%s0 + $0x8] sm:$0xff]
  %v19 = vld [vmem:[%s1] sm:$0xff]
  %v20 = vld [vmem:[%s1 + $0x8] sm:$0xff]
  %v21 = vld [vmem:[%s1 + $0x10] sm:$0xff]
  %v22 = vld [vmem:[%s1 + $0x18] sm:$0xff]
  %v23 = vld [vmem:[%s1 + $0x20] sm:$0xff]
  %v24 = vld [vmem:[%s1 + $0x28] sm:$0xff]
  %v25 = vld [vmem:[%s1 + $0x30] sm:$0xff]
  %v26 = vld [vmem:[%s1 + $0x38] sm:$0xff]
  %v27 = vld [vmem:[%s1 + $0x40] sm:$0xff]
  %v28 = vld [vmem:[%s1 + $0x48] sm:$0xff]
  %v29 = vld [vmem:[%s1 + $0x50] sm:$0xff]
  %v30 = vld [vmem:[%s1 + $0x58] sm:$0xff]
  %v31 = vld [vmem:[%s1 + $0x60] sm:$0xff]
  %v32 = vld [vmem:[%s1 + $0x68] sm:$0xff]
  %v33 = vld [vmem:[%s1 + $0x70] sm:$0xff]
  %v34 = vld [vmem:[%s1 + $0x78] sm:$0xff]
  %v35 = vld [vmem:[%s1 + $0x80] sm:$0xff]
  %v36 = vld [vmem:[%s1 + $0x88] sm:$0xff]
  %v37 = vld [vmem:[%s1 + $0x90] sm:$0xff]
  %v38 = vld [vmem:[%s1 + $0x98] sm:$0xff]
  %v39 = vld [vmem:[%s1 + $0xa0] sm:$0xff]
  %v40 = vld [vmem:[%s1 + $0xa8] sm:$0xff]
  %v41 = vld [vmem:[%s1 + $0xb0] sm:$0xff]
  %v42 = vld [vmem:[%s1 + $0xb8] sm:$0xff]
  %v43 = vld [vmem:[%s1 + $0xc0] sm:$0xff]
  %v44 = vld [vmem:[%s1 + $0xc8] sm:$0xff]
  %v45 = vld [vmem:[%s1 + $0xd0] sm:$0xff]
  %v46 = vld [vmem:[%s1 + $0xd8] sm:$0xff]
  %v47 = vld [vmem:[%s1 + $0xe0] sm:$0xff]
  %v48 = vld [vmem:[%s1 + $0xe8] sm:$0xff]
  %v49 = vld [vmem:[%s1 + $0xf0] sm:$0xff]
  %v50 = vld [vmem:[%s1 + $0xf8] sm:$0xff]
  %v53 = vunpack.c.l.b16 %v17
  %v54 = vunpack.c.h.b16 %v17
  %v55 = vunpack.c.l.b16 %v18
  %v56 = vunpack.c.h.b16 %v18
  %v57 = vpack.c.b16 %v55, %v53
  %v58 = vpack.c.b16 %v56, %v54
  %v93 = vunpack.c.l.b16 %v19
  %v94 = vunpack.c.h.b16 %v19
  %v95 = vunpack.c.l.b16 %v20
  %v96 = vunpack.c.h.b16 %v20
  %v97 = vunpack.c.l.b16 %v21
  %v98 = vunpack.c.h.b16 %v21
  %v99 = vunpack.c.l.b16 %v22
  %v100 = vunpack.c.h.b16 %v22
  %v101 = vunpack.c.l.b16 %v23
  %v102 = vunpack.c.h.b16 %v23
  %v103 = vunpack.c.l.b16 %v24
  %v104 = vunpack.c.h.b16 %v24
  %v105 = vunpack.c.l.b16 %v25
  %v106 = vunpack.c.h.b16 %v25
  %v107 = vunpack.c.l.b16 %v26
  %v108 = vunpack.c.h.b16 %v26
  %v109 = vunpack.c.l.b16 %v27
  %v110 = vunpack.c.h.b16 %v27
  %v111 = vunpack.c.l.b16 %v28
  %v112 = vunpack.c.h.b16 %v28
  %v113 = vunpack.c.l.b16 %v29
  %v114 = vunpack.c.h.b16 %v29
  %v115 = vunpack.c.l.b16 %v30
  %v116 = vunpack.c.h.b16 %v30
  %v117 = vunpack.c.l.b16 %v31
  %v118 = vunpack.c.h.b16 %v31
  %v119 = vunpack.c.l.b16 %v32
  %v120 = vunpack.c.h.b16 %v32
  %v121 = vunpack.c.l.b16 %v33
  %v122 = vunpack.c.h.b16 %v33
  %v123 = vunpack.c.l.b16 %v34
  %v124 = vunpack.c.h.b16 %v34
  %v125 = vunpack.c.l.b16 %v35
  %v126 = vunpack.c.h.b16 %v35
  %v127 = vunpack.c.l.b16 %v36
  %v128 = vunpack.c.h.b16 %v36
  %v129 = vunpack.c.l.b16 %v37
  %v130 = vunpack.c.h.b16 %v37
  %v131 = vunpack.c.l.b16 %v38
  %v132 = vunpack.c.h.b16 %v38
  %v133 = vunpack.c.l.b16 %v39
  %v134 = vunpack.c.h.b16 %v39
  %v135 = vunpack.c.l.b16 %v40
  %v136 = vunpack.c.h.b16 %v40
  %v137 = vunpack.c.l.b16 %v41
  %v138 = vunpack.c.h.b16 %v41
  %v139 = vunpack.c.l.b16 %v42
  %v140 = vunpack.c.h.b16 %v42
  %v141 = vunpack.c.l.b16 %v43
  %v142 = vunpack.c.h.b16 %v43
  %v143 = vunpack.c.l.b16 %v44
  %v144 = vunpack.c.h.b16 %v44
  %v145 = vunpack.c.l.b16 %v45
  %v146 = vunpack.c.h.b16 %v45
  %v147 = vunpack.c.l.b16 %v46
  %v148 = vunpack.c.h.b16 %v46
  %v149 = vunpack.c.l.b16 %v47
  %v150 = vunpack.c.h.b16 %v47
  %v151 = vunpack.c.l.b16 %v48
  %v152 = vunpack.c.h.b16 %v48
  %v153 = vunpack.c.l.b16 %v49
  %v154 = vunpack.c.h.b16 %v49
  %v155 = vunpack.c.l.b16 %v50
  %v156 = vunpack.c.h.b16 %v50
  %v157 = vpack.c.b16 %v95, %v93
  %v158 = vpack.c.b16 %v96, %v94
  %v159 = vpack.c.b16 %v99, %v97
  %v160 = vpack.c.b16 %v100, %v98
  %v161 = vpack.c.b16 %v103, %v101
  %v162 = vpack.c.b16 %v104, %v102
  %v163 = vpack.c.b16 %v107, %v105
  %v164 = vpack.c.b16 %v108, %v106
  %v165 = vpack.c.b16 %v111, %v109
  %v166 = vpack.c.b16 %v112, %v110
  %v167 = vpack.c.b16 %v115, %v113
  %v168 = vpack.c.b16 %v116, %v114
  %v169 = vpack.c.b16 %v119, %v117
  %v170 = vpack.c.b16 %v120, %v118
  %v171 = vpack.c.b16 %v123, %v121
  %v172 = vpack.c.b16 %v124, %v122
  %v173 = vpack.c.b16 %v127, %v125
  %v174 = vpack.c.b16 %v128, %v126
  %v175 = vpack.c.b16 %v131, %v129
  %v176 = vpack.c.b16 %v132, %v130
  %v177 = vpack.c.b16 %v135, %v133
  %v178 = vpack.c.b16 %v136, %v134
  %v179 = vpack.c.b16 %v139, %v137
  %v180 = vpack.c.b16 %v140, %v138
  %v181 = vpack.c.b16 %v143, %v141
  %v182 = vpack.c.b16 %v144, %v142
  %v183 = vpack.c.b16 %v147, %v145
  %v184 = vpack.c.b16 %v148, %v146
  %v185 = vpack.c.b16 %v151, %v149
  %v186 = vpack.c.b16 %v152, %v150
  %v187 = vpack.c.b16 %v155, %v153
  %v188 = vpack.c.b16 %v156, %v154
  %221 = vmatprep.subr.bf16.mxu0 %v172
  %222 = vmatpush1.bf16.msra.mxu0 %v171
  %223 = vmatprep.subr.bf16.mxu0 %v170
  %224 = vmatpush1.bf16.msra.mxu0 %v169
  %225 = vmatprep.subr.bf16.mxu0 %v168
  %226 = vmatpush1.bf16.msra.mxu0 %v167
  %227 = vmatprep.subr.bf16.mxu0 %v166
  %228 = vmatpush1.bf16.msra.mxu0 %v165
  %229 = vmatprep.subr.bf16.mxu0 %v164
  %230 = vmatpush1.bf16.msra.mxu0 %v163
  %231 = vmatprep.subr.bf16.mxu0 %v162
  %232 = vmatpush1.bf16.msra.mxu0 %v161
  %233 = vmatprep.subr.bf16.mxu0 %v160
  %234 = vmatpush1.bf16.msra.mxu0 %v159
  %235 = vmatprep.subr.bf16.mxu0 %v158
  %236 = vmatpush1.bf16.msra.mxu0 %v157
  %237 = vmatprep.subr.bf16.mxu0 %v188
  %238 = vmatpush2.bf16.msra.mxu0 %v187
  %239 = vmatprep.subr.bf16.mxu0 %v186
  %240 = vmatpush2.bf16.msra.mxu0 %v185
  %241 = vmatprep.subr.bf16.mxu0 %v184
  %242 = vmatpush2.bf16.msra.mxu0 %v183
  %243 = vmatprep.subr.bf16.mxu0 %v182
  %244 = vmatpush2.bf16.msra.mxu0 %v181
  %245 = vmatprep.subr.bf16.mxu0 %v180
  %246 = vmatpush2.bf16.msra.mxu0 %v179
  %247 = vmatprep.subr.bf16.mxu0 %v178
  %248 = vmatpush2.bf16.msra.mxu0 %v177
  %249 = vmatprep.subr.bf16.mxu0 %v176
  %250 = vmatpush2.bf16.msra.mxu0 %v175
  %251 = vmatprep.subr.bf16.mxu0 %v174
  %252 = vmatpush2.bf16.msra.mxu0 %v173
  %253 = vmatprep.mubr.bf16.mxu0 %v58
  %254 = vmatmul.mubr.bf16.gmra.mxu0 %v57
  %v255 = vpop.f32.mrf.mxu0
  %v256 = vadd.f32 0.0, %v255
  %v257 = vpop.f32.mrf.mxu0
  %v258 = vadd.f32 0.0, %v257
  %v259 = vpop.f32.mrf.mxu0
  %v260 = vadd.f32 0.0, %v259
  %v261 = vpop.f32.mrf.mxu0
  %v262 = vadd.f32 0.0, %v261
  %263 = vdwg.mxu0
  %v264 = vld [vmem:[%s2] sm:$0x3]
  %v266 = vlaneseq
  %v267 = vshrl.u32 %v266, 7
  %v268 = vsub.s32 0, %v267
  %v269 = vrot.slane %v264, %v268
  %v270 = vlaneseq
  %v271 = vshrl.u32 %v270, 7
  %v272 = vsub.s32 1, %v271
  %v273 = vrot.slane %v264, %v272
  %v276 = vmul.f32 %v256, %v269
  %v277 = vmul.f32 %v258, %v273
  %v278 = vmul.f32 %v260, %v269
  %v279 = vmul.f32 %v262, %v273
  %v280 = vld [vmem:[%s3] sm:$0x3]
  %v282 = vlaneseq
  %v283 = vshrl.u32 %v282, 7
  %v284 = vsub.s32 0, %v283
  %v285 = vrot.slane %v280, %v284
  %v286 = vlaneseq
  %v287 = vshrl.u32 %v286, 7
  %v288 = vsub.s32 1, %v287
  %v289 = vrot.slane %v280, %v288
  %v292 = vadd.f32 %v276, %v285
  %v293 = vadd.f32 %v277, %v289
  %v294 = vadd.f32 %v278, %v285
  %v295 = vadd.f32 %v279, %v289
  %v296 = vpack.c.bf16 %v294, %v292
  %v297 = vpack.c.bf16 %v295, %v293
  %v300 = vunpack.c.l.b16 %v296
  %v301 = vunpack.c.l.b16 %v297
  %v302 = vunpack.c.h.b16 %v296
  %v303 = vunpack.c.h.b16 %v297
  %v304 = vpack.c.b16 %v301, %v300
  %v305 = vpack.c.b16 %v303, %v302
  %308 = vst [vmem:[%s4] sm:$0xff] %v304
  %309 = vst [vmem:[%s4 + $0x8] sm:$0xff] %v305
  // Predicated region
  $region18: #{_lambda_.80} parent=0 // pred_check
    _
  $region19: #{_lambda_.80} parent=0 // pred_check_branch
    %311 = sbr.rel (0) target = $region21
  $region20: #{_lambda_.80} parent=0 // pred_region
    _
  $region21: #{_lambda_.80} parent=0 // pred_fallthru
    _
  // Predicated region
  $region22: #{_lambda_.80} parent=0 // pred_check
    _
  $region23: #{_lambda_.80} parent=0 // pred_check_branch
    %313 = sbr.rel (0) target = $region25
  $region24: #{_lambda_.80} parent=0 // pred_region
    _
  $region25: #{_lambda_.80} parent=0 // pred_fallthru
    _

// kernel: _lambda_.82
$region0: #{_lambda_.82}
  #allocation0 [shape = 'u32[]', space=smem, size = 0x4, offset = 0x4, fixed_abs, tag = 'smem constant byte address 0x4 - core index']
  #allocation1 [shape = 'u32[144,128]{1,0:T(1,128)}', space=vmem, size = 0x12000, scoped, tag = 'internal scratch']
  %s0 = inlined_call_operand.vmem [shape: bf16[16,256], index: 0, kind: input, shape index: {}]
  %s1 = inlined_call_operand.vmem [shape: bf16[256,256], index: 1, kind: input, shape index: {}]
  %s2 = inlined_call_operand.vmem [shape: f32[1,256], index: 2, kind: input, shape index: {}]
  %s3 = inlined_call_operand.vmem [shape: f32[1,256], index: 3, kind: input, shape index: {}]
  %s4 = inlined_call_operand.vmem [shape: bf16[16,256], index: 4, kind: input, shape index: {}]
  %s5 = inlined_call_operand.vmem [shape: bf16[16,256], index: 5, kind: output, shape index: {}]
  %s6 = sld [smem:[#allocation0]]
  $region30: #{_lambda_.82} parent=0
    _
  %s8 = ssub.s32 1, %s6
  %s9 = scalar_select 0, %s8, %s6
  // Predicated region
  $region2: #{_lambda_.82} parent=0 // pred_check
    _
  $region3: #{_lambda_.82} parent=0 // pred_check_branch
    %11 = sbr.rel (0) target = $region5
  $region4: #{_lambda_.82} parent=0 // pred_region
    _
  $region5: #{_lambda_.82} parent=0 // pred_fallthru
    _
  // Predicated region
  $region6: #{_lambda_.82} parent=0 // pred_check
    _
  $region7: #{_lambda_.82} parent=0 // pred_check_branch
    %13 = sbr.rel (0) target = $region9
  $region8: #{_lambda_.82} parent=0 // pred_region
    _
  $region9: #{_lambda_.82} parent=0 // pred_fallthru
    _
  // Predicated region
  $region10: #{_lambda_.82} parent=0 // pred_check
    _
  $region11: #{_lambda_.82} parent=0 // pred_check_branch
    %15 = sbr.rel (0) target = $region13
  $region12: #{_lambda_.82} parent=0 // pred_region
    _
  $region13: #{_lambda_.82} parent=0 // pred_fallthru
    _
  // Predicated region
  $region14: #{_lambda_.82} parent=0 // pred_check
    _
  $region15: #{_lambda_.82} parent=0 // pred_check_branch
    %17 = sbr.rel (0) target = $region17
  $region16: #{_lambda_.82} parent=0 // pred_region
    _
  $region17: #{_lambda_.82} parent=0 // pred_fallthru
    _
  // Predicated region
  $region18: #{_lambda_.82} parent=0 // pred_check
    _
  $region19: #{_lambda_.82} parent=0 // pred_check_branch
    %19 = sbr.rel (0) target = $region21
  $region20: #{_lambda_.82} parent=0 // pred_region
    _
  $region21: #{_lambda_.82} parent=0 // pred_fallthru
    _
  %v20 = vld [vmem:[%s0] sm:$0xff]
  %v21 = vld [vmem:[%s0 + $0x8] sm:$0xff]
  %v22 = vld [vmem:[%s1] sm:$0xff]
  %v23 = vld [vmem:[%s1 + $0x8] sm:$0xff]
  %v24 = vld [vmem:[%s1 + $0x10] sm:$0xff]
  %v25 = vld [vmem:[%s1 + $0x18] sm:$0xff]
  %v26 = vld [vmem:[%s1 + $0x20] sm:$0xff]
  %v27 = vld [vmem:[%s1 + $0x28] sm:$0xff]
  %v28 = vld [vmem:[%s1 + $0x30] sm:$0xff]
  %v29 = vld [vmem:[%s1 + $0x38] sm:$0xff]
  %v30 = vld [vmem:[%s1 + $0x40] sm:$0xff]
  %v31 = vld [vmem:[%s1 + $0x48] sm:$0xff]
  %v32 = vld [vmem:[%s1 + $0x50] sm:$0xff]
  %v33 = vld [vmem:[%s1 + $0x58] sm:$0xff]
  %v34 = vld [vmem:[%s1 + $0x60] sm:$0xff]
  %v35 = vld [vmem:[%s1 + $0x68] sm:$0xff]
  %v36 = vld [vmem:[%s1 + $0x70] sm:$0xff]
  %v37 = vld [vmem:[%s1 + $0x78] sm:$0xff]
  %v38 = vld [vmem:[%s1 + $0x80] sm:$0xff]
  %v39 = vld [vmem:[%s1 + $0x88] sm:$0xff]
  %v40 = vld [vmem:[%s1 + $0x90] sm:$0xff]
  %v41 = vld [vmem:[%s1 + $0x98] sm:$0xff]
  %v42 = vld [vmem:[%s1 + $0xa0] sm:$0xff]
  %v43 = vld [vmem:[%s1 + $0xa8] sm:$0xff]
  %v44 = vld [vmem:[%s1 + $0xb0] sm:$0xff]
  %v45 = vld [vmem:[%s1 + $0xb8] sm:$0xff]
  %v46 = vld [vmem:[%s1 + $0xc0] sm:$0xff]
  %v47 = vld [vmem:[%s1 + $0xc8] sm:$0xff]
  %v48 = vld [vmem:[%s1 + $0xd0] sm:$0xff]
  %v49 = vld [vmem:[%s1 + $0xd8] sm:$0xff]
  %v50 = vld [vmem:[%s1 + $0xe0] sm:$0xff]
  %v51 = vld [vmem:[%s1 + $0xe8] sm:$0xff]
  %v52 = vld [vmem:[%s1 + $0xf0] sm:$0xff]
  %v53 = vld [vmem:[%s1 + $0xf8] sm:$0xff]
  %v56 = vunpack.c.l.b16 %v20
  %v57 = vunpack.c.h.b16 %v20
  %v58 = vunpack.c.l.b16 %v21
  %v59 = vunpack.c.h.b16 %v21
  %v60 = vpack.c.b16 %v58, %v56
  %v61 = vpack.c.b16 %v59, %v57
  %v96 = vunpack.c.l.b16 %v22
  %v97 = vunpack.c.h.b16 %v22
  %v98 = vunpack.c.l.b16 %v23
  %v99 = vunpack.c.h.b16 %v23
  %v100 = vunpack.c.l.b16 %v24
  %v101 = vunpack.c.h.b16 %v24
  %v102 = vunpack.c.l.b16 %v25
  %v103 = vunpack.c.h.b16 %v25
  %v104 = vunpack.c.l.b16 %v26
  %v105 = vunpack.c.h.b16 %v26
  %v106 = vunpack.c.l.b16 %v27
  %v107 = vunpack.c.h.b16 %v27
  %v108 = vunpack.c.l.b16 %v28
  %v109 = vunpack.c.h.b16 %v28
  %v110 = vunpack.c.l.b16 %v29
  %v111 = vunpack.c.h.b16 %v29
  %v112 = vunpack.c.l.b16 %v30
  %v113 = vunpack.c.h.b16 %v30
  %v114 = vunpack.c.l.b16 %v31
  %v115 = vunpack.c.h.b16 %v31
  %v116 = vunpack.c.l.b16 %v32
  %v117 = vunpack.c.h.b16 %v32
  %v118 = vunpack.c.l.b16 %v33
  %v119 = vunpack.c.h.b16 %v33
  %v120 = vunpack.c.l.b16 %v34
  %v121 = vunpack.c.h.b16 %v34
  %v122 = vunpack.c.l.b16 %v35
  %v123 = vunpack.c.h.b16 %v35
  %v124 = vunpack.c.l.b16 %v36
  %v125 = vunpack.c.h.b16 %v36
  %v126 = vunpack.c.l.b16 %v37
  %v127 = vunpack.c.h.b16 %v37
  %v128 = vunpack.c.l.b16 %v38
  %v129 = vunpack.c.h.b16 %v38
  %v130 = vunpack.c.l.b16 %v39
  %v131 = vunpack.c.h.b16 %v39
  %v132 = vunpack.c.l.b16 %v40
  %v133 = vunpack.c.h.b16 %v40
  %v134 = vunpack.c.l.b16 %v41
  %v135 = vunpack.c.h.b16 %v41
  %v136 = vunpack.c.l.b16 %v42
  %v137 = vunpack.c.h.b16 %v42
  %v138 = vunpack.c.l.b16 %v43
  %v139 = vunpack.c.h.b16 %v43
  %v140 = vunpack.c.l.b16 %v44
  %v141 = vunpack.c.h.b16 %v44
  %v142 = vunpack.c.l.b16 %v45
  %v143 = vunpack.c.h.b16 %v45
  %v144 = vunpack.c.l.b16 %v46
  %v145 = vunpack.c.h.b16 %v46
  %v146 = vunpack.c.l.b16 %v47
  %v147 = vunpack.c.h.b16 %v47
  %v148 = vunpack.c.l.b16 %v48
  %v149 = vunpack.c.h.b16 %v48
  %v150 = vunpack.c.l.b16 %v49
  %v151 = vunpack.c.h.b16 %v49
  %v152 = vunpack.c.l.b16 %v50
  %v153 = vunpack.c.h.b16 %v50
  %v154 = vunpack.c.l.b16 %v51
  %v155 = vunpack.c.h.b16 %v51
  %v156 = vunpack.c.l.b16 %v52
  %v157 = vunpack.c.h.b16 %v52
  %v158 = vunpack.c.l.b16 %v53
  %v159 = vunpack.c.h.b16 %v53
  %v160 = vpack.c.b16 %v98, %v96
  %v161 = vpack.c.b16 %v99, %v97
  %v162 = vpack.c.b16 %v102, %v100
  %v163 = vpack.c.b16 %v103, %v101
  %v164 = vpack.c.b16 %v106, %v104
  %v165 = vpack.c.b16 %v107, %v105
  %v166 = vpack.c.b16 %v110, %v108
  %v167 = vpack.c.b16 %v111, %v109
  %v168 = vpack.c.b16 %v114, %v112
  %v169 = vpack.c.b16 %v115, %v113
  %v170 = vpack.c.b16 %v118, %v116
  %v171 = vpack.c.b16 %v119, %v117
  %v172 = vpack.c.b16 %v122, %v120
  %v173 = vpack.c.b16 %v123, %v121
  %v174 = vpack.c.b16 %v126, %v124
  %v175 = vpack.c.b16 %v127, %v125
  %v176 = vpack.c.b16 %v130, %v128
  %v177 = vpack.c.b16 %v131, %v129
  %v178 = vpack.c.b16 %v134, %v132
  %v179 = vpack.c.b16 %v135, %v133
  %v180 = vpack.c.b16 %v138, %v136
  %v181 = vpack.c.b16 %v139, %v137
  %v182 = vpack.c.b16 %v142, %v140
  %v183 = vpack.c.b16 %v143, %v141
  %v184 = vpack.c.b16 %v146, %v144
  %v185 = vpack.c.b16 %v147, %v145
  %v186 = vpack.c.b16 %v150, %v148
  %v187 = vpack.c.b16 %v151, %v149
  %v188 = vpack.c.b16 %v154, %v152
  %v189 = vpack.c.b16 %v155, %v153
  %v190 = vpack.c.b16 %v158, %v156
  %v191 = vpack.c.b16 %v159, %v157
  %224 = vmatprep.subr.bf16.mxu0 %v175
  %225 = vmatpush1.bf16.msra.mxu0 %v174
  %226 = vmatprep.subr.bf16.mxu0 %v173
  %227 = vmatpush1.bf16.msra.mxu0 %v172
  %228 = vmatprep.subr.bf16.mxu0 %v171
  %229 = vmatpush1.bf16.msra.mxu0 %v170
  %230 = vmatprep.subr.bf16.mxu0 %v169
  %231 = vmatpush1.bf16.msra.mxu0 %v168
  %232 = vmatprep.subr.bf16.mxu0 %v167
  %233 = vmatpush1.bf16.msra.mxu0 %v166
  %234 = vmatprep.subr.bf16.mxu0 %v165
  %235 = vmatpush1.bf16.msra.mxu0 %v164
  %236 = vmatprep.subr.bf16.mxu0 %v163
  %237 = vmatpush1.bf16.msra.mxu0 %v162
  %238 = vmatprep.subr.bf16.mxu0 %v161
  %239 = vmatpush1.bf16.msra.mxu0 %v160
  %240 = vmatprep.subr.bf16.mxu0 %v191
  %241 = vmatpush2.bf16.msra.mxu0 %v190
  %242 = vmatprep.subr.bf16.mxu0 %v189
  %243 = vmatpush2.bf16.msra.mxu0 %v188
  %244 = vmatprep.subr.bf16.mxu0 %v187
  %245 = vmatpush2.bf16.msra.mxu0 %v186
  %246 = vmatprep.subr.bf16.mxu0 %v185
  %247 = vmatpush2.bf16.msra.mxu0 %v184
  %248 = vmatprep.subr.bf16.mxu0 %v183
  %249 = vmatpush2.bf16.msra.mxu0 %v182
  %250 = vmatprep.subr.bf16.mxu0 %v181
  %251 = vmatpush2.bf16.msra.mxu0 %v180
  %252 = vmatprep.subr.bf16.mxu0 %v179
  %253 = vmatpush2.bf16.msra.mxu0 %v178
  %254 = vmatprep.subr.bf16.mxu0 %v177
  %255 = vmatpush2.bf16.msra.mxu0 %v176
  %256 = vmatprep.mubr.bf16.mxu0 %v61
  %257 = vmatmul.mubr.bf16.gmra.mxu0 %v60
  %v258 = vpop.f32.mrf.mxu0
  %v259 = vadd.f32 0.0, %v258
  %v260 = vpop.f32.mrf.mxu0
  %v261 = vadd.f32 0.0, %v260
  %v262 = vpop.f32.mrf.mxu0
  %v263 = vadd.f32 0.0, %v262
  %v264 = vpop.f32.mrf.mxu0
  %v265 = vadd.f32 0.0, %v264
  %266 = vdwg.mxu0
  %v267 = vld [vmem:[%s2] sm:$0x3]
  %v269 = vlaneseq
  %v270 = vshrl.u32 %v269, 7
  %v271 = vsub.s32 0, %v270
  %v272 = vrot.slane %v267, %v271
  %v273 = vlaneseq
  %v274 = vshrl.u32 %v273, 7
  %v275 = vsub.s32 1, %v274
  %v276 = vrot.slane %v267, %v275
  %v279 = vmul.f32 %v259, %v272
  %v280 = vmul.f32 %v261, %v276
  %v281 = vmul.f32 %v263, %v272
  %v282 = vmul.f32 %v265, %v276
  %v283 = vld [vmem:[%s3] sm:$0x3]
  %v285 = vlaneseq
  %v286 = vshrl.u32 %v285, 7
  %v287 = vsub.s32 0, %v286
  %v288 = vrot.slane %v283, %v287
  %v289 = vlaneseq
  %v290 = vshrl.u32 %v289, 7
  %v291 = vsub.s32 1, %v290
  %v292 = vrot.slane %v283, %v291
  %v295 = vadd.f32 %v279, %v288
  %v296 = vadd.f32 %v280, %v292
  %v297 = vadd.f32 %v281, %v288
  %v298 = vadd.f32 %v282, %v292
  %v299 = vld [vmem:[%s4] sm:$0xff]
  %v300 = vld [vmem:[%s4 + $0x8] sm:$0xff]
  %v301 = vunpack.c.l.bf16 %v299
  %v302 = vunpack.c.h.bf16 %v299
  %v303 = vunpack.c.l.bf16 %v300
  %v304 = vunpack.c.h.bf16 %v300
  %v305 = vadd.f32 %v295, %v301
  %v306 = vadd.f32 %v296, %v302
  %v307 = vadd.f32 %v297, %v303
  %v308 = vadd.f32 %v298, %v304
  %v309 = vmax.f32 %v305, 0.0
  %v310 = vmax.f32 %v306, 0.0
  %v311 = vmax.f32 %v307, 0.0
  %v312 = vmax.f32 %v308, 0.0
  %v313 = vpack.c.bf16 %v311, %v309
  %v314 = vpack.c.bf16 %v312, %v310
  %v317 = vunpack.c.l.b16 %v313
  %v318 = vunpack.c.l.b16 %v314
  %v319 = vunpack.c.h.b16 %v313
  %v320 = vunpack.c.h.b16 %v314
  %v321 = vpack.c.b16 %v318, %v317
  %v322 = vpack.c.b16 %v320, %v319
  %325 = vst [vmem:[%s5] sm:$0xff] %v321
  %326 = vst [vmem:[%s5 + $0x8] sm:$0xff] %v322
  // Predicated region
  $region22: #{_lambda_.82} parent=0 // pred_check
    _
  $region23: #{_lambda_.82} parent=0 // pred_check_branch
    %328 = sbr.rel (0) target = $region25
  $region24: #{_lambda_.82} parent=0 // pred_region
    _
  $region25: #{_lambda_.82} parent=0 // pred_fallthru
    _
  // Predicated region
  $region26: #{_lambda_.82} parent=0 // pred_check
    _
  $region27: #{_lambda_.82} parent=0 // pred_check_branch
    %330 = sbr.rel (0) target = $region29
  $region28: #{_lambda_.82} parent=0 // pred_region
    _
  $region29: #{_lambda_.82} parent=0 // pred_fallthru
    _

// kernel: _lambda_.81
$region0: #{_lambda_.81}
  #allocation0 [shape = 'u32[]', space=smem, size = 0x4, offset = 0x4, fixed_abs, tag = 'smem constant byte address 0x4 - core index']
  #allocation1 [shape = 'u32[144,128]{1,0:T(1,128)}', space=vmem, size = 0x12000, scoped, tag = 'internal scratch']
  %s0 = inlined_call_operand.vmem [shape: bf16[16,768], index: 0, kind: input, shape index: {}]
  %s1 = inlined_call_operand.vmem [shape: bf16[768,256], index: 1, kind: input, shape index: {}]
  %s2 = inlined_call_operand.vmem [shape: f32[1,256], index: 2, kind: input, shape index: {}]
  %s3 = inlined_call_operand.vmem [shape: f32[1,256], index: 3, kind: input, shape index: {}]
  %s4 = inlined_call_operand.vmem [shape: bf16[16,256], index: 4, kind: output, shape index: {}]
  %s5 = sld [smem:[#allocation0]]
  $region26: #{_lambda_.81} parent=0
    _
  %s7 = ssub.s32 1, %s5
  %s8 = scalar_select 0, %s7, %s5
  // Predicated region
  $region2: #{_lambda_.81} parent=0 // pred_check
    _
  $region3: #{_lambda_.81} parent=0 // pred_check_branch
    %10 = sbr.rel (0) target = $region5
  $region4: #{_lambda_.81} parent=0 // pred_region
    _
  $region5: #{_lambda_.81} parent=0 // pred_fallthru
    _
  // Predicated region
  $region6: #{_lambda_.81} parent=0 // pred_check
    _
  $region7: #{_lambda_.81} parent=0 // pred_check_branch
    %12 = sbr.rel (0) target = $region9
  $region8: #{_lambda_.81} parent=0 // pred_region
    _
  $region9: #{_lambda_.81} parent=0 // pred_fallthru
    _
  // Predicated region
  $region10: #{_lambda_.81} parent=0 // pred_check
    _
  $region11: #{_lambda_.81} parent=0 // pred_check_branch
    %14 = sbr.rel (0) target = $region13
  $region12: #{_lambda_.81} parent=0 // pred_region
    _
  $region13: #{_lambda_.81} parent=0 // pred_fallthru
    _
  // Predicated region
  $region14: #{_lambda_.81} parent=0 // pred_check
    _
  $region15: #{_lambda_.81} parent=0 // pred_check_branch
    %16 = sbr.rel (0) target = $region17
  $region16: #{_lambda_.81} parent=0 // pred_region
    _
  $region17: #{_lambda_.81} parent=0 // pred_fallthru
    _
  %v17 = vld [vmem:[%s0] sm:$0xff]
  %v18 = vld [vmem:[%s0 + $0x8] sm:$0xff]
  %v19 = vld [vmem:[%s0 + $0x10] sm:$0xff]
  %v20 = vld [vmem:[%s0 + $0x18] sm:$0xff]
  %v21 = vld [vmem:[%s0 + $0x20] sm:$0xff]
  %v22 = vld [vmem:[%s0 + $0x28] sm:$0xff]
  %v23 = vld [vmem:[%s1] sm:$0xff]
  %v24 = vld [vmem:[%s1 + $0x8] sm:$0xff]
  %v25 = vld [vmem:[%s1 + $0x10] sm:$0xff]
  %v26 = vld [vmem:[%s1 + $0x18] sm:$0xff]
  %v27 = vld [vmem:[%s1 + $0x20] sm:$0xff]
  %v28 = vld [vmem:[%s1 + $0x28] sm:$0xff]
  %v29 = vld [vmem:[%s1 + $0x30] sm:$0xff]
  %v30 = vld [vmem:[%s1 + $0x38] sm:$0xff]
  %v31 = vld [vmem:[%s1 + $0x40] sm:$0xff]
  %v32 = vld [vmem:[%s1 + $0x48] sm:$0xff]
  %v33 = vld [vmem:[%s1 + $0x50] sm:$0xff]
  %v34 = vld [vmem:[%s1 + $0x58] sm:$0xff]
  %v35 = vld [vmem:[%s1 + $0x60] sm:$0xff]
  %v36 = vld [vmem:[%s1 + $0x68] sm:$0xff]
  %v37 = vld [vmem:[%s1 + $0x70] sm:$0xff]
  %v38 = vld [vmem:[%s1 + $0x78] sm:$0xff]
  %v39 = vld [vmem:[%s1 + $0x80] sm:$0xff]
  %v40 = vld [vmem:[%s1 + $0x88] sm:$0xff]
  %v41 = vld [vmem:[%s1 + $0x90] sm:$0xff]
  %v42 = vld [vmem:[%s1 + $0x98] sm:$0xff]
  %v43 = vld [vmem:[%s1 + $0xa0] sm:$0xff]
  %v44 = vld [vmem:[%s1 + $0xa8] sm:$0xff]
  %v45 = vld [vmem:[%s1 + $0xb0] sm:$0xff]
  %v46 = vld [vmem:[%s1 + $0xb8] sm:$0xff]
  %v47 = vld [vmem:[%s1 + $0xc0] sm:$0xff]
  %v48 = vld [vmem:[%s1 + $0xc8] sm:$0xff]
  %v49 = vld [vmem:[%s1 + $0xd0] sm:$0xff]
  %v50 = vld [vmem:[%s1 + $0xd8] sm:$0xff]
  %v51 = vld [vmem:[%s1 + $0xe0] sm:$0xff]
  %v52 = vld [vmem:[%s1 + $0xe8] sm:$0xff]
  %v53 = vld [vmem:[%s1 + $0xf0] sm:$0xff]
  %v54 = vld [vmem:[%s1 + $0xf8] sm:$0xff]
  %v55 = vld [vmem:[%s1 + $0x100] sm:$0xff]
  %v56 = vld [vmem:[%s1 + $0x108] sm:$0xff]
  %v57 = vld [vmem:[%s1 + $0x110] sm:$0xff]
  %v58 = vld [vmem:[%s1 + $0x118] sm:$0xff]
  %v59 = vld [vmem:[%s1 + $0x120] sm:$0xff]
  %v60 = vld [vmem:[%s1 + $0x128] sm:$0xff]
  %v61 = vld [vmem:[%s1 + $0x130] sm:$0xff]
  %v62 = vld [vmem:[%s1 + $0x138] sm:$0xff]
  %v63 = vld [vmem:[%s1 + $0x140] sm:$0xff]
  %v64 = vld [vmem:[%s1 + $0x148] sm:$0xff]
  %v65 = vld [vmem:[%s1 + $0x150] sm:$0xff]
  %v66 = vld [vmem:[%s1 + $0x158] sm:$0xff]
  %v67 = vld [vmem:[%s1 + $0x160] sm:$0xff]
  %v68 = vld [vmem:[%s1 + $0x168] sm:$0xff]
  %v69 = vld [vmem:[%s1 + $0x170] sm:$0xff]
  %v70 = vld [vmem:[%s1 + $0x178] sm:$0xff]
  %v71 = vld [vmem:[%s1 + $0x180] sm:$0xff]
  %v72 = vld [vmem:[%s1 + $0x188] sm:$0xff]
  %v73 = vld [vmem:[%s1 + $0x190] sm:$0xff]
  %v74 = vld [vmem:[%s1 + $0x198] sm:$0xff]
  %v75 = vld [vmem:[%s1 + $0x1a0] sm:$0xff]
  %v76 = vld [vmem:[%s1 + $0x1a8] sm:$0xff]
  %v77 = vld [vmem:[%s1 + $0x1b0] sm:$0xff]
  %v78 = vld [vmem:[%s1 + $0x1b8] sm:$0xff]
  %v79 = vld [vmem:[%s1 + $0x1c0] sm:$0xff]
  %v80 = vld [vmem:[%s1 + $0x1c8] sm:$0xff]
  %v81 = vld [vmem:[%s1 + $0x1d0] sm:$0xff]
  %v82 = vld [vmem:[%s1 + $0x1d8] sm:$0xff]
  %v83 = vld [vmem:[%s1 + $0x1e0] sm:$0xff]
  %v84 = vld [vmem:[%s1 + $0x1e8] sm:$0xff]
  %v85 = vld [vmem:[%s1 + $0x1f0] sm:$0xff]
  %v86 = vld [vmem:[%s1 + $0x1f8] sm:$0xff]
  %v87 = vld [vmem:[%s1 + $0x200] sm:$0xff]
  %v88 = vld [vmem:[%s1 + $0x208] sm:$0xff]
  %v89 = vld [vmem:[%s1 + $0x210] sm:$0xff]
  %v90 = vld [vmem:[%s1 + $0x218] sm:$0xff]
  %v91 = vld [vmem:[%s1 + $0x220] sm:$0xff]
  %v92 = vld [vmem:[%s1 + $0x228] sm:$0xff]
  %v93 = vld [vmem:[%s1 + $0x230] sm:$0xff]
  %v94 = vld [vmem:[%s1 + $0x238] sm:$0xff]
  %v95 = vld [vmem:[%s1 + $0x240] sm:$0xff]
  %v96 = vld [vmem:[%s1 + $0x248] sm:$0xff]
  %v97 = vld [vmem:[%s1 + $0x250] sm:$0xff]
  %v98 = vld [vmem:[%s1 + $0x258] sm:$0xff]
  %v99 = vld [vmem:[%s1 + $0x260] sm:$0xff]
  %v100 = vld [vmem:[%s1 + $0x268] sm:$0xff]
  %v101 = vld [vmem:[%s1 + $0x270] sm:$0xff]
  %v102 = vld [vmem:[%s1 + $0x278] sm:$0xff]
  %v103 = vld [vmem:[%s1 + $0x280] sm:$0xff]
  %v104 = vld [vmem:[%s1 + $0x288] sm:$0xff]
  %v105 = vld [vmem:[%s1 + $0x290] sm:$0xff]
  %v106 = vld [vmem:[%s1 + $0x298] sm:$0xff]
  %v107 = vld [vmem:[%s1 + $0x2a0] sm:$0xff]
  %v108 = vld [vmem:[%s1 + $0x2a8] sm:$0xff]
  %v109 = vld [vmem:[%s1 + $0x2b0] sm:$0xff]
  %v110 = vld [vmem:[%s1 + $0x2b8] sm:$0xff]
  %v111 = vld [vmem:[%s1 + $0x2c0] sm:$0xff]
  %v112 = vld [vmem:[%s1 + $0x2c8] sm:$0xff]
  %v113 = vld [vmem:[%s1 + $0x2d0] sm:$0xff]
  %v114 = vld [vmem:[%s1 + $0x2d8] sm:$0xff]
  %v115 = vld [vmem:[%s1 + $0x2e0] sm:$0xff]
  %v116 = vld [vmem:[%s1 + $0x2e8] sm:$0xff]
  %v117 = vld [vmem:[%s1 + $0x2f0] sm:$0xff]
  %v118 = vld [vmem:[%s1 + $0x2f8] sm:$0xff]
  %v125 = vunpack.c.l.b16 %v17
  %v126 = vunpack.c.h.b16 %v17
  %v127 = vunpack.c.l.b16 %v18
  %v128 = vunpack.c.h.b16 %v18
  %v129 = vunpack.c.l.b16 %v19
  %v130 = vunpack.c.h.b16 %v19
  %v131 = vunpack.c.l.b16 %v20
  %v132 = vunpack.c.h.b16 %v20
  %v133 = vunpack.c.l.b16 %v21
  %v134 = vunpack.c.h.b16 %v21
  %v135 = vunpack.c.l.b16 %v22
  %v136 = vunpack.c.h.b16 %v22
  %v137 = vpack.c.b16 %v131, %v125
  %v138 = vpack.c.b16 %v132, %v126
  %v139 = vpack.c.b16 %v133, %v127
  %v140 = vpack.c.b16 %v134, %v128
  %v141 = vpack.c.b16 %v135, %v129
  %v142 = vpack.c.b16 %v136, %v130
  %v245 = vunpack.c.l.b16 %v23
  %v246 = vunpack.c.h.b16 %v23
  %v247 = vunpack.c.l.b16 %v24
  %v248 = vunpack.c.h.b16 %v24
  %v249 = vunpack.c.l.b16 %v25
  %v250 = vunpack.c.h.b16 %v25
  %v251 = vunpack.c.l.b16 %v26
  %v252 = vunpack.c.h.b16 %v26
  %v253 = vunpack.c.l.b16 %v27
  %v254 = vunpack.c.h.b16 %v27
  %v255 = vunpack.c.l.b16 %v28
  %v256 = vunpack.c.h.b16 %v28
  %v257 = vunpack.c.l.b16 %v29
  %v258 = vunpack.c.h.b16 %v29
  %v259 = vunpack.c.l.b16 %v30
  %v260 = vunpack.c.h.b16 %v30
  %v261 = vunpack.c.l.b16 %v31
  %v262 = vunpack.c.h.b16 %v31
  %v263 = vunpack.c.l.b16 %v32
  %v264 = vunpack.c.h.b16 %v32
  %v265 = vunpack.c.l.b16 %v33
  %v266 = vunpack.c.h.b16 %v33
  %v267 = vunpack.c.l.b16 %v34
  %v268 = vunpack.c.h.b16 %v34
  %v269 = vunpack.c.l.b16 %v35
  %v270 = vunpack.c.h.b16 %v35
  %v271 = vunpack.c.l.b16 %v36
  %v272 = vunpack.c.h.b16 %v36
  %v273 = vunpack.c.l.b16 %v37
  %v274 = vunpack.c.h.b16 %v37
  %v275 = vunpack.c.l.b16 %v38
  %v276 = vunpack.c.h.b16 %v38
  %v277 = vunpack.c.l.b16 %v39
  %v278 = vunpack.c.h.b16 %v39
  %v279 = vunpack.c.l.b16 %v40
  %v280 = vunpack.c.h.b16 %v40
  %v281 = vunpack.c.l.b16 %v41
  %v282 = vunpack.c.h.b16 %v41
  %v283 = vunpack.c.l.b16 %v42
  %v284 = vunpack.c.h.b16 %v42
  %v285 = vunpack.c.l.b16 %v43
  %v286 = vunpack.c.h.b16 %v43
  %v287 = vunpack.c.l.b16 %v44
  %v288 = vunpack.c.h.b16 %v44
  %v289 = vunpack.c.l.b16 %v45
  %v290 = vunpack.c.h.b16 %v45
  %v291 = vunpack.c.l.b16 %v46
  %v292 = vunpack.c.h.b16 %v46
  %v293 = vunpack.c.l.b16 %v47
  %v294 = vunpack.c.h.b16 %v47
  %v295 = vunpack.c.l.b16 %v48
  %v296 = vunpack.c.h.b16 %v48
  %v297 = vunpack.c.l.b16 %v49
  %v298 = vunpack.c.h.b16 %v49
  %v299 = vunpack.c.l.b16 %v50
  %v300 = vunpack.c.h.b16 %v50
  %v301 = vunpack.c.l.b16 %v51
  %v302 = vunpack.c.h.b16 %v51
  %v303 = vunpack.c.l.b16 %v52
  %v304 = vunpack.c.h.b16 %v52
  %v305 = vunpack.c.l.b16 %v53
  %v306 = vunpack.c.h.b16 %v53
  %v307 = vunpack.c.l.b16 %v54
  %v308 = vunpack.c.h.b16 %v54
  %v309 = vunpack.c.l.b16 %v55
  %v310 = vunpack.c.h.b16 %v55
  %v311 = vunpack.c.l.b16 %v56
  %v312 = vunpack.c.h.b16 %v56
  %v313 = vunpack.c.l.b16 %v57
  %v314 = vunpack.c.h.b16 %v57
  %v315 = vunpack.c.l.b16 %v58
  %v316 = vunpack.c.h.b16 %v58
  %v317 = vunpack.c.l.b16 %v59
  %v318 = vunpack.c.h.b16 %v59
  %v319 = vunpack.c.l.b16 %v60
  %v320 = vunpack.c.h.b16 %v60
  %v321 = vunpack.c.l.b16 %v61
  %v322 = vunpack.c.h.b16 %v61
  %v323 = vunpack.c.l.b16 %v62
  %v324 = vunpack.c.h.b16 %v62
  %v325 = vunpack.c.l.b16 %v63
  %v326 = vunpack.c.h.b16 %v63
  %v327 = vunpack.c.l.b16 %v64
  %v328 = vunpack.c.h.b16 %v64
  %v329 = vunpack.c.l.b16 %v65
  %v330 = vunpack.c.h.b16 %v65
  %v331 = vunpack.c.l.b16 %v66
  %v332 = vunpack.c.h.b16 %v66
  %v333 = vunpack.c.l.b16 %v67
  %v334 = vunpack.c.h.b16 %v67
  %v335 = vunpack.c.l.b16 %v68
  %v336 = vunpack.c.h.b16 %v68
  %v337 = vunpack.c.l.b16 %v69
  %v338 = vunpack.c.h.b16 %v69
  %v339 = vunpack.c.l.b16 %v70
  %v340 = vunpack.c.h.b16 %v70
  %v341 = vunpack.c.l.b16 %v71
  %v342 = vunpack.c.h.b16 %v71
  %v343 = vunpack.c.l.b16 %v72
  %v344 = vunpack.c.h.b16 %v72
  %v345 = vunpack.c.l.b16 %v73
  %v346 = vunpack.c.h.b16 %v73
  %v347 = vunpack.c.l.b16 %v74
  %v348 = vunpack.c.h.b16 %v74
  %v349 = vunpack.c.l.b16 %v75
  %v350 = vunpack.c.h.b16 %v75
  %v351 = vunpack.c.l.b16 %v76
  %v352 = vunpack.c.h.b16 %v76
  %v353 = vunpack.c.l.b16 %v77
  %v354 = vunpack.c.h.b16 %v77
  %v355 = vunpack.c.l.b16 %v78
  %v356 = vunpack.c.h.b16 %v78
  %v357 = vunpack.c.l.b16 %v79
  %v358 = vunpack.c.h.b16 %v79
  %v359 = vunpack.c.l.b16 %v80
  %v360 = vunpack.c.h.b16 %v80
  %v361 = vunpack.c.l.b16 %v81
  %v362 = vunpack.c.h.b16 %v81
  %v363 = vunpack.c.l.b16 %v82
  %v364 = vunpack.c.h.b16 %v82
  %v365 = vunpack.c.l.b16 %v83
  %v366 = vunpack.c.h.b16 %v83
  %v367 = vunpack.c.l.b16 %v84
  %v368 = vunpack.c.h.b16 %v84
  %v369 = vunpack.c.l.b16 %v85
  %v370 = vunpack.c.h.b16 %v85
  %v371 = vunpack.c.l.b16 %v86
  %v372 = vunpack.c.h.b16 %v86
  %v373 = vunpack.c.l.b16 %v87
  %v374 = vunpack.c.h.b16 %v87
  %v375 = vunpack.c.l.b16 %v88
  %v376 = vunpack.c.h.b16 %v88
  %v377 = vunpack.c.l.b16 %v89
  %v378 = vunpack.c.h.b16 %v89
  %v379 = vunpack.c.l.b16 %v90
  %v380 = vunpack.c.h.b16 %v90
  %v381 = vunpack.c.l.b16 %v91
  %v382 = vunpack.c.h.b16 %v91
  %v383 = vunpack.c.l.b16 %v92
  %v384 = vunpack.c.h.b16 %v92
  %v385 = vunpack.c.l.b16 %v93
  %v386 = vunpack.c.h.b16 %v93
  %v387 = vunpack.c.l.b16 %v94
  %v388 = vunpack.c.h.b16 %v94
  %v389 = vunpack.c.l.b16 %v95
  %v390 = vunpack.c.h.b16 %v95
  %v391 = vunpack.c.l.b16 %v96
  %v392 = vunpack.c.h.b16 %v96
  %v393 = vunpack.c.l.b16 %v97
  %v394 = vunpack.c.h.b16 %v97
  %v395 = vunpack.c.l.b16 %v98
  %v396 = vunpack.c.h.b16 %v98
  %v397 = vunpack.c.l.b16 %v99
  %v398 = vunpack.c.h.b16 %v99
  %v399 = vunpack.c.l.b16 %v100
  %v400 = vunpack.c.h.b16 %v100
  %v401 = vunpack.c.l.b16 %v101
  %v402 = vunpack.c.h.b16 %v101
  %v403 = vunpack.c.l.b16 %v102
  %v404 = vunpack.c.h.b16 %v102
  %v405 = vunpack.c.l.b16 %v103
  %v406 = vunpack.c.h.b16 %v103
  %v407 = vunpack.c.l.b16 %v104
  %v408 = vunpack.c.h.b16 %v104
  %v409 = vunpack.c.l.b16 %v105
  %v410 = vunpack.c.h.b16 %v105
  %v411 = vunpack.c.l.b16 %v106
  %v412 = vunpack.c.h.b16 %v106
  %v413 = vunpack.c.l.b16 %v107
  %v414 = vunpack.c.h.b16 %v107
  %v415 = vunpack.c.l.b16 %v108
  %v416 = vunpack.c.h.b16 %v108
  %v417 = vunpack.c.l.b16 %v109
  %v418 = vunpack.c.h.b16 %v109
  %v419 = vunpack.c.l.b16 %v110
  %v420 = vunpack.c.h.b16 %v110
  %v421 = vunpack.c.l.b16 %v111
  %v422 = vunpack.c.h.b16 %v111
  %v423 = vunpack.c.l.b16 %v112
  %v424 = vunpack.c.h.b16 %v112
  %v425 = vunpack.c.l.b16 %v113
  %v426 = vunpack.c.h.b16 %v113
  %v427 = vunpack.c.l.b16 %v114
  %v428 = vunpack.c.h.b16 %v114
  %v429 = vunpack.c.l.b16 %v115
  %v430 = vunpack.c.h.b16 %v115
  %v431 = vunpack.c.l.b16 %v116
  %v432 = vunpack.c.h.b16 %v116
  %v433 = vunpack.c.l.b16 %v117
  %v434 = vunpack.c.h.b16 %v117
  %v435 = vunpack.c.l.b16 %v118
  %v436 = vunpack.c.h.b16 %v118
  %v437 = vpack.c.b16 %v247, %v245
  %v438 = vpack.c.b16 %v248, %v246
  %v439 = vpack.c.b16 %v251, %v249
  %v440 = vpack.c.b16 %v252, %v250
  %v441 = vpack.c.b16 %v255, %v253
  %v442 = vpack.c.b16 %v256, %v254
  %v443 = vpack.c.b16 %v259, %v257
  %v444 = vpack.c.b16 %v260, %v258
  %v445 = vpack.c.b16 %v263, %v261
  %v446 = vpack.c.b16 %v264, %v262
  %v447 = vpack.c.b16 %v267, %v265
  %v448 = vpack.c.b16 %v268, %v266
  %v449 = vpack.c.b16 %v271, %v269
  %v450 = vpack.c.b16 %v272, %v270
  %v451 = vpack.c.b16 %v275, %v273
  %v452 = vpack.c.b16 %v276, %v274
  %v453 = vpack.c.b16 %v279, %v277
  %v454 = vpack.c.b16 %v280, %v278
  %v455 = vpack.c.b16 %v283, %v281
  %v456 = vpack.c.b16 %v284, %v282
  %v457 = vpack.c.b16 %v287, %v285
  %v458 = vpack.c.b16 %v288, %v286
  %v459 = vpack.c.b16 %v291, %v289
  %v460 = vpack.c.b16 %v292, %v290
  %v461 = vpack.c.b16 %v295, %v293
  %v462 = vpack.c.b16 %v296, %v294
  %v463 = vpack.c.b16 %v299, %v297
  %v464 = vpack.c.b16 %v300, %v298
  %v465 = vpack.c.b16 %v303, %v301
  %v466 = vpack.c.b16 %v304, %v302
  %v467 = vpack.c.b16 %v307, %v305
  %v468 = vpack.c.b16 %v308, %v306
  %v469 = vpack.c.b16 %v311, %v309
  %v470 = vpack.c.b16 %v312, %v310
  %v471 = vpack.c.b16 %v315, %v313
  %v472 = vpack.c.b16 %v316, %v314
  %v473 = vpack.c.b16 %v319, %v317
  %v474 = vpack.c.b16 %v320, %v318
  %v475 = vpack.c.b16 %v323, %v321
  %v476 = vpack.c.b16 %v324, %v322
  %v477 = vpack.c.b16 %v327, %v325
  %v478 = vpack.c.b16 %v328, %v326
  %v479 = vpack.c.b16 %v331, %v329
  %v480 = vpack.c.b16 %v332, %v330
  %v481 = vpack.c.b16 %v335, %v333
  %v482 = vpack.c.b16 %v336, %v334
  %v483 = vpack.c.b16 %v339, %v337
  %v484 = vpack.c.b16 %v340, %v338
  %v485 = vpack.c.b16 %v343, %v341
  %v486 = vpack.c.b16 %v344, %v342
  %v487 = vpack.c.b16 %v347, %v345
  %v488 = vpack.c.b16 %v348, %v346
  %v489 = vpack.c.b16 %v351, %v349
  %v490 = vpack.c.b16 %v352, %v350
  %v491 = vpack.c.b16 %v355, %v353
  %v492 = vpack.c.b16 %v356, %v354
  %v493 = vpack.c.b16 %v359, %v357
  %v494 = vpack.c.b16 %v360, %v358
  %v495 = vpack.c.b16 %v363, %v361
  %v496 = vpack.c.b16 %v364, %v362
  %v497 = vpack.c.b16 %v367, %v365
  %v498 = vpack.c.b16 %v368, %v366
  %v499 = vpack.c.b16 %v371, %v369
  %v500 = vpack.c.b16 %v372, %v370
  %v501 = vpack.c.b16 %v375, %v373
  %v502 = vpack.c.b16 %v376, %v374
  %v503 = vpack.c.b16 %v379, %v377
  %v504 = vpack.c.b16 %v380, %v378
  %v505 = vpack.c.b16 %v383, %v381
  %v506 = vpack.c.b16 %v384, %v382
  %v507 = vpack.c.b16 %v387, %v385
  %v508 = vpack.c.b16 %v388, %v386
  %v509 = vpack.c.b16 %v391, %v389
  %v510 = vpack.c.b16 %v392, %v390
  %v511 = vpack.c.b16 %v395, %v393
  %v512 = vpack.c.b16 %v396, %v394
  %v513 = vpack.c.b16 %v399, %v397
  %v514 = vpack.c.b16 %v400, %v398
  %v515 = vpack.c.b16 %v403, %v401
  %v516 = vpack.c.b16 %v404, %v402
  %v517 = vpack.c.b16 %v407, %v405
  %v518 = vpack.c.b16 %v408, %v406
  %v519 = vpack.c.b16 %v411, %v409
  %v520 = vpack.c.b16 %v412, %v410
  %v521 = vpack.c.b16 %v415, %v413
  %v522 = vpack.c.b16 %v416, %v414
  %v523 = vpack.c.b16 %v419, %v417
  %v524 = vpack.c.b16 %v420, %v418
  %v525 = vpack.c.b16 %v423, %v421
  %v526 = vpack.c.b16 %v424, %v422
  %v527 = vpack.c.b16 %v427, %v425
  %v528 = vpack.c.b16 %v428, %v426
  %v529 = vpack.c.b16 %v431, %v429
  %v530 = vpack.c.b16 %v432, %v430
  %v531 = vpack.c.b16 %v435, %v433
  %v532 = vpack.c.b16 %v436, %v434
  %629 = vmatprep.subr.bf16.mxu0 %v452
  %630 = vmatpush1.bf16.msra.mxu0 %v451
  %631 = vmatprep.subr.bf16.mxu0 %v450
  %632 = vmatpush1.bf16.msra.mxu0 %v449
  %633 = vmatprep.subr.bf16.mxu0 %v448
  %634 = vmatpush1.bf16.msra.mxu0 %v447
  %635 = vmatprep.subr.bf16.mxu0 %v446
  %636 = vmatpush1.bf16.msra.mxu0 %v445
  %637 = vmatprep.subr.bf16.mxu0 %v444
  %638 = vmatpush1.bf16.msra.mxu0 %v443
  %639 = vmatprep.subr.bf16.mxu0 %v442
  %640 = vmatpush1.bf16.msra.mxu0 %v441
  %641 = vmatprep.subr.bf16.mxu0 %v440
  %642 = vmatpush1.bf16.msra.mxu0 %v439
  %643 = vmatprep.subr.bf16.mxu0 %v438
  %644 = vmatpush1.bf16.msra.mxu0 %v437
  %645 = vmatprep.subr.bf16.mxu0 %v468
  %646 = vmatpush2.bf16.msra.mxu0 %v467
  %647 = vmatprep.subr.bf16.mxu0 %v466
  %648 = vmatpush2.bf16.msra.mxu0 %v465
  %649 = vmatprep.subr.bf16.mxu0 %v464
  %650 = vmatpush2.bf16.msra.mxu0 %v463
  %651 = vmatprep.subr.bf16.mxu0 %v462
  %652 = vmatpush2.bf16.msra.mxu0 %v461
  %653 = vmatprep.subr.bf16.mxu0 %v460
  %654 = vmatpush2.bf16.msra.mxu0 %v459
  %655 = vmatprep.subr.bf16.mxu0 %v458
  %656 = vmatpush2.bf16.msra.mxu0 %v457
  %657 = vmatprep.subr.bf16.mxu0 %v456
  %658 = vmatpush2.bf16.msra.mxu0 %v455
  %659 = vmatprep.subr.bf16.mxu0 %v454
  %660 = vmatpush2.bf16.msra.mxu0 %v453
  %661 = vmatprep.mubr.bf16.mxu0 %v138
  %662 = vmatmul.mubr.bf16.gmra.mxu0 %v137
  %v663 = vpop.f32.mrf.mxu0
  %v664 = vadd.f32 0.0, %v663
  %v665 = vpop.f32.mrf.mxu0
  %v666 = vadd.f32 0.0, %v665
  %v667 = vpop.f32.mrf.mxu0
  %v668 = vadd.f32 0.0, %v667
  %v669 = vpop.f32.mrf.mxu0
  %v670 = vadd.f32 0.0, %v669
  %671 = vdwg.mxu0
  %672 = vmatprep.subr.bf16.mxu0 %v484
  %673 = vmatpush1.bf16.msra.mxu0 %v483
  %674 = vmatprep.subr.bf16.mxu0 %v482
  %675 = vmatpush1.bf16.msra.mxu0 %v481
  %676 = vmatprep.subr.bf16.mxu0 %v480
  %677 = vmatpush1.bf16.msra.mxu0 %v479
  %678 = vmatprep.subr.bf16.mxu0 %v478
  %679 = vmatpush1.bf16.msra.mxu0 %v477
  %680 = vmatprep.subr.bf16.mxu0 %v476
  %681 = vmatpush1.bf16.msra.mxu0 %v475
  %682 = vmatprep.subr.bf16.mxu0 %v474
  %683 = vmatpush1.bf16.msra.mxu0 %v473
  %684 = vmatprep.subr.bf16.mxu0 %v472
  %685 = vmatpush1.bf16.msra.mxu0 %v471
  %686 = vmatprep.subr.bf16.mxu0 %v470
  %687 = vmatpush1.bf16.msra.mxu0 %v469
  %688 = vmatprep.subr.bf16.mxu0 %v500
  %689 = vmatpush2.bf16.msra.mxu0 %v499
  %690 = vmatprep.subr.bf16.mxu0 %v498
  %691 = vmatpush2.bf16.msra.mxu0 %v497
  %692 = vmatprep.subr.bf16.mxu0 %v496
  %693 = vmatpush2.bf16.msra.mxu0 %v495
  %694 = vmatprep.subr.bf16.mxu0 %v494
  %695 = vmatpush2.bf16.msra.mxu0 %v493
  %696 = vmatprep.subr.bf16.mxu0 %v492
  %697 = vmatpush2.bf16.msra.mxu0 %v491
  %698 = vmatprep.subr.bf16.mxu0 %v490
  %699 = vmatpush2.bf16.msra.mxu0 %v489
  %700 = vmatprep.subr.bf16.mxu0 %v488
  %701 = vmatpush2.bf16.msra.mxu0 %v487
  %702 = vmatprep.subr.bf16.mxu0 %v486
  %703 = vmatpush2.bf16.msra.mxu0 %v485
  %704 = vmatprep.mubr.bf16.mxu0 %v140
  %705 = vmatmul.mubr.bf16.gmra.mxu0 %v139
  %v706 = vpop.f32.mrf.mxu0
  %v707 = vadd.f32 %v664, %v706
  %v708 = vpop.f32.mrf.mxu0
  %v709 = vadd.f32 %v666, %v708
  %v710 = vpop.f32.mrf.mxu0
  %v711 = vadd.f32 %v668, %v710
  %v712 = vpop.f32.mrf.mxu0
  %v713 = vadd.f32 %v670, %v712
  %714 = vdwg.mxu0
  %715 = vmatprep.subr.bf16.mxu0 %v516
  %716 = vmatpush1.bf16.msra.mxu0 %v515
  %717 = vmatprep.subr.bf16.mxu0 %v514
  %718 = vmatpush1.bf16.msra.mxu0 %v513
  %719 = vmatprep.subr.bf16.mxu0 %v512
  %720 = vmatpush1.bf16.msra.mxu0 %v511
  %721 = vmatprep.subr.bf16.mxu0 %v510
  %722 = vmatpush1.bf16.msra.mxu0 %v509
  %723 = vmatprep.subr.bf16.mxu0 %v508
  %724 = vmatpush1.bf16.msra.mxu0 %v507
  %725 = vmatprep.subr.bf16.mxu0 %v506
  %726 = vmatpush1.bf16.msra.mxu0 %v505
  %727 = vmatprep.subr.bf16.mxu0 %v504
  %728 = vmatpush1.bf16.msra.mxu0 %v503
  %729 = vmatprep.subr.bf16.mxu0 %v502
  %730 = vmatpush1.bf16.msra.mxu0 %v501
  %731 = vmatprep.subr.bf16.mxu0 %v532
  %732 = vmatpush2.bf16.msra.mxu0 %v531
  %733 = vmatprep.subr.bf16.mxu0 %v530
  %734 = vmatpush2.bf16.msra.mxu0 %v529
  %735 = vmatprep.subr.bf16.mxu0 %v528
  %736 = vmatpush2.bf16.msra.mxu0 %v527
  %737 = vmatprep.subr.bf16.mxu0 %v526
  %738 = vmatpush2.bf16.msra.mxu0 %v525
  %739 = vmatprep.subr.bf16.mxu0 %v524
  %740 = vmatpush2.bf16.msra.mxu0 %v523
  %741 = vmatprep.subr.bf16.mxu0 %v522
  %742 = vmatpush2.bf16.msra.mxu0 %v521
  %743 = vmatprep.subr.bf16.mxu0 %v520
  %744 = vmatpush2.bf16.msra.mxu0 %v519
  %745 = vmatprep.subr.bf16.mxu0 %v518
  %746 = vmatpush2.bf16.msra.mxu0 %v517
  %747 = vmatprep.mubr.bf16.mxu0 %v142
  %748 = vmatmul.mubr.bf16.gmra.mxu0 %v141
  %v749 = vpop.f32.mrf.mxu0
  %v750 = vadd.f32 %v707, %v749
  %v751 = vpop.f32.mrf.mxu0
  %v752 = vadd.f32 %v709, %v751
  %v753 = vpop.f32.mrf.mxu0
  %v754 = vadd.f32 %v711, %v753
  %v755 = vpop.f32.mrf.mxu0
  %v756 = vadd.f32 %v713, %v755
  %757 = vdwg.mxu0
  %v758 = vld [vmem:[%s2] sm:$0x3]
  %v760 = vlaneseq
  %v761 = vshrl.u32 %v760, 7
  %v762 = vsub.s32 0, %v761
  %v763 = vrot.slane %v758, %v762
  %v764 = vlaneseq
  %v765 = vshrl.u32 %v764, 7
  %v766 = vsub.s32 1, %v765
  %v767 = vrot.slane %v758, %v766
  %v770 = vmul.f32 %v750, %v763
  %v771 = vmul.f32 %v752, %v767
  %v772 = vmul.f32 %v754, %v763
  %v773 = vmul.f32 %v756, %v767
  %v774 = vld [vmem:[%s3] sm:$0x3]
  %v776 = vlaneseq
  %v777 = vshrl.u32 %v776, 7
  %v778 = vsub.s32 0, %v777
  %v779 = vrot.slane %v774, %v778
  %v780 = vlaneseq
  %v781 = vshrl.u32 %v780, 7
  %v782 = vsub.s32 1, %v781
  %v783 = vrot.slane %v774, %v782
  %v786 = vadd.f32 %v770, %v779
  %v787 = vadd.f32 %v771, %v783
  %v788 = vadd.f32 %v772, %v779
  %v789 = vadd.f32 %v773, %v783
  %v790 = vmax.f32 %v786, 0.0
  %v791 = vmax.f32 %v787, 0.0
  %v792 = vmax.f32 %v788, 0.0
  %v793 = vmax.f32 %v789, 0.0
  %v794 = vpack.c.bf16 %v792, %v790
  %v795 = vpack.c.bf16 %v793, %v791
  %v798 = vunpack.c.l.b16 %v794
  %v799 = vunpack.c.l.b16 %v795
  %v800 = vunpack.c.h.b16 %v794
  %v801 = vunpack.c.h.b16 %v795
  %v802 = vpack.c.b16 %v799, %v798
  %v803 = vpack.c.b16 %v801, %v800
  %806 = vst [vmem:[%s4] sm:$0xff] %v802
  %807 = vst [vmem:[%s4 + $0x8] sm:$0xff] %v803
  // Predicated region
  $region18: #{_lambda_.81} parent=0 // pred_check
    _
  $region19: #{_lambda_.81} parent=0 // pred_check_branch
    %809 = sbr.rel (0) target = $region21
  $region20: #{_lambda_.81} parent=0 // pred_region
    _
  $region21: #{_lambda_.81} parent=0 // pred_fallthru
    _
  // Predicated region
  $region22: #{_lambda_.81} parent=0 // pred_check
    _
  $region23: #{_lambda_.81} parent=0 // pred_check_branch
    %811 = sbr.rel (0) target = $region25
  $region24: #{_lambda_.81} parent=0 // pred_region
    _
  $region25: #{_lambda_.81} parent=0 // pred_fallthru
    _

// kernel: _lambda_.99
$region0: #{_lambda_.99}
  #allocation0 [shape = 'u32[]', space=smem, size = 0x4, offset = 0x4, fixed_abs, tag = 'smem constant byte address 0x4 - core index']
  #allocation1 [shape = 'u32[144,128]{1,0:T(1,128)}', space=vmem, size = 0x12000, scoped, tag = 'internal scratch']
  %s0 = inlined_call_operand.vmem [shape: bf16[16,256], index: 0, kind: input, shape index: {}]
  %s1 = inlined_call_operand.vmem [shape: bf16[256,512], index: 1, kind: input, shape index: {}]
  %s2 = inlined_call_operand.vmem [shape: f32[1,512], index: 2, kind: input, shape index: {}]
  %s3 = inlined_call_operand.vmem [shape: f32[1,512], index: 3, kind: input, shape index: {}]
  %s4 = inlined_call_operand.vmem [shape: bf16[16,512], index: 4, kind: output, shape index: {}]
  %s5 = sld [smem:[#allocation0]]
  $region121: #{_lambda_.99} parent=0
    _
  %s7 = ssub.s32 1, %s5
  %s8 = scalar_select 0, %s7, %s5
  $region1: #{_lambda_.99} parent=0
    #allocation2 [shape = 'u8[262144]{0}', space=vmem, size = 0x40000, scoped, tag = 'input window, operand 1']
    #allocation3 [shape = 'u8[16384]{0}', space=vmem, size = 0x4000, scoped, tag = 'output window, operand 0']
    loop: start=0, step=1, limit=4
    $region2: #{_lambda_.99} parent=1 // loop_pre_header
      _
    $region3: #{_lambda_.99} parent=1 // loop_header
      %s10 = sphi 0, %s14
      %p11 = scmp.ge.s32.totalorder %s10, 4
      %s17 = sphi 0, %s29
      %s18 = sphi 0, %s25
      %s19 = sphi 0, %s17
      %s20 = sphi 0, %s18
      %s21 = sphi 0, %s19
      %s22 = sphi 0, %s20
      %s32 = sphi 0, %s34
      %s35 = sphi 0, %s32
      %s36 = sphi 0, %s35
      %s52 = sphi 0, %s36
      %s58 = sphi 0, %s60
      %s61 = sphi 0, %s58
      %s62 = sphi 0, %s61
      %s78 = sphi 0, %s62
      %s84 = sphi 0, %s86
      %s87 = sphi 0, %s84
      %s88 = sphi 0, %s87
      %s104 = sphi 0, %s88
      %s110 = sphi 0, %s112
      %s113 = sphi 0, %s110
      %s114 = sphi 0, %s113
      %s130 = sphi 0, %s114
      %s138 = sphi 0, %s140
      %s141 = sphi 0, %s138
      %s142 = sphi 0, %s141
      %s158 = sphi 0, %s142
    $region4: #{_lambda_.99} parent=1 // loop_header_branch
      %13 = sbr.rel (%p11) target = $region8
    $region5: #{_lambda_.99} parent=1 // loop_body
      %s15 = ssub.s32 %s10, 1
      %s16 = ssub.s32 %s10, 2
      %s23 = sadd.s32 1, %s18
      %p24 = scmp.ge.s32.totalorder %s23, 2
      %s25 = scalar_select %p24, 0, %s23
      %s26 = sadd.s32 1, %s17
      %s27 = scalar_select %p24, %s26, %s17
      %p28 = scmp.ge.s32.totalorder %s27, 1
      %s29 = scalar_select %p28, 0, %s27
      %s30 = ssub.s32 %s17, %s29
      %p31 = scmp.eq.s32.totalorder %s30, 0
      %s33 = sadd.s32 %s32, 1
      %s34 = scalar_select %p31, %s32, %s33
      %p37 = pneg %p31
      %p38 = scmp.eq.s32.totalorder %s10, 1
      %p39 = por %p37, %p38
      %p40 = scmp.ne.s32.totalorder %s32, %s35
      %p41 = scmp.eq.s32.totalorder %s10, 0
      %p42 = por %p40, %p41
      %p43 = scmp.ne.s32.totalorder %s32, %s35
      %p44 = scmp.eq.s32.totalorder %s15, 1
      %p45 = por %p43, %p44
      %p46 = scmp.ne.s32.totalorder %s35, %s36
      %p47 = scmp.eq.s32.totalorder %s15, 0
      %p48 = por %p46, %p47
      %p49 = scmp.ne.s32.totalorder %s35, %s36
      %p50 = scmp.eq.s32.totalorder %s16, 1
      %p51 = por %p49, %p50
      %p53 = scmp.ne.s32.totalorder %s36, %s52
      %p54 = scmp.eq.s32.totalorder %s16, 0
      %p55 = por %p53, %p54
      %s56 = ssub.s32 %s18, %s25
      %p57 = scmp.eq.s32.totalorder %s56, 0
      %s59 = sadd.s32 %s58, 1
      %s60 = scalar_select %p57, %s58, %s59
      %p63 = pneg %p57
      %p64 = scmp.eq.s32.totalorder %s10, 1
      %p65 = por %p63, %p64
      %p66 = scmp.ne.s32.totalorder %s58, %s61
      %p67 = scmp.eq.s32.totalorder %s10, 0
      %p68 = por %p66, %p67
      %p69 = scmp.ne.s32.totalorder %s58, %s61
      %p70 = scmp.eq.s32.totalorder %s15, 1
      %p71 = por %p69, %p70
      %p72 = scmp.ne.s32.totalorder %s61, %s62
      %p73 = scmp.eq.s32.totalorder %s15, 0
      %p74 = por %p72, %p73
      %p75 = scmp.ne.s32.totalorder %s61, %s62
      %p76 = scmp.eq.s32.totalorder %s16, 1
      %p77 = por %p75, %p76
      %p79 = scmp.ne.s32.totalorder %s62, %s78
      %p80 = scmp.eq.s32.totalorder %s16, 0
      %p81 = por %p79, %p80
      %s82 = ssub.s32 %s18, %s25
      %p83 = scmp.eq.s32.totalorder %s82, 0
      %s85 = sadd.s32 %s84, 1
      %s86 = scalar_select %p83, %s84, %s85
      %p89 = pneg %p83
      %p90 = scmp.eq.s32.totalorder %s10, 1
      %p91 = por %p89, %p90
      %p92 = scmp.ne.s32.totalorder %s84, %s87
      %p93 = scmp.eq.s32.totalorder %s10, 0
      %p94 = por %p92, %p93
      %p95 = scmp.ne.s32.totalorder %s84, %s87
      %p96 = scmp.eq.s32.totalorder %s15, 1
      %p97 = por %p95, %p96
      %p98 = scmp.ne.s32.totalorder %s87, %s88
      %p99 = scmp.eq.s32.totalorder %s15, 0
      %p100 = por %p98, %p99
      %p101 = scmp.ne.s32.totalorder %s87, %s88
      %p102 = scmp.eq.s32.totalorder %s16, 1
      %p103 = por %p101, %p102
      %p105 = scmp.ne.s32.totalorder %s88, %s104
      %p106 = scmp.eq.s32.totalorder %s16, 0
      %p107 = por %p105, %p106
      %s108 = ssub.s32 %s18, %s25
      %p109 = scmp.eq.s32.totalorder %s108, 0
      %s111 = sadd.s32 %s110, 1
      %s112 = scalar_select %p109, %s110, %s111
      %p115 = pneg %p109
      %p116 = scmp.eq.s32.totalorder %s10, 1
      %p117 = por %p115, %p116
      %p118 = scmp.ne.s32.totalorder %s110, %s113
      %p119 = scmp.eq.s32.totalorder %s10, 0
      %p120 = por %p118, %p119
      %p121 = scmp.ne.s32.totalorder %s110, %s113
      %p122 = scmp.eq.s32.totalorder %s15, 1
      %p123 = por %p121, %p122
      %p124 = scmp.ne.s32.totalorder %s113, %s114
      %p125 = scmp.eq.s32.totalorder %s15, 0
      %p126 = por %p124, %p125
      %p127 = scmp.ne.s32.totalorder %s113, %s114
      %p128 = scmp.eq.s32.totalorder %s16, 1
      %p129 = por %p127, %p128
      %p131 = scmp.ne.s32.totalorder %s114, %s130
      %p132 = scmp.eq.s32.totalorder %s16, 0
      %p133 = por %p131, %p132
      %s134 = ssub.s32 %s17, %s29
      %s135 = ssub.s32 %s18, %s25
      %s136 = sor.u32 %s134, %s135
      %p137 = scmp.eq.s32.totalorder %s136, 0
      %s139 = sadd.s32 %s138, 1
      %s140 = scalar_select %p137, %s138, %s139
      %p143 = pneg %p137
      %p144 = scmp.eq.s32.totalorder %s10, 1
      %p145 = por %p143, %p144
      %p146 = scmp.ne.s32.totalorder %s138, %s141
      %p147 = scmp.eq.s32.totalorder %s10, 0
      %p148 = por %p146, %p147
      %p149 = scmp.ne.s32.totalorder %s138, %s141
      %p150 = scmp.eq.s32.totalorder %s15, 1
      %p151 = por %p149, %p150
      %p152 = scmp.ne.s32.totalorder %s141, %s142
      %p153 = scmp.eq.s32.totalorder %s15, 0
      %p154 = por %p152, %p153
      %p155 = scmp.ne.s32.totalorder %s141, %s142
      %p156 = scmp.eq.s32.totalorder %s16, 1
      %p157 = por %p155, %p156
      %p159 = scmp.ne.s32.totalorder %s142, %s158
      %p160 = scmp.eq.s32.totalorder %s16, 0
      %p161 = por %p159, %p160
      %p162 = scmp.le.s32.totalorder 1, %s10
      %p163 = scmp.lt.s32.totalorder %s10, 3
      %p164 = pnand %p162, %p163
      %p165 = pneg %p164
      // Predicated region
      $region9: #{_lambda_.99} parent=5 // pred_check
        _
      $region10: #{_lambda_.99} parent=5 // pred_check_branch
        %167 = sbr.rel (%p164) target = $region12
      $region11: #{_lambda_.99} parent=5 // pred_region
        %s168 = ssub.s32 %s10, 1
        // Predicated region
        $region13: #{_lambda_.99} parent=11 // pred_check
          %p169 = pneg %p48
        $region14: #{_lambda_.99} parent=11 // pred_check_branch
          %171 = sbr.rel (%p169) target = $region16
        $region15: #{_lambda_.99} parent=11 // pred_region
          %s172 = smul.u32 2, %s19
          %p173 = scmp.lt.s32.totalorder %s172, 1
          %s174 = scalar_select %p173, %s172, 1
          %s175 = smul.addr %s174, 2
          %s176 = smul.addr %s175, 4
          %s177 = scalar_lea.vmem %s0, %s176
          %s178 = smul.u32 2, %s19
        $region16: #{_lambda_.99} parent=11 // pred_fallthru
          _
      $region12: #{_lambda_.99} parent=5 // pred_fallthru
        _
      %p179 = scmp.lt.s32.totalorder %s10, 2
      // Predicated region
      $region17: #{_lambda_.99} parent=5 // pred_check
        %p180 = pneg %p179
      $region18: #{_lambda_.99} parent=5 // pred_check_branch
        %182 = sbr.rel (%p180) target = $region20
      $region19: #{_lambda_.99} parent=5 // pred_region
        // Predicated region
        $region21: #{_lambda_.99} parent=19 // pred_check
          %p183 = pneg %p68
        $region22: #{_lambda_.99} parent=19 // pred_check_branch
          %185 = sbr.rel (%p183) target = $region24
        $region23: #{_lambda_.99} parent=19 // pred_region
          %s186 = sand.u32 %s58, 1
          %s187 = sand.u32 %s58, 1
          %s188 = smul.addr %s187, 256
          %s189 = scalar_lea.vmem [#allocation2], %s188
          %s190 = smul.u32 2, %s18
          %s191 = smul.addr %s190, 4
          %s192 = scalar_lea.vmem %s1, %s191
          // Predicated region
          $region25: #{_lambda_.99} parent=23 // pred_check
            _
          $region26: #{_lambda_.99} parent=23 // pred_check_branch
            %194 = sbr.rel (0) target = $region28
          $region27: #{_lambda_.99} parent=23 // pred_region
            // Predicated region
            $region29: #{_lambda_.99} parent=27 // pred_check
              _
            $region30: #{_lambda_.99} parent=27 // pred_check_branch
              %196 = sbr.rel (0) target = $region32
            $region31: #{_lambda_.99} parent=27 // pred_region
              // Predicated region
              $region44: #{_lambda_.99} parent=31 // pred_check
                _
              $region45: #{_lambda_.99} parent=31 // pred_check_branch
                %274 = sbr.rel (0) target = $region47
              $region46: #{_lambda_.99} parent=31 // pred_region
                loop: start=0, step=1, limit=1
                $region48: #{_lambda_.99} parent=46 // loop_pre_header
                  _
                $region49: #{_lambda_.99} parent=46 // loop_header
                  %s276 = sphi 0, %s280
                  %p277 = scmp.ge.s32.totalorder %s276, 1
                  %s281 = sphi %s192, %s192
                  %s282 = sphi %s189, %s189
                $region50: #{_lambda_.99} parent=46 // loop_header_branch
                  %279 = sbr.rel (%p277) target = $region54
                $region51: #{_lambda_.99} parent=46 // loop_body
                  %v283 = vld [vmem:[%s281] sm:$0xff]
                  %284 = vst [vmem:[%s282] sm:$0xff] %v283
                  %v285 = vld [vmem:[%s281 + $0x10] sm:$0xff]
                  %286 = vst [vmem:[%s282 + $0x8] sm:$0xff] %v285
                  %v287 = vld [vmem:[%s281 + $0x20] sm:$0xff]
                  %288 = vst [vmem:[%s282 + $0x10] sm:$0xff] %v287
                  %v289 = vld [vmem:[%s281 + $0x30] sm:$0xff]
                  %290 = vst [vmem:[%s282 + $0x18] sm:$0xff] %v289
                  %v291 = vld [vmem:[%s281 + $0x40] sm:$0xff]
                  %292 = vst [vmem:[%s282 + $0x20] sm:$0xff] %v291
                  %v293 = vld [vmem:[%s281 + $0x50] sm:$0xff]
                  %294 = vst [vmem:[%s282 + $0x28] sm:$0xff] %v293
                  %v295 = vld [vmem:[%s281 + $0x60] sm:$0xff]
                  %296 = vst [vmem:[%s282 + $0x30] sm:$0xff] %v295
                  %v297 = vld [vmem:[%s281 + $0x70] sm:$0xff]
                  %298 = vst [vmem:[%s282 + $0x38] sm:$0xff] %v297
                  %v299 = vld [vmem:[%s281 + $0x80] sm:$0xff]
                  %300 = vst [vmem:[%s282 + $0x40] sm:$0xff] %v299
                  %v301 = vld [vmem:[%s281 + $0x90] sm:$0xff]
                  %302 = vst [vmem:[%s282 + $0x48] sm:$0xff] %v301
                  %v303 = vld [vmem:[%s281 + $0xa0] sm:$0xff]
                  %304 = vst [vmem:[%s282 + $0x50] sm:$0xff] %v303
                  %v305 = vld [vmem:[%s281 + $0xb0] sm:$0xff]
                  %306 = vst [vmem:[%s282 + $0x58] sm:$0xff] %v305
                  %v307 = vld [vmem:[%s281 + $0xc0] sm:$0xff]
                  %308 = vst [vmem:[%s282 + $0x60] sm:$0xff] %v307
                  %v309 = vld [vmem:[%s281 + $0xd0] sm:$0xff]
                  %310 = vst [vmem:[%s282 + $0x68] sm:$0xff] %v309
                  %v311 = vld [vmem:[%s281 + $0xe0] sm:$0xff]
                  %312 = vst [vmem:[%s282 + $0x70] sm:$0xff] %v311
                  %v313 = vld [vmem:[%s281 + $0xf0] sm:$0xff]
                  %314 = vst [vmem:[%s282 + $0x78] sm:$0xff] %v313
                  %v315 = vld [vmem:[%s281 + $0x100] sm:$0xff]
                  %316 = vst [vmem:[%s282 + $0x80] sm:$0xff] %v315
                  %v317 = vld [vmem:[%s281 + $0x110] sm:$0xff]
                  %318 = vst [vmem:[%s282 + $0x88] sm:$0xff] %v317
                  %v319 = vld [vmem:[%s281 + $0x120] sm:$0xff]
                  %320 = vst [vmem:[%s282 + $0x90] sm:$0xff] %v319
                  %v321 = vld [vmem:[%s281 + $0x130] sm:$0xff]
                  %322 = vst [vmem:[%s282 + $0x98] sm:$0xff] %v321
                  %v323 = vld [vmem:[%s281 + $0x140] sm:$0xff]
                  %324 = vst [vmem:[%s282 + $0xa0] sm:$0xff] %v323
                  %v325 = vld [vmem:[%s281 + $0x150] sm:$0xff]
                  %326 = vst [vmem:[%s282 + $0xa8] sm:$0xff] %v325
                  %v327 = vld [vmem:[%s281 + $0x160] sm:$0xff]
                  %328 = vst [vmem:[%s282 + $0xb0] sm:$0xff] %v327
                  %v329 = vld [vmem:[%s281 + $0x170] sm:$0xff]
                  %330 = vst [vmem:[%s282 + $0xb8] sm:$0xff] %v329
                  %v331 = vld [vmem:[%s281 + $0x180] sm:$0xff]
                  %332 = vst [vmem:[%s282 + $0xc0] sm:$0xff] %v331
                  %v333 = vld [vmem:[%s281 + $0x190] sm:$0xff]
                  %334 = vst [vmem:[%s282 + $0xc8] sm:$0xff] %v333
                  %v335 = vld [vmem:[%s281 + $0x1a0] sm:$0xff]
                  %336 = vst [vmem:[%s282 + $0xd0] sm:$0xff] %v335
                  %v337 = vld [vmem:[%s281 + $0x1b0] sm:$0xff]
                  %338 = vst [vmem:[%s282 + $0xd8] sm:$0xff] %v337
                  %v339 = vld [vmem:[%s281 + $0x1c0] sm:$0xff]
                  %340 = vst [vmem:[%s282 + $0xe0] sm:$0xff] %v339
                  %v341 = vld [vmem:[%s281 + $0x1d0] sm:$0xff]
                  %342 = vst [vmem:[%s282 + $0xe8] sm:$0xff] %v341
                  %v343 = vld [vmem:[%s281 + $0x1e0] sm:$0xff]
                  %344 = vst [vmem:[%s282 + $0xf0] sm:$0xff] %v343
                  %v345 = vld [vmem:[%s281 + $0x1f0] sm:$0xff]
                  %346 = vst [vmem:[%s282 + $0xf8] sm:$0xff] %v345
                $region52: #{_lambda_.99} parent=46 // loop_footer
                  %s280 = sadd.s32 1, %s276
                $region53: #{_lambda_.99} parent=46 // loop_footer_branch
                  %275 = sbr.rel target = $region49
                $region54: #{_lambda_.99} parent=46 // loop_exit
                  _
              $region47: #{_lambda_.99} parent=31 // pred_fallthru
                _
              // Predicated region
              $region55: #{_lambda_.99} parent=31 // pred_check
                _
              $region56: #{_lambda_.99} parent=31 // pred_check_branch
                %348 = sbr.rel target = $region58
              $region57: #{_lambda_.99} parent=31 // pred_region
                _
              $region58: #{_lambda_.99} parent=31 // pred_fallthru
                _
            $region32: #{_lambda_.99} parent=27 // pred_fallthru
              _
            // Predicated region
            $region33: #{_lambda_.99} parent=27 // pred_check
              _
            $region34: #{_lambda_.99} parent=27 // pred_check_branch
              %198 = sbr.rel target = $region36
            $region35: #{_lambda_.99} parent=27 // pred_region
              %s200 = ssub.s32 256, 1
              loop: start=0, step=1, limit=1
              $region37: #{_lambda_.99} parent=35 // loop_pre_header
                _
              $region38: #{_lambda_.99} parent=35 // loop_header
                %s202 = sphi 0, %s206
                %p203 = scmp.ge.s32.totalorder %s202, 1
                %s207 = sphi %s192, %s192
                %s208 = sphi %s189, %s189
              $region39: #{_lambda_.99} parent=35 // loop_header_branch
                %205 = sbr.rel (%p203) target = $region43
              $region40: #{_lambda_.99} parent=35 // loop_body
                %v209 = vld [vmem:[%s207] sm:%s200]
                %210 = vst [vmem:[%s208] sm:%s200] %v209
                %v211 = vld [vmem:[%s207 + $0x10] sm:%s200]
                %212 = vst [vmem:[%s208 + $0x8] sm:%s200] %v211
                %v213 = vld [vmem:[%s207 + $0x20] sm:%s200]
                %214 = vst [vmem:[%s208 + $0x10] sm:%s200] %v213
                %v215 = vld [vmem:[%s207 + $0x30] sm:%s200]
                %216 = vst [vmem:[%s208 + $0x18] sm:%s200] %v215
                %v217 = vld [vmem:[%s207 + $0x40] sm:%s200]
                %218 = vst [vmem:[%s208 + $0x20] sm:%s200] %v217
                %v219 = vld [vmem:[%s207 + $0x50] sm:%s200]
                %220 = vst [vmem:[%s208 + $0x28] sm:%s200] %v219
                %v221 = vld [vmem:[%s207 + $0x60] sm:%s200]
                %222 = vst [vmem:[%s208 + $0x30] sm:%s200] %v221
                %v223 = vld [vmem:[%s207 + $0x70] sm:%s200]
                %224 = vst [vmem:[%s208 + $0x38] sm:%s200] %v223
                %v225 = vld [vmem:[%s207 + $0x80] sm:%s200]
                %226 = vst [vmem:[%s208 + $0x40] sm:%s200] %v225
                %v227 = vld [vmem:[%s207 + $0x90] sm:%s200]
                %228 = vst [vmem:[%s208 + $0x48] sm:%s200] %v227
                %v229 = vld [vmem:[%s207 + $0xa0] sm:%s200]
                %230 = vst [vmem:[%s208 + $0x50] sm:%s200] %v229
                %v231 = vld [vmem:[%s207 + $0xb0] sm:%s200]
                %232 = vst [vmem:[%s208 + $0x58] sm:%s200] %v231
                %v233 = vld [vmem:[%s207 + $0xc0] sm:%s200]
                %234 = vst [vmem:[%s208 + $0x60] sm:%s200] %v233
                %v235 = vld [vmem:[%s207 + $0xd0] sm:%s200]
                %236 = vst [vmem:[%s208 + $0x68] sm:%s200] %v235
                %v237 = vld [vmem:[%s207 + $0xe0] sm:%s200]
                %238 = vst [vmem:[%s208 + $0x70] sm:%s200] %v237
                %v239 = vld [vmem:[%s207 + $0xf0] sm:%s200]
                %240 = vst [vmem:[%s208 + $0x78] sm:%s200] %v239
                %v241 = vld [vmem:[%s207 + $0x100] sm:%s200]
                %242 = vst [vmem:[%s208 + $0x80] sm:%s200] %v241
                %v243 = vld [vmem:[%s207 + $0x110] sm:%s200]
                %244 = vst [vmem:[%s208 + $0x88] sm:%s200] %v243
                %v245 = vld [vmem:[%s207 + $0x120] sm:%s200]
                %246 = vst [vmem:[%s208 + $0x90] sm:%s200] %v245
                %v247 = vld [vmem:[%s207 + $0x130] sm:%s200]
                %248 = vst [vmem:[%s208 + $0x98] sm:%s200] %v247
                %v249 = vld [vmem:[%s207 + $0x140] sm:%s200]
                %250 = vst [vmem:[%s208 + $0xa0] sm:%s200] %v249
                %v251 = vld [vmem:[%s207 + $0x150] sm:%s200]
                %252 = vst [vmem:[%s208 + $0xa8] sm:%s200] %v251
                %v253 = vld [vmem:[%s207 + $0x160] sm:%s200]
                %254 = vst [vmem:[%s208 + $0xb0] sm:%s200] %v253
                %v255 = vld [vmem:[%s207 + $0x170] sm:%s200]
                %256 = vst [vmem:[%s208 + $0xb8] sm:%s200] %v255
                %v257 = vld [vmem:[%s207 + $0x180] sm:%s200]
                %258 = vst [vmem:[%s208 + $0xc0] sm:%s200] %v257
                %v259 = vld [vmem:[%s207 + $0x190] sm:%s200]
                %260 = vst [vmem:[%s208 + $0xc8] sm:%s200] %v259
                %v261 = vld [vmem:[%s207 + $0x1a0] sm:%s200]
                %262 = vst [vmem:[%s208 + $0xd0] sm:%s200] %v261
                %v263 = vld [vmem:[%s207 + $0x1b0] sm:%s200]
                %264 = vst [vmem:[%s208 + $0xd8] sm:%s200] %v263
                %v265 = vld [vmem:[%s207 + $0x1c0] sm:%s200]
                %266 = vst [vmem:[%s208 + $0xe0] sm:%s200] %v265
                %v267 = vld [vmem:[%s207 + $0x1d0] sm:%s200]
                %268 = vst [vmem:[%s208 + $0xe8] sm:%s200] %v267
                %v269 = vld [vmem:[%s207 + $0x1e0] sm:%s200]
                %270 = vst [vmem:[%s208 + $0xf0] sm:%s200] %v269
                %v271 = vld [vmem:[%s207 + $0x1f0] sm:%s200]
                %272 = vst [vmem:[%s208 + $0xf8] sm:%s200] %v271
              $region41: #{_lambda_.99} parent=35 // loop_footer
                %s206 = sadd.s32 1, %s202
              $region42: #{_lambda_.99} parent=35 // loop_footer_branch
                %201 = sbr.rel target = $region38
              $region43: #{_lambda_.99} parent=35 // loop_exit
                _
            $region36: #{_lambda_.99} parent=27 // pred_fallthru
              _
          $region28: #{_lambda_.99} parent=23 // pred_fallthru
            _
          %349 = vnop
        $region24: #{_lambda_.99} parent=19 // pred_fallthru
          _
        // Predicated region
        $region59: #{_lambda_.99} parent=19 // pred_check
          %p350 = pneg %p94
        $region60: #{_lambda_.99} parent=19 // pred_check_branch
          %352 = sbr.rel (%p350) target = $region62
        $region61: #{_lambda_.99} parent=19 // pred_region
          %s353 = smul.u32 2, %s18
          %p354 = scmp.lt.s32.totalorder %s353, 3
          %s355 = scalar_select %p354, %s353, 3
          %s356 = scalar_lea.vmem %s2, %s355
          %s357 = smul.u32 2, %s18
        $region62: #{_lambda_.99} parent=19 // pred_fallthru
          _
        // Predicated region
        $region63: #{_lambda_.99} parent=19 // pred_check
          %p358 = pneg %p120
        $region64: #{_lambda_.99} parent=19 // pred_check_branch
          %360 = sbr.rel (%p358) target = $region66
        $region65: #{_lambda_.99} parent=19 // pred_region
          %s361 = smul.u32 2, %s18
          %p362 = scmp.lt.s32.totalorder %s361, 3
          %s363 = scalar_select %p362, %s361, 3
          %s364 = scalar_lea.vmem %s3, %s363
          %s365 = smul.u32 2, %s18
        $region66: #{_lambda_.99} parent=19 // pred_fallthru
          _
      $region20: #{_lambda_.99} parent=5 // pred_fallthru
        _
      %p366 = scmp.le.s32.totalorder 1, %s10
      %p367 = scmp.lt.s32.totalorder %s10, 3
      %p368 = pnand %p366, %p367
      %p369 = pneg %p368
      // Predicated region
      $region67: #{_lambda_.99} parent=5 // pred_check
        _
      $region68: #{_lambda_.99} parent=5 // pred_check_branch
        %371 = sbr.rel (%p368) target = $region70
      $region69: #{_lambda_.99} parent=5 // pred_region
        %s372 = ssub.s32 %s10, 1
        %s373 = sand.u32 %s61, 1
        %s374 = sand.u32 %s61, 1
        %s375 = smul.addr %s374, 256
        %s376 = scalar_lea.vmem [#allocation2], %s375
        // Predicated region
        $region71: #{_lambda_.99} parent=69 // pred_check
          %p377 = pneg %p74
        $region72: #{_lambda_.99} parent=69 // pred_check_branch
          %379 = sbr.rel (%p377) target = $region74
        $region73: #{_lambda_.99} parent=69 // pred_region
          _
        $region74: #{_lambda_.99} parent=69 // pred_fallthru
          _
        %s380 = smul.u32 2, %s19
        %p381 = scmp.lt.s32.totalorder %s380, 1
        %s382 = scalar_select %p381, %s380, 1
        %s383 = smul.addr %s382, 2
        %s384 = smul.addr %s383, 4
        %s385 = scalar_lea.vmem %s0, %s384
        %p386 = pneg %p48
        %p387 = pneg %p45
        %s388 = sand.u32 %s61, 1
        %s389 = sand.u32 %s61, 1
        %s390 = smul.addr %s389, 256
        %s391 = scalar_lea.vmem [#allocation2], %s390
        %p392 = pneg %p74
        %p393 = pneg %p71
        %s394 = smul.u32 2, %s20
        %p395 = scmp.lt.s32.totalorder %s394, 3
        %s396 = scalar_select %p395, %s394, 3
        %s397 = scalar_lea.vmem %s2, %s396
        %p398 = pneg %p100
        %p399 = pneg %p97
        %s400 = smul.u32 2, %s20
        %p401 = scmp.lt.s32.totalorder %s400, 3
        %s402 = scalar_select %p401, %s400, 3
        %s403 = scalar_lea.vmem %s3, %s402
        %p404 = pneg %p126
        %p405 = pneg %p123
        %p406 = pneg %p154
        %p407 = pneg %p151
        %s408 = sand.u32 %s141, 1
        %s409 = sand.u32 %s141, 1
        %s410 = smul.addr %s409, 16
        %s411 = scalar_lea.vmem [#allocation3], %s410
        %s412 = smul.u32 2, %s19
        %p413 = scmp.lt.s32.totalorder %s412, 1
        %s414 = scalar_select %p413, %s412, 1
        %s415 = smul.addr %s414, 2
        %s416 = smul.addr %s415, 4
        %s417 = scalar_lea.vmem %s0, %s416
        %s418 = smul.u32 2, %s19
        %s419 = smul.u32 2, %s20
        %s420 = smul.u32 2, %s20
        %p421 = scmp.lt.s32.totalorder %s420, 3
        %s422 = scalar_select %p421, %s420, 3
        %s423 = scalar_lea.vmem %s2, %s422
        %s424 = smul.u32 2, %s20
        %s425 = smul.u32 2, %s20
        %p426 = scmp.lt.s32.totalorder %s425, 3
        %s427 = scalar_select %p426, %s425, 3
        %s428 = scalar_lea.vmem %s3, %s427
        %s429 = smul.u32 2, %s20
        %s430 = smul.u32 2, %s19
        %s431 = smul.u32 2, %s20
        %v432 = vld [vmem:[%s417] sm:$0xff]
        %v433 = vld [vmem:[%s417 + $0x8] sm:$0xff]
        %v434 = vld [vmem:[%s376] sm:$0xff]
        %v435 = vld [vmem:[%s376 + $0x8] sm:$0xff]
        %v436 = vld [vmem:[%s376 + $0x10] sm:$0xff]
        %v437 = vld [vmem:[%s376 + $0x18] sm:$0xff]
        %v438 = vld [vmem:[%s376 + $0x20] sm:$0xff]
        %v439 = vld [vmem:[%s376 + $0x28] sm:$0xff]
        %v440 = vld [vmem:[%s376 + $0x30] sm:$0xff]
        %v441 = vld [vmem:[%s376 + $0x38] sm:$0xff]
        %v442 = vld [vmem:[%s376 + $0x40] sm:$0xff]
        %v443 = vld [vmem:[%s376 + $0x48] sm:$0xff]
        %v444 = vld [vmem:[%s376 + $0x50] sm:$0xff]
        %v445 = vld [vmem:[%s376 + $0x58] sm:$0xff]
        %v446 = vld [vmem:[%s376 + $0x60] sm:$0xff]
        %v447 = vld [vmem:[%s376 + $0x68] sm:$0xff]
        %v448 = vld [vmem:[%s376 + $0x70] sm:$0xff]
        %v449 = vld [vmem:[%s376 + $0x78] sm:$0xff]
        %v450 = vld [vmem:[%s376 + $0x80] sm:$0xff]
        %v451 = vld [vmem:[%s376 + $0x88] sm:$0xff]
        %v452 = vld [vmem:[%s376 + $0x90] sm:$0xff]
        %v453 = vld [vmem:[%s376 + $0x98] sm:$0xff]
        %v454 = vld [vmem:[%s376 + $0xa0] sm:$0xff]
        %v455 = vld [vmem:[%s376 + $0xa8] sm:$0xff]
        %v456 = vld [vmem:[%s376 + $0xb0] sm:$0xff]
        %v457 = vld [vmem:[%s376 + $0xb8] sm:$0xff]
        %v458 = vld [vmem:[%s376 + $0xc0] sm:$0xff]
        %v459 = vld [vmem:[%s376 + $0xc8] sm:$0xff]
        %v460 = vld [vmem:[%s376 + $0xd0] sm:$0xff]
        %v461 = vld [vmem:[%s376 + $0xd8] sm:$0xff]
        %v462 = vld [vmem:[%s376 + $0xe0] sm:$0xff]
        %v463 = vld [vmem:[%s376 + $0xe8] sm:$0xff]
        %v464 = vld [vmem:[%s376 + $0xf0] sm:$0xff]
        %v465 = vld [vmem:[%s376 + $0xf8] sm:$0xff]
        %v468 = vunpack.c.l.b16 %v432
        %v469 = vunpack.c.h.b16 %v432
        %v470 = vunpack.c.l.b16 %v433
        %v471 = vunpack.c.h.b16 %v433
        %v472 = vpack.c.b16 %v470, %v468
        %v473 = vpack.c.b16 %v471, %v469
        %v508 = vunpack.c.l.b16 %v434
        %v509 = vunpack.c.h.b16 %v434
        %v510 = vunpack.c.l.b16 %v435
        %v511 = vunpack.c.h.b16 %v435
        %v512 = vunpack.c.l.b16 %v436
        %v513 = vunpack.c.h.b16 %v436
        %v514 = vunpack.c.l.b16 %v437
        %v515 = vunpack.c.h.b16 %v437
        %v516 = vunpack.c.l.b16 %v438
        %v517 = vunpack.c.h.b16 %v438
        %v518 = vunpack.c.l.b16 %v439
        %v519 = vunpack.c.h.b16 %v439
        %v520 = vunpack.c.l.b16 %v440
        %v521 = vunpack.c.h.b16 %v440
        %v522 = vunpack.c.l.b16 %v441
        %v523 = vunpack.c.h.b16 %v441
        %v524 = vunpack.c.l.b16 %v442
        %v525 = vunpack.c.h.b16 %v442
        %v526 = vunpack.c.l.b16 %v443
        %v527 = vunpack.c.h.b16 %v443
        %v528 = vunpack.c.l.b16 %v444
        %v529 = vunpack.c.h.b16 %v444
        %v530 = vunpack.c.l.b16 %v445
        %v531 = vunpack.c.h.b16 %v445
        %v532 = vunpack.c.l.b16 %v446
        %v533 = vunpack.c.h.b16 %v446
        %v534 = vunpack.c.l.b16 %v447
        %v535 = vunpack.c.h.b16 %v447
        %v536 = vunpack.c.l.b16 %v448
        %v537 = vunpack.c.h.b16 %v448
        %v538 = vunpack.c.l.b16 %v449
        %v539 = vunpack.c.h.b16 %v449
        %v540 = vunpack.c.l.b16 %v450
        %v541 = vunpack.c.h.b16 %v450
        %v542 = vunpack.c.l.b16 %v451
        %v543 = vunpack.c.h.b16 %v451
        %v544 = vunpack.c.l.b16 %v452
        %v545 = vunpack.c.h.b16 %v452
        %v546 = vunpack.c.l.b16 %v453
        %v547 = vunpack.c.h.b16 %v453
        %v548 = vunpack.c.l.b16 %v454
        %v549 = vunpack.c.h.b16 %v454
        %v550 = vunpack.c.l.b16 %v455
        %v551 = vunpack.c.h.b16 %v455
        %v552 = vunpack.c.l.b16 %v456
        %v553 = vunpack.c.h.b16 %v456
        %v554 = vunpack.c.l.b16 %v457
        %v555 = vunpack.c.h.b16 %v457
        %v556 = vunpack.c.l.b16 %v458
        %v557 = vunpack.c.h.b16 %v458
        %v558 = vunpack.c.l.b16 %v459
        %v559 = vunpack.c.h.b16 %v459
        %v560 = vunpack.c.l.b16 %v460
        %v561 = vunpack.c.h.b16 %v460
        %v562 = vunpack.c.l.b16 %v461
        %v563 = vunpack.c.h.b16 %v461
        %v564 = vunpack.c.l.b16 %v462
        %v565 = vunpack.c.h.b16 %v462
        %v566 = vunpack.c.l.b16 %v463
        %v567 = vunpack.c.h.b16 %v463
        %v568 = vunpack.c.l.b16 %v464
        %v569 = vunpack.c.h.b16 %v464
        %v570 = vunpack.c.l.b16 %v465
        %v571 = vunpack.c.h.b16 %v465
        %v572 = vpack.c.b16 %v510, %v508
        %v573 = vpack.c.b16 %v511, %v509
        %v574 = vpack.c.b16 %v514, %v512
        %v575 = vpack.c.b16 %v515, %v513
        %v576 = vpack.c.b16 %v518, %v516
        %v577 = vpack.c.b16 %v519, %v517
        %v578 = vpack.c.b16 %v522, %v520
        %v579 = vpack.c.b16 %v523, %v521
        %v580 = vpack.c.b16 %v526, %v524
        %v581 = vpack.c.b16 %v527, %v525
        %v582 = vpack.c.b16 %v530, %v528
        %v583 = vpack.c.b16 %v531, %v529
        %v584 = vpack.c.b16 %v534, %v532
        %v585 = vpack.c.b16 %v535, %v533
        %v586 = vpack.c.b16 %v538, %v536
        %v587 = vpack.c.b16 %v539, %v537
        %v588 = vpack.c.b16 %v542, %v540
        %v589 = vpack.c.b16 %v543, %v541
        %v590 = vpack.c.b16 %v546, %v544
        %v591 = vpack.c.b16 %v547, %v545
        %v592 = vpack.c.b16 %v550, %v548
        %v593 = vpack.c.b16 %v551, %v549
        %v594 = vpack.c.b16 %v554, %v552
        %v595 = vpack.c.b16 %v555, %v553
        %v596 = vpack.c.b16 %v558, %v556
        %v597 = vpack.c.b16 %v559, %v557
        %v598 = vpack.c.b16 %v562, %v560
        %v599 = vpack.c.b16 %v563, %v561
        %v600 = vpack.c.b16 %v566, %v564
        %v601 = vpack.c.b16 %v567, %v565
        %v602 = vpack.c.b16 %v570, %v568
        %v603 = vpack.c.b16 %v571, %v569
        %636 = vmatprep.subr.bf16.mxu0 %v587
        %637 = vmatpush1.bf16.msra.mxu0 %v586
        %638 = vmatprep.subr.bf16.mxu0 %v585
        %639 = vmatpush1.bf16.msra.mxu0 %v584
        %640 = vmatprep.subr.bf16.mxu0 %v583
        %641 = vmatpush1.bf16.msra.mxu0 %v582
        %642 = vmatprep.subr.bf16.mxu0 %v581
        %643 = vmatpush1.bf16.msra.mxu0 %v580
        %644 = vmatprep.subr.bf16.mxu0 %v579
        %645 = vmatpush1.bf16.msra.mxu0 %v578
        %646 = vmatprep.subr.bf16.mxu0 %v577
        %647 = vmatpush1.bf16.msra.mxu0 %v576
        %648 = vmatprep.subr.bf16.mxu0 %v575
        %649 = vmatpush1.bf16.msra.mxu0 %v574
        %650 = vmatprep.subr.bf16.mxu0 %v573
        %651 = vmatpush1.bf16.msra.mxu0 %v572
        %652 = vmatprep.subr.bf16.mxu0 %v603
        %653 = vmatpush2.bf16.msra.mxu0 %v602
        %654 = vmatprep.subr.bf16.mxu0 %v601
        %655 = vmatpush2.bf16.msra.mxu0 %v600
        %656 = vmatprep.subr.bf16.mxu0 %v599
        %657 = vmatpush2.bf16.msra.mxu0 %v598
        %658 = vmatprep.subr.bf16.mxu0 %v597
        %659 = vmatpush2.bf16.msra.mxu0 %v596
        %660 = vmatprep.subr.bf16.mxu0 %v595
        %661 = vmatpush2.bf16.msra.mxu0 %v594
        %662 = vmatprep.subr.bf16.mxu0 %v593
        %663 = vmatpush2.bf16.msra.mxu0 %v592
        %664 = vmatprep.subr.bf16.mxu0 %v591
        %665 = vmatpush2.bf16.msra.mxu0 %v590
        %666 = vmatprep.subr.bf16.mxu0 %v589
        %667 = vmatpush2.bf16.msra.mxu0 %v588
        %668 = vmatprep.mubr.bf16.mxu0 %v473
        %669 = vmatmul.mubr.bf16.gmra.mxu0 %v472
        %v670 = vpop.f32.mrf.mxu0
        %v671 = vadd.f32 0.0, %v670
        %v672 = vpop.f32.mrf.mxu0
        %v673 = vadd.f32 0.0, %v672
        %v674 = vpop.f32.mrf.mxu0
        %v675 = vadd.f32 0.0, %v674
        %v676 = vpop.f32.mrf.mxu0
        %v677 = vadd.f32 0.0, %v676
        %678 = vdwg.mxu0
        %v679 = vld [vmem:[%s423] sm:$0x3]
        %v681 = vlaneseq
        %v682 = vshrl.u32 %v681, 7
        %v683 = vsub.s32 0, %v682
        %v684 = vrot.slane %v679, %v683
        %v685 = vlaneseq
        %v686 = vshrl.u32 %v685, 7
        %v687 = vsub.s32 1, %v686
        %v688 = vrot.slane %v679, %v687
        %v691 = vmul.f32 %v671, %v684
        %v692 = vmul.f32 %v673, %v688
        %v693 = vmul.f32 %v675, %v684
        %v694 = vmul.f32 %v677, %v688
        %v695 = vld [vmem:[%s428] sm:$0x3]
        %v697 = vlaneseq
        %v698 = vshrl.u32 %v697, 7
        %v699 = vsub.s32 0, %v698
        %v700 = vrot.slane %v695, %v699
        %v701 = vlaneseq
        %v702 = vshrl.u32 %v701, 7
        %v703 = vsub.s32 1, %v702
        %v704 = vrot.slane %v695, %v703
        %v707 = vadd.f32 %v691, %v700
        %v708 = vadd.f32 %v692, %v704
        %v709 = vadd.f32 %v693, %v700
        %v710 = vadd.f32 %v694, %v704
        %v711 = vpack.c.bf16 %v709, %v707
        %v712 = vpack.c.bf16 %v710, %v708
        %v715 = vunpack.c.l.b16 %v711
        %v716 = vunpack.c.l.b16 %v712
        %v717 = vunpack.c.h.b16 %v711
        %v718 = vunpack.c.h.b16 %v712
        %v719 = vpack.c.b16 %v716, %v715
        %v720 = vpack.c.b16 %v718, %v717
        %723 = vst [vmem:[%s411] sm:$0xff] %v719
        %724 = vst [vmem:[%s411 + $0x8] sm:$0xff] %v720
        %s725 = sand.u32 %s141, 1
        %s726 = sand.u32 %s141, 1
        %s727 = smul.addr %s726, 16
        %s728 = scalar_lea.vmem [#allocation3], %s727
        // Predicated region
        $region75: #{_lambda_.99} parent=69 // pred_check
          %p729 = pneg %p151
        $region76: #{_lambda_.99} parent=69 // pred_check_branch
          %731 = sbr.rel (%p729) target = $region78
        $region77: #{_lambda_.99} parent=69 // pred_region
          %s732 = smul.u32 2, %s19
          %s733 = smul.u32 2, %s20
          %s734 = smul.addr %s732, 4
          %s735 = sadd.s32 %s733, %s734
          %s736 = smul.addr %s735, 4
          %s737 = scalar_lea.vmem %s4, %s736
          // Predicated region
          $region79: #{_lambda_.99} parent=77 // pred_check
            _
          $region80: #{_lambda_.99} parent=77 // pred_check_branch
            %739 = sbr.rel (0) target = $region82
          $region81: #{_lambda_.99} parent=77 // pred_region
            // Predicated region
            $region83: #{_lambda_.99} parent=81 // pred_check
              _
            $region84: #{_lambda_.99} parent=81 // pred_check_branch
              %741 = sbr.rel (0) target = $region86
            $region85: #{_lambda_.99} parent=81 // pred_region
              // Predicated region
              $region98: #{_lambda_.99} parent=85 // pred_check
                _
              $region99: #{_lambda_.99} parent=85 // pred_check_branch
                %759 = sbr.rel (0) target = $region101
              $region100: #{_lambda_.99} parent=85 // pred_region
                loop: start=0, step=1, limit=1
                $region102: #{_lambda_.99} parent=100 // loop_pre_header
                  _
                $region103: #{_lambda_.99} parent=100 // loop_header
                  %s761 = sphi 0, %s765
                  %p762 = scmp.ge.s32.totalorder %s761, 1
                  %s766 = sphi %s728, %s728
                  %s767 = sphi %s737, %s737
                $region104: #{_lambda_.99} parent=100 // loop_header_branch
                  %764 = sbr.rel (%p762) target = $region108
                $region105: #{_lambda_.99} parent=100 // loop_body
                  %v768 = vld [vmem:[%s766] sm:$0xff]
                  %769 = vst [vmem:[%s767] sm:$0xff] %v768
                  %v770 = vld [vmem:[%s766 + $0x8] sm:$0xff]
                  %771 = vst [vmem:[%s767 + $0x10] sm:$0xff] %v770
                $region106: #{_lambda_.99} parent=100 // loop_footer
                  %s765 = sadd.s32 1, %s761
                $region107: #{_lambda_.99} parent=100 // loop_footer_branch
                  %760 = sbr.rel target = $region103
                $region108: #{_lambda_.99} parent=100 // loop_exit
                  _
              $region101: #{_lambda_.99} parent=85 // pred_fallthru
                _
              // Predicated region
              $region109: #{_lambda_.99} parent=85 // pred_check
                _
              $region110: #{_lambda_.99} parent=85 // pred_check_branch
                %773 = sbr.rel target = $region112
              $region111: #{_lambda_.99} parent=85 // pred_region
                _
              $region112: #{_lambda_.99} parent=85 // pred_fallthru
                _
            $region86: #{_lambda_.99} parent=81 // pred_fallthru
              _
            // Predicated region
            $region87: #{_lambda_.99} parent=81 // pred_check
              _
            $region88: #{_lambda_.99} parent=81 // pred_check_branch
              %743 = sbr.rel target = $region90
            $region89: #{_lambda_.99} parent=81 // pred_region
              %s745 = ssub.s32 256, 1
              loop: start=0, step=1, limit=1
              $region91: #{_lambda_.99} parent=89 // loop_pre_header
                _
              $region92: #{_lambda_.99} parent=89 // loop_header
                %s747 = sphi 0, %s751
                %p748 = scmp.ge.s32.totalorder %s747, 1
                %s752 = sphi %s728, %s728
                %s753 = sphi %s737, %s737
              $region93: #{_lambda_.99} parent=89 // loop_header_branch
                %750 = sbr.rel (%p748) target = $region97
              $region94: #{_lambda_.99} parent=89 // loop_body
                %v754 = vld [vmem:[%s752] sm:%s745]
                %755 = vst [vmem:[%s753] sm:%s745] %v754
                %v756 = vld [vmem:[%s752 + $0x8] sm:%s745]
                %757 = vst [vmem:[%s753 + $0x10] sm:%s745] %v756
              $region95: #{_lambda_.99} parent=89 // loop_footer
                %s751 = sadd.s32 1, %s747
              $region96: #{_lambda_.99} parent=89 // loop_footer_branch
                %746 = sbr.rel target = $region92
              $region97: #{_lambda_.99} parent=89 // loop_exit
                _
            $region90: #{_lambda_.99} parent=81 // pred_fallthru
              _
          $region82: #{_lambda_.99} parent=77 // pred_fallthru
            _
          %774 = vnop
        $region78: #{_lambda_.99} parent=69 // pred_fallthru
          _
      $region70: #{_lambda_.99} parent=5 // pred_fallthru
        _
      %p775 = scmp.le.s32.totalorder 2, %s10
      // Predicated region
      $region113: #{_lambda_.99} parent=5 // pred_check
        %p776 = pneg %p775
      $region114: #{_lambda_.99} parent=5 // pred_check_branch
        %778 = sbr.rel (%p776) target = $region116
      $region115: #{_lambda_.99} parent=5 // pred_region
        %s779 = ssub.s32 %s10, 2
        // Predicated region
        $region117: #{_lambda_.99} parent=115 // pred_check
          %p780 = pneg %p157
        $region118: #{_lambda_.99} parent=115 // pred_check_branch
          %782 = sbr.rel (%p780) target = $region120
        $region119: #{_lambda_.99} parent=115 // pred_region
          %s783 = sand.u32 %s142, 1
          %s784 = sand.u32 %s142, 1
          %s785 = smul.addr %s784, 16
          %s786 = scalar_lea.vmem [#allocation3], %s785
        $region120: #{_lambda_.99} parent=115 // pred_fallthru
          _
      $region116: #{_lambda_.99} parent=5 // pred_fallthru
        _
    $region6: #{_lambda_.99} parent=1 // loop_footer
      %s14 = sadd.s32 1, %s10
    $region7: #{_lambda_.99} parent=1 // loop_footer_branch
      %9 = sbr.rel target = $region3
    $region8: #{_lambda_.99} parent=1 // loop_exit
      _

// kernel: _lambda_.100
$region0: #{_lambda_.100}
  #allocation0 [shape = 'u32[]', space=smem, size = 0x4, offset = 0x4, fixed_abs, tag = 'smem constant byte address 0x4 - core index']
  #allocation1 [shape = 'u32[144,128]{1,0:T(1,128)}', space=vmem, size = 0x12000, scoped, tag = 'internal scratch']
  %s0 = inlined_call_operand.vmem [shape: bf16[16,1280], index: 0, kind: input, shape index: {}]
  %s1 = inlined_call_operand.vmem [shape: bf16[1280,256], index: 1, kind: input, shape index: {}]
  %s2 = inlined_call_operand.vmem [shape: f32[1,256], index: 2, kind: input, shape index: {}]
  %s3 = inlined_call_operand.vmem [shape: f32[1,256], index: 3, kind: input, shape index: {}]
  %s4 = inlined_call_operand.vmem [shape: bf16[16,256], index: 4, kind: output, shape index: {}]
  %s5 = sld [smem:[#allocation0]]
  $region26: #{_lambda_.100} parent=0
    _
  %s7 = ssub.s32 1, %s5
  %s8 = scalar_select 0, %s7, %s5
  // Predicated region
  $region2: #{_lambda_.100} parent=0 // pred_check
    _
  $region3: #{_lambda_.100} parent=0 // pred_check_branch
    %10 = sbr.rel (0) target = $region5
  $region4: #{_lambda_.100} parent=0 // pred_region
    _
  $region5: #{_lambda_.100} parent=0 // pred_fallthru
    _
  // Predicated region
  $region6: #{_lambda_.100} parent=0 // pred_check
    _
  $region7: #{_lambda_.100} parent=0 // pred_check_branch
    %12 = sbr.rel (0) target = $region9
  $region8: #{_lambda_.100} parent=0 // pred_region
    _
  $region9: #{_lambda_.100} parent=0 // pred_fallthru
    _
  // Predicated region
  $region10: #{_lambda_.100} parent=0 // pred_check
    _
  $region11: #{_lambda_.100} parent=0 // pred_check_branch
    %14 = sbr.rel (0) target = $region13
  $region12: #{_lambda_.100} parent=0 // pred_region
    _
  $region13: #{_lambda_.100} parent=0 // pred_fallthru
    _
  // Predicated region
  $region14: #{_lambda_.100} parent=0 // pred_check
    _
  $region15: #{_lambda_.100} parent=0 // pred_check_branch
    %16 = sbr.rel (0) target = $region17
  $region16: #{_lambda_.100} parent=0 // pred_region
    _
  $region17: #{_lambda_.100} parent=0 // pred_fallthru
    _
  %v17 = vld [vmem:[%s0] sm:$0xff]
  %v18 = vld [vmem:[%s0 + $0x8] sm:$0xff]
  %v19 = vld [vmem:[%s0 + $0x10] sm:$0xff]
  %v20 = vld [vmem:[%s0 + $0x18] sm:$0xff]
  %v21 = vld [vmem:[%s0 + $0x20] sm:$0xff]
  %v22 = vld [vmem:[%s0 + $0x28] sm:$0xff]
  %v23 = vld [vmem:[%s0 + $0x30] sm:$0xff]
  %v24 = vld [vmem:[%s0 + $0x38] sm:$0xff]
  %v25 = vld [vmem:[%s0 + $0x40] sm:$0xff]
  %v26 = vld [vmem:[%s0 + $0x48] sm:$0xff]
  %v27 = vld [vmem:[%s1] sm:$0xff]
  %v28 = vld [vmem:[%s1 + $0x8] sm:$0xff]
  %v29 = vld [vmem:[%s1 + $0x10] sm:$0xff]
  %v30 = vld [vmem:[%s1 + $0x18] sm:$0xff]
  %v31 = vld [vmem:[%s1 + $0x20] sm:$0xff]
  %v32 = vld [vmem:[%s1 + $0x28] sm:$0xff]
  %v33 = vld [vmem:[%s1 + $0x30] sm:$0xff]
  %v34 = vld [vmem:[%s1 + $0x38] sm:$0xff]
  %v35 = vld [vmem:[%s1 + $0x40] sm:$0xff]
  %v36 = vld [vmem:[%s1 + $0x48] sm:$0xff]
  %v37 = vld [vmem:[%s1 + $0x50] sm:$0xff]
  %v38 = vld [vmem:[%s1 + $0x58] sm:$0xff]
  %v39 = vld [vmem:[%s1 + $0x60] sm:$0xff]
  %v40 = vld [vmem:[%s1 + $0x68] sm:$0xff]
  %v41 = vld [vmem:[%s1 + $0x70] sm:$0xff]
  %v42 = vld [vmem:[%s1 + $0x78] sm:$0xff]
  %v43 = vld [vmem:[%s1 + $0x80] sm:$0xff]
  %v44 = vld [vmem:[%s1 + $0x88] sm:$0xff]
  %v45 = vld [vmem:[%s1 + $0x90] sm:$0xff]
  %v46 = vld [vmem:[%s1 + $0x98] sm:$0xff]
  %v47 = vld [vmem:[%s1 + $0xa0] sm:$0xff]
  %v48 = vld [vmem:[%s1 + $0xa8] sm:$0xff]
  %v49 = vld [vmem:[%s1 + $0xb0] sm:$0xff]
  %v50 = vld [vmem:[%s1 + $0xb8] sm:$0xff]
  %v51 = vld [vmem:[%s1 + $0xc0] sm:$0xff]
  %v52 = vld [vmem:[%s1 + $0xc8] sm:$0xff]
  %v53 = vld [vmem:[%s1 + $0xd0] sm:$0xff]
  %v54 = vld [vmem:[%s1 + $0xd8] sm:$0xff]
  %v55 = vld [vmem:[%s1 + $0xe0] sm:$0xff]
  %v56 = vld [vmem:[%s1 + $0xe8] sm:$0xff]
  %v57 = vld [vmem:[%s1 + $0xf0] sm:$0xff]
  %v58 = vld [vmem:[%s1 + $0xf8] sm:$0xff]
  %v59 = vld [vmem:[%s1 + $0x100] sm:$0xff]
  %v60 = vld [vmem:[%s1 + $0x108] sm:$0xff]
  %v61 = vld [vmem:[%s1 + $0x110] sm:$0xff]
  %v62 = vld [vmem:[%s1 + $0x118] sm:$0xff]
  %v63 = vld [vmem:[%s1 + $0x120] sm:$0xff]
  %v64 = vld [vmem:[%s1 + $0x128] sm:$0xff]
  %v65 = vld [vmem:[%s1 + $0x130] sm:$0xff]
  %v66 = vld [vmem:[%s1 + $0x138] sm:$0xff]
  %v67 = vld [vmem:[%s1 + $0x140] sm:$0xff]
  %v68 = vld [vmem:[%s1 + $0x148] sm:$0xff]
  %v69 = vld [vmem:[%s1 + $0x150] sm:$0xff]
  %v70 = vld [vmem:[%s1 + $0x158] sm:$0xff]
  %v71 = vld [vmem:[%s1 + $0x160] sm:$0xff]
  %v72 = vld [vmem:[%s1 + $0x168] sm:$0xff]
  %v73 = vld [vmem:[%s1 + $0x170] sm:$0xff]
  %v74 = vld [vmem:[%s1 + $0x178] sm:$0xff]
  %v75 = vld [vmem:[%s1 + $0x180] sm:$0xff]
  %v76 = vld [vmem:[%s1 + $0x188] sm:$0xff]
  %v77 = vld [vmem:[%s1 + $0x190] sm:$0xff]
  %v78 = vld [vmem:[%s1 + $0x198] sm:$0xff]
  %v79 = vld [vmem:[%s1 + $0x1a0] sm:$0xff]
  %v80 = vld [vmem:[%s1 + $0x1a8] sm:$0xff]
  %v81 = vld [vmem:[%s1 + $0x1b0] sm:$0xff]
  %v82 = vld [vmem:[%s1 + $0x1b8] sm:$0xff]
  %v83 = vld [vmem:[%s1 + $0x1c0] sm:$0xff]
  %v84 = vld [vmem:[%s1 + $0x1c8] sm:$0xff]
  %v85 = vld [vmem:[%s1 + $0x1d0] sm:$0xff]
  %v86 = vld [vmem:[%s1 + $0x1d8] sm:$0xff]
  %v87 = vld [vmem:[%s1 + $0x1e0] sm:$0xff]
  %v88 = vld [vmem:[%s1 + $0x1e8] sm:$0xff]
  %v89 = vld [vmem:[%s1 + $0x1f0] sm:$0xff]
  %v90 = vld [vmem:[%s1 + $0x1f8] sm:$0xff]
  %v91 = vld [vmem:[%s1 + $0x200] sm:$0xff]
  %v92 = vld [vmem:[%s1 + $0x208] sm:$0xff]
  %v93 = vld [vmem:[%s1 + $0x210] sm:$0xff]
  %v94 = vld [vmem:[%s1 + $0x218] sm:$0xff]
  %v95 = vld [vmem:[%s1 + $0x220] sm:$0xff]
  %v96 = vld [vmem:[%s1 + $0x228] sm:$0xff]
  %v97 = vld [vmem:[%s1 + $0x230] sm:$0xff]
  %v98 = vld [vmem:[%s1 + $0x238] sm:$0xff]
  %v99 = vld [vmem:[%s1 + $0x240] sm:$0xff]
  %v100 = vld [vmem:[%s1 + $0x248] sm:$0xff]
  %v101 = vld [vmem:[%s1 + $0x250] sm:$0xff]
  %v102 = vld [vmem:[%s1 + $0x258] sm:$0xff]
  %v103 = vld [vmem:[%s1 + $0x260] sm:$0xff]
  %v104 = vld [vmem:[%s1 + $0x268] sm:$0xff]
  %v105 = vld [vmem:[%s1 + $0x270] sm:$0xff]
  %v106 = vld [vmem:[%s1 + $0x278] sm:$0xff]
  %v107 = vld [vmem:[%s1 + $0x280] sm:$0xff]
  %v108 = vld [vmem:[%s1 + $0x288] sm:$0xff]
  %v109 = vld [vmem:[%s1 + $0x290] sm:$0xff]
  %v110 = vld [vmem:[%s1 + $0x298] sm:$0xff]
  %v111 = vld [vmem:[%s1 + $0x2a0] sm:$0xff]
  %v112 = vld [vmem:[%s1 + $0x2a8] sm:$0xff]
  %v113 = vld [vmem:[%s1 + $0x2b0] sm:$0xff]
  %v114 = vld [vmem:[%s1 + $0x2b8] sm:$0xff]
  %v115 = vld [vmem:[%s1 + $0x2c0] sm:$0xff]
  %v116 = vld [vmem:[%s1 + $0x2c8] sm:$0xff]
  %v117 = vld [vmem:[%s1 + $0x2d0] sm:$0xff]
  %v118 = vld [vmem:[%s1 + $0x2d8] sm:$0xff]
  %v119 = vld [vmem:[%s1 + $0x2e0] sm:$0xff]
  %v120 = vld [vmem:[%s1 + $0x2e8] sm:$0xff]
  %v121 = vld [vmem:[%s1 + $0x2f0] sm:$0xff]
  %v122 = vld [vmem:[%s1 + $0x2f8] sm:$0xff]
  %v123 = vld [vmem:[%s1 + $0x300] sm:$0xff]
  %v124 = vld [vmem:[%s1 + $0x308] sm:$0xff]
  %v125 = vld [vmem:[%s1 + $0x310] sm:$0xff]
  %v126 = vld [vmem:[%s1 + $0x318] sm:$0xff]
  %v127 = vld [vmem:[%s1 + $0x320] sm:$0xff]
  %v128 = vld [vmem:[%s1 + $0x328] sm:$0xff]
  %v129 = vld [vmem:[%s1 + $0x330] sm:$0xff]
  %v130 = vld [vmem:[%s1 + $0x338] sm:$0xff]
  %v131 = vld [vmem:[%s1 + $0x340] sm:$0xff]
  %v132 = vld [vmem:[%s1 + $0x348] sm:$0xff]
  %v133 = vld [vmem:[%s1 + $0x350] sm:$0xff]
  %v134 = vld [vmem:[%s1 + $0x358] sm:$0xff]
  %v135 = vld [vmem:[%s1 + $0x360] sm:$0xff]
  %v136 = vld [vmem:[%s1 + $0x368] sm:$0xff]
  %v137 = vld [vmem:[%s1 + $0x370] sm:$0xff]
  %v138 = vld [vmem:[%s1 + $0x378] sm:$0xff]
  %v139 = vld [vmem:[%s1 + $0x380] sm:$0xff]
  %v140 = vld [vmem:[%s1 + $0x388] sm:$0xff]
  %v141 = vld [vmem:[%s1 + $0x390] sm:$0xff]
  %v142 = vld [vmem:[%s1 + $0x398] sm:$0xff]
  %v143 = vld [vmem:[%s1 + $0x3a0] sm:$0xff]
  %v144 = vld [vmem:[%s1 + $0x3a8] sm:$0xff]
  %v145 = vld [vmem:[%s1 + $0x3b0] sm:$0xff]
  %v146 = vld [vmem:[%s1 + $0x3b8] sm:$0xff]
  %v147 = vld [vmem:[%s1 + $0x3c0] sm:$0xff]
  %v148 = vld [vmem:[%s1 + $0x3c8] sm:$0xff]
  %v149 = vld [vmem:[%s1 + $0x3d0] sm:$0xff]
  %v150 = vld [vmem:[%s1 + $0x3d8] sm:$0xff]
  %v151 = vld [vmem:[%s1 + $0x3e0] sm:$0xff]
  %v152 = vld [vmem:[%s1 + $0x3e8] sm:$0xff]
  %v153 = vld [vmem:[%s1 + $0x3f0] sm:$0xff]
  %v154 = vld [vmem:[%s1 + $0x3f8] sm:$0xff]
  %v155 = vld [vmem:[%s1 + $0x400] sm:$0xff]
  %v156 = vld [vmem:[%s1 + $0x408] sm:$0xff]
  %v157 = vld [vmem:[%s1 + $0x410] sm:$0xff]
  %v158 = vld [vmem:[%s1 + $0x418] sm:$0xff]
  %v159 = vld [vmem:[%s1 + $0x420] sm:$0xff]
  %v160 = vld [vmem:[%s1 + $0x428] sm:$0xff]
  %v161 = vld [vmem:[%s1 + $0x430] sm:$0xff]
  %v162 = vld [vmem:[%s1 + $0x438] sm:$0xff]
  %v163 = vld [vmem:[%s1 + $0x440] sm:$0xff]
  %v164 = vld [vmem:[%s1 + $0x448] sm:$0xff]
  %v165 = vld [vmem:[%s1 + $0x450] sm:$0xff]
  %v166 = vld [vmem:[%s1 + $0x458] sm:$0xff]
  %v167 = vld [vmem:[%s1 + $0x460] sm:$0xff]
  %v168 = vld [vmem:[%s1 + $0x468] sm:$0xff]
  %v169 = vld [vmem:[%s1 + $0x470] sm:$0xff]
  %v170 = vld [vmem:[%s1 + $0x478] sm:$0xff]
  %v171 = vld [vmem:[%s1 + $0x480] sm:$0xff]
  %v172 = vld [vmem:[%s1 + $0x488] sm:$0xff]
  %v173 = vld [vmem:[%s1 + $0x490] sm:$0xff]
  %v174 = vld [vmem:[%s1 + $0x498] sm:$0xff]
  %v175 = vld [vmem:[%s1 + $0x4a0] sm:$0xff]
  %v176 = vld [vmem:[%s1 + $0x4a8] sm:$0xff]
  %v177 = vld [vmem:[%s1 + $0x4b0] sm:$0xff]
  %v178 = vld [vmem:[%s1 + $0x4b8] sm:$0xff]
  %v179 = vld [vmem:[%s1 + $0x4c0] sm:$0xff]
  %v180 = vld [vmem:[%s1 + $0x4c8] sm:$0xff]
  %v181 = vld [vmem:[%s1 + $0x4d0] sm:$0xff]
  %v182 = vld [vmem:[%s1 + $0x4d8] sm:$0xff]
  %v183 = vld [vmem:[%s1 + $0x4e0] sm:$0xff]
  %v184 = vld [vmem:[%s1 + $0x4e8] sm:$0xff]
  %v185 = vld [vmem:[%s1 + $0x4f0] sm:$0xff]
  %v186 = vld [vmem:[%s1 + $0x4f8] sm:$0xff]
  %v197 = vunpack.c.l.b16 %v17
  %v198 = vunpack.c.h.b16 %v17
  %v199 = vunpack.c.l.b16 %v18
  %v200 = vunpack.c.h.b16 %v18
  %v201 = vunpack.c.l.b16 %v19
  %v202 = vunpack.c.h.b16 %v19
  %v203 = vunpack.c.l.b16 %v20
  %v204 = vunpack.c.h.b16 %v20
  %v205 = vunpack.c.l.b16 %v21
  %v206 = vunpack.c.h.b16 %v21
  %v207 = vunpack.c.l.b16 %v22
  %v208 = vunpack.c.h.b16 %v22
  %v209 = vunpack.c.l.b16 %v23
  %v210 = vunpack.c.h.b16 %v23
  %v211 = vunpack.c.l.b16 %v24
  %v212 = vunpack.c.h.b16 %v24
  %v213 = vunpack.c.l.b16 %v25
  %v214 = vunpack.c.h.b16 %v25
  %v215 = vunpack.c.l.b16 %v26
  %v216 = vunpack.c.h.b16 %v26
  %v217 = vpack.c.b16 %v207, %v197
  %v218 = vpack.c.b16 %v208, %v198
  %v219 = vpack.c.b16 %v209, %v199
  %v220 = vpack.c.b16 %v210, %v200
  %v221 = vpack.c.b16 %v211, %v201
  %v222 = vpack.c.b16 %v212, %v202
  %v223 = vpack.c.b16 %v213, %v203
  %v224 = vpack.c.b16 %v214, %v204
  %v225 = vpack.c.b16 %v215, %v205
  %v226 = vpack.c.b16 %v216, %v206
  %v397 = vunpack.c.l.b16 %v27
  %v398 = vunpack.c.h.b16 %v27
  %v399 = vunpack.c.l.b16 %v28
  %v400 = vunpack.c.h.b16 %v28
  %v401 = vunpack.c.l.b16 %v29
  %v402 = vunpack.c.h.b16 %v29
  %v403 = vunpack.c.l.b16 %v30
  %v404 = vunpack.c.h.b16 %v30
  %v405 = vunpack.c.l.b16 %v31
  %v406 = vunpack.c.h.b16 %v31
  %v407 = vunpack.c.l.b16 %v32
  %v408 = vunpack.c.h.b16 %v32
  %v409 = vunpack.c.l.b16 %v33
  %v410 = vunpack.c.h.b16 %v33
  %v411 = vunpack.c.l.b16 %v34
  %v412 = vunpack.c.h.b16 %v34
  %v413 = vunpack.c.l.b16 %v35
  %v414 = vunpack.c.h.b16 %v35
  %v415 = vunpack.c.l.b16 %v36
  %v416 = vunpack.c.h.b16 %v36
  %v417 = vunpack.c.l.b16 %v37
  %v418 = vunpack.c.h.b16 %v37
  %v419 = vunpack.c.l.b16 %v38
  %v420 = vunpack.c.h.b16 %v38
  %v421 = vunpack.c.l.b16 %v39
  %v422 = vunpack.c.h.b16 %v39
  %v423 = vunpack.c.l.b16 %v40
  %v424 = vunpack.c.h.b16 %v40
  %v425 = vunpack.c.l.b16 %v41
  %v426 = vunpack.c.h.b16 %v41
  %v427 = vunpack.c.l.b16 %v42
  %v428 = vunpack.c.h.b16 %v42
  %v429 = vunpack.c.l.b16 %v43
  %v430 = vunpack.c.h.b16 %v43
  %v431 = vunpack.c.l.b16 %v44
  %v432 = vunpack.c.h.b16 %v44
  %v433 = vunpack.c.l.b16 %v45
  %v434 = vunpack.c.h.b16 %v45
  %v435 = vunpack.c.l.b16 %v46
  %v436 = vunpack.c.h.b16 %v46
  %v437 = vunpack.c.l.b16 %v47
  %v438 = vunpack.c.h.b16 %v47
  %v439 = vunpack.c.l.b16 %v48
  %v440 = vunpack.c.h.b16 %v48
  %v441 = vunpack.c.l.b16 %v49
  %v442 = vunpack.c.h.b16 %v49
  %v443 = vunpack.c.l.b16 %v50
  %v444 = vunpack.c.h.b16 %v50
  %v445 = vunpack.c.l.b16 %v51
  %v446 = vunpack.c.h.b16 %v51
  %v447 = vunpack.c.l.b16 %v52
  %v448 = vunpack.c.h.b16 %v52
  %v449 = vunpack.c.l.b16 %v53
  %v450 = vunpack.c.h.b16 %v53
  %v451 = vunpack.c.l.b16 %v54
  %v452 = vunpack.c.h.b16 %v54
  %v453 = vunpack.c.l.b16 %v55
  %v454 = vunpack.c.h.b16 %v55
  %v455 = vunpack.c.l.b16 %v56
  %v456 = vunpack.c.h.b16 %v56
  %v457 = vunpack.c.l.b16 %v57
  %v458 = vunpack.c.h.b16 %v57
  %v459 = vunpack.c.l.b16 %v58
  %v460 = vunpack.c.h.b16 %v58
  %v461 = vunpack.c.l.b16 %v59
  %v462 = vunpack.c.h.b16 %v59
  %v463 = vunpack.c.l.b16 %v60
  %v464 = vunpack.c.h.b16 %v60
  %v465 = vunpack.c.l.b16 %v61
  %v466 = vunpack.c.h.b16 %v61
  %v467 = vunpack.c.l.b16 %v62
  %v468 = vunpack.c.h.b16 %v62
  %v469 = vunpack.c.l.b16 %v63
  %v470 = vunpack.c.h.b16 %v63
  %v471 = vunpack.c.l.b16 %v64
  %v472 = vunpack.c.h.b16 %v64
  %v473 = vunpack.c.l.b16 %v65
  %v474 = vunpack.c.h.b16 %v65
  %v475 = vunpack.c.l.b16 %v66
  %v476 = vunpack.c.h.b16 %v66
  %v477 = vunpack.c.l.b16 %v67
  %v478 = vunpack.c.h.b16 %v67
  %v479 = vunpack.c.l.b16 %v68
  %v480 = vunpack.c.h.b16 %v68
  %v481 = vunpack.c.l.b16 %v69
  %v482 = vunpack.c.h.b16 %v69
  %v483 = vunpack.c.l.b16 %v70
  %v484 = vunpack.c.h.b16 %v70
  %v485 = vunpack.c.l.b16 %v71
  %v486 = vunpack.c.h.b16 %v71
  %v487 = vunpack.c.l.b16 %v72
  %v488 = vunpack.c.h.b16 %v72
  %v489 = vunpack.c.l.b16 %v73
  %v490 = vunpack.c.h.b16 %v73
  %v491 = vunpack.c.l.b16 %v74
  %v492 = vunpack.c.h.b16 %v74
  %v493 = vunpack.c.l.b16 %v75
  %v494 = vunpack.c.h.b16 %v75
  %v495 = vunpack.c.l.b16 %v76
  %v496 = vunpack.c.h.b16 %v76
  %v497 = vunpack.c.l.b16 %v77
  %v498 = vunpack.c.h.b16 %v77
  %v499 = vunpack.c.l.b16 %v78
  %v500 = vunpack.c.h.b16 %v78
  %v501 = vunpack.c.l.b16 %v79
  %v502 = vunpack.c.h.b16 %v79
  %v503 = vunpack.c.l.b16 %v80
  %v504 = vunpack.c.h.b16 %v80
  %v505 = vunpack.c.l.b16 %v81
  %v506 = vunpack.c.h.b16 %v81
  %v507 = vunpack.c.l.b16 %v82
  %v508 = vunpack.c.h.b16 %v82
  %v509 = vunpack.c.l.b16 %v83
  %v510 = vunpack.c.h.b16 %v83
  %v511 = vunpack.c.l.b16 %v84
  %v512 = vunpack.c.h.b16 %v84
  %v513 = vunpack.c.l.b16 %v85
  %v514 = vunpack.c.h.b16 %v85
  %v515 = vunpack.c.l.b16 %v86
  %v516 = vunpack.c.h.b16 %v86
  %v517 = vunpack.c.l.b16 %v87
  %v518 = vunpack.c.h.b16 %v87
  %v519 = vunpack.c.l.b16 %v88
  %v520 = vunpack.c.h.b16 %v88
  %v521 = vunpack.c.l.b16 %v89
  %v522 = vunpack.c.h.b16 %v89
  %v523 = vunpack.c.l.b16 %v90
  %v524 = vunpack.c.h.b16 %v90
  %v525 = vunpack.c.l.b16 %v91
  %v526 = vunpack.c.h.b16 %v91
  %v527 = vunpack.c.l.b16 %v92
  %v528 = vunpack.c.h.b16 %v92
  %v529 = vunpack.c.l.b16 %v93
  %v530 = vunpack.c.h.b16 %v93
  %v531 = vunpack.c.l.b16 %v94
  %v532 = vunpack.c.h.b16 %v94
  %v533 = vunpack.c.l.b16 %v95
  %v534 = vunpack.c.h.b16 %v95
  %v535 = vunpack.c.l.b16 %v96
  %v536 = vunpack.c.h.b16 %v96
  %v537 = vunpack.c.l.b16 %v97
  %v538 = vunpack.c.h.b16 %v97
  %v539 = vunpack.c.l.b16 %v98
  %v540 = vunpack.c.h.b16 %v98
  %v541 = vunpack.c.l.b16 %v99
  %v542 = vunpack.c.h.b16 %v99
  %v543 = vunpack.c.l.b16 %v100
  %v544 = vunpack.c.h.b16 %v100
  %v545 = vunpack.c.l.b16 %v101
  %v546 = vunpack.c.h.b16 %v101
  %v547 = vunpack.c.l.b16 %v102
  %v548 = vunpack.c.h.b16 %v102
  %v549 = vunpack.c.l.b16 %v103
  %v550 = vunpack.c.h.b16 %v103
  %v551 = vunpack.c.l.b16 %v104
  %v552 = vunpack.c.h.b16 %v104
  %v553 = vunpack.c.l.b16 %v105
  %v554 = vunpack.c.h.b16 %v105
  %v555 = vunpack.c.l.b16 %v106
  %v556 = vunpack.c.h.b16 %v106
  %v557 = vunpack.c.l.b16 %v107
  %v558 = vunpack.c.h.b16 %v107
  %v559 = vunpack.c.l.b16 %v108
  %v560 = vunpack.c.h.b16 %v108
  %v561 = vunpack.c.l.b16 %v109
  %v562 = vunpack.c.h.b16 %v109
  %v563 = vunpack.c.l.b16 %v110
  %v564 = vunpack.c.h.b16 %v110
  %v565 = vunpack.c.l.b16 %v111
  %v566 = vunpack.c.h.b16 %v111
  %v567 = vunpack.c.l.b16 %v112
  %v568 = vunpack.c.h.b16 %v112
  %v569 = vunpack.c.l.b16 %v113
  %v570 = vunpack.c.h.b16 %v113
  %v571 = vunpack.c.l.b16 %v114
  %v572 = vunpack.c.h.b16 %v114
  %v573 = vunpack.c.l.b16 %v115
  %v574 = vunpack.c.h.b16 %v115
  %v575 = vunpack.c.l.b16 %v116
  %v576 = vunpack.c.h.b16 %v116
  %v577 = vunpack.c.l.b16 %v117
  %v578 = vunpack.c.h.b16 %v117
  %v579 = vunpack.c.l.b16 %v118
  %v580 = vunpack.c.h.b16 %v118
  %v581 = vunpack.c.l.b16 %v119
  %v582 = vunpack.c.h.b16 %v119
  %v583 = vunpack.c.l.b16 %v120
  %v584 = vunpack.c.h.b16 %v120
  %v585 = vunpack.c.l.b16 %v121
  %v586 = vunpack.c.h.b16 %v121
  %v587 = vunpack.c.l.b16 %v122
  %v588 = vunpack.c.h.b16 %v122
  %v589 = vunpack.c.l.b16 %v123
  %v590 = vunpack.c.h.b16 %v123
  %v591 = vunpack.c.l.b16 %v124
  %v592 = vunpack.c.h.b16 %v124
  %v593 = vunpack.c.l.b16 %v125
  %v594 = vunpack.c.h.b16 %v125
  %v595 = vunpack.c.l.b16 %v126
  %v596 = vunpack.c.h.b16 %v126
  %v597 = vunpack.c.l.b16 %v127
  %v598 = vunpack.c.h.b16 %v127
  %v599 = vunpack.c.l.b16 %v128
  %v600 = vunpack.c.h.b16 %v128
  %v601 = vunpack.c.l.b16 %v129
  %v602 = vunpack.c.h.b16 %v129
  %v603 = vunpack.c.l.b16 %v130
  %v604 = vunpack.c.h.b16 %v130
  %v605 = vunpack.c.l.b16 %v131
  %v606 = vunpack.c.h.b16 %v131
  %v607 = vunpack.c.l.b16 %v132
  %v608 = vunpack.c.h.b16 %v132
  %v609 = vunpack.c.l.b16 %v133
  %v610 = vunpack.c.h.b16 %v133
  %v611 = vunpack.c.l.b16 %v134
  %v612 = vunpack.c.h.b16 %v134
  %v613 = vunpack.c.l.b16 %v135
  %v614 = vunpack.c.h.b16 %v135
  %v615 = vunpack.c.l.b16 %v136
  %v616 = vunpack.c.h.b16 %v136
  %v617 = vunpack.c.l.b16 %v137
  %v618 = vunpack.c.h.b16 %v137
  %v619 = vunpack.c.l.b16 %v138
  %v620 = vunpack.c.h.b16 %v138
  %v621 = vunpack.c.l.b16 %v139
  %v622 = vunpack.c.h.b16 %v139
  %v623 = vunpack.c.l.b16 %v140
  %v624 = vunpack.c.h.b16 %v140
  %v625 = vunpack.c.l.b16 %v141
  %v626 = vunpack.c.h.b16 %v141
  %v627 = vunpack.c.l.b16 %v142
  %v628 = vunpack.c.h.b16 %v142
  %v629 = vunpack.c.l.b16 %v143
  %v630 = vunpack.c.h.b16 %v143
  %v631 = vunpack.c.l.b16 %v144
  %v632 = vunpack.c.h.b16 %v144
  %v633 = vunpack.c.l.b16 %v145
  %v634 = vunpack.c.h.b16 %v145
  %v635 = vunpack.c.l.b16 %v146
  %v636 = vunpack.c.h.b16 %v146
  %v637 = vunpack.c.l.b16 %v147
  %v638 = vunpack.c.h.b16 %v147
  %v639 = vunpack.c.l.b16 %v148
  %v640 = vunpack.c.h.b16 %v148
  %v641 = vunpack.c.l.b16 %v149
  %v642 = vunpack.c.h.b16 %v149
  %v643 = vunpack.c.l.b16 %v150
  %v644 = vunpack.c.h.b16 %v150
  %v645 = vunpack.c.l.b16 %v151
  %v646 = vunpack.c.h.b16 %v151
  %v647 = vunpack.c.l.b16 %v152
  %v648 = vunpack.c.h.b16 %v152
  %v649 = vunpack.c.l.b16 %v153
  %v650 = vunpack.c.h.b16 %v153
  %v651 = vunpack.c.l.b16 %v154
  %v652 = vunpack.c.h.b16 %v154
  %v653 = vunpack.c.l.b16 %v155
  %v654 = vunpack.c.h.b16 %v155
  %v655 = vunpack.c.l.b16 %v156
  %v656 = vunpack.c.h.b16 %v156
  %v657 = vunpack.c.l.b16 %v157
  %v658 = vunpack.c.h.b16 %v157
  %v659 = vunpack.c.l.b16 %v158
  %v660 = vunpack.c.h.b16 %v158
  %v661 = vunpack.c.l.b16 %v159
  %v662 = vunpack.c.h.b16 %v159
  %v663 = vunpack.c.l.b16 %v160
  %v664 = vunpack.c.h.b16 %v160
  %v665 = vunpack.c.l.b16 %v161
  %v666 = vunpack.c.h.b16 %v161
  %v667 = vunpack.c.l.b16 %v162
  %v668 = vunpack.c.h.b16 %v162
  %v669 = vunpack.c.l.b16 %v163
  %v670 = vunpack.c.h.b16 %v163
  %v671 = vunpack.c.l.b16 %v164
  %v672 = vunpack.c.h.b16 %v164
  %v673 = vunpack.c.l.b16 %v165
  %v674 = vunpack.c.h.b16 %v165
  %v675 = vunpack.c.l.b16 %v166
  %v676 = vunpack.c.h.b16 %v166
  %v677 = vunpack.c.l.b16 %v167
  %v678 = vunpack.c.h.b16 %v167
  %v679 = vunpack.c.l.b16 %v168
  %v680 = vunpack.c.h.b16 %v168
  %v681 = vunpack.c.l.b16 %v169
  %v682 = vunpack.c.h.b16 %v169
  %v683 = vunpack.c.l.b16 %v170
  %v684 = vunpack.c.h.b16 %v170
  %v685 = vunpack.c.l.b16 %v171
  %v686 = vunpack.c.h.b16 %v171
  %v687 = vunpack.c.l.b16 %v172
  %v688 = vunpack.c.h.b16 %v172
  %v689 = vunpack.c.l.b16 %v173
  %v690 = vunpack.c.h.b16 %v173
  %v691 = vunpack.c.l.b16 %v174
  %v692 = vunpack.c.h.b16 %v174
  %v693 = vunpack.c.l.b16 %v175
  %v694 = vunpack.c.h.b16 %v175
  %v695 = vunpack.c.l.b16 %v176
  %v696 = vunpack.c.h.b16 %v176
  %v697 = vunpack.c.l.b16 %v177
  %v698 = vunpack.c.h.b16 %v177
  %v699 = vunpack.c.l.b16 %v178
  %v700 = vunpack.c.h.b16 %v178
  %v701 = vunpack.c.l.b16 %v179
  %v702 = vunpack.c.h.b16 %v179
  %v703 = vunpack.c.l.b16 %v180
  %v704 = vunpack.c.h.b16 %v180
  %v705 = vunpack.c.l.b16 %v181
  %v706 = vunpack.c.h.b16 %v181
  %v707 = vunpack.c.l.b16 %v182
  %v708 = vunpack.c.h.b16 %v182
  %v709 = vunpack.c.l.b16 %v183
  %v710 = vunpack.c.h.b16 %v183
  %v711 = vunpack.c.l.b16 %v184
  %v712 = vunpack.c.h.b16 %v184
  %v713 = vunpack.c.l.b16 %v185
  %v714 = vunpack.c.h.b16 %v185
  %v715 = vunpack.c.l.b16 %v186
  %v716 = vunpack.c.h.b16 %v186
  %v717 = vpack.c.b16 %v399, %v397
  %v718 = vpack.c.b16 %v400, %v398
  %v719 = vpack.c.b16 %v403, %v401
  %v720 = vpack.c.b16 %v404, %v402
  %v721 = vpack.c.b16 %v407, %v405
  %v722 = vpack.c.b16 %v408, %v406
  %v723 = vpack.c.b16 %v411, %v409
  %v724 = vpack.c.b16 %v412, %v410
  %v725 = vpack.c.b16 %v415, %v413
  %v726 = vpack.c.b16 %v416, %v414
  %v727 = vpack.c.b16 %v419, %v417
  %v728 = vpack.c.b16 %v420, %v418
  %v729 = vpack.c.b16 %v423, %v421
  %v730 = vpack.c.b16 %v424, %v422
  %v731 = vpack.c.b16 %v427, %v425
  %v732 = vpack.c.b16 %v428, %v426
  %v733 = vpack.c.b16 %v431, %v429
  %v734 = vpack.c.b16 %v432, %v430
  %v735 = vpack.c.b16 %v435, %v433
  %v736 = vpack.c.b16 %v436, %v434
  %v737 = vpack.c.b16 %v439, %v437
  %v738 = vpack.c.b16 %v440, %v438
  %v739 = vpack.c.b16 %v443, %v441
  %v740 = vpack.c.b16 %v444, %v442
  %v741 = vpack.c.b16 %v447, %v445
  %v742 = vpack.c.b16 %v448, %v446
  %v743 = vpack.c.b16 %v451, %v449
  %v744 = vpack.c.b16 %v452, %v450
  %v745 = vpack.c.b16 %v455, %v453
  %v746 = vpack.c.b16 %v456, %v454
  %v747 = vpack.c.b16 %v459, %v457
  %v748 = vpack.c.b16 %v460, %v458
  %v749 = vpack.c.b16 %v463, %v461
  %v750 = vpack.c.b16 %v464, %v462
  %v751 = vpack.c.b16 %v467, %v465
  %v752 = vpack.c.b16 %v468, %v466
  %v753 = vpack.c.b16 %v471, %v469
  %v754 = vpack.c.b16 %v472, %v470
  %v755 = vpack.c.b16 %v475, %v473
  %v756 = vpack.c.b16 %v476, %v474
  %v757 = vpack.c.b16 %v479, %v477
  %v758 = vpack.c.b16 %v480, %v478
  %v759 = vpack.c.b16 %v483, %v481
  %v760 = vpack.c.b16 %v484, %v482
  %v761 = vpack.c.b16 %v487, %v485
  %v762 = vpack.c.b16 %v488, %v486
  %v763 = vpack.c.b16 %v491, %v489
  %v764 = vpack.c.b16 %v492, %v490
  %v765 = vpack.c.b16 %v495, %v493
  %v766 = vpack.c.b16 %v496, %v494
  %v767 = vpack.c.b16 %v499, %v497
  %v768 = vpack.c.b16 %v500, %v498
  %v769 = vpack.c.b16 %v503, %v501
  %v770 = vpack.c.b16 %v504, %v502
  %v771 = vpack.c.b16 %v507, %v505
  %v772 = vpack.c.b16 %v508, %v506
  %v773 = vpack.c.b16 %v511, %v509
  %v774 = vpack.c.b16 %v512, %v510
  %v775 = vpack.c.b16 %v515, %v513
  %v776 = vpack.c.b16 %v516, %v514
  %v777 = vpack.c.b16 %v519, %v517
  %v778 = vpack.c.b16 %v520, %v518
  %v779 = vpack.c.b16 %v523, %v521
  %v780 = vpack.c.b16 %v524, %v522
  %v781 = vpack.c.b16 %v527, %v525
  %v782 = vpack.c.b16 %v528, %v526
  %v783 = vpack.c.b16 %v531, %v529
  %v784 = vpack.c.b16 %v532, %v530
  %v785 = vpack.c.b16 %v535, %v533
  %v786 = vpack.c.b16 %v536, %v534
  %v787 = vpack.c.b16 %v539, %v537
  %v788 = vpack.c.b16 %v540, %v538
  %v789 = vpack.c.b16 %v543, %v541
  %v790 = vpack.c.b16 %v544, %v542
  %v791 = vpack.c.b16 %v547, %v545
  %v792 = vpack.c.b16 %v548, %v546
  %v793 = vpack.c.b16 %v551, %v549
  %v794 = vpack.c.b16 %v552, %v550
  %v795 = vpack.c.b16 %v555, %v553
  %v796 = vpack.c.b16 %v556, %v554
  %v797 = vpack.c.b16 %v559, %v557
  %v798 = vpack.c.b16 %v560, %v558
  %v799 = vpack.c.b16 %v563, %v561
  %v800 = vpack.c.b16 %v564, %v562
  %v801 = vpack.c.b16 %v567, %v565
  %v802 = vpack.c.b16 %v568, %v566
  %v803 = vpack.c.b16 %v571, %v569
  %v804 = vpack.c.b16 %v572, %v570
  %v805 = vpack.c.b16 %v575, %v573
  %v806 = vpack.c.b16 %v576, %v574
  %v807 = vpack.c.b16 %v579, %v577
  %v808 = vpack.c.b16 %v580, %v578
  %v809 = vpack.c.b16 %v583, %v581
  %v810 = vpack.c.b16 %v584, %v582
  %v811 = vpack.c.b16 %v587, %v585
  %v812 = vpack.c.b16 %v588, %v586
  %v813 = vpack.c.b16 %v591, %v589
  %v814 = vpack.c.b16 %v592, %v590
  %v815 = vpack.c.b16 %v595, %v593
  %v816 = vpack.c.b16 %v596, %v594
  %v817 = vpack.c.b16 %v599, %v597
  %v818 = vpack.c.b16 %v600, %v598
  %v819 = vpack.c.b16 %v603, %v601
  %v820 = vpack.c.b16 %v604, %v602
  %v821 = vpack.c.b16 %v607, %v605
  %v822 = vpack.c.b16 %v608, %v606
  %v823 = vpack.c.b16 %v611, %v609
  %v824 = vpack.c.b16 %v612, %v610
  %v825 = vpack.c.b16 %v615, %v613
  %v826 = vpack.c.b16 %v616, %v614
  %v827 = vpack.c.b16 %v619, %v617
  %v828 = vpack.c.b16 %v620, %v618
  %v829 = vpack.c.b16 %v623, %v621
  %v830 = vpack.c.b16 %v624, %v622
  %v831 = vpack.c.b16 %v627, %v625
  %v832 = vpack.c.b16 %v628, %v626
  %v833 = vpack.c.b16 %v631, %v629
  %v834 = vpack.c.b16 %v632, %v630
  %v835 = vpack.c.b16 %v635, %v633
  %v836 = vpack.c.b16 %v636, %v634
  %v837 = vpack.c.b16 %v639, %v637
  %v838 = vpack.c.b16 %v640, %v638
  %v839 = vpack.c.b16 %v643, %v641
  %v840 = vpack.c.b16 %v644, %v642
  %v841 = vpack.c.b16 %v647, %v645
  %v842 = vpack.c.b16 %v648, %v646
  %v843 = vpack.c.b16 %v651, %v649
  %v844 = vpack.c.b16 %v652, %v650
  %v845 = vpack.c.b16 %v655, %v653
  %v846 = vpack.c.b16 %v656, %v654
  %v847 = vpack.c.b16 %v659, %v657
  %v848 = vpack.c.b16 %v660, %v658
  %v849 = vpack.c.b16 %v663, %v661
  %v850 = vpack.c.b16 %v664, %v662
  %v851 = vpack.c.b16 %v667, %v665
  %v852 = vpack.c.b16 %v668, %v666
  %v853 = vpack.c.b16 %v671, %v669
  %v854 = vpack.c.b16 %v672, %v670
  %v855 = vpack.c.b16 %v675, %v673
  %v856 = vpack.c.b16 %v676, %v674
  %v857 = vpack.c.b16 %v679, %v677
  %v858 = vpack.c.b16 %v680, %v678
  %v859 = vpack.c.b16 %v683, %v681
  %v860 = vpack.c.b16 %v684, %v682
  %v861 = vpack.c.b16 %v687, %v685
  %v862 = vpack.c.b16 %v688, %v686
  %v863 = vpack.c.b16 %v691, %v689
  %v864 = vpack.c.b16 %v692, %v690
  %v865 = vpack.c.b16 %v695, %v693
  %v866 = vpack.c.b16 %v696, %v694
  %v867 = vpack.c.b16 %v699, %v697
  %v868 = vpack.c.b16 %v700, %v698
  %v869 = vpack.c.b16 %v703, %v701
  %v870 = vpack.c.b16 %v704, %v702
  %v871 = vpack.c.b16 %v707, %v705
  %v872 = vpack.c.b16 %v708, %v706
  %v873 = vpack.c.b16 %v711, %v709
  %v874 = vpack.c.b16 %v712, %v710
  %v875 = vpack.c.b16 %v715, %v713
  %v876 = vpack.c.b16 %v716, %v714
  %1037 = vmatprep.subr.bf16.mxu0 %v732
  %1038 = vmatpush1.bf16.msra.mxu0 %v731
  %1039 = vmatprep.subr.bf16.mxu0 %v730
  %1040 = vmatpush1.bf16.msra.mxu0 %v729
  %1041 = vmatprep.subr.bf16.mxu0 %v728
  %1042 = vmatpush1.bf16.msra.mxu0 %v727
  %1043 = vmatprep.subr.bf16.mxu0 %v726
  %1044 = vmatpush1.bf16.msra.mxu0 %v725
  %1045 = vmatprep.subr.bf16.mxu0 %v724
  %1046 = vmatpush1.bf16.msra.mxu0 %v723
  %1047 = vmatprep.subr.bf16.mxu0 %v722
  %1048 = vmatpush1.bf16.msra.mxu0 %v721
  %1049 = vmatprep.subr.bf16.mxu0 %v720
  %1050 = vmatpush1.bf16.msra.mxu0 %v719
  %1051 = vmatprep.subr.bf16.mxu0 %v718
  %1052 = vmatpush1.bf16.msra.mxu0 %v717
  %1053 = vmatprep.subr.bf16.mxu0 %v748
  %1054 = vmatpush2.bf16.msra.mxu0 %v747
  %1055 = vmatprep.subr.bf16.mxu0 %v746
  %1056 = vmatpush2.bf16.msra.mxu0 %v745
  %1057 = vmatprep.subr.bf16.mxu0 %v744
  %1058 = vmatpush2.bf16.msra.mxu0 %v743
  %1059 = vmatprep.subr.bf16.mxu0 %v742
  %1060 = vmatpush2.bf16.msra.mxu0 %v741
  %1061 = vmatprep.subr.bf16.mxu0 %v740
  %1062 = vmatpush2.bf16.msra.mxu0 %v739
  %1063 = vmatprep.subr.bf16.mxu0 %v738
  %1064 = vmatpush2.bf16.msra.mxu0 %v737
  %1065 = vmatprep.subr.bf16.mxu0 %v736
  %1066 = vmatpush2.bf16.msra.mxu0 %v735
  %1067 = vmatprep.subr.bf16.mxu0 %v734
  %1068 = vmatpush2.bf16.msra.mxu0 %v733
  %1069 = vmatprep.mubr.bf16.mxu0 %v218
  %1070 = vmatmul.mubr.bf16.gmra.mxu0 %v217
  %v1071 = vpop.f32.mrf.mxu0
  %v1072 = vadd.f32 0.0, %v1071
  %v1073 = vpop.f32.mrf.mxu0
  %v1074 = vadd.f32 0.0, %v1073
  %v1075 = vpop.f32.mrf.mxu0
  %v1076 = vadd.f32 0.0, %v1075
  %v1077 = vpop.f32.mrf.mxu0
  %v1078 = vadd.f32 0.0, %v1077
  %1079 = vdwg.mxu0
  %1080 = vmatprep.subr.bf16.mxu0 %v764
  %1081 = vmatpush1.bf16.msra.mxu0 %v763
  %1082 = vmatprep.subr.bf16.mxu0 %v762
  %1083 = vmatpush1.bf16.msra.mxu0 %v761
  %1084 = vmatprep.subr.bf16.mxu0 %v760
  %1085 = vmatpush1.bf16.msra.mxu0 %v759
  %1086 = vmatprep.subr.bf16.mxu0 %v758
  %1087 = vmatpush1.bf16.msra.mxu0 %v757
  %1088 = vmatprep.subr.bf16.mxu0 %v756
  %1089 = vmatpush1.bf16.msra.mxu0 %v755
  %1090 = vmatprep.subr.bf16.mxu0 %v754
  %1091 = vmatpush1.bf16.msra.mxu0 %v753
  %1092 = vmatprep.subr.bf16.mxu0 %v752
  %1093 = vmatpush1.bf16.msra.mxu0 %v751
  %1094 = vmatprep.subr.bf16.mxu0 %v750
  %1095 = vmatpush1.bf16.msra.mxu0 %v749
  %1096 = vmatprep.subr.bf16.mxu0 %v780
  %1097 = vmatpush2.bf16.msra.mxu0 %v779
  %1098 = vmatprep.subr.bf16.mxu0 %v778
  %1099 = vmatpush2.bf16.msra.mxu0 %v777
  %1100 = vmatprep.subr.bf16.mxu0 %v776
  %1101 = vmatpush2.bf16.msra.mxu0 %v775
  %1102 = vmatprep.subr.bf16.mxu0 %v774
  %1103 = vmatpush2.bf16.msra.mxu0 %v773
  %1104 = vmatprep.subr.bf16.mxu0 %v772
  %1105 = vmatpush2.bf16.msra.mxu0 %v771
  %1106 = vmatprep.subr.bf16.mxu0 %v770
  %1107 = vmatpush2.bf16.msra.mxu0 %v769
  %1108 = vmatprep.subr.bf16.mxu0 %v768
  %1109 = vmatpush2.bf16.msra.mxu0 %v767
  %1110 = vmatprep.subr.bf16.mxu0 %v766
  %1111 = vmatpush2.bf16.msra.mxu0 %v765
  %1112 = vmatprep.mubr.bf16.mxu0 %v220
  %1113 = vmatmul.mubr.bf16.gmra.mxu0 %v219
  %v1114 = vpop.f32.mrf.mxu0
  %v1115 = vadd.f32 %v1072, %v1114
  %v1116 = vpop.f32.mrf.mxu0
  %v1117 = vadd.f32 %v1074, %v1116
  %v1118 = vpop.f32.mrf.mxu0
  %v1119 = vadd.f32 %v1076, %v1118
  %v1120 = vpop.f32.mrf.mxu0
  %v1121 = vadd.f32 %v1078, %v1120
  %1122 = vdwg.mxu0
  %1123 = vmatprep.subr.bf16.mxu0 %v796
  %1124 = vmatpush1.bf16.msra.mxu0 %v795
  %1125 = vmatprep.subr.bf16.mxu0 %v794
  %1126 = vmatpush1.bf16.msra.mxu0 %v793
  %1127 = vmatprep.subr.bf16.mxu0 %v792
  %1128 = vmatpush1.bf16.msra.mxu0 %v791
  %1129 = vmatprep.subr.bf16.mxu0 %v790
  %1130 = vmatpush1.bf16.msra.mxu0 %v789
  %1131 = vmatprep.subr.bf16.mxu0 %v788
  %1132 = vmatpush1.bf16.msra.mxu0 %v787
  %1133 = vmatprep.subr.bf16.mxu0 %v786
  %1134 = vmatpush1.bf16.msra.mxu0 %v785
  %1135 = vmatprep.subr.bf16.mxu0 %v784
  %1136 = vmatpush1.bf16.msra.mxu0 %v783
  %1137 = vmatprep.subr.bf16.mxu0 %v782
  %1138 = vmatpush1.bf16.msra.mxu0 %v781
  %1139 = vmatprep.subr.bf16.mxu0 %v812
  %1140 = vmatpush2.bf16.msra.mxu0 %v811
  %1141 = vmatprep.subr.bf16.mxu0 %v810
  %1142 = vmatpush2.bf16.msra.mxu0 %v809
  %1143 = vmatprep.subr.bf16.mxu0 %v808
  %1144 = vmatpush2.bf16.msra.mxu0 %v807
  %1145 = vmatprep.subr.bf16.mxu0 %v806
  %1146 = vmatpush2.bf16.msra.mxu0 %v805
  %1147 = vmatprep.subr.bf16.mxu0 %v804
  %1148 = vmatpush2.bf16.msra.mxu0 %v803
  %1149 = vmatprep.subr.bf16.mxu0 %v802
  %1150 = vmatpush2.bf16.msra.mxu0 %v801
  %1151 = vmatprep.subr.bf16.mxu0 %v800
  %1152 = vmatpush2.bf16.msra.mxu0 %v799
  %1153 = vmatprep.subr.bf16.mxu0 %v798
  %1154 = vmatpush2.bf16.msra.mxu0 %v797
  %1155 = vmatprep.mubr.bf16.mxu0 %v222
  %1156 = vmatmul.mubr.bf16.gmra.mxu0 %v221
  %v1157 = vpop.f32.mrf.mxu0
  %v1158 = vadd.f32 %v1115, %v1157
  %v1159 = vpop.f32.mrf.mxu0
  %v1160 = vadd.f32 %v1117, %v1159
  %v1161 = vpop.f32.mrf.mxu0
  %v1162 = vadd.f32 %v1119, %v1161
  %v1163 = vpop.f32.mrf.mxu0
  %v1164 = vadd.f32 %v1121, %v1163
  %1165 = vdwg.mxu0
  %1166 = vmatprep.subr.bf16.mxu0 %v828
  %1167 = vmatpush1.bf16.msra.mxu0 %v827
  %1168 = vmatprep.subr.bf16.mxu0 %v826
  %1169 = vmatpush1.bf16.msra.mxu0 %v825
  %1170 = vmatprep.subr.bf16.mxu0 %v824
  %1171 = vmatpush1.bf16.msra.mxu0 %v823
  %1172 = vmatprep.subr.bf16.mxu0 %v822
  %1173 = vmatpush1.bf16.msra.mxu0 %v821
  %1174 = vmatprep.subr.bf16.mxu0 %v820
  %1175 = vmatpush1.bf16.msra.mxu0 %v819
  %1176 = vmatprep.subr.bf16.mxu0 %v818
  %1177 = vmatpush1.bf16.msra.mxu0 %v817
  %1178 = vmatprep.subr.bf16.mxu0 %v816
  %1179 = vmatpush1.bf16.msra.mxu0 %v815
  %1180 = vmatprep.subr.bf16.mxu0 %v814
  %1181 = vmatpush1.bf16.msra.mxu0 %v813
  %1182 = vmatprep.subr.bf16.mxu0 %v844
  %1183 = vmatpush2.bf16.msra.mxu0 %v843
  %1184 = vmatprep.subr.bf16.mxu0 %v842
  %1185 = vmatpush2.bf16.msra.mxu0 %v841
  %1186 = vmatprep.subr.bf16.mxu0 %v840
  %1187 = vmatpush2.bf16.msra.mxu0 %v839
  %1188 = vmatprep.subr.bf16.mxu0 %v838
  %1189 = vmatpush2.bf16.msra.mxu0 %v837
  %1190 = vmatprep.subr.bf16.mxu0 %v836
  %1191 = vmatpush2.bf16.msra.mxu0 %v835
  %1192 = vmatprep.subr.bf16.mxu0 %v834
  %1193 = vmatpush2.bf16.msra.mxu0 %v833
  %1194 = vmatprep.subr.bf16.mxu0 %v832
  %1195 = vmatpush2.bf16.msra.mxu0 %v831
  %1196 = vmatprep.subr.bf16.mxu0 %v830
  %1197 = vmatpush2.bf16.msra.mxu0 %v829
  %1198 = vmatprep.mubr.bf16.mxu0 %v224
  %1199 = vmatmul.mubr.bf16.gmra.mxu0 %v223
  %v1200 = vpop.f32.mrf.mxu0
  %v1201 = vadd.f32 %v1158, %v1200
  %v1202 = vpop.f32.mrf.mxu0
  %v1203 = vadd.f32 %v1160, %v1202
  %v1204 = vpop.f32.mrf.mxu0
  %v1205 = vadd.f32 %v1162, %v1204
  %v1206 = vpop.f32.mrf.mxu0
  %v1207 = vadd.f32 %v1164, %v1206
  %1208 = vdwg.mxu0
  %1209 = vmatprep.subr.bf16.mxu0 %v860
  %1210 = vmatpush1.bf16.msra.mxu0 %v859
  %1211 = vmatprep.subr.bf16.mxu0 %v858
  %1212 = vmatpush1.bf16.msra.mxu0 %v857
  %1213 = vmatprep.subr.bf16.mxu0 %v856
  %1214 = vmatpush1.bf16.msra.mxu0 %v855
  %1215 = vmatprep.subr.bf16.mxu0 %v854
  %1216 = vmatpush1.bf16.msra.mxu0 %v853
  %1217 = vmatprep.subr.bf16.mxu0 %v852
  %1218 = vmatpush1.bf16.msra.mxu0 %v851
  %1219 = vmatprep.subr.bf16.mxu0 %v850
  %1220 = vmatpush1.bf16.msra.mxu0 %v849
  %1221 = vmatprep.subr.bf16.mxu0 %v848
  %1222 = vmatpush1.bf16.msra.mxu0 %v847
  %1223 = vmatprep.subr.bf16.mxu0 %v846
  %1224 = vmatpush1.bf16.msra.mxu0 %v845
  %1225 = vmatprep.subr.bf16.mxu0 %v876
  %1226 = vmatpush2.bf16.msra.mxu0 %v875
  %1227 = vmatprep.subr.bf16.mxu0 %v874
  %1228 = vmatpush2.bf16.msra.mxu0 %v873
  %1229 = vmatprep.subr.bf16.mxu0 %v872
  %1230 = vmatpush2.bf16.msra.mxu0 %v871
  %1231 = vmatprep.subr.bf16.mxu0 %v870
  %1232 = vmatpush2.bf16.msra.mxu0 %v869
  %1233 = vmatprep.subr.bf16.mxu0 %v868
  %1234 = vmatpush2.bf16.msra.mxu0 %v867
  %1235 = vmatprep.subr.bf16.mxu0 %v866
  %1236 = vmatpush2.bf16.msra.mxu0 %v865
  %1237 = vmatprep.subr.bf16.mxu0 %v864
  %1238 = vmatpush2.bf16.msra.mxu0 %v863
  %1239 = vmatprep.subr.bf16.mxu0 %v862
  %1240 = vmatpush2.bf16.msra.mxu0 %v861
  %1241 = vmatprep.mubr.bf16.mxu0 %v226
  %1242 = vmatmul.mubr.bf16.gmra.mxu0 %v225
  %v1243 = vpop.f32.mrf.mxu0
  %v1244 = vadd.f32 %v1201, %v1243
  %v1245 = vpop.f32.mrf.mxu0
  %v1246 = vadd.f32 %v1203, %v1245
  %v1247 = vpop.f32.mrf.mxu0
  %v1248 = vadd.f32 %v1205, %v1247
  %v1249 = vpop.f32.mrf.mxu0
  %v1250 = vadd.f32 %v1207, %v1249
  %1251 = vdwg.mxu0
  %v1252 = vld [vmem:[%s2] sm:$0x3]
  %v1254 = vlaneseq
  %v1255 = vshrl.u32 %v1254, 7
  %v1256 = vsub.s32 0, %v1255
  %v1257 = vrot.slane %v1252, %v1256
  %v1258 = vlaneseq
  %v1259 = vshrl.u32 %v1258, 7
  %v1260 = vsub.s32 1, %v1259
  %v1261 = vrot.slane %v1252, %v1260
  %v1264 = vmul.f32 %v1244, %v1257
  %v1265 = vmul.f32 %v1246, %v1261
  %v1266 = vmul.f32 %v1248, %v1257
  %v1267 = vmul.f32 %v1250, %v1261
  %v1268 = vld [vmem:[%s3] sm:$0x3]
  %v1270 = vlaneseq
  %v1271 = vshrl.u32 %v1270, 7
  %v1272 = vsub.s32 0, %v1271
  %v1273 = vrot.slane %v1268, %v1272
  %v1274 = vlaneseq
  %v1275 = vshrl.u32 %v1274, 7
  %v1276 = vsub.s32 1, %v1275
  %v1277 = vrot.slane %v1268, %v1276
  %v1280 = vadd.f32 %v1264, %v1273
  %v1281 = vadd.f32 %v1265, %v1277
  %v1282 = vadd.f32 %v1266, %v1273
  %v1283 = vadd.f32 %v1267, %v1277
  %v1284 = vmax.f32 %v1280, 0.0
  %v1285 = vmax.f32 %v1281, 0.0
  %v1286 = vmax.f32 %v1282, 0.0
  %v1287 = vmax.f32 %v1283, 0.0
  %v1288 = vpack.c.bf16 %v1286, %v1284
  %v1289 = vpack.c.bf16 %v1287, %v1285
  %v1292 = vunpack.c.l.b16 %v1288
  %v1293 = vunpack.c.l.b16 %v1289
  %v1294 = vunpack.c.h.b16 %v1288
  %v1295 = vunpack.c.h.b16 %v1289
  %v1296 = vpack.c.b16 %v1293, %v1292
  %v1297 = vpack.c.b16 %v1295, %v1294
  %1300 = vst [vmem:[%s4] sm:$0xff] %v1296
  %1301 = vst [vmem:[%s4 + $0x8] sm:$0xff] %v1297
  // Predicated region
  $region18: #{_lambda_.100} parent=0 // pred_check
    _
  $region19: #{_lambda_.100} parent=0 // pred_check_branch
    %1303 = sbr.rel (0) target = $region21
  $region20: #{_lambda_.100} parent=0 // pred_region
    _
  $region21: #{_lambda_.100} parent=0 // pred_fallthru
    _
  // Predicated region
  $region22: #{_lambda_.100} parent=0 // pred_check
    _
  $region23: #{_lambda_.100} parent=0 // pred_check_branch
    %1305 = sbr.rel (0) target = $region25
  $region24: #{_lambda_.100} parent=0 // pred_region
    _
  $region25: #{_lambda_.100} parent=0 // pred_fallthru
    _

// kernel: _lambda_.101
$region0: #{_lambda_.101}
  #allocation0 [shape = 'u32[]', space=smem, size = 0x4, offset = 0x4, fixed_abs, tag = 'smem constant byte address 0x4 - core index']
  #allocation1 [shape = 'u32[144,128]{1,0:T(1,128)}', space=vmem, size = 0x12000, scoped, tag = 'internal scratch']
  %s0 = inlined_call_operand.vmem [shape: bf16[16,256], index: 0, kind: input, shape index: {}]
  %s1 = inlined_call_operand.vmem [shape: bf16[256,512], index: 1, kind: input, shape index: {}]
  %s2 = inlined_call_operand.vmem [shape: f32[1,512], index: 2, kind: input, shape index: {}]
  %s3 = inlined_call_operand.vmem [shape: f32[1,512], index: 3, kind: input, shape index: {}]
  %s4 = inlined_call_operand.vmem [shape: bf16[16,512], index: 4, kind: input, shape index: {}]
  %s5 = inlined_call_operand.vmem [shape: bf16[16,512], index: 5, kind: output, shape index: {}]
  %s6 = sld [smem:[#allocation0]]
  $region163: #{_lambda_.101} parent=0
    _
  %s8 = ssub.s32 1, %s6
  %s9 = scalar_select 0, %s8, %s6
  $region1: #{_lambda_.101} parent=0
    #allocation2 [shape = 'u8[262144]{0}', space=vmem, size = 0x40000, scoped, tag = 'input window, operand 1']
    #allocation3 [shape = 'u8[16384]{0}', space=vmem, size = 0x4000, scoped, tag = 'input window, operand 4']
    #allocation4 [shape = 'u8[16384]{0}', space=vmem, size = 0x4000, scoped, tag = 'output window, operand 0']
    loop: start=0, step=1, limit=4
    $region2: #{_lambda_.101} parent=1 // loop_pre_header
      _
    $region3: #{_lambda_.101} parent=1 // loop_header
      %s11 = sphi 0, %s15
      %p12 = scmp.ge.s32.totalorder %s11, 4
      %s18 = sphi 0, %s30
      %s19 = sphi 0, %s26
      %s20 = sphi 0, %s18
      %s21 = sphi 0, %s19
      %s22 = sphi 0, %s20
      %s23 = sphi 0, %s21
      %s33 = sphi 0, %s35
      %s36 = sphi 0, %s33
      %s37 = sphi 0, %s36
      %s53 = sphi 0, %s37
      %s59 = sphi 0, %s61
      %s62 = sphi 0, %s59
      %s63 = sphi 0, %s62
      %s79 = sphi 0, %s63
      %s85 = sphi 0, %s87
      %s88 = sphi 0, %s85
      %s89 = sphi 0, %s88
      %s105 = sphi 0, %s89
      %s111 = sphi 0, %s113
      %s114 = sphi 0, %s111
      %s115 = sphi 0, %s114
      %s131 = sphi 0, %s115
      %s139 = sphi 0, %s141
      %s142 = sphi 0, %s139
      %s143 = sphi 0, %s142
      %s159 = sphi 0, %s143
      %s167 = sphi 0, %s169
      %s170 = sphi 0, %s167
      %s171 = sphi 0, %s170
      %s187 = sphi 0, %s171
    $region4: #{_lambda_.101} parent=1 // loop_header_branch
      %14 = sbr.rel (%p12) target = $region8
    $region5: #{_lambda_.101} parent=1 // loop_body
      %s16 = ssub.s32 %s11, 1
      %s17 = ssub.s32 %s11, 2
      %s24 = sadd.s32 1, %s19
      %p25 = scmp.ge.s32.totalorder %s24, 2
      %s26 = scalar_select %p25, 0, %s24
      %s27 = sadd.s32 1, %s18
      %s28 = scalar_select %p25, %s27, %s18
      %p29 = scmp.ge.s32.totalorder %s28, 1
      %s30 = scalar_select %p29, 0, %s28
      %s31 = ssub.s32 %s18, %s30
      %p32 = scmp.eq.s32.totalorder %s31, 0
      %s34 = sadd.s32 %s33, 1
      %s35 = scalar_select %p32, %s33, %s34
      %p38 = pneg %p32
      %p39 = scmp.eq.s32.totalorder %s11, 1
      %p40 = por %p38, %p39
      %p41 = scmp.ne.s32.totalorder %s33, %s36
      %p42 = scmp.eq.s32.totalorder %s11, 0
      %p43 = por %p41, %p42
      %p44 = scmp.ne.s32.totalorder %s33, %s36
      %p45 = scmp.eq.s32.totalorder %s16, 1
      %p46 = por %p44, %p45
      %p47 = scmp.ne.s32.totalorder %s36, %s37
      %p48 = scmp.eq.s32.totalorder %s16, 0
      %p49 = por %p47, %p48
      %p50 = scmp.ne.s32.totalorder %s36, %s37
      %p51 = scmp.eq.s32.totalorder %s17, 1
      %p52 = por %p50, %p51
      %p54 = scmp.ne.s32.totalorder %s37, %s53
      %p55 = scmp.eq.s32.totalorder %s17, 0
      %p56 = por %p54, %p55
      %s57 = ssub.s32 %s19, %s26
      %p58 = scmp.eq.s32.totalorder %s57, 0
      %s60 = sadd.s32 %s59, 1
      %s61 = scalar_select %p58, %s59, %s60
      %p64 = pneg %p58
      %p65 = scmp.eq.s32.totalorder %s11, 1
      %p66 = por %p64, %p65
      %p67 = scmp.ne.s32.totalorder %s59, %s62
      %p68 = scmp.eq.s32.totalorder %s11, 0
      %p69 = por %p67, %p68
      %p70 = scmp.ne.s32.totalorder %s59, %s62
      %p71 = scmp.eq.s32.totalorder %s16, 1
      %p72 = por %p70, %p71
      %p73 = scmp.ne.s32.totalorder %s62, %s63
      %p74 = scmp.eq.s32.totalorder %s16, 0
      %p75 = por %p73, %p74
      %p76 = scmp.ne.s32.totalorder %s62, %s63
      %p77 = scmp.eq.s32.totalorder %s17, 1
      %p78 = por %p76, %p77
      %p80 = scmp.ne.s32.totalorder %s63, %s79
      %p81 = scmp.eq.s32.totalorder %s17, 0
      %p82 = por %p80, %p81
      %s83 = ssub.s32 %s19, %s26
      %p84 = scmp.eq.s32.totalorder %s83, 0
      %s86 = sadd.s32 %s85, 1
      %s87 = scalar_select %p84, %s85, %s86
      %p90 = pneg %p84
      %p91 = scmp.eq.s32.totalorder %s11, 1
      %p92 = por %p90, %p91
      %p93 = scmp.ne.s32.totalorder %s85, %s88
      %p94 = scmp.eq.s32.totalorder %s11, 0
      %p95 = por %p93, %p94
      %p96 = scmp.ne.s32.totalorder %s85, %s88
      %p97 = scmp.eq.s32.totalorder %s16, 1
      %p98 = por %p96, %p97
      %p99 = scmp.ne.s32.totalorder %s88, %s89
      %p100 = scmp.eq.s32.totalorder %s16, 0
      %p101 = por %p99, %p100
      %p102 = scmp.ne.s32.totalorder %s88, %s89
      %p103 = scmp.eq.s32.totalorder %s17, 1
      %p104 = por %p102, %p103
      %p106 = scmp.ne.s32.totalorder %s89, %s105
      %p107 = scmp.eq.s32.totalorder %s17, 0
      %p108 = por %p106, %p107
      %s109 = ssub.s32 %s19, %s26
      %p110 = scmp.eq.s32.totalorder %s109, 0
      %s112 = sadd.s32 %s111, 1
      %s113 = scalar_select %p110, %s111, %s112
      %p116 = pneg %p110
      %p117 = scmp.eq.s32.totalorder %s11, 1
      %p118 = por %p116, %p117
      %p119 = scmp.ne.s32.totalorder %s111, %s114
      %p120 = scmp.eq.s32.totalorder %s11, 0
      %p121 = por %p119, %p120
      %p122 = scmp.ne.s32.totalorder %s111, %s114
      %p123 = scmp.eq.s32.totalorder %s16, 1
      %p124 = por %p122, %p123
      %p125 = scmp.ne.s32.totalorder %s114, %s115
      %p126 = scmp.eq.s32.totalorder %s16, 0
      %p127 = por %p125, %p126
      %p128 = scmp.ne.s32.totalorder %s114, %s115
      %p129 = scmp.eq.s32.totalorder %s17, 1
      %p130 = por %p128, %p129
      %p132 = scmp.ne.s32.totalorder %s115, %s131
      %p133 = scmp.eq.s32.totalorder %s17, 0
      %p134 = por %p132, %p133
      %s135 = ssub.s32 %s18, %s30
      %s136 = ssub.s32 %s19, %s26
      %s137 = sor.u32 %s135, %s136
      %p138 = scmp.eq.s32.totalorder %s137, 0
      %s140 = sadd.s32 %s139, 1
      %s141 = scalar_select %p138, %s139, %s140
      %p144 = pneg %p138
      %p145 = scmp.eq.s32.totalorder %s11, 1
      %p146 = por %p144, %p145
      %p147 = scmp.ne.s32.totalorder %s139, %s142
      %p148 = scmp.eq.s32.totalorder %s11, 0
      %p149 = por %p147, %p148
      %p150 = scmp.ne.s32.totalorder %s139, %s142
      %p151 = scmp.eq.s32.totalorder %s16, 1
      %p152 = por %p150, %p151
      %p153 = scmp.ne.s32.totalorder %s142, %s143
      %p154 = scmp.eq.s32.totalorder %s16, 0
      %p155 = por %p153, %p154
      %p156 = scmp.ne.s32.totalorder %s142, %s143
      %p157 = scmp.eq.s32.totalorder %s17, 1
      %p158 = por %p156, %p157
      %p160 = scmp.ne.s32.totalorder %s143, %s159
      %p161 = scmp.eq.s32.totalorder %s17, 0
      %p162 = por %p160, %p161
      %s163 = ssub.s32 %s18, %s30
      %s164 = ssub.s32 %s19, %s26
      %s165 = sor.u32 %s163, %s164
      %p166 = scmp.eq.s32.totalorder %s165, 0
      %s168 = sadd.s32 %s167, 1
      %s169 = scalar_select %p166, %s167, %s168
      %p172 = pneg %p166
      %p173 = scmp.eq.s32.totalorder %s11, 1
      %p174 = por %p172, %p173
      %p175 = scmp.ne.s32.totalorder %s167, %s170
      %p176 = scmp.eq.s32.totalorder %s11, 0
      %p177 = por %p175, %p176
      %p178 = scmp.ne.s32.totalorder %s167, %s170
      %p179 = scmp.eq.s32.totalorder %s16, 1
      %p180 = por %p178, %p179
      %p181 = scmp.ne.s32.totalorder %s170, %s171
      %p182 = scmp.eq.s32.totalorder %s16, 0
      %p183 = por %p181, %p182
      %p184 = scmp.ne.s32.totalorder %s170, %s171
      %p185 = scmp.eq.s32.totalorder %s17, 1
      %p186 = por %p184, %p185
      %p188 = scmp.ne.s32.totalorder %s171, %s187
      %p189 = scmp.eq.s32.totalorder %s17, 0
      %p190 = por %p188, %p189
      %p191 = scmp.le.s32.totalorder 1, %s11
      %p192 = scmp.lt.s32.totalorder %s11, 3
      %p193 = pnand %p191, %p192
      %p194 = pneg %p193
      // Predicated region
      $region9: #{_lambda_.101} parent=5 // pred_check
        _
      $region10: #{_lambda_.101} parent=5 // pred_check_branch
        %196 = sbr.rel (%p193) target = $region12
      $region11: #{_lambda_.101} parent=5 // pred_region
        %s197 = ssub.s32 %s11, 1
        // Predicated region
        $region13: #{_lambda_.101} parent=11 // pred_check
          %p198 = pneg %p49
        $region14: #{_lambda_.101} parent=11 // pred_check_branch
          %200 = sbr.rel (%p198) target = $region16
        $region15: #{_lambda_.101} parent=11 // pred_region
          %s201 = smul.u32 2, %s20
          %p202 = scmp.lt.s32.totalorder %s201, 1
          %s203 = scalar_select %p202, %s201, 1
          %s204 = smul.addr %s203, 2
          %s205 = smul.addr %s204, 4
          %s206 = scalar_lea.vmem %s0, %s205
          %s207 = smul.u32 2, %s20
        $region16: #{_lambda_.101} parent=11 // pred_fallthru
          _
      $region12: #{_lambda_.101} parent=5 // pred_fallthru
        _
      %p208 = scmp.lt.s32.totalorder %s11, 2
      // Predicated region
      $region17: #{_lambda_.101} parent=5 // pred_check
        %p209 = pneg %p208
      $region18: #{_lambda_.101} parent=5 // pred_check_branch
        %211 = sbr.rel (%p209) target = $region20
      $region19: #{_lambda_.101} parent=5 // pred_region
        // Predicated region
        $region21: #{_lambda_.101} parent=19 // pred_check
          %p212 = pneg %p69
        $region22: #{_lambda_.101} parent=19 // pred_check_branch
          %214 = sbr.rel (%p212) target = $region24
        $region23: #{_lambda_.101} parent=19 // pred_region
          %s215 = sand.u32 %s59, 1
          %s216 = sand.u32 %s59, 1
          %s217 = smul.addr %s216, 256
          %s218 = scalar_lea.vmem [#allocation2], %s217
          %s219 = smul.u32 2, %s19
          %s220 = smul.addr %s219, 4
          %s221 = scalar_lea.vmem %s1, %s220
          // Predicated region
          $region25: #{_lambda_.101} parent=23 // pred_check
            _
          $region26: #{_lambda_.101} parent=23 // pred_check_branch
            %223 = sbr.rel (0) target = $region28
          $region27: #{_lambda_.101} parent=23 // pred_region
            // Predicated region
            $region29: #{_lambda_.101} parent=27 // pred_check
              _
            $region30: #{_lambda_.101} parent=27 // pred_check_branch
              %225 = sbr.rel (0) target = $region32
            $region31: #{_lambda_.101} parent=27 // pred_region
              // Predicated region
              $region44: #{_lambda_.101} parent=31 // pred_check
                _
              $region45: #{_lambda_.101} parent=31 // pred_check_branch
                %303 = sbr.rel (0) target = $region47
              $region46: #{_lambda_.101} parent=31 // pred_region
                loop: start=0, step=1, limit=1
                $region48: #{_lambda_.101} parent=46 // loop_pre_header
                  _
                $region49: #{_lambda_.101} parent=46 // loop_header
                  %s305 = sphi 0, %s309
                  %p306 = scmp.ge.s32.totalorder %s305, 1
                  %s310 = sphi %s221, %s221
                  %s311 = sphi %s218, %s218
                $region50: #{_lambda_.101} parent=46 // loop_header_branch
                  %308 = sbr.rel (%p306) target = $region54
                $region51: #{_lambda_.101} parent=46 // loop_body
                  %v312 = vld [vmem:[%s310] sm:$0xff]
                  %313 = vst [vmem:[%s311] sm:$0xff] %v312
                  %v314 = vld [vmem:[%s310 + $0x10] sm:$0xff]
                  %315 = vst [vmem:[%s311 + $0x8] sm:$0xff] %v314
                  %v316 = vld [vmem:[%s310 + $0x20] sm:$0xff]
                  %317 = vst [vmem:[%s311 + $0x10] sm:$0xff] %v316
                  %v318 = vld [vmem:[%s310 + $0x30] sm:$0xff]
                  %319 = vst [vmem:[%s311 + $0x18] sm:$0xff] %v318
                  %v320 = vld [vmem:[%s310 + $0x40] sm:$0xff]
                  %321 = vst [vmem:[%s311 + $0x20] sm:$0xff] %v320
                  %v322 = vld [vmem:[%s310 + $0x50] sm:$0xff]
                  %323 = vst [vmem:[%s311 + $0x28] sm:$0xff] %v322
                  %v324 = vld [vmem:[%s310 + $0x60] sm:$0xff]
                  %325 = vst [vmem:[%s311 + $0x30] sm:$0xff] %v324
                  %v326 = vld [vmem:[%s310 + $0x70] sm:$0xff]
                  %327 = vst [vmem:[%s311 + $0x38] sm:$0xff] %v326
                  %v328 = vld [vmem:[%s310 + $0x80] sm:$0xff]
                  %329 = vst [vmem:[%s311 + $0x40] sm:$0xff] %v328
                  %v330 = vld [vmem:[%s310 + $0x90] sm:$0xff]
                  %331 = vst [vmem:[%s311 + $0x48] sm:$0xff] %v330
                  %v332 = vld [vmem:[%s310 + $0xa0] sm:$0xff]
                  %333 = vst [vmem:[%s311 + $0x50] sm:$0xff] %v332
                  %v334 = vld [vmem:[%s310 + $0xb0] sm:$0xff]
                  %335 = vst [vmem:[%s311 + $0x58] sm:$0xff] %v334
                  %v336 = vld [vmem:[%s310 + $0xc0] sm:$0xff]
                  %337 = vst [vmem:[%s311 + $0x60] sm:$0xff] %v336
                  %v338 = vld [vmem:[%s310 + $0xd0] sm:$0xff]
                  %339 = vst [vmem:[%s311 + $0x68] sm:$0xff] %v338
                  %v340 = vld [vmem:[%s310 + $0xe0] sm:$0xff]
                  %341 = vst [vmem:[%s311 + $0x70] sm:$0xff] %v340
                  %v342 = vld [vmem:[%s310 + $0xf0] sm:$0xff]
                  %343 = vst [vmem:[%s311 + $0x78] sm:$0xff] %v342
                  %v344 = vld [vmem:[%s310 + $0x100] sm:$0xff]
                  %345 = vst [vmem:[%s311 + $0x80] sm:$0xff] %v344
                  %v346 = vld [vmem:[%s310 + $0x110] sm:$0xff]
                  %347 = vst [vmem:[%s311 + $0x88] sm:$0xff] %v346
                  %v348 = vld [vmem:[%s310 + $0x120] sm:$0xff]
                  %349 = vst [vmem:[%s311 + $0x90] sm:$0xff] %v348
                  %v350 = vld [vmem:[%s310 + $0x130] sm:$0xff]
                  %351 = vst [vmem:[%s311 + $0x98] sm:$0xff] %v350
                  %v352 = vld [vmem:[%s310 + $0x140] sm:$0xff]
                  %353 = vst [vmem:[%s311 + $0xa0] sm:$0xff] %v352
                  %v354 = vld [vmem:[%s310 + $0x150] sm:$0xff]
                  %355 = vst [vmem:[%s311 + $0xa8] sm:$0xff] %v354
                  %v356 = vld [vmem:[%s310 + $0x160] sm:$0xff]
                  %357 = vst [vmem:[%s311 + $0xb0] sm:$0xff] %v356
                  %v358 = vld [vmem:[%s310 + $0x170] sm:$0xff]
                  %359 = vst [vmem:[%s311 + $0xb8] sm:$0xff] %v358
                  %v360 = vld [vmem:[%s310 + $0x180] sm:$0xff]
                  %361 = vst [vmem:[%s311 + $0xc0] sm:$0xff] %v360
                  %v362 = vld [vmem:[%s310 + $0x190] sm:$0xff]
                  %363 = vst [vmem:[%s311 + $0xc8] sm:$0xff] %v362
                  %v364 = vld [vmem:[%s310 + $0x1a0] sm:$0xff]
                  %365 = vst [vmem:[%s311 + $0xd0] sm:$0xff] %v364
                  %v366 = vld [vmem:[%s310 + $0x1b0] sm:$0xff]
                  %367 = vst [vmem:[%s311 + $0xd8] sm:$0xff] %v366
                  %v368 = vld [vmem:[%s310 + $0x1c0] sm:$0xff]
                  %369 = vst [vmem:[%s311 + $0xe0] sm:$0xff] %v368
                  %v370 = vld [vmem:[%s310 + $0x1d0] sm:$0xff]
                  %371 = vst [vmem:[%s311 + $0xe8] sm:$0xff] %v370
                  %v372 = vld [vmem:[%s310 + $0x1e0] sm:$0xff]
                  %373 = vst [vmem:[%s311 + $0xf0] sm:$0xff] %v372
                  %v374 = vld [vmem:[%s310 + $0x1f0] sm:$0xff]
                  %375 = vst [vmem:[%s311 + $0xf8] sm:$0xff] %v374
                $region52: #{_lambda_.101} parent=46 // loop_footer
                  %s309 = sadd.s32 1, %s305
                $region53: #{_lambda_.101} parent=46 // loop_footer_branch
                  %304 = sbr.rel target = $region49
                $region54: #{_lambda_.101} parent=46 // loop_exit
                  _
              $region47: #{_lambda_.101} parent=31 // pred_fallthru
                _
              // Predicated region
              $region55: #{_lambda_.101} parent=31 // pred_check
                _
              $region56: #{_lambda_.101} parent=31 // pred_check_branch
                %377 = sbr.rel target = $region58
              $region57: #{_lambda_.101} parent=31 // pred_region
                _
              $region58: #{_lambda_.101} parent=31 // pred_fallthru
                _
            $region32: #{_lambda_.101} parent=27 // pred_fallthru
              _
            // Predicated region
            $region33: #{_lambda_.101} parent=27 // pred_check
              _
            $region34: #{_lambda_.101} parent=27 // pred_check_branch
              %227 = sbr.rel target = $region36
            $region35: #{_lambda_.101} parent=27 // pred_region
              %s229 = ssub.s32 256, 1
              loop: start=0, step=1, limit=1
              $region37: #{_lambda_.101} parent=35 // loop_pre_header
                _
              $region38: #{_lambda_.101} parent=35 // loop_header
                %s231 = sphi 0, %s235
                %p232 = scmp.ge.s32.totalorder %s231, 1
                %s236 = sphi %s221, %s221
                %s237 = sphi %s218, %s218
              $region39: #{_lambda_.101} parent=35 // loop_header_branch
                %234 = sbr.rel (%p232) target = $region43
              $region40: #{_lambda_.101} parent=35 // loop_body
                %v238 = vld [vmem:[%s236] sm:%s229]
                %239 = vst [vmem:[%s237] sm:%s229] %v238
                %v240 = vld [vmem:[%s236 + $0x10] sm:%s229]
                %241 = vst [vmem:[%s237 + $0x8] sm:%s229] %v240
                %v242 = vld [vmem:[%s236 + $0x20] sm:%s229]
                %243 = vst [vmem:[%s237 + $0x10] sm:%s229] %v242
                %v244 = vld [vmem:[%s236 + $0x30] sm:%s229]
                %245 = vst [vmem:[%s237 + $0x18] sm:%s229] %v244
                %v246 = vld [vmem:[%s236 + $0x40] sm:%s229]
                %247 = vst [vmem:[%s237 + $0x20] sm:%s229] %v246
                %v248 = vld [vmem:[%s236 + $0x50] sm:%s229]
                %249 = vst [vmem:[%s237 + $0x28] sm:%s229] %v248
                %v250 = vld [vmem:[%s236 + $0x60] sm:%s229]
                %251 = vst [vmem:[%s237 + $0x30] sm:%s229] %v250
                %v252 = vld [vmem:[%s236 + $0x70] sm:%s229]
                %253 = vst [vmem:[%s237 + $0x38] sm:%s229] %v252
                %v254 = vld [vmem:[%s236 + $0x80] sm:%s229]
                %255 = vst [vmem:[%s237 + $0x40] sm:%s229] %v254
                %v256 = vld [vmem:[%s236 + $0x90] sm:%s229]
                %257 = vst [vmem:[%s237 + $0x48] sm:%s229] %v256
                %v258 = vld [vmem:[%s236 + $0xa0] sm:%s229]
                %259 = vst [vmem:[%s237 + $0x50] sm:%s229] %v258
                %v260 = vld [vmem:[%s236 + $0xb0] sm:%s229]
                %261 = vst [vmem:[%s237 + $0x58] sm:%s229] %v260
                %v262 = vld [vmem:[%s236 + $0xc0] sm:%s229]
                %263 = vst [vmem:[%s237 + $0x60] sm:%s229] %v262
                %v264 = vld [vmem:[%s236 + $0xd0] sm:%s229]
                %265 = vst [vmem:[%s237 + $0x68] sm:%s229] %v264
                %v266 = vld [vmem:[%s236 + $0xe0] sm:%s229]
                %267 = vst [vmem:[%s237 + $0x70] sm:%s229] %v266
                %v268 = vld [vmem:[%s236 + $0xf0] sm:%s229]
                %269 = vst [vmem:[%s237 + $0x78] sm:%s229] %v268
                %v270 = vld [vmem:[%s236 + $0x100] sm:%s229]
                %271 = vst [vmem:[%s237 + $0x80] sm:%s229] %v270
                %v272 = vld [vmem:[%s236 + $0x110] sm:%s229]
                %273 = vst [vmem:[%s237 + $0x88] sm:%s229] %v272
                %v274 = vld [vmem:[%s236 + $0x120] sm:%s229]
                %275 = vst [vmem:[%s237 + $0x90] sm:%s229] %v274
                %v276 = vld [vmem:[%s236 + $0x130] sm:%s229]
                %277 = vst [vmem:[%s237 + $0x98] sm:%s229] %v276
                %v278 = vld [vmem:[%s236 + $0x140] sm:%s229]
                %279 = vst [vmem:[%s237 + $0xa0] sm:%s229] %v278
                %v280 = vld [vmem:[%s236 + $0x150] sm:%s229]
                %281 = vst [vmem:[%s237 + $0xa8] sm:%s229] %v280
                %v282 = vld [vmem:[%s236 + $0x160] sm:%s229]
                %283 = vst [vmem:[%s237 + $0xb0] sm:%s229] %v282
                %v284 = vld [vmem:[%s236 + $0x170] sm:%s229]
                %285 = vst [vmem:[%s237 + $0xb8] sm:%s229] %v284
                %v286 = vld [vmem:[%s236 + $0x180] sm:%s229]
                %287 = vst [vmem:[%s237 + $0xc0] sm:%s229] %v286
                %v288 = vld [vmem:[%s236 + $0x190] sm:%s229]
                %289 = vst [vmem:[%s237 + $0xc8] sm:%s229] %v288
                %v290 = vld [vmem:[%s236 + $0x1a0] sm:%s229]
                %291 = vst [vmem:[%s237 + $0xd0] sm:%s229] %v290
                %v292 = vld [vmem:[%s236 + $0x1b0] sm:%s229]
                %293 = vst [vmem:[%s237 + $0xd8] sm:%s229] %v292
                %v294 = vld [vmem:[%s236 + $0x1c0] sm:%s229]
                %295 = vst [vmem:[%s237 + $0xe0] sm:%s229] %v294
                %v296 = vld [vmem:[%s236 + $0x1d0] sm:%s229]
                %297 = vst [vmem:[%s237 + $0xe8] sm:%s229] %v296
                %v298 = vld [vmem:[%s236 + $0x1e0] sm:%s229]
                %299 = vst [vmem:[%s237 + $0xf0] sm:%s229] %v298
                %v300 = vld [vmem:[%s236 + $0x1f0] sm:%s229]
                %301 = vst [vmem:[%s237 + $0xf8] sm:%s229] %v300
              $region41: #{_lambda_.101} parent=35 // loop_footer
                %s235 = sadd.s32 1, %s231
              $region42: #{_lambda_.101} parent=35 // loop_footer_branch
                %230 = sbr.rel target = $region38
              $region43: #{_lambda_.101} parent=35 // loop_exit
                _
            $region36: #{_lambda_.101} parent=27 // pred_fallthru
              _
          $region28: #{_lambda_.101} parent=23 // pred_fallthru
            _
          %378 = vnop
        $region24: #{_lambda_.101} parent=19 // pred_fallthru
          _
        // Predicated region
        $region59: #{_lambda_.101} parent=19 // pred_check
          %p379 = pneg %p95
        $region60: #{_lambda_.101} parent=19 // pred_check_branch
          %381 = sbr.rel (%p379) target = $region62
        $region61: #{_lambda_.101} parent=19 // pred_region
          %s382 = smul.u32 2, %s19
          %p383 = scmp.lt.s32.totalorder %s382, 3
          %s384 = scalar_select %p383, %s382, 3
          %s385 = scalar_lea.vmem %s2, %s384
          %s386 = smul.u32 2, %s19
        $region62: #{_lambda_.101} parent=19 // pred_fallthru
          _
        // Predicated region
        $region63: #{_lambda_.101} parent=19 // pred_check
          %p387 = pneg %p121
        $region64: #{_lambda_.101} parent=19 // pred_check_branch
          %389 = sbr.rel (%p387) target = $region66
        $region65: #{_lambda_.101} parent=19 // pred_region
          %s390 = smul.u32 2, %s19
          %p391 = scmp.lt.s32.totalorder %s390, 3
          %s392 = scalar_select %p391, %s390, 3
          %s393 = scalar_lea.vmem %s3, %s392
          %s394 = smul.u32 2, %s19
        $region66: #{_lambda_.101} parent=19 // pred_fallthru
          _
        // Predicated region
        $region67: #{_lambda_.101} parent=19 // pred_check
          %p395 = pneg %p149
        $region68: #{_lambda_.101} parent=19 // pred_check_branch
          %397 = sbr.rel (%p395) target = $region70
        $region69: #{_lambda_.101} parent=19 // pred_region
          %s398 = sand.u32 %s139, 1
          %s399 = sand.u32 %s139, 1
          %s400 = smul.addr %s399, 16
          %s401 = scalar_lea.vmem [#allocation3], %s400
          %s402 = smul.u32 2, %s18
          %s403 = smul.u32 2, %s19
          %s404 = smul.addr %s402, 4
          %s405 = sadd.s32 %s403, %s404
          %s406 = smul.addr %s405, 4
          %s407 = scalar_lea.vmem %s4, %s406
          // Predicated region
          $region71: #{_lambda_.101} parent=69 // pred_check
            _
          $region72: #{_lambda_.101} parent=69 // pred_check_branch
            %409 = sbr.rel (0) target = $region74
          $region73: #{_lambda_.101} parent=69 // pred_region
            // Predicated region
            $region75: #{_lambda_.101} parent=73 // pred_check
              _
            $region76: #{_lambda_.101} parent=73 // pred_check_branch
              %411 = sbr.rel (0) target = $region78
            $region77: #{_lambda_.101} parent=73 // pred_region
              // Predicated region
              $region90: #{_lambda_.101} parent=77 // pred_check
                _
              $region91: #{_lambda_.101} parent=77 // pred_check_branch
                %429 = sbr.rel (0) target = $region93
              $region92: #{_lambda_.101} parent=77 // pred_region
                loop: start=0, step=1, limit=1
                $region94: #{_lambda_.101} parent=92 // loop_pre_header
                  _
                $region95: #{_lambda_.101} parent=92 // loop_header
                  %s431 = sphi 0, %s435
                  %p432 = scmp.ge.s32.totalorder %s431, 1
                  %s436 = sphi %s407, %s407
                  %s437 = sphi %s401, %s401
                $region96: #{_lambda_.101} parent=92 // loop_header_branch
                  %434 = sbr.rel (%p432) target = $region100
                $region97: #{_lambda_.101} parent=92 // loop_body
                  %v438 = vld [vmem:[%s436] sm:$0xff]
                  %439 = vst [vmem:[%s437] sm:$0xff] %v438
                  %v440 = vld [vmem:[%s436 + $0x10] sm:$0xff]
                  %441 = vst [vmem:[%s437 + $0x8] sm:$0xff] %v440
                $region98: #{_lambda_.101} parent=92 // loop_footer
                  %s435 = sadd.s32 1, %s431
                $region99: #{_lambda_.101} parent=92 // loop_footer_branch
                  %430 = sbr.rel target = $region95
                $region100: #{_lambda_.101} parent=92 // loop_exit
                  _
              $region93: #{_lambda_.101} parent=77 // pred_fallthru
                _
              // Predicated region
              $region101: #{_lambda_.101} parent=77 // pred_check
                _
              $region102: #{_lambda_.101} parent=77 // pred_check_branch
                %443 = sbr.rel target = $region104
              $region103: #{_lambda_.101} parent=77 // pred_region
                _
              $region104: #{_lambda_.101} parent=77 // pred_fallthru
                _
            $region78: #{_lambda_.101} parent=73 // pred_fallthru
              _
            // Predicated region
            $region79: #{_lambda_.101} parent=73 // pred_check
              _
            $region80: #{_lambda_.101} parent=73 // pred_check_branch
              %413 = sbr.rel target = $region82
            $region81: #{_lambda_.101} parent=73 // pred_region
              %s415 = ssub.s32 256, 1
              loop: start=0, step=1, limit=1
              $region83: #{_lambda_.101} parent=81 // loop_pre_header
                _
              $region84: #{_lambda_.101} parent=81 // loop_header
                %s417 = sphi 0, %s421
                %p418 = scmp.ge.s32.totalorder %s417, 1
                %s422 = sphi %s407, %s407
                %s423 = sphi %s401, %s401
              $region85: #{_lambda_.101} parent=81 // loop_header_branch
                %420 = sbr.rel (%p418) target = $region89
              $region86: #{_lambda_.101} parent=81 // loop_body
                %v424 = vld [vmem:[%s422] sm:%s415]
                %425 = vst [vmem:[%s423] sm:%s415] %v424
                %v426 = vld [vmem:[%s422 + $0x10] sm:%s415]
                %427 = vst [vmem:[%s423 + $0x8] sm:%s415] %v426
              $region87: #{_lambda_.101} parent=81 // loop_footer
                %s421 = sadd.s32 1, %s417
              $region88: #{_lambda_.101} parent=81 // loop_footer_branch
                %416 = sbr.rel target = $region84
              $region89: #{_lambda_.101} parent=81 // loop_exit
                _
            $region82: #{_lambda_.101} parent=73 // pred_fallthru
              _
          $region74: #{_lambda_.101} parent=69 // pred_fallthru
            _
          %444 = vnop
        $region70: #{_lambda_.101} parent=19 // pred_fallthru
          _
      $region20: #{_lambda_.101} parent=5 // pred_fallthru
        _
      %p445 = scmp.le.s32.totalorder 1, %s11
      %p446 = scmp.lt.s32.totalorder %s11, 3
      %p447 = pnand %p445, %p446
      %p448 = pneg %p447
      // Predicated region
      $region105: #{_lambda_.101} parent=5 // pred_check
        _
      $region106: #{_lambda_.101} parent=5 // pred_check_branch
        %450 = sbr.rel (%p447) target = $region108
      $region107: #{_lambda_.101} parent=5 // pred_region
        %s451 = ssub.s32 %s11, 1
        %s452 = sand.u32 %s62, 1
        %s453 = sand.u32 %s62, 1
        %s454 = smul.addr %s453, 256
        %s455 = scalar_lea.vmem [#allocation2], %s454
        // Predicated region
        $region109: #{_lambda_.101} parent=107 // pred_check
          %p456 = pneg %p75
        $region110: #{_lambda_.101} parent=107 // pred_check_branch
          %458 = sbr.rel (%p456) target = $region112
        $region111: #{_lambda_.101} parent=107 // pred_region
          _
        $region112: #{_lambda_.101} parent=107 // pred_fallthru
          _
        %s459 = sand.u32 %s142, 1
        %s460 = sand.u32 %s142, 1
        %s461 = smul.addr %s460, 16
        %s462 = scalar_lea.vmem [#allocation3], %s461
        // Predicated region
        $region113: #{_lambda_.101} parent=107 // pred_check
          %p463 = pneg %p155
        $region114: #{_lambda_.101} parent=107 // pred_check_branch
          %465 = sbr.rel (%p463) target = $region116
        $region115: #{_lambda_.101} parent=107 // pred_region
          _
        $region116: #{_lambda_.101} parent=107 // pred_fallthru
          _
        %s466 = smul.u32 2, %s20
        %p467 = scmp.lt.s32.totalorder %s466, 1
        %s468 = scalar_select %p467, %s466, 1
        %s469 = smul.addr %s468, 2
        %s470 = smul.addr %s469, 4
        %s471 = scalar_lea.vmem %s0, %s470
        %p472 = pneg %p49
        %p473 = pneg %p46
        %s474 = sand.u32 %s62, 1
        %s475 = sand.u32 %s62, 1
        %s476 = smul.addr %s475, 256
        %s477 = scalar_lea.vmem [#allocation2], %s476
        %p478 = pneg %p75
        %p479 = pneg %p72
        %s480 = smul.u32 2, %s21
        %p481 = scmp.lt.s32.totalorder %s480, 3
        %s482 = scalar_select %p481, %s480, 3
        %s483 = scalar_lea.vmem %s2, %s482
        %p484 = pneg %p101
        %p485 = pneg %p98
        %s486 = smul.u32 2, %s21
        %p487 = scmp.lt.s32.totalorder %s486, 3
        %s488 = scalar_select %p487, %s486, 3
        %s489 = scalar_lea.vmem %s3, %s488
        %p490 = pneg %p127
        %p491 = pneg %p124
        %s492 = sand.u32 %s142, 1
        %s493 = sand.u32 %s142, 1
        %s494 = smul.addr %s493, 16
        %s495 = scalar_lea.vmem [#allocation3], %s494
        %p496 = pneg %p155
        %p497 = pneg %p152
        %p498 = pneg %p183
        %p499 = pneg %p180
        %s500 = sand.u32 %s170, 1
        %s501 = sand.u32 %s170, 1
        %s502 = smul.addr %s501, 16
        %s503 = scalar_lea.vmem [#allocation4], %s502
        %s504 = smul.u32 2, %s20
        %p505 = scmp.lt.s32.totalorder %s504, 1
        %s506 = scalar_select %p505, %s504, 1
        %s507 = smul.addr %s506, 2
        %s508 = smul.addr %s507, 4
        %s509 = scalar_lea.vmem %s0, %s508
        %s510 = smul.u32 2, %s20
        %s511 = smul.u32 2, %s21
        %s512 = smul.u32 2, %s21
        %p513 = scmp.lt.s32.totalorder %s512, 3
        %s514 = scalar_select %p513, %s512, 3
        %s515 = scalar_lea.vmem %s2, %s514
        %s516 = smul.u32 2, %s21
        %s517 = smul.u32 2, %s21
        %p518 = scmp.lt.s32.totalorder %s517, 3
        %s519 = scalar_select %p518, %s517, 3
        %s520 = scalar_lea.vmem %s3, %s519
        %s521 = smul.u32 2, %s21
        %s522 = smul.u32 2, %s20
        %s523 = smul.u32 2, %s21
        %s524 = smul.u32 2, %s20
        %s525 = smul.u32 2, %s21
        %v526 = vld [vmem:[%s509] sm:$0xff]
        %v527 = vld [vmem:[%s509 + $0x8] sm:$0xff]
        %v528 = vld [vmem:[%s455] sm:$0xff]
        %v529 = vld [vmem:[%s455 + $0x8] sm:$0xff]
        %v530 = vld [vmem:[%s455 + $0x10] sm:$0xff]
        %v531 = vld [vmem:[%s455 + $0x18] sm:$0xff]
        %v532 = vld [vmem:[%s455 + $0x20] sm:$0xff]
        %v533 = vld [vmem:[%s455 + $0x28] sm:$0xff]
        %v534 = vld [vmem:[%s455 + $0x30] sm:$0xff]
        %v535 = vld [vmem:[%s455 + $0x38] sm:$0xff]
        %v536 = vld [vmem:[%s455 + $0x40] sm:$0xff]
        %v537 = vld [vmem:[%s455 + $0x48] sm:$0xff]
        %v538 = vld [vmem:[%s455 + $0x50] sm:$0xff]
        %v539 = vld [vmem:[%s455 + $0x58] sm:$0xff]
        %v540 = vld [vmem:[%s455 + $0x60] sm:$0xff]
        %v541 = vld [vmem:[%s455 + $0x68] sm:$0xff]
        %v542 = vld [vmem:[%s455 + $0x70] sm:$0xff]
        %v543 = vld [vmem:[%s455 + $0x78] sm:$0xff]
        %v544 = vld [vmem:[%s455 + $0x80] sm:$0xff]
        %v545 = vld [vmem:[%s455 + $0x88] sm:$0xff]
        %v546 = vld [vmem:[%s455 + $0x90] sm:$0xff]
        %v547 = vld [vmem:[%s455 + $0x98] sm:$0xff]
        %v548 = vld [vmem:[%s455 + $0xa0] sm:$0xff]
        %v549 = vld [vmem:[%s455 + $0xa8] sm:$0xff]
        %v550 = vld [vmem:[%s455 + $0xb0] sm:$0xff]
        %v551 = vld [vmem:[%s455 + $0xb8] sm:$0xff]
        %v552 = vld [vmem:[%s455 + $0xc0] sm:$0xff]
        %v553 = vld [vmem:[%s455 + $0xc8] sm:$0xff]
        %v554 = vld [vmem:[%s455 + $0xd0] sm:$0xff]
        %v555 = vld [vmem:[%s455 + $0xd8] sm:$0xff]
        %v556 = vld [vmem:[%s455 + $0xe0] sm:$0xff]
        %v557 = vld [vmem:[%s455 + $0xe8] sm:$0xff]
        %v558 = vld [vmem:[%s455 + $0xf0] sm:$0xff]
        %v559 = vld [vmem:[%s455 + $0xf8] sm:$0xff]
        %v562 = vunpack.c.l.b16 %v526
        %v563 = vunpack.c.h.b16 %v526
        %v564 = vunpack.c.l.b16 %v527
        %v565 = vunpack.c.h.b16 %v527
        %v566 = vpack.c.b16 %v564, %v562
        %v567 = vpack.c.b16 %v565, %v563
        %v602 = vunpack.c.l.b16 %v528
        %v603 = vunpack.c.h.b16 %v528
        %v604 = vunpack.c.l.b16 %v529
        %v605 = vunpack.c.h.b16 %v529
        %v606 = vunpack.c.l.b16 %v530
        %v607 = vunpack.c.h.b16 %v530
        %v608 = vunpack.c.l.b16 %v531
        %v609 = vunpack.c.h.b16 %v531
        %v610 = vunpack.c.l.b16 %v532
        %v611 = vunpack.c.h.b16 %v532
        %v612 = vunpack.c.l.b16 %v533
        %v613 = vunpack.c.h.b16 %v533
        %v614 = vunpack.c.l.b16 %v534
        %v615 = vunpack.c.h.b16 %v534
        %v616 = vunpack.c.l.b16 %v535
        %v617 = vunpack.c.h.b16 %v535
        %v618 = vunpack.c.l.b16 %v536
        %v619 = vunpack.c.h.b16 %v536
        %v620 = vunpack.c.l.b16 %v537
        %v621 = vunpack.c.h.b16 %v537
        %v622 = vunpack.c.l.b16 %v538
        %v623 = vunpack.c.h.b16 %v538
        %v624 = vunpack.c.l.b16 %v539
        %v625 = vunpack.c.h.b16 %v539
        %v626 = vunpack.c.l.b16 %v540
        %v627 = vunpack.c.h.b16 %v540
        %v628 = vunpack.c.l.b16 %v541
        %v629 = vunpack.c.h.b16 %v541
        %v630 = vunpack.c.l.b16 %v542
        %v631 = vunpack.c.h.b16 %v542
        %v632 = vunpack.c.l.b16 %v543
        %v633 = vunpack.c.h.b16 %v543
        %v634 = vunpack.c.l.b16 %v544
        %v635 = vunpack.c.h.b16 %v544
        %v636 = vunpack.c.l.b16 %v545
        %v637 = vunpack.c.h.b16 %v545
        %v638 = vunpack.c.l.b16 %v546
        %v639 = vunpack.c.h.b16 %v546
        %v640 = vunpack.c.l.b16 %v547
        %v641 = vunpack.c.h.b16 %v547
        %v642 = vunpack.c.l.b16 %v548
        %v643 = vunpack.c.h.b16 %v548
        %v644 = vunpack.c.l.b16 %v549
        %v645 = vunpack.c.h.b16 %v549
        %v646 = vunpack.c.l.b16 %v550
        %v647 = vunpack.c.h.b16 %v550
        %v648 = vunpack.c.l.b16 %v551
        %v649 = vunpack.c.h.b16 %v551
        %v650 = vunpack.c.l.b16 %v552
        %v651 = vunpack.c.h.b16 %v552
        %v652 = vunpack.c.l.b16 %v553
        %v653 = vunpack.c.h.b16 %v553
        %v654 = vunpack.c.l.b16 %v554
        %v655 = vunpack.c.h.b16 %v554
        %v656 = vunpack.c.l.b16 %v555
        %v657 = vunpack.c.h.b16 %v555
        %v658 = vunpack.c.l.b16 %v556
        %v659 = vunpack.c.h.b16 %v556
        %v660 = vunpack.c.l.b16 %v557
        %v661 = vunpack.c.h.b16 %v557
        %v662 = vunpack.c.l.b16 %v558
        %v663 = vunpack.c.h.b16 %v558
        %v664 = vunpack.c.l.b16 %v559
        %v665 = vunpack.c.h.b16 %v559
        %v666 = vpack.c.b16 %v604, %v602
        %v667 = vpack.c.b16 %v605, %v603
        %v668 = vpack.c.b16 %v608, %v606
        %v669 = vpack.c.b16 %v609, %v607
        %v670 = vpack.c.b16 %v612, %v610
        %v671 = vpack.c.b16 %v613, %v611
        %v672 = vpack.c.b16 %v616, %v614
        %v673 = vpack.c.b16 %v617, %v615
        %v674 = vpack.c.b16 %v620, %v618
        %v675 = vpack.c.b16 %v621, %v619
        %v676 = vpack.c.b16 %v624, %v622
        %v677 = vpack.c.b16 %v625, %v623
        %v678 = vpack.c.b16 %v628, %v626
        %v679 = vpack.c.b16 %v629, %v627
        %v680 = vpack.c.b16 %v632, %v630
        %v681 = vpack.c.b16 %v633, %v631
        %v682 = vpack.c.b16 %v636, %v634
        %v683 = vpack.c.b16 %v637, %v635
        %v684 = vpack.c.b16 %v640, %v638
        %v685 = vpack.c.b16 %v641, %v639
        %v686 = vpack.c.b16 %v644, %v642
        %v687 = vpack.c.b16 %v645, %v643
        %v688 = vpack.c.b16 %v648, %v646
        %v689 = vpack.c.b16 %v649, %v647
        %v690 = vpack.c.b16 %v652, %v650
        %v691 = vpack.c.b16 %v653, %v651
        %v692 = vpack.c.b16 %v656, %v654
        %v693 = vpack.c.b16 %v657, %v655
        %v694 = vpack.c.b16 %v660, %v658
        %v695 = vpack.c.b16 %v661, %v659
        %v696 = vpack.c.b16 %v664, %v662
        %v697 = vpack.c.b16 %v665, %v663
        %730 = vmatprep.subr.bf16.mxu0 %v681
        %731 = vmatpush1.bf16.msra.mxu0 %v680
        %732 = vmatprep.subr.bf16.mxu0 %v679
        %733 = vmatpush1.bf16.msra.mxu0 %v678
        %734 = vmatprep.subr.bf16.mxu0 %v677
        %735 = vmatpush1.bf16.msra.mxu0 %v676
        %736 = vmatprep.subr.bf16.mxu0 %v675
        %737 = vmatpush1.bf16.msra.mxu0 %v674
        %738 = vmatprep.subr.bf16.mxu0 %v673
        %739 = vmatpush1.bf16.msra.mxu0 %v672
        %740 = vmatprep.subr.bf16.mxu0 %v671
        %741 = vmatpush1.bf16.msra.mxu0 %v670
        %742 = vmatprep.subr.bf16.mxu0 %v669
        %743 = vmatpush1.bf16.msra.mxu0 %v668
        %744 = vmatprep.subr.bf16.mxu0 %v667
        %745 = vmatpush1.bf16.msra.mxu0 %v666
        %746 = vmatprep.subr.bf16.mxu0 %v697
        %747 = vmatpush2.bf16.msra.mxu0 %v696
        %748 = vmatprep.subr.bf16.mxu0 %v695
        %749 = vmatpush2.bf16.msra.mxu0 %v694
        %750 = vmatprep.subr.bf16.mxu0 %v693
        %751 = vmatpush2.bf16.msra.mxu0 %v692
        %752 = vmatprep.subr.bf16.mxu0 %v691
        %753 = vmatpush2.bf16.msra.mxu0 %v690
        %754 = vmatprep.subr.bf16.mxu0 %v689
        %755 = vmatpush2.bf16.msra.mxu0 %v688
        %756 = vmatprep.subr.bf16.mxu0 %v687
        %757 = vmatpush2.bf16.msra.mxu0 %v686
        %758 = vmatprep.subr.bf16.mxu0 %v685
        %759 = vmatpush2.bf16.msra.mxu0 %v684
        %760 = vmatprep.subr.bf16.mxu0 %v683
        %761 = vmatpush2.bf16.msra.mxu0 %v682
        %762 = vmatprep.mubr.bf16.mxu0 %v567
        %763 = vmatmul.mubr.bf16.gmra.mxu0 %v566
        %v764 = vpop.f32.mrf.mxu0
        %v765 = vadd.f32 0.0, %v764
        %v766 = vpop.f32.mrf.mxu0
        %v767 = vadd.f32 0.0, %v766
        %v768 = vpop.f32.mrf.mxu0
        %v769 = vadd.f32 0.0, %v768
        %v770 = vpop.f32.mrf.mxu0
        %v771 = vadd.f32 0.0, %v770
        %772 = vdwg.mxu0
        %v773 = vld [vmem:[%s515] sm:$0x3]
        %v775 = vlaneseq
        %v776 = vshrl.u32 %v775, 7
        %v777 = vsub.s32 0, %v776
        %v778 = vrot.slane %v773, %v777
        %v779 = vlaneseq
        %v780 = vshrl.u32 %v779, 7
        %v781 = vsub.s32 1, %v780
        %v782 = vrot.slane %v773, %v781
        %v785 = vmul.f32 %v765, %v778
        %v786 = vmul.f32 %v767, %v782
        %v787 = vmul.f32 %v769, %v778
        %v788 = vmul.f32 %v771, %v782
        %v789 = vld [vmem:[%s520] sm:$0x3]
        %v791 = vlaneseq
        %v792 = vshrl.u32 %v791, 7
        %v793 = vsub.s32 0, %v792
        %v794 = vrot.slane %v789, %v793
        %v795 = vlaneseq
        %v796 = vshrl.u32 %v795, 7
        %v797 = vsub.s32 1, %v796
        %v798 = vrot.slane %v789, %v797
        %v801 = vadd.f32 %v785, %v794
        %v802 = vadd.f32 %v786, %v798
        %v803 = vadd.f32 %v787, %v794
        %v804 = vadd.f32 %v788, %v798
        %v805 = vld [vmem:[%s462] sm:$0xff]
        %v806 = vld [vmem:[%s462 + $0x8] sm:$0xff]
        %v807 = vunpack.c.l.bf16 %v805
        %v808 = vunpack.c.h.bf16 %v805
        %v809 = vunpack.c.l.bf16 %v806
        %v810 = vunpack.c.h.bf16 %v806
        %v811 = vadd.f32 %v801, %v807
        %v812 = vadd.f32 %v802, %v808
        %v813 = vadd.f32 %v803, %v809
        %v814 = vadd.f32 %v804, %v810
        %v815 = vmax.f32 %v811, 0.0
        %v816 = vmax.f32 %v812, 0.0
        %v817 = vmax.f32 %v813, 0.0
        %v818 = vmax.f32 %v814, 0.0
        %v819 = vpack.c.bf16 %v817, %v815
        %v820 = vpack.c.bf16 %v818, %v816
        %v823 = vunpack.c.l.b16 %v819
        %v824 = vunpack.c.l.b16 %v820
        %v825 = vunpack.c.h.b16 %v819
        %v826 = vunpack.c.h.b16 %v820
        %v827 = vpack.c.b16 %v824, %v823
        %v828 = vpack.c.b16 %v826, %v825
        %831 = vst [vmem:[%s503] sm:$0xff] %v827
        %832 = vst [vmem:[%s503 + $0x8] sm:$0xff] %v828
        %s833 = sand.u32 %s170, 1
        %s834 = sand.u32 %s170, 1
        %s835 = smul.addr %s834, 16
        %s836 = scalar_lea.vmem [#allocation4], %s835
        // Predicated region
        $region117: #{_lambda_.101} parent=107 // pred_check
          %p837 = pneg %p180
        $region118: #{_lambda_.101} parent=107 // pred_check_branch
          %839 = sbr.rel (%p837) target = $region120
        $region119: #{_lambda_.101} parent=107 // pred_region
          %s840 = smul.u32 2, %s20
          %s841 = smul.u32 2, %s21
          %s842 = smul.addr %s840, 4
          %s843 = sadd.s32 %s841, %s842
          %s844 = smul.addr %s843, 4
          %s845 = scalar_lea.vmem %s5, %s844
          // Predicated region
          $region121: #{_lambda_.101} parent=119 // pred_check
            _
          $region122: #{_lambda_.101} parent=119 // pred_check_branch
            %847 = sbr.rel (0) target = $region124
          $region123: #{_lambda_.101} parent=119 // pred_region
            // Predicated region
            $region125: #{_lambda_.101} parent=123 // pred_check
              _
            $region126: #{_lambda_.101} parent=123 // pred_check_branch
              %849 = sbr.rel (0) target = $region128
            $region127: #{_lambda_.101} parent=123 // pred_region
              // Predicated region
              $region140: #{_lambda_.101} parent=127 // pred_check
                _
              $region141: #{_lambda_.101} parent=127 // pred_check_branch
                %867 = sbr.rel (0) target = $region143
              $region142: #{_lambda_.101} parent=127 // pred_region
                loop: start=0, step=1, limit=1
                $region144: #{_lambda_.101} parent=142 // loop_pre_header
                  _
                $region145: #{_lambda_.101} parent=142 // loop_header
                  %s869 = sphi 0, %s873
                  %p870 = scmp.ge.s32.totalorder %s869, 1
                  %s874 = sphi %s836, %s836
                  %s875 = sphi %s845, %s845
                $region146: #{_lambda_.101} parent=142 // loop_header_branch
                  %872 = sbr.rel (%p870) target = $region150
                $region147: #{_lambda_.101} parent=142 // loop_body
                  %v876 = vld [vmem:[%s874] sm:$0xff]
                  %877 = vst [vmem:[%s875] sm:$0xff] %v876
                  %v878 = vld [vmem:[%s874 + $0x8] sm:$0xff]
                  %879 = vst [vmem:[%s875 + $0x10] sm:$0xff] %v878
                $region148: #{_lambda_.101} parent=142 // loop_footer
                  %s873 = sadd.s32 1, %s869
                $region149: #{_lambda_.101} parent=142 // loop_footer_branch
                  %868 = sbr.rel target = $region145
                $region150: #{_lambda_.101} parent=142 // loop_exit
                  _
              $region143: #{_lambda_.101} parent=127 // pred_fallthru
                _
              // Predicated region
              $region151: #{_lambda_.101} parent=127 // pred_check
                _
              $region152: #{_lambda_.101} parent=127 // pred_check_branch
                %881 = sbr.rel target = $region154
              $region153: #{_lambda_.101} parent=127 // pred_region
                _
              $region154: #{_lambda_.101} parent=127 // pred_fallthru
                _
            $region128: #{_lambda_.101} parent=123 // pred_fallthru
              _
            // Predicated region
            $region129: #{_lambda_.101} parent=123 // pred_check
              _
            $region130: #{_lambda_.101} parent=123 // pred_check_branch
              %851 = sbr.rel target = $region132
            $region131: #{_lambda_.101} parent=123 // pred_region
              %s853 = ssub.s32 256, 1
              loop: start=0, step=1, limit=1
              $region133: #{_lambda_.101} parent=131 // loop_pre_header
                _
              $region134: #{_lambda_.101} parent=131 // loop_header
                %s855 = sphi 0, %s859
                %p856 = scmp.ge.s32.totalorder %s855, 1
                %s860 = sphi %s836, %s836
                %s861 = sphi %s845, %s845
              $region135: #{_lambda_.101} parent=131 // loop_header_branch
                %858 = sbr.rel (%p856) target = $region139
              $region136: #{_lambda_.101} parent=131 // loop_body
                %v862 = vld [vmem:[%s860] sm:%s853]
                %863 = vst [vmem:[%s861] sm:%s853] %v862
                %v864 = vld [vmem:[%s860 + $0x8] sm:%s853]
                %865 = vst [vmem:[%s861 + $0x10] sm:%s853] %v864
              $region137: #{_lambda_.101} parent=131 // loop_footer
                %s859 = sadd.s32 1, %s855
              $region138: #{_lambda_.101} parent=131 // loop_footer_branch
                %854 = sbr.rel target = $region134
              $region139: #{_lambda_.101} parent=131 // loop_exit
                _
            $region132: #{_lambda_.101} parent=123 // pred_fallthru
              _
          $region124: #{_lambda_.101} parent=119 // pred_fallthru
            _
          %882 = vnop
        $region120: #{_lambda_.101} parent=107 // pred_fallthru
          _
      $region108: #{_lambda_.101} parent=5 // pred_fallthru
        _
      %p883 = scmp.le.s32.totalorder 2, %s11
      // Predicated region
      $region155: #{_lambda_.101} parent=5 // pred_check
        %p884 = pneg %p883
      $region156: #{_lambda_.101} parent=5 // pred_check_branch
        %886 = sbr.rel (%p884) target = $region158
      $region157: #{_lambda_.101} parent=5 // pred_region
        %s887 = ssub.s32 %s11, 2
        // Predicated region
        $region159: #{_lambda_.101} parent=157 // pred_check
          %p888 = pneg %p186
        $region160: #{_lambda_.101} parent=157 // pred_check_branch
          %890 = sbr.rel (%p888) target = $region162
        $region161: #{_lambda_.101} parent=157 // pred_region
          %s891 = sand.u32 %s171, 1
          %s892 = sand.u32 %s171, 1
          %s893 = smul.addr %s892, 16
          %s894 = scalar_lea.vmem [#allocation4], %s893
        $region162: #{_lambda_.101} parent=157 // pred_fallthru
          _
      $region158: #{_lambda_.101} parent=5 // pred_fallthru
        _
    $region6: #{_lambda_.101} parent=1 // loop_footer
      %s15 = sadd.s32 1, %s11
    $region7: #{_lambda_.101} parent=1 // loop_footer_branch
      %10 = sbr.rel target = $region3
    $region8: #{_lambda_.101} parent=1 // loop_exit
      _

// kernel: _lambda_.102
$region0: #{_lambda_.102}
  #allocation0 [shape = 'u32[]', space=smem, size = 0x4, offset = 0x4, fixed_abs, tag = 'smem constant byte address 0x4 - core index']
  #allocation1 [shape = 'u32[144,128]{1,0:T(1,128)}', space=vmem, size = 0x12000, scoped, tag = 'internal scratch']
  %s0 = inlined_call_operand.vmem [shape: bf16[16,512], index: 0, kind: input, shape index: {}]
  %s1 = inlined_call_operand.vmem [shape: bf16[512,256], index: 1, kind: input, shape index: {}]
  %s2 = inlined_call_operand.vmem [shape: f32[1,256], index: 2, kind: input, shape index: {}]
  %s3 = inlined_call_operand.vmem [shape: f32[1,256], index: 3, kind: input, shape index: {}]
  %s4 = inlined_call_operand.vmem [shape: bf16[16,256], index: 4, kind: output, shape index: {}]
  %s5 = sld [smem:[#allocation0]]
  $region26: #{_lambda_.102} parent=0
    _
  %s7 = ssub.s32 1, %s5
  %s8 = scalar_select 0, %s7, %s5
  // Predicated region
  $region2: #{_lambda_.102} parent=0 // pred_check
    _
  $region3: #{_lambda_.102} parent=0 // pred_check_branch
    %10 = sbr.rel (0) target = $region5
  $region4: #{_lambda_.102} parent=0 // pred_region
    _
  $region5: #{_lambda_.102} parent=0 // pred_fallthru
    _
  // Predicated region
  $region6: #{_lambda_.102} parent=0 // pred_check
    _
  $region7: #{_lambda_.102} parent=0 // pred_check_branch
    %12 = sbr.rel (0) target = $region9
  $region8: #{_lambda_.102} parent=0 // pred_region
    _
  $region9: #{_lambda_.102} parent=0 // pred_fallthru
    _
  // Predicated region
  $region10: #{_lambda_.102} parent=0 // pred_check
    _
  $region11: #{_lambda_.102} parent=0 // pred_check_branch
    %14 = sbr.rel (0) target = $region13
  $region12: #{_lambda_.102} parent=0 // pred_region
    _
  $region13: #{_lambda_.102} parent=0 // pred_fallthru
    _
  // Predicated region
  $region14: #{_lambda_.102} parent=0 // pred_check
    _
  $region15: #{_lambda_.102} parent=0 // pred_check_branch
    %16 = sbr.rel (0) target = $region17
  $region16: #{_lambda_.102} parent=0 // pred_region
    _
  $region17: #{_lambda_.102} parent=0 // pred_fallthru
    _
  %v17 = vld [vmem:[%s0] sm:$0xff]
  %v18 = vld [vmem:[%s0 + $0x8] sm:$0xff]
  %v19 = vld [vmem:[%s0 + $0x10] sm:$0xff]
  %v20 = vld [vmem:[%s0 + $0x18] sm:$0xff]
  %v21 = vld [vmem:[%s1] sm:$0xff]
  %v22 = vld [vmem:[%s1 + $0x8] sm:$0xff]
  %v23 = vld [vmem:[%s1 + $0x10] sm:$0xff]
  %v24 = vld [vmem:[%s1 + $0x18] sm:$0xff]
  %v25 = vld [vmem:[%s1 + $0x20] sm:$0xff]
  %v26 = vld [vmem:[%s1 + $0x28] sm:$0xff]
  %v27 = vld [vmem:[%s1 + $0x30] sm:$0xff]
  %v28 = vld [vmem:[%s1 + $0x38] sm:$0xff]
  %v29 = vld [vmem:[%s1 + $0x40] sm:$0xff]
  %v30 = vld [vmem:[%s1 + $0x48] sm:$0xff]
  %v31 = vld [vmem:[%s1 + $0x50] sm:$0xff]
  %v32 = vld [vmem:[%s1 + $0x58] sm:$0xff]
  %v33 = vld [vmem:[%s1 + $0x60] sm:$0xff]
  %v34 = vld [vmem:[%s1 + $0x68] sm:$0xff]
  %v35 = vld [vmem:[%s1 + $0x70] sm:$0xff]
  %v36 = vld [vmem:[%s1 + $0x78] sm:$0xff]
  %v37 = vld [vmem:[%s1 + $0x80] sm:$0xff]
  %v38 = vld [vmem:[%s1 + $0x88] sm:$0xff]
  %v39 = vld [vmem:[%s1 + $0x90] sm:$0xff]
  %v40 = vld [vmem:[%s1 + $0x98] sm:$0xff]
  %v41 = vld [vmem:[%s1 + $0xa0] sm:$0xff]
  %v42 = vld [vmem:[%s1 + $0xa8] sm:$0xff]
  %v43 = vld [vmem:[%s1 + $0xb0] sm:$0xff]
  %v44 = vld [vmem:[%s1 + $0xb8] sm:$0xff]
  %v45 = vld [vmem:[%s1 + $0xc0] sm:$0xff]
  %v46 = vld [vmem:[%s1 + $0xc8] sm:$0xff]
  %v47 = vld [vmem:[%s1 + $0xd0] sm:$0xff]
  %v48 = vld [vmem:[%s1 + $0xd8] sm:$0xff]
  %v49 = vld [vmem:[%s1 + $0xe0] sm:$0xff]
  %v50 = vld [vmem:[%s1 + $0xe8] sm:$0xff]
  %v51 = vld [vmem:[%s1 + $0xf0] sm:$0xff]
  %v52 = vld [vmem:[%s1 + $0xf8] sm:$0xff]
  %v53 = vld [vmem:[%s1 + $0x100] sm:$0xff]
  %v54 = vld [vmem:[%s1 + $0x108] sm:$0xff]
  %v55 = vld [vmem:[%s1 + $0x110] sm:$0xff]
  %v56 = vld [vmem:[%s1 + $0x118] sm:$0xff]
  %v57 = vld [vmem:[%s1 + $0x120] sm:$0xff]
  %v58 = vld [vmem:[%s1 + $0x128] sm:$0xff]
  %v59 = vld [vmem:[%s1 + $0x130] sm:$0xff]
  %v60 = vld [vmem:[%s1 + $0x138] sm:$0xff]
  %v61 = vld [vmem:[%s1 + $0x140] sm:$0xff]
  %v62 = vld [vmem:[%s1 + $0x148] sm:$0xff]
  %v63 = vld [vmem:[%s1 + $0x150] sm:$0xff]
  %v64 = vld [vmem:[%s1 + $0x158] sm:$0xff]
  %v65 = vld [vmem:[%s1 + $0x160] sm:$0xff]
  %v66 = vld [vmem:[%s1 + $0x168] sm:$0xff]
  %v67 = vld [vmem:[%s1 + $0x170] sm:$0xff]
  %v68 = vld [vmem:[%s1 + $0x178] sm:$0xff]
  %v69 = vld [vmem:[%s1 + $0x180] sm:$0xff]
  %v70 = vld [vmem:[%s1 + $0x188] sm:$0xff]
  %v71 = vld [vmem:[%s1 + $0x190] sm:$0xff]
  %v72 = vld [vmem:[%s1 + $0x198] sm:$0xff]
  %v73 = vld [vmem:[%s1 + $0x1a0] sm:$0xff]
  %v74 = vld [vmem:[%s1 + $0x1a8] sm:$0xff]
  %v75 = vld [vmem:[%s1 + $0x1b0] sm:$0xff]
  %v76 = vld [vmem:[%s1 + $0x1b8] sm:$0xff]
  %v77 = vld [vmem:[%s1 + $0x1c0] sm:$0xff]
  %v78 = vld [vmem:[%s1 + $0x1c8] sm:$0xff]
  %v79 = vld [vmem:[%s1 + $0x1d0] sm:$0xff]
  %v80 = vld [vmem:[%s1 + $0x1d8] sm:$0xff]
  %v81 = vld [vmem:[%s1 + $0x1e0] sm:$0xff]
  %v82 = vld [vmem:[%s1 + $0x1e8] sm:$0xff]
  %v83 = vld [vmem:[%s1 + $0x1f0] sm:$0xff]
  %v84 = vld [vmem:[%s1 + $0x1f8] sm:$0xff]
  %v89 = vunpack.c.l.b16 %v17
  %v90 = vunpack.c.h.b16 %v17
  %v91 = vunpack.c.l.b16 %v18
  %v92 = vunpack.c.h.b16 %v18
  %v93 = vunpack.c.l.b16 %v19
  %v94 = vunpack.c.h.b16 %v19
  %v95 = vunpack.c.l.b16 %v20
  %v96 = vunpack.c.h.b16 %v20
  %v97 = vpack.c.b16 %v93, %v89
  %v98 = vpack.c.b16 %v94, %v90
  %v99 = vpack.c.b16 %v95, %v91
  %v100 = vpack.c.b16 %v96, %v92
  %v169 = vunpack.c.l.b16 %v21
  %v170 = vunpack.c.h.b16 %v21
  %v171 = vunpack.c.l.b16 %v22
  %v172 = vunpack.c.h.b16 %v22
  %v173 = vunpack.c.l.b16 %v23
  %v174 = vunpack.c.h.b16 %v23
  %v175 = vunpack.c.l.b16 %v24
  %v176 = vunpack.c.h.b16 %v24
  %v177 = vunpack.c.l.b16 %v25
  %v178 = vunpack.c.h.b16 %v25
  %v179 = vunpack.c.l.b16 %v26
  %v180 = vunpack.c.h.b16 %v26
  %v181 = vunpack.c.l.b16 %v27
  %v182 = vunpack.c.h.b16 %v27
  %v183 = vunpack.c.l.b16 %v28
  %v184 = vunpack.c.h.b16 %v28
  %v185 = vunpack.c.l.b16 %v29
  %v186 = vunpack.c.h.b16 %v29
  %v187 = vunpack.c.l.b16 %v30
  %v188 = vunpack.c.h.b16 %v30
  %v189 = vunpack.c.l.b16 %v31
  %v190 = vunpack.c.h.b16 %v31
  %v191 = vunpack.c.l.b16 %v32
  %v192 = vunpack.c.h.b16 %v32
  %v193 = vunpack.c.l.b16 %v33
  %v194 = vunpack.c.h.b16 %v33
  %v195 = vunpack.c.l.b16 %v34
  %v196 = vunpack.c.h.b16 %v34
  %v197 = vunpack.c.l.b16 %v35
  %v198 = vunpack.c.h.b16 %v35
  %v199 = vunpack.c.l.b16 %v36
  %v200 = vunpack.c.h.b16 %v36
  %v201 = vunpack.c.l.b16 %v37
  %v202 = vunpack.c.h.b16 %v37
  %v203 = vunpack.c.l.b16 %v38
  %v204 = vunpack.c.h.b16 %v38
  %v205 = vunpack.c.l.b16 %v39
  %v206 = vunpack.c.h.b16 %v39
  %v207 = vunpack.c.l.b16 %v40
  %v208 = vunpack.c.h.b16 %v40
  %v209 = vunpack.c.l.b16 %v41
  %v210 = vunpack.c.h.b16 %v41
  %v211 = vunpack.c.l.b16 %v42
  %v212 = vunpack.c.h.b16 %v42
  %v213 = vunpack.c.l.b16 %v43
  %v214 = vunpack.c.h.b16 %v43
  %v215 = vunpack.c.l.b16 %v44
  %v216 = vunpack.c.h.b16 %v44
  %v217 = vunpack.c.l.b16 %v45
  %v218 = vunpack.c.h.b16 %v45
  %v219 = vunpack.c.l.b16 %v46
  %v220 = vunpack.c.h.b16 %v46
  %v221 = vunpack.c.l.b16 %v47
  %v222 = vunpack.c.h.b16 %v47
  %v223 = vunpack.c.l.b16 %v48
  %v224 = vunpack.c.h.b16 %v48
  %v225 = vunpack.c.l.b16 %v49
  %v226 = vunpack.c.h.b16 %v49
  %v227 = vunpack.c.l.b16 %v50
  %v228 = vunpack.c.h.b16 %v50
  %v229 = vunpack.c.l.b16 %v51
  %v230 = vunpack.c.h.b16 %v51
  %v231 = vunpack.c.l.b16 %v52
  %v232 = vunpack.c.h.b16 %v52
  %v233 = vunpack.c.l.b16 %v53
  %v234 = vunpack.c.h.b16 %v53
  %v235 = vunpack.c.l.b16 %v54
  %v236 = vunpack.c.h.b16 %v54
  %v237 = vunpack.c.l.b16 %v55
  %v238 = vunpack.c.h.b16 %v55
  %v239 = vunpack.c.l.b16 %v56
  %v240 = vunpack.c.h.b16 %v56
  %v241 = vunpack.c.l.b16 %v57
  %v242 = vunpack.c.h.b16 %v57
  %v243 = vunpack.c.l.b16 %v58
  %v244 = vunpack.c.h.b16 %v58
  %v245 = vunpack.c.l.b16 %v59
  %v246 = vunpack.c.h.b16 %v59
  %v247 = vunpack.c.l.b16 %v60
  %v248 = vunpack.c.h.b16 %v60
  %v249 = vunpack.c.l.b16 %v61
  %v250 = vunpack.c.h.b16 %v61
  %v251 = vunpack.c.l.b16 %v62
  %v252 = vunpack.c.h.b16 %v62
  %v253 = vunpack.c.l.b16 %v63
  %v254 = vunpack.c.h.b16 %v63
  %v255 = vunpack.c.l.b16 %v64
  %v256 = vunpack.c.h.b16 %v64
  %v257 = vunpack.c.l.b16 %v65
  %v258 = vunpack.c.h.b16 %v65
  %v259 = vunpack.c.l.b16 %v66
  %v260 = vunpack.c.h.b16 %v66
  %v261 = vunpack.c.l.b16 %v67
  %v262 = vunpack.c.h.b16 %v67
  %v263 = vunpack.c.l.b16 %v68
  %v264 = vunpack.c.h.b16 %v68
  %v265 = vunpack.c.l.b16 %v69
  %v266 = vunpack.c.h.b16 %v69
  %v267 = vunpack.c.l.b16 %v70
  %v268 = vunpack.c.h.b16 %v70
  %v269 = vunpack.c.l.b16 %v71
  %v270 = vunpack.c.h.b16 %v71
  %v271 = vunpack.c.l.b16 %v72
  %v272 = vunpack.c.h.b16 %v72
  %v273 = vunpack.c.l.b16 %v73
  %v274 = vunpack.c.h.b16 %v73
  %v275 = vunpack.c.l.b16 %v74
  %v276 = vunpack.c.h.b16 %v74
  %v277 = vunpack.c.l.b16 %v75
  %v278 = vunpack.c.h.b16 %v75
  %v279 = vunpack.c.l.b16 %v76
  %v280 = vunpack.c.h.b16 %v76
  %v281 = vunpack.c.l.b16 %v77
  %v282 = vunpack.c.h.b16 %v77
  %v283 = vunpack.c.l.b16 %v78
  %v284 = vunpack.c.h.b16 %v78
  %v285 = vunpack.c.l.b16 %v79
  %v286 = vunpack.c.h.b16 %v79
  %v287 = vunpack.c.l.b16 %v80
  %v288 = vunpack.c.h.b16 %v80
  %v289 = vunpack.c.l.b16 %v81
  %v290 = vunpack.c.h.b16 %v81
  %v291 = vunpack.c.l.b16 %v82
  %v292 = vunpack.c.h.b16 %v82
  %v293 = vunpack.c.l.b16 %v83
  %v294 = vunpack.c.h.b16 %v83
  %v295 = vunpack.c.l.b16 %v84
  %v296 = vunpack.c.h.b16 %v84
  %v297 = vpack.c.b16 %v171, %v169
  %v298 = vpack.c.b16 %v172, %v170
  %v299 = vpack.c.b16 %v175, %v173
  %v300 = vpack.c.b16 %v176, %v174
  %v301 = vpack.c.b16 %v179, %v177
  %v302 = vpack.c.b16 %v180, %v178
  %v303 = vpack.c.b16 %v183, %v181
  %v304 = vpack.c.b16 %v184, %v182
  %v305 = vpack.c.b16 %v187, %v185
  %v306 = vpack.c.b16 %v188, %v186
  %v307 = vpack.c.b16 %v191, %v189
  %v308 = vpack.c.b16 %v192, %v190
  %v309 = vpack.c.b16 %v195, %v193
  %v310 = vpack.c.b16 %v196, %v194
  %v311 = vpack.c.b16 %v199, %v197
  %v312 = vpack.c.b16 %v200, %v198
  %v313 = vpack.c.b16 %v203, %v201
  %v314 = vpack.c.b16 %v204, %v202
  %v315 = vpack.c.b16 %v207, %v205
  %v316 = vpack.c.b16 %v208, %v206
  %v317 = vpack.c.b16 %v211, %v209
  %v318 = vpack.c.b16 %v212, %v210
  %v319 = vpack.c.b16 %v215, %v213
  %v320 = vpack.c.b16 %v216, %v214
  %v321 = vpack.c.b16 %v219, %v217
  %v322 = vpack.c.b16 %v220, %v218
  %v323 = vpack.c.b16 %v223, %v221
  %v324 = vpack.c.b16 %v224, %v222
  %v325 = vpack.c.b16 %v227, %v225
  %v326 = vpack.c.b16 %v228, %v226
  %v327 = vpack.c.b16 %v231, %v229
  %v328 = vpack.c.b16 %v232, %v230
  %v329 = vpack.c.b16 %v235, %v233
  %v330 = vpack.c.b16 %v236, %v234
  %v331 = vpack.c.b16 %v239, %v237
  %v332 = vpack.c.b16 %v240, %v238
  %v333 = vpack.c.b16 %v243, %v241
  %v334 = vpack.c.b16 %v244, %v242
  %v335 = vpack.c.b16 %v247, %v245
  %v336 = vpack.c.b16 %v248, %v246
  %v337 = vpack.c.b16 %v251, %v249
  %v338 = vpack.c.b16 %v252, %v250
  %v339 = vpack.c.b16 %v255, %v253
  %v340 = vpack.c.b16 %v256, %v254
  %v341 = vpack.c.b16 %v259, %v257
  %v342 = vpack.c.b16 %v260, %v258
  %v343 = vpack.c.b16 %v263, %v261
  %v344 = vpack.c.b16 %v264, %v262
  %v345 = vpack.c.b16 %v267, %v265
  %v346 = vpack.c.b16 %v268, %v266
  %v347 = vpack.c.b16 %v271, %v269
  %v348 = vpack.c.b16 %v272, %v270
  %v349 = vpack.c.b16 %v275, %v273
  %v350 = vpack.c.b16 %v276, %v274
  %v351 = vpack.c.b16 %v279, %v277
  %v352 = vpack.c.b16 %v280, %v278
  %v353 = vpack.c.b16 %v283, %v281
  %v354 = vpack.c.b16 %v284, %v282
  %v355 = vpack.c.b16 %v287, %v285
  %v356 = vpack.c.b16 %v288, %v286
  %v357 = vpack.c.b16 %v291, %v289
  %v358 = vpack.c.b16 %v292, %v290
  %v359 = vpack.c.b16 %v295, %v293
  %v360 = vpack.c.b16 %v296, %v294
  %425 = vmatprep.subr.bf16.mxu0 %v312
  %426 = vmatpush1.bf16.msra.mxu0 %v311
  %427 = vmatprep.subr.bf16.mxu0 %v310
  %428 = vmatpush1.bf16.msra.mxu0 %v309
  %429 = vmatprep.subr.bf16.mxu0 %v308
  %430 = vmatpush1.bf16.msra.mxu0 %v307
  %431 = vmatprep.subr.bf16.mxu0 %v306
  %432 = vmatpush1.bf16.msra.mxu0 %v305
  %433 = vmatprep.subr.bf16.mxu0 %v304
  %434 = vmatpush1.bf16.msra.mxu0 %v303
  %435 = vmatprep.subr.bf16.mxu0 %v302
  %436 = vmatpush1.bf16.msra.mxu0 %v301
  %437 = vmatprep.subr.bf16.mxu0 %v300
  %438 = vmatpush1.bf16.msra.mxu0 %v299
  %439 = vmatprep.subr.bf16.mxu0 %v298
  %440 = vmatpush1.bf16.msra.mxu0 %v297
  %441 = vmatprep.subr.bf16.mxu0 %v328
  %442 = vmatpush2.bf16.msra.mxu0 %v327
  %443 = vmatprep.subr.bf16.mxu0 %v326
  %444 = vmatpush2.bf16.msra.mxu0 %v325
  %445 = vmatprep.subr.bf16.mxu0 %v324
  %446 = vmatpush2.bf16.msra.mxu0 %v323
  %447 = vmatprep.subr.bf16.mxu0 %v322
  %448 = vmatpush2.bf16.msra.mxu0 %v321
  %449 = vmatprep.subr.bf16.mxu0 %v320
  %450 = vmatpush2.bf16.msra.mxu0 %v319
  %451 = vmatprep.subr.bf16.mxu0 %v318
  %452 = vmatpush2.bf16.msra.mxu0 %v317
  %453 = vmatprep.subr.bf16.mxu0 %v316
  %454 = vmatpush2.bf16.msra.mxu0 %v315
  %455 = vmatprep.subr.bf16.mxu0 %v314
  %456 = vmatpush2.bf16.msra.mxu0 %v313
  %457 = vmatprep.mubr.bf16.mxu0 %v98
  %458 = vmatmul.mubr.bf16.gmra.mxu0 %v97
  %v459 = vpop.f32.mrf.mxu0
  %v460 = vadd.f32 0.0, %v459
  %v461 = vpop.f32.mrf.mxu0
  %v462 = vadd.f32 0.0, %v461
  %v463 = vpop.f32.mrf.mxu0
  %v464 = vadd.f32 0.0, %v463
  %v465 = vpop.f32.mrf.mxu0
  %v466 = vadd.f32 0.0, %v465
  %467 = vdwg.mxu0
  %468 = vmatprep.subr.bf16.mxu0 %v344
  %469 = vmatpush1.bf16.msra.mxu0 %v343
  %470 = vmatprep.subr.bf16.mxu0 %v342
  %471 = vmatpush1.bf16.msra.mxu0 %v341
  %472 = vmatprep.subr.bf16.mxu0 %v340
  %473 = vmatpush1.bf16.msra.mxu0 %v339
  %474 = vmatprep.subr.bf16.mxu0 %v338
  %475 = vmatpush1.bf16.msra.mxu0 %v337
  %476 = vmatprep.subr.bf16.mxu0 %v336
  %477 = vmatpush1.bf16.msra.mxu0 %v335
  %478 = vmatprep.subr.bf16.mxu0 %v334
  %479 = vmatpush1.bf16.msra.mxu0 %v333
  %480 = vmatprep.subr.bf16.mxu0 %v332
  %481 = vmatpush1.bf16.msra.mxu0 %v331
  %482 = vmatprep.subr.bf16.mxu0 %v330
  %483 = vmatpush1.bf16.msra.mxu0 %v329
  %484 = vmatprep.subr.bf16.mxu0 %v360
  %485 = vmatpush2.bf16.msra.mxu0 %v359
  %486 = vmatprep.subr.bf16.mxu0 %v358
  %487 = vmatpush2.bf16.msra.mxu0 %v357
  %488 = vmatprep.subr.bf16.mxu0 %v356
  %489 = vmatpush2.bf16.msra.mxu0 %v355
  %490 = vmatprep.subr.bf16.mxu0 %v354
  %491 = vmatpush2.bf16.msra.mxu0 %v353
  %492 = vmatprep.subr.bf16.mxu0 %v352
  %493 = vmatpush2.bf16.msra.mxu0 %v351
  %494 = vmatprep.subr.bf16.mxu0 %v350
  %495 = vmatpush2.bf16.msra.mxu0 %v349
  %496 = vmatprep.subr.bf16.mxu0 %v348
  %497 = vmatpush2.bf16.msra.mxu0 %v347
  %498 = vmatprep.subr.bf16.mxu0 %v346
  %499 = vmatpush2.bf16.msra.mxu0 %v345
  %500 = vmatprep.mubr.bf16.mxu0 %v100
  %501 = vmatmul.mubr.bf16.gmra.mxu0 %v99
  %v502 = vpop.f32.mrf.mxu0
  %v503 = vadd.f32 %v460, %v502
  %v504 = vpop.f32.mrf.mxu0
  %v505 = vadd.f32 %v462, %v504
  %v506 = vpop.f32.mrf.mxu0
  %v507 = vadd.f32 %v464, %v506
  %v508 = vpop.f32.mrf.mxu0
  %v509 = vadd.f32 %v466, %v508
  %510 = vdwg.mxu0
  %v511 = vld [vmem:[%s2] sm:$0x3]
  %v513 = vlaneseq
  %v514 = vshrl.u32 %v513, 7
  %v515 = vsub.s32 0, %v514
  %v516 = vrot.slane %v511, %v515
  %v517 = vlaneseq
  %v518 = vshrl.u32 %v517, 7
  %v519 = vsub.s32 1, %v518
  %v520 = vrot.slane %v511, %v519
  %v523 = vmul.f32 %v503, %v516
  %v524 = vmul.f32 %v505, %v520
  %v525 = vmul.f32 %v507, %v516
  %v526 = vmul.f32 %v509, %v520
  %v527 = vld [vmem:[%s3] sm:$0x3]
  %v529 = vlaneseq
  %v530 = vshrl.u32 %v529, 7
  %v531 = vsub.s32 0, %v530
  %v532 = vrot.slane %v527, %v531
  %v533 = vlaneseq
  %v534 = vshrl.u32 %v533, 7
  %v535 = vsub.s32 1, %v534
  %v536 = vrot.slane %v527, %v535
  %v539 = vadd.f32 %v523, %v532
  %v540 = vadd.f32 %v524, %v536
  %v541 = vadd.f32 %v525, %v532
  %v542 = vadd.f32 %v526, %v536
  %v543 = vmax.f32 %v539, 0.0
  %v544 = vmax.f32 %v540, 0.0
  %v545 = vmax.f32 %v541, 0.0
  %v546 = vmax.f32 %v542, 0.0
  %v547 = vpack.c.bf16 %v545, %v543
  %v548 = vpack.c.bf16 %v546, %v544
  %v551 = vunpack.c.l.b16 %v547
  %v552 = vunpack.c.l.b16 %v548
  %v553 = vunpack.c.h.b16 %v547
  %v554 = vunpack.c.h.b16 %v548
  %v555 = vpack.c.b16 %v552, %v551
  %v556 = vpack.c.b16 %v554, %v553
  %559 = vst [vmem:[%s4] sm:$0xff] %v555
  %560 = vst [vmem:[%s4 + $0x8] sm:$0xff] %v556
  // Predicated region
  $region18: #{_lambda_.102} parent=0 // pred_check
    _
  $region19: #{_lambda_.102} parent=0 // pred_check_branch
    %562 = sbr.rel (0) target = $region21
  $region20: #{_lambda_.102} parent=0 // pred_region
    _
  $region21: #{_lambda_.102} parent=0 // pred_fallthru
    _
  // Predicated region
  $region22: #{_lambda_.102} parent=0 // pred_check
    _
  $region23: #{_lambda_.102} parent=0 // pred_check_branch
    %564 = sbr.rel (0) target = $region25
  $region24: #{_lambda_.102} parent=0 // pred_region
    _
  $region25: #{_lambda_.102} parent=0 // pred_fallthru
    _

// kernel: _lambda_.108
$region0: #{_lambda_.108}
  #allocation0 [shape = 'u32[]', space=smem, size = 0x4, offset = 0x4, fixed_abs, tag = 'smem constant byte address 0x4 - core index']
  #allocation1 [shape = 'u32[144,128]{1,0:T(1,128)}', space=vmem, size = 0x12000, scoped, tag = 'internal scratch']
  %s0 = inlined_call_operand.vmem [shape: bf16[2,1,512], index: 0, kind: input, shape index: {}]
  %s1 = inlined_call_operand.vmem [shape: f32[2,512], index: 1, kind: output, shape index: {}]
  %s2 = sld [smem:[#allocation0]]
  $region71: #{_lambda_.108} parent=0
    _
  %s4 = ssub.s32 1, %s2
  %s5 = scalar_select 0, %s4, %s2
  $region1: #{_lambda_.108} parent=0
    #allocation2 [shape = 'u8[4096]{0}', space=vmem, size = 0x1000, scoped, tag = 'input window, operand 0']
    loop: start=0, step=1, limit=4
    $region2: #{_lambda_.108} parent=1 // loop_pre_header
      _
    $region3: #{_lambda_.108} parent=1 // loop_header
      %s7 = sphi 0, %s11
      %p8 = scmp.ge.s32.totalorder %s7, 4
      %s17 = sphi 0, %s19
      %s20 = sphi 0, %s17
      %s21 = sphi 0, %s20
      %s37 = sphi 0, %s21
      %s43 = sphi 0, %s45
      %s46 = sphi 0, %s43
      %s47 = sphi 0, %s46
      %s63 = sphi 0, %s47
    $region4: #{_lambda_.108} parent=1 // loop_header_branch
      %10 = sbr.rel (%p8) target = $region8
    $region5: #{_lambda_.108} parent=1 // loop_body
      %s12 = ssub.s32 %s7, 1
      %s13 = ssub.s32 %s7, 2
      %s14 = sadd.s32 %s7, 1
      %s15 = ssub.s32 %s7, %s14
      %p16 = scmp.eq.s32.totalorder %s15, 0
      %s18 = sadd.s32 %s17, 1
      %s19 = scalar_select %p16, %s17, %s18
      %p22 = pneg %p16
      %p23 = scmp.eq.s32.totalorder %s7, 1
      %p24 = por %p22, %p23
      %p25 = scmp.ne.s32.totalorder %s17, %s20
      %p26 = scmp.eq.s32.totalorder %s7, 0
      %p27 = por %p25, %p26
      %p28 = scmp.ne.s32.totalorder %s17, %s20
      %p29 = scmp.eq.s32.totalorder %s12, 1
      %p30 = por %p28, %p29
      %p31 = scmp.ne.s32.totalorder %s20, %s21
      %p32 = scmp.eq.s32.totalorder %s12, 0
      %p33 = por %p31, %p32
      %p34 = scmp.ne.s32.totalorder %s20, %s21
      %p35 = scmp.eq.s32.totalorder %s13, 1
      %p36 = por %p34, %p35
      %p38 = scmp.ne.s32.totalorder %s21, %s37
      %p39 = scmp.eq.s32.totalorder %s13, 0
      %p40 = por %p38, %p39
      %s41 = ssub.s32 %s7, %s14
      %p42 = scmp.eq.s32.totalorder %s41, 0
      %s44 = sadd.s32 %s43, 1
      %s45 = scalar_select %p42, %s43, %s44
      %p48 = pneg %p42
      %p49 = scmp.eq.s32.totalorder %s7, 1
      %p50 = por %p48, %p49
      %p51 = scmp.ne.s32.totalorder %s43, %s46
      %p52 = scmp.eq.s32.totalorder %s7, 0
      %p53 = por %p51, %p52
      %p54 = scmp.ne.s32.totalorder %s43, %s46
      %p55 = scmp.eq.s32.totalorder %s12, 1
      %p56 = por %p54, %p55
      %p57 = scmp.ne.s32.totalorder %s46, %s47
      %p58 = scmp.eq.s32.totalorder %s12, 0
      %p59 = por %p57, %p58
      %p60 = scmp.ne.s32.totalorder %s46, %s47
      %p61 = scmp.eq.s32.totalorder %s13, 1
      %p62 = por %p60, %p61
      %p64 = scmp.ne.s32.totalorder %s47, %s63
      %p65 = scmp.eq.s32.totalorder %s13, 0
      %p66 = por %p64, %p65
      %p67 = scmp.le.s32.totalorder 1, %s7
      %p68 = scmp.lt.s32.totalorder %s7, 3
      %p69 = pnand %p67, %p68
      %p70 = pneg %p69
      // Predicated region
      $region9: #{_lambda_.108} parent=5 // pred_check
        _
      $region10: #{_lambda_.108} parent=5 // pred_check_branch
        %72 = sbr.rel (%p69) target = $region12
      $region11: #{_lambda_.108} parent=5 // pred_region
        %s73 = ssub.s32 %s7, 1
      $region12: #{_lambda_.108} parent=5 // pred_fallthru
        _
      %p74 = scmp.lt.s32.totalorder %s7, 2
      // Predicated region
      $region13: #{_lambda_.108} parent=5 // pred_check
        %p75 = pneg %p74
      $region14: #{_lambda_.108} parent=5 // pred_check_branch
        %77 = sbr.rel (%p75) target = $region16
      $region15: #{_lambda_.108} parent=5 // pred_region
        // Predicated region
        $region17: #{_lambda_.108} parent=15 // pred_check
          %p78 = pneg %p27
        $region18: #{_lambda_.108} parent=15 // pred_check_branch
          %80 = sbr.rel (%p78) target = $region20
        $region19: #{_lambda_.108} parent=15 // pred_region
          %s81 = sand.u32 %s17, 1
          %s82 = sand.u32 %s17, 1
          %s83 = smul.addr %s82, 4
          %s84 = scalar_lea.vmem [#allocation2], %s83
          %s85 = smul.u32 2, %s7
          %s86 = scalar_lea.vmem %s0, %s85
          // Predicated region
          $region21: #{_lambda_.108} parent=19 // pred_check
            _
          $region22: #{_lambda_.108} parent=19 // pred_check_branch
            %88 = sbr.rel (0) target = $region24
          $region23: #{_lambda_.108} parent=19 // pred_region
            // Predicated region
            $region25: #{_lambda_.108} parent=23 // pred_check
              _
            $region26: #{_lambda_.108} parent=23 // pred_check_branch
              %90 = sbr.rel target = $region28
            $region27: #{_lambda_.108} parent=23 // pred_region
              // Predicated region
              $region40: #{_lambda_.108} parent=27 // pred_check
                _
              $region41: #{_lambda_.108} parent=27 // pred_check_branch
                %108 = sbr.rel (0) target = $region43
              $region42: #{_lambda_.108} parent=27 // pred_region
                %s110 = ssub.s32 4, 1
                loop: start=0, step=1, limit=1
                $region44: #{_lambda_.108} parent=42 // loop_pre_header
                  _
                $region45: #{_lambda_.108} parent=42 // loop_header
                  %s112 = sphi 0, %s116
                  %p113 = scmp.ge.s32.totalorder %s112, 1
                  %s117 = sphi %s86, %s86
                  %s118 = sphi %s84, %s84
                $region46: #{_lambda_.108} parent=42 // loop_header_branch
                  %115 = sbr.rel (%p113) target = $region50
                $region47: #{_lambda_.108} parent=42 // loop_body
                  %v119 = vld [vmem:[%s117] sm:%s110]
                  %120 = vst [vmem:[%s118] sm:%s110] %v119
                  %v121 = vld [vmem:[%s117 + $0x4] sm:%s110]
                  %122 = vst [vmem:[%s118 + $0x2] sm:%s110] %v121
                $region48: #{_lambda_.108} parent=42 // loop_footer
                  %s116 = sadd.s32 1, %s112
                $region49: #{_lambda_.108} parent=42 // loop_footer_branch
                  %111 = sbr.rel target = $region45
                $region50: #{_lambda_.108} parent=42 // loop_exit
                  _
              $region43: #{_lambda_.108} parent=27 // pred_fallthru
                _
            $region28: #{_lambda_.108} parent=23 // pred_fallthru
              _
            // Predicated region
            $region29: #{_lambda_.108} parent=23 // pred_check
              _
            $region30: #{_lambda_.108} parent=23 // pred_check_branch
              %92 = sbr.rel (0) target = $region32
            $region31: #{_lambda_.108} parent=23 // pred_region
              %s94 = ssub.s32 4, 1
              loop: start=0, step=1, limit=1
              $region33: #{_lambda_.108} parent=31 // loop_pre_header
                _
              $region34: #{_lambda_.108} parent=31 // loop_header
                %s96 = sphi 0, %s100
                %p97 = scmp.ge.s32.totalorder %s96, 1
                %s101 = sphi %s86, %s86
                %s102 = sphi %s84, %s84
              $region35: #{_lambda_.108} parent=31 // loop_header_branch
                %99 = sbr.rel (%p97) target = $region39
              $region36: #{_lambda_.108} parent=31 // loop_body
                %v103 = vld [vmem:[%s101] sm:%s94]
                %104 = vst [vmem:[%s102] sm:%s94] %v103
                %v105 = vld [vmem:[%s101 + $0x4] sm:%s94]
                %106 = vst [vmem:[%s102 + $0x2] sm:%s94] %v105
              $region37: #{_lambda_.108} parent=31 // loop_footer
                %s100 = sadd.s32 1, %s96
              $region38: #{_lambda_.108} parent=31 // loop_footer_branch
                %95 = sbr.rel target = $region34
              $region39: #{_lambda_.108} parent=31 // loop_exit
                _
            $region32: #{_lambda_.108} parent=23 // pred_fallthru
              _
          $region24: #{_lambda_.108} parent=19 // pred_fallthru
            _
          %123 = vnop
        $region20: #{_lambda_.108} parent=15 // pred_fallthru
          _
      $region16: #{_lambda_.108} parent=5 // pred_fallthru
        _
      %p124 = scmp.le.s32.totalorder 1, %s7
      %p125 = scmp.lt.s32.totalorder %s7, 3
      %p126 = pnand %p124, %p125
      %p127 = pneg %p126
      // Predicated region
      $region51: #{_lambda_.108} parent=5 // pred_check
        _
      $region52: #{_lambda_.108} parent=5 // pred_check_branch
        %129 = sbr.rel (%p126) target = $region54
      $region53: #{_lambda_.108} parent=5 // pred_region
        %s130 = ssub.s32 %s7, 1
        %s131 = sand.u32 %s20, 1
        %s132 = sand.u32 %s20, 1
        %s133 = smul.addr %s132, 4
        %s134 = scalar_lea.vmem [#allocation2], %s133
        // Predicated region
        $region55: #{_lambda_.108} parent=53 // pred_check
          %p135 = pneg %p33
        $region56: #{_lambda_.108} parent=53 // pred_check_branch
          %137 = sbr.rel (%p135) target = $region58
        $region57: #{_lambda_.108} parent=53 // pred_region
          _
        $region58: #{_lambda_.108} parent=53 // pred_fallthru
          _
        %s138 = sand.u32 %s20, 1
        %s139 = sand.u32 %s20, 1
        %s140 = smul.addr %s139, 4
        %s141 = scalar_lea.vmem [#allocation2], %s140
        %p142 = pneg %p33
        %p143 = pneg %p30
        %p144 = pneg %p59
        %p145 = pneg %p56
        %s146 = smul.u32 2, %s12
        %p147 = scmp.lt.s32.totalorder %s146, 3
        %s148 = scalar_select %p147, %s146, 3
        %s149 = smul.addr %s148, 2
        %s150 = scalar_lea.vmem %s1, %s149
        %s151 = smul.u32 2, %s12
        %s152 = smul.u32 2, %s12
        %p153 = scmp.lt.s32.totalorder %s152, 3
        %s154 = scalar_select %p153, %s152, 3
        %s155 = smul.addr %s154, 2
        %s156 = scalar_lea.vmem %s1, %s155
        %s157 = smul.u32 2, %s12
        %v158 = vld [vmem:[%s134] sm:$0x3]
        %v159 = vld [vmem:[%s134 + $0x2] sm:$0x3]
        %v160 = vunpack.c.l.bf16 %v158
        %v161 = vunpack.c.l.bf16 %v159
        %v162 = vadd.f32 %v160, 0.0
        %v163 = vadd.f32 %v161, 0.0
        %vm166 = vcmask 1044484
        %v167 = vsel %vm166, %v162, %v162
        %vm168 = vcmask 1046534
        %v169 = vsel %vm168, %v162, %v167
        %v170 = vrot.slane %v163, 7
        %vm171 = vcmask 1041409
        %v172 = vsel %vm171, %v170, %v169
        %vm173 = vcmask 1043459
        %v174 = vsel %vm173, %v170, %v172
        %vm175 = vcmask 1045509
        %v176 = vsel %vm175, %v170, %v174
        %vm177 = vcmask 1047559
        %v178 = vsel %vm177, %v170, %v176
        %180 = vst [vmem:[%s156] sm:$0xf] %v178
        %s181 = smul.u32 2, %s12
        %p182 = scmp.lt.s32.totalorder %s181, 3
        %s183 = scalar_select %p182, %s181, 3
        %s184 = smul.addr %s183, 2
        %s185 = scalar_lea.vmem %s1, %s184
        // Predicated region
        $region59: #{_lambda_.108} parent=53 // pred_check
          %p186 = pneg %p56
        $region60: #{_lambda_.108} parent=53 // pred_check_branch
          %188 = sbr.rel (%p186) target = $region62
        $region61: #{_lambda_.108} parent=53 // pred_region
          %s189 = smul.u32 2, %s12
        $region62: #{_lambda_.108} parent=53 // pred_fallthru
          _
      $region54: #{_lambda_.108} parent=5 // pred_fallthru
        _
      %p190 = scmp.le.s32.totalorder 2, %s7
      // Predicated region
      $region63: #{_lambda_.108} parent=5 // pred_check
        %p191 = pneg %p190
      $region64: #{_lambda_.108} parent=5 // pred_check_branch
        %193 = sbr.rel (%p191) target = $region66
      $region65: #{_lambda_.108} parent=5 // pred_region
        %s194 = ssub.s32 %s7, 2
        // Predicated region
        $region67: #{_lambda_.108} parent=65 // pred_check
          %p195 = pneg %p62
        $region68: #{_lambda_.108} parent=65 // pred_check_branch
          %197 = sbr.rel (%p195) target = $region70
        $region69: #{_lambda_.108} parent=65 // pred_region
          %s198 = smul.u32 2, %s13
          %p199 = scmp.lt.s32.totalorder %s198, 3
          %s200 = scalar_select %p199, %s198, 3
          %s201 = smul.addr %s200, 2
          %s202 = scalar_lea.vmem %s1, %s201
        $region70: #{_lambda_.108} parent=65 // pred_fallthru
          _
      $region66: #{_lambda_.108} parent=5 // pred_fallthru
        _
    $region6: #{_lambda_.108} parent=1 // loop_footer
      %s11 = sadd.s32 1, %s7
    $region7: #{_lambda_.108} parent=1 // loop_footer_branch
      %6 = sbr.rel target = $region3
    $region8: #{_lambda_.108} parent=1 // loop_exit
      _

// kernel: _lambda_.109
$region0: #{_lambda_.109}
  #allocation0 [shape = 'u32[]', space=smem, size = 0x4, offset = 0x4, fixed_abs, tag = 'smem constant byte address 0x4 - core index']
  #allocation1 [shape = 'u32[144,128]{1,0:T(1,128)}', space=vmem, size = 0x12000, scoped, tag = 'internal scratch']
  %s0 = inlined_call_operand.vmem [shape: bf16[16,512], index: 0, kind: input, shape index: {}]
  %s1 = inlined_call_operand.vmem [shape: bf16[512,256], index: 1, kind: input, shape index: {}]
  %s2 = inlined_call_operand.vmem [shape: f32[1,256], index: 2, kind: input, shape index: {}]
  %s3 = inlined_call_operand.vmem [shape: f32[1,256], index: 3, kind: input, shape index: {}]
  %s4 = inlined_call_operand.vmem [shape: f32[16,256], index: 4, kind: output, shape index: {}]
  %s5 = sld [smem:[#allocation0]]
  $region26: #{_lambda_.109} parent=0
    _
  %s7 = ssub.s32 1, %s5
  %s8 = scalar_select 0, %s7, %s5
  // Predicated region
  $region2: #{_lambda_.109} parent=0 // pred_check
    _
  $region3: #{_lambda_.109} parent=0 // pred_check_branch
    %10 = sbr.rel (0) target = $region5
  $region4: #{_lambda_.109} parent=0 // pred_region
    _
  $region5: #{_lambda_.109} parent=0 // pred_fallthru
    _
  // Predicated region
  $region6: #{_lambda_.109} parent=0 // pred_check
    _
  $region7: #{_lambda_.109} parent=0 // pred_check_branch
    %12 = sbr.rel (0) target = $region9
  $region8: #{_lambda_.109} parent=0 // pred_region
    _
  $region9: #{_lambda_.109} parent=0 // pred_fallthru
    _
  // Predicated region
  $region10: #{_lambda_.109} parent=0 // pred_check
    _
  $region11: #{_lambda_.109} parent=0 // pred_check_branch
    %14 = sbr.rel (0) target = $region13
  $region12: #{_lambda_.109} parent=0 // pred_region
    _
  $region13: #{_lambda_.109} parent=0 // pred_fallthru
    _
  // Predicated region
  $region14: #{_lambda_.109} parent=0 // pred_check
    _
  $region15: #{_lambda_.109} parent=0 // pred_check_branch
    %16 = sbr.rel (0) target = $region17
  $region16: #{_lambda_.109} parent=0 // pred_region
    _
  $region17: #{_lambda_.109} parent=0 // pred_fallthru
    _
  %v17 = vld [vmem:[%s0] sm:$0xff]
  %v18 = vld [vmem:[%s0 + $0x8] sm:$0xff]
  %v19 = vld [vmem:[%s0 + $0x10] sm:$0xff]
  %v20 = vld [vmem:[%s0 + $0x18] sm:$0xff]
  %v21 = vld [vmem:[%s1] sm:$0xff]
  %v22 = vld [vmem:[%s1 + $0x8] sm:$0xff]
  %v23 = vld [vmem:[%s1 + $0x10] sm:$0xff]
  %v24 = vld [vmem:[%s1 + $0x18] sm:$0xff]
  %v25 = vld [vmem:[%s1 + $0x20] sm:$0xff]
  %v26 = vld [vmem:[%s1 + $0x28] sm:$0xff]
  %v27 = vld [vmem:[%s1 + $0x30] sm:$0xff]
  %v28 = vld [vmem:[%s1 + $0x38] sm:$0xff]
  %v29 = vld [vmem:[%s1 + $0x40] sm:$0xff]
  %v30 = vld [vmem:[%s1 + $0x48] sm:$0xff]
  %v31 = vld [vmem:[%s1 + $0x50] sm:$0xff]
  %v32 = vld [vmem:[%s1 + $0x58] sm:$0xff]
  %v33 = vld [vmem:[%s1 + $0x60] sm:$0xff]
  %v34 = vld [vmem:[%s1 + $0x68] sm:$0xff]
  %v35 = vld [vmem:[%s1 + $0x70] sm:$0xff]
  %v36 = vld [vmem:[%s1 + $0x78] sm:$0xff]
  %v37 = vld [vmem:[%s1 + $0x80] sm:$0xff]
  %v38 = vld [vmem:[%s1 + $0x88] sm:$0xff]
  %v39 = vld [vmem:[%s1 + $0x90] sm:$0xff]
  %v40 = vld [vmem:[%s1 + $0x98] sm:$0xff]
  %v41 = vld [vmem:[%s1 + $0xa0] sm:$0xff]
  %v42 = vld [vmem:[%s1 + $0xa8] sm:$0xff]
  %v43 = vld [vmem:[%s1 + $0xb0] sm:$0xff]
  %v44 = vld [vmem:[%s1 + $0xb8] sm:$0xff]
  %v45 = vld [vmem:[%s1 + $0xc0] sm:$0xff]
  %v46 = vld [vmem:[%s1 + $0xc8] sm:$0xff]
  %v47 = vld [vmem:[%s1 + $0xd0] sm:$0xff]
  %v48 = vld [vmem:[%s1 + $0xd8] sm:$0xff]
  %v49 = vld [vmem:[%s1 + $0xe0] sm:$0xff]
  %v50 = vld [vmem:[%s1 + $0xe8] sm:$0xff]
  %v51 = vld [vmem:[%s1 + $0xf0] sm:$0xff]
  %v52 = vld [vmem:[%s1 + $0xf8] sm:$0xff]
  %v53 = vld [vmem:[%s1 + $0x100] sm:$0xff]
  %v54 = vld [vmem:[%s1 + $0x108] sm:$0xff]
  %v55 = vld [vmem:[%s1 + $0x110] sm:$0xff]
  %v56 = vld [vmem:[%s1 + $0x118] sm:$0xff]
  %v57 = vld [vmem:[%s1 + $0x120] sm:$0xff]
  %v58 = vld [vmem:[%s1 + $0x128] sm:$0xff]
  %v59 = vld [vmem:[%s1 + $0x130] sm:$0xff]
  %v60 = vld [vmem:[%s1 + $0x138] sm:$0xff]
  %v61 = vld [vmem:[%s1 + $0x140] sm:$0xff]
  %v62 = vld [vmem:[%s1 + $0x148] sm:$0xff]
  %v63 = vld [vmem:[%s1 + $0x150] sm:$0xff]
  %v64 = vld [vmem:[%s1 + $0x158] sm:$0xff]
  %v65 = vld [vmem:[%s1 + $0x160] sm:$0xff]
  %v66 = vld [vmem:[%s1 + $0x168] sm:$0xff]
  %v67 = vld [vmem:[%s1 + $0x170] sm:$0xff]
  %v68 = vld [vmem:[%s1 + $0x178] sm:$0xff]
  %v69 = vld [vmem:[%s1 + $0x180] sm:$0xff]
  %v70 = vld [vmem:[%s1 + $0x188] sm:$0xff]
  %v71 = vld [vmem:[%s1 + $0x190] sm:$0xff]
  %v72 = vld [vmem:[%s1 + $0x198] sm:$0xff]
  %v73 = vld [vmem:[%s1 + $0x1a0] sm:$0xff]
  %v74 = vld [vmem:[%s1 + $0x1a8] sm:$0xff]
  %v75 = vld [vmem:[%s1 + $0x1b0] sm:$0xff]
  %v76 = vld [vmem:[%s1 + $0x1b8] sm:$0xff]
  %v77 = vld [vmem:[%s1 + $0x1c0] sm:$0xff]
  %v78 = vld [vmem:[%s1 + $0x1c8] sm:$0xff]
  %v79 = vld [vmem:[%s1 + $0x1d0] sm:$0xff]
  %v80 = vld [vmem:[%s1 + $0x1d8] sm:$0xff]
  %v81 = vld [vmem:[%s1 + $0x1e0] sm:$0xff]
  %v82 = vld [vmem:[%s1 + $0x1e8] sm:$0xff]
  %v83 = vld [vmem:[%s1 + $0x1f0] sm:$0xff]
  %v84 = vld [vmem:[%s1 + $0x1f8] sm:$0xff]
  %v89 = vunpack.c.l.b16 %v17
  %v90 = vunpack.c.h.b16 %v17
  %v91 = vunpack.c.l.b16 %v18
  %v92 = vunpack.c.h.b16 %v18
  %v93 = vunpack.c.l.b16 %v19
  %v94 = vunpack.c.h.b16 %v19
  %v95 = vunpack.c.l.b16 %v20
  %v96 = vunpack.c.h.b16 %v20
  %v97 = vpack.c.b16 %v93, %v89
  %v98 = vpack.c.b16 %v94, %v90
  %v99 = vpack.c.b16 %v95, %v91
  %v100 = vpack.c.b16 %v96, %v92
  %v169 = vunpack.c.l.b16 %v21
  %v170 = vunpack.c.h.b16 %v21
  %v171 = vunpack.c.l.b16 %v22
  %v172 = vunpack.c.h.b16 %v22
  %v173 = vunpack.c.l.b16 %v23
  %v174 = vunpack.c.h.b16 %v23
  %v175 = vunpack.c.l.b16 %v24
  %v176 = vunpack.c.h.b16 %v24
  %v177 = vunpack.c.l.b16 %v25
  %v178 = vunpack.c.h.b16 %v25
  %v179 = vunpack.c.l.b16 %v26
  %v180 = vunpack.c.h.b16 %v26
  %v181 = vunpack.c.l.b16 %v27
  %v182 = vunpack.c.h.b16 %v27
  %v183 = vunpack.c.l.b16 %v28
  %v184 = vunpack.c.h.b16 %v28
  %v185 = vunpack.c.l.b16 %v29
  %v186 = vunpack.c.h.b16 %v29
  %v187 = vunpack.c.l.b16 %v30
  %v188 = vunpack.c.h.b16 %v30
  %v189 = vunpack.c.l.b16 %v31
  %v190 = vunpack.c.h.b16 %v31
  %v191 = vunpack.c.l.b16 %v32
  %v192 = vunpack.c.h.b16 %v32
  %v193 = vunpack.c.l.b16 %v33
  %v194 = vunpack.c.h.b16 %v33
  %v195 = vunpack.c.l.b16 %v34
  %v196 = vunpack.c.h.b16 %v34
  %v197 = vunpack.c.l.b16 %v35
  %v198 = vunpack.c.h.b16 %v35
  %v199 = vunpack.c.l.b16 %v36
  %v200 = vunpack.c.h.b16 %v36
  %v201 = vunpack.c.l.b16 %v37
  %v202 = vunpack.c.h.b16 %v37
  %v203 = vunpack.c.l.b16 %v38
  %v204 = vunpack.c.h.b16 %v38
  %v205 = vunpack.c.l.b16 %v39
  %v206 = vunpack.c.h.b16 %v39
  %v207 = vunpack.c.l.b16 %v40
  %v208 = vunpack.c.h.b16 %v40
  %v209 = vunpack.c.l.b16 %v41
  %v210 = vunpack.c.h.b16 %v41
  %v211 = vunpack.c.l.b16 %v42
  %v212 = vunpack.c.h.b16 %v42
  %v213 = vunpack.c.l.b16 %v43
  %v214 = vunpack.c.h.b16 %v43
  %v215 = vunpack.c.l.b16 %v44
  %v216 = vunpack.c.h.b16 %v44
  %v217 = vunpack.c.l.b16 %v45
  %v218 = vunpack.c.h.b16 %v45
  %v219 = vunpack.c.l.b16 %v46
  %v220 = vunpack.c.h.b16 %v46
  %v221 = vunpack.c.l.b16 %v47
  %v222 = vunpack.c.h.b16 %v47
  %v223 = vunpack.c.l.b16 %v48
  %v224 = vunpack.c.h.b16 %v48
  %v225 = vunpack.c.l.b16 %v49
  %v226 = vunpack.c.h.b16 %v49
  %v227 = vunpack.c.l.b16 %v50
  %v228 = vunpack.c.h.b16 %v50
  %v229 = vunpack.c.l.b16 %v51
  %v230 = vunpack.c.h.b16 %v51
  %v231 = vunpack.c.l.b16 %v52
  %v232 = vunpack.c.h.b16 %v52
  %v233 = vunpack.c.l.b16 %v53
  %v234 = vunpack.c.h.b16 %v53
  %v235 = vunpack.c.l.b16 %v54
  %v236 = vunpack.c.h.b16 %v54
  %v237 = vunpack.c.l.b16 %v55
  %v238 = vunpack.c.h.b16 %v55
  %v239 = vunpack.c.l.b16 %v56
  %v240 = vunpack.c.h.b16 %v56
  %v241 = vunpack.c.l.b16 %v57
  %v242 = vunpack.c.h.b16 %v57
  %v243 = vunpack.c.l.b16 %v58
  %v244 = vunpack.c.h.b16 %v58
  %v245 = vunpack.c.l.b16 %v59
  %v246 = vunpack.c.h.b16 %v59
  %v247 = vunpack.c.l.b16 %v60
  %v248 = vunpack.c.h.b16 %v60
  %v249 = vunpack.c.l.b16 %v61
  %v250 = vunpack.c.h.b16 %v61
  %v251 = vunpack.c.l.b16 %v62
  %v252 = vunpack.c.h.b16 %v62
  %v253 = vunpack.c.l.b16 %v63
  %v254 = vunpack.c.h.b16 %v63
  %v255 = vunpack.c.l.b16 %v64
  %v256 = vunpack.c.h.b16 %v64
  %v257 = vunpack.c.l.b16 %v65
  %v258 = vunpack.c.h.b16 %v65
  %v259 = vunpack.c.l.b16 %v66
  %v260 = vunpack.c.h.b16 %v66
  %v261 = vunpack.c.l.b16 %v67
  %v262 = vunpack.c.h.b16 %v67
  %v263 = vunpack.c.l.b16 %v68
  %v264 = vunpack.c.h.b16 %v68
  %v265 = vunpack.c.l.b16 %v69
  %v266 = vunpack.c.h.b16 %v69
  %v267 = vunpack.c.l.b16 %v70
  %v268 = vunpack.c.h.b16 %v70
  %v269 = vunpack.c.l.b16 %v71
  %v270 = vunpack.c.h.b16 %v71
  %v271 = vunpack.c.l.b16 %v72
  %v272 = vunpack.c.h.b16 %v72
  %v273 = vunpack.c.l.b16 %v73
  %v274 = vunpack.c.h.b16 %v73
  %v275 = vunpack.c.l.b16 %v74
  %v276 = vunpack.c.h.b16 %v74
  %v277 = vunpack.c.l.b16 %v75
  %v278 = vunpack.c.h.b16 %v75
  %v279 = vunpack.c.l.b16 %v76
  %v280 = vunpack.c.h.b16 %v76
  %v281 = vunpack.c.l.b16 %v77
  %v282 = vunpack.c.h.b16 %v77
  %v283 = vunpack.c.l.b16 %v78
  %v284 = vunpack.c.h.b16 %v78
  %v285 = vunpack.c.l.b16 %v79
  %v286 = vunpack.c.h.b16 %v79
  %v287 = vunpack.c.l.b16 %v80
  %v288 = vunpack.c.h.b16 %v80
  %v289 = vunpack.c.l.b16 %v81
  %v290 = vunpack.c.h.b16 %v81
  %v291 = vunpack.c.l.b16 %v82
  %v292 = vunpack.c.h.b16 %v82
  %v293 = vunpack.c.l.b16 %v83
  %v294 = vunpack.c.h.b16 %v83
  %v295 = vunpack.c.l.b16 %v84
  %v296 = vunpack.c.h.b16 %v84
  %v297 = vpack.c.b16 %v171, %v169
  %v298 = vpack.c.b16 %v172, %v170
  %v299 = vpack.c.b16 %v175, %v173
  %v300 = vpack.c.b16 %v176, %v174
  %v301 = vpack.c.b16 %v179, %v177
  %v302 = vpack.c.b16 %v180, %v178
  %v303 = vpack.c.b16 %v183, %v181
  %v304 = vpack.c.b16 %v184, %v182
  %v305 = vpack.c.b16 %v187, %v185
  %v306 = vpack.c.b16 %v188, %v186
  %v307 = vpack.c.b16 %v191, %v189
  %v308 = vpack.c.b16 %v192, %v190
  %v309 = vpack.c.b16 %v195, %v193
  %v310 = vpack.c.b16 %v196, %v194
  %v311 = vpack.c.b16 %v199, %v197
  %v312 = vpack.c.b16 %v200, %v198
  %v313 = vpack.c.b16 %v203, %v201
  %v314 = vpack.c.b16 %v204, %v202
  %v315 = vpack.c.b16 %v207, %v205
  %v316 = vpack.c.b16 %v208, %v206
  %v317 = vpack.c.b16 %v211, %v209
  %v318 = vpack.c.b16 %v212, %v210
  %v319 = vpack.c.b16 %v215, %v213
  %v320 = vpack.c.b16 %v216, %v214
  %v321 = vpack.c.b16 %v219, %v217
  %v322 = vpack.c.b16 %v220, %v218
  %v323 = vpack.c.b16 %v223, %v221
  %v324 = vpack.c.b16 %v224, %v222
  %v325 = vpack.c.b16 %v227, %v225
  %v326 = vpack.c.b16 %v228, %v226
  %v327 = vpack.c.b16 %v231, %v229
  %v328 = vpack.c.b16 %v232, %v230
  %v329 = vpack.c.b16 %v235, %v233
  %v330 = vpack.c.b16 %v236, %v234
  %v331 = vpack.c.b16 %v239, %v237
  %v332 = vpack.c.b16 %v240, %v238
  %v333 = vpack.c.b16 %v243, %v241
  %v334 = vpack.c.b16 %v244, %v242
  %v335 = vpack.c.b16 %v247, %v245
  %v336 = vpack.c.b16 %v248, %v246
  %v337 = vpack.c.b16 %v251, %v249
  %v338 = vpack.c.b16 %v252, %v250
  %v339 = vpack.c.b16 %v255, %v253
  %v340 = vpack.c.b16 %v256, %v254
  %v341 = vpack.c.b16 %v259, %v257
  %v342 = vpack.c.b16 %v260, %v258
  %v343 = vpack.c.b16 %v263, %v261
  %v344 = vpack.c.b16 %v264, %v262
  %v345 = vpack.c.b16 %v267, %v265
  %v346 = vpack.c.b16 %v268, %v266
  %v347 = vpack.c.b16 %v271, %v269
  %v348 = vpack.c.b16 %v272, %v270
  %v349 = vpack.c.b16 %v275, %v273
  %v350 = vpack.c.b16 %v276, %v274
  %v351 = vpack.c.b16 %v279, %v277
  %v352 = vpack.c.b16 %v280, %v278
  %v353 = vpack.c.b16 %v283, %v281
  %v354 = vpack.c.b16 %v284, %v282
  %v355 = vpack.c.b16 %v287, %v285
  %v356 = vpack.c.b16 %v288, %v286
  %v357 = vpack.c.b16 %v291, %v289
  %v358 = vpack.c.b16 %v292, %v290
  %v359 = vpack.c.b16 %v295, %v293
  %v360 = vpack.c.b16 %v296, %v294
  %425 = vmatprep.subr.bf16.mxu0 %v312
  %426 = vmatpush1.bf16.msra.mxu0 %v311
  %427 = vmatprep.subr.bf16.mxu0 %v310
  %428 = vmatpush1.bf16.msra.mxu0 %v309
  %429 = vmatprep.subr.bf16.mxu0 %v308
  %430 = vmatpush1.bf16.msra.mxu0 %v307
  %431 = vmatprep.subr.bf16.mxu0 %v306
  %432 = vmatpush1.bf16.msra.mxu0 %v305
  %433 = vmatprep.subr.bf16.mxu0 %v304
  %434 = vmatpush1.bf16.msra.mxu0 %v303
  %435 = vmatprep.subr.bf16.mxu0 %v302
  %436 = vmatpush1.bf16.msra.mxu0 %v301
  %437 = vmatprep.subr.bf16.mxu0 %v300
  %438 = vmatpush1.bf16.msra.mxu0 %v299
  %439 = vmatprep.subr.bf16.mxu0 %v298
  %440 = vmatpush1.bf16.msra.mxu0 %v297
  %441 = vmatprep.subr.bf16.mxu0 %v328
  %442 = vmatpush2.bf16.msra.mxu0 %v327
  %443 = vmatprep.subr.bf16.mxu0 %v326
  %444 = vmatpush2.bf16.msra.mxu0 %v325
  %445 = vmatprep.subr.bf16.mxu0 %v324
  %446 = vmatpush2.bf16.msra.mxu0 %v323
  %447 = vmatprep.subr.bf16.mxu0 %v322
  %448 = vmatpush2.bf16.msra.mxu0 %v321
  %449 = vmatprep.subr.bf16.mxu0 %v320
  %450 = vmatpush2.bf16.msra.mxu0 %v319
  %451 = vmatprep.subr.bf16.mxu0 %v318
  %452 = vmatpush2.bf16.msra.mxu0 %v317
  %453 = vmatprep.subr.bf16.mxu0 %v316
  %454 = vmatpush2.bf16.msra.mxu0 %v315
  %455 = vmatprep.subr.bf16.mxu0 %v314
  %456 = vmatpush2.bf16.msra.mxu0 %v313
  %457 = vmatprep.mubr.bf16.mxu0 %v98
  %458 = vmatmul.mubr.bf16.gmra.mxu0 %v97
  %v459 = vpop.f32.mrf.mxu0
  %v460 = vadd.f32 0.0, %v459
  %v461 = vpop.f32.mrf.mxu0
  %v462 = vadd.f32 0.0, %v461
  %v463 = vpop.f32.mrf.mxu0
  %v464 = vadd.f32 0.0, %v463
  %v465 = vpop.f32.mrf.mxu0
  %v466 = vadd.f32 0.0, %v465
  %467 = vdwg.mxu0
  %468 = vmatprep.subr.bf16.mxu0 %v344
  %469 = vmatpush1.bf16.msra.mxu0 %v343
  %470 = vmatprep.subr.bf16.mxu0 %v342
  %471 = vmatpush1.bf16.msra.mxu0 %v341
  %472 = vmatprep.subr.bf16.mxu0 %v340
  %473 = vmatpush1.bf16.msra.mxu0 %v339
  %474 = vmatprep.subr.bf16.mxu0 %v338
  %475 = vmatpush1.bf16.msra.mxu0 %v337
  %476 = vmatprep.subr.bf16.mxu0 %v336
  %477 = vmatpush1.bf16.msra.mxu0 %v335
  %478 = vmatprep.subr.bf16.mxu0 %v334
  %479 = vmatpush1.bf16.msra.mxu0 %v333
  %480 = vmatprep.subr.bf16.mxu0 %v332
  %481 = vmatpush1.bf16.msra.mxu0 %v331
  %482 = vmatprep.subr.bf16.mxu0 %v330
  %483 = vmatpush1.bf16.msra.mxu0 %v329
  %484 = vmatprep.subr.bf16.mxu0 %v360
  %485 = vmatpush2.bf16.msra.mxu0 %v359
  %486 = vmatprep.subr.bf16.mxu0 %v358
  %487 = vmatpush2.bf16.msra.mxu0 %v357
  %488 = vmatprep.subr.bf16.mxu0 %v356
  %489 = vmatpush2.bf16.msra.mxu0 %v355
  %490 = vmatprep.subr.bf16.mxu0 %v354
  %491 = vmatpush2.bf16.msra.mxu0 %v353
  %492 = vmatprep.subr.bf16.mxu0 %v352
  %493 = vmatpush2.bf16.msra.mxu0 %v351
  %494 = vmatprep.subr.bf16.mxu0 %v350
  %495 = vmatpush2.bf16.msra.mxu0 %v349
  %496 = vmatprep.subr.bf16.mxu0 %v348
  %497 = vmatpush2.bf16.msra.mxu0 %v347
  %498 = vmatprep.subr.bf16.mxu0 %v346
  %499 = vmatpush2.bf16.msra.mxu0 %v345
  %500 = vmatprep.mubr.bf16.mxu0 %v100
  %501 = vmatmul.mubr.bf16.gmra.mxu0 %v99
  %v502 = vpop.f32.mrf.mxu0
  %v503 = vadd.f32 %v460, %v502
  %v504 = vpop.f32.mrf.mxu0
  %v505 = vadd.f32 %v462, %v504
  %v506 = vpop.f32.mrf.mxu0
  %v507 = vadd.f32 %v464, %v506
  %v508 = vpop.f32.mrf.mxu0
  %v509 = vadd.f32 %v466, %v508
  %510 = vdwg.mxu0
  %v511 = vld [vmem:[%s2] sm:$0x3]
  %v513 = vlaneseq
  %v514 = vshrl.u32 %v513, 7
  %v515 = vsub.s32 0, %v514
  %v516 = vrot.slane %v511, %v515
  %v517 = vlaneseq
  %v518 = vshrl.u32 %v517, 7
  %v519 = vsub.s32 1, %v518
  %v520 = vrot.slane %v511, %v519
  %v523 = vmul.f32 %v503, %v516
  %v524 = vmul.f32 %v505, %v520
  %v525 = vmul.f32 %v507, %v516
  %v526 = vmul.f32 %v509, %v520
  %v527 = vld [vmem:[%s3] sm:$0x3]
  %v529 = vlaneseq
  %v530 = vshrl.u32 %v529, 7
  %v531 = vsub.s32 0, %v530
  %v532 = vrot.slane %v527, %v531
  %v533 = vlaneseq
  %v534 = vshrl.u32 %v533, 7
  %v535 = vsub.s32 1, %v534
  %v536 = vrot.slane %v527, %v535
  %v539 = vadd.f32 %v523, %v532
  %v540 = vadd.f32 %v524, %v536
  %v541 = vadd.f32 %v525, %v532
  %v542 = vadd.f32 %v526, %v536
  %543 = vst [vmem:[%s4] sm:$0xff] %v539
  %544 = vst [vmem:[%s4 + $0x8] sm:$0xff] %v540
  %545 = vst [vmem:[%s4 + $0x10] sm:$0xff] %v541
  %546 = vst [vmem:[%s4 + $0x18] sm:$0xff] %v542
  // Predicated region
  $region18: #{_lambda_.109} parent=0 // pred_check
    _
  $region19: #{_lambda_.109} parent=0 // pred_check_branch
    %548 = sbr.rel (0) target = $region21
  $region20: #{_lambda_.109} parent=0 // pred_region
    _
  $region21: #{_lambda_.109} parent=0 // pred_fallthru
    _
  // Predicated region
  $region22: #{_lambda_.109} parent=0 // pred_check
    _
  $region23: #{_lambda_.109} parent=0 // pred_check_branch
    %550 = sbr.rel (0) target = $region25
  $region24: #{_lambda_.109} parent=0 // pred_region
    _
  $region25: #{_lambda_.109} parent=0 // pred_fallthru
    _

</llo_original>
